<compile_context>
chip_gen: v7x
topology: tpu7x:2x2x1
jax: 0.10.0
libtpu: 0.0.40
codegen_flags: <defaults>
</compile_context>

<pallas_src>
import math

import jax
import jax.numpy as jnp
from jax.experimental import pallas as pl
from jax.experimental.pallas import tpu as pltpu


def _round_up(x, m):
    return ((x + m - 1) // m) * m


def _vmem_capacity_bytes():
    try:
        info = pltpu.get_tpu_info()
        cap = getattr(info, "vmem_capacity_bytes", None)
        if cap:
            return int(cap)
    except Exception:
        pass
    return 64 * 1024 * 1024  # conservative: v7x per-TensorCore VMEM


# ----------------------------------------------------------------------------
# Parameter init (deterministic, matches PyTorch module shapes / default init)
# ----------------------------------------------------------------------------
def init_params(key, embed_size, hidden_size, output_size):
    E, H, V = embed_size, hidden_size, output_size
    ks = jax.random.split(key, 10)

    def uni(k, shape, bound):
        return jax.random.uniform(k, shape, jnp.float32, -bound, bound)

    embed_w = jax.random.normal(ks[0], (V, E), jnp.float32)          # nn.Embedding

    b_lin = 1.0 / math.sqrt(2 * H)
    attn_W = uni(ks[1], (H, 2 * H), b_lin)                           # attn Linear(2H,H)
    attn_b = uni(ks[2], (H,), b_lin)
    v = uni(ks[3], (H,), 1.0 / math.sqrt(H))                         # attention vector

    bg = 1.0 / math.sqrt(H)                                          # GRU(H+E -> H)
    W_ih = uni(ks[4], (3 * H, E + H), bg)
    W_hh = uni(ks[5], (3 * H, H), bg)
    b_ih = uni(ks[6], (3 * H,), bg)
    b_hh = uni(ks[7], (3 * H,), bg)

    bo_ = 1.0 / math.sqrt(2 * H)
    out_W = uni(ks[8], (V, 2 * H), bo_)                              # out Linear(2H,V)
    out_b = uni(ks[9], (V,), bo_)

    return dict(embed_w=embed_w, attn_W=attn_W, attn_b=attn_b, v=v,
                W_ih=W_ih, W_hh=W_hh, b_ih=b_ih, b_hh=b_hh,
                out_W=out_W, out_b=out_b)


# ----------------------------------------------------------------------------
# Wrapper: pad/pack weights (lane-aligned), build the kernel, pallas_call
# ----------------------------------------------------------------------------
def attn_decoder_forward(params, input_ids, last_hidden, encoder_outputs):
    # input_ids: (B,) int32 ; last_hidden: (1, B, H) ; encoder_outputs: (T, B, H)
    E = params['embed_w'].shape[1]
    T, B, H = encoder_outputs.shape
    V = params['out_W'].shape[0]

    f32, bf16 = jnp.float32, jnp.bfloat16

    B_pad = _round_up(B, 8)
    T_pad = _round_up(T, 128)
    H_pad = _round_up(H, 128)
    E_pad = _round_up(E, 128)

    # ---- VMEM-budget-aware streamed vocab tile ------------------------------
    vmem_cap = _vmem_capacity_bytes()
    # Resident (constant-index) bytes; counted x2 so the fallback path
    # (default double-buffered constants) still fits the computed limit.
    resident = 2 * (
        B_pad * T_pad * H_pad * 2                          # enc (bf16)
        + 2 * H_pad * H_pad * 2                            # wah + wae
        + (E_pad + 2 * H_pad) * 3 * H_pad * 2              # wxe + wxc + whh
        + B_pad * E_pad * 2 + B_pad * H_pad * 4            # emb, hid
        + 8 * 4 * H_pad                                    # small bias rows
    )
    resident += B_pad * (2 * H_pad) * 2 + 2 * B_pad * 4    # scratch
    resident += B_pad * (H_pad + T_pad + 128) * 4          # resident outputs
    # Streamed bytes per vocab column: double-buffered wo (bf16) + bo (f32)
    # tiles + double-buffered streamed logits tile (f32).
    per_col = 2 * (2 * H_pad * 2 + 1 * 4 + B_pad * 4)
    budget = int(0.70 * vmem_cap)
    tile_cap = max((budget - resident) // per_col, 128)
    TILE_V = max(128, min(4096, (tile_cap // 128) * 128, _round_up(V, 128)))
    V_pad = _round_up(V, TILE_V)
    num_v = V_pad // TILE_V

    need = resident + per_col * TILE_V + 4 * 1024 * 1024
    vmem_limit = int(min(max(need, 32 * 1024 * 1024), 0.9 * vmem_cap))

    # ---- activations (padded, batch-major) ----
    embedded = jnp.take(params['embed_w'], input_ids, axis=0).astype(f32)   # (B,E)
    # TODO(synk): nn.Dropout omitted — eval-mode identity (no RNG applied).
    emb_p = jnp.zeros((B_pad, E_pad), f32).at[:B, :E].set(embedded).astype(bf16)

    hid = last_hidden[-1].astype(f32)                                       # (B,H)
    hid_p = jnp.zeros((B_pad, H_pad), f32).at[:B, :H].set(hid)

    enc_bf = jnp.transpose(encoder_outputs, (1, 0, 2)).astype(f32)          # (B,T,H)
    enc_p = jnp.zeros((B_pad, T_pad, H_pad), f32).at[:B, :T, :H].set(enc_bf)
    enc2d = enc_p.reshape(B_pad * T_pad, H_pad).astype(bf16)                # (B*Tp,Hp)

    # ---- attention weights (Linear(2H->H) split into hidden / encoder parts) ----
    attn_W = params['attn_W']                                               # (H, 2H)
    wah = jnp.zeros((H_pad, H_pad), f32).at[:H, :H].set(attn_W[:, :H].T).astype(bf16)
    wae = jnp.zeros((H_pad, H_pad), f32).at[:H, :H].set(attn_W[:, H:].T).astype(bf16)
    ba = jnp.zeros((1, H_pad), f32).at[0, :H].set(params['attn_b'])
    vv = jnp.zeros((1, H_pad), f32).at[0, :H].set(params['v'])

    # ---- GRU weights: W_ih split into emb / context column blocks, per-gate
    #      128-aligned columns (gate g lives in columns [g*H_pad, g*H_pad+H)) ----
    W_ih, W_hh = params['W_ih'], params['W_hh']                             # (3H,E+H),(3H,H)
    b_ih, b_hh = params['b_ih'], params['b_hh']
    wxe = jnp.zeros((E_pad, 3 * H_pad), f32)
    wxc = jnp.zeros((H_pad, 3 * H_pad), f32)
    whh = jnp.zeros((H_pad, 3 * H_pad), f32)
    bih = jnp.zeros((1, 3 * H_pad), f32)
    bhh = jnp.zeros((1, 3 * H_pad), f32)
    for g in range(3):                                                      # r, z, n
        Wg = W_ih[g * H:(g + 1) * H]                                        # (H, E+H)
        wxe = wxe.at[:E, g * H_pad:g * H_pad + H].set(Wg[:, :E].T)
        wxc = wxc.at[:H, g * H_pad:g * H_pad + H].set(Wg[:, E:].T)
        whh = whh.at[:H, g * H_pad:g * H_pad + H].set(W_hh[g * H:(g + 1) * H].T)
        bih = bih.at[0, g * H_pad:g * H_pad + H].set(b_ih[g * H:(g + 1) * H])
        bhh = bhh.at[0, g * H_pad:g * H_pad + H].set(b_hh[g * H:(g + 1) * H])
    wxe, wxc, whh = wxe.astype(bf16), wxc.astype(bf16), whh.astype(bf16)

    # ---- output head: fused [h_new ; context] weight, streamed over V ----
    out_W, out_b = params['out_W'], params['out_b']                         # (V,2H),(V,)
    wo = jnp.zeros((2 * H_pad, V_pad), f32)
    wo = wo.at[:H, :V].set(out_W[:, :H].T)
    wo = wo.at[H_pad:H_pad + H, :V].set(out_W[:, H:].T)
    wo = wo.astype(bf16)
    # -1e30 bias on padded vocab columns keeps them out of the log-sum-exp.
    bo = jnp.full((1, V_pad), -1e30, f32).at[0, :V].set(out_b)

    # ------------------------------------------------------------------
    # Kernel (closes over the static padded dims).  Grid axis j tiles V.
    # ------------------------------------------------------------------
    def kernel(emb_ref, hid_ref, enc_ref, wah_ref, wae_ref, ba_ref, v_ref,
               wxe_ref, wxc_ref, whh_ref, bih_ref, bhh_ref, wo_ref, bo_ref,
               logits_ref, lse_ref, nh_ref, aw_ref,
               x2h_scr, m_scr, l_scr):
        j = pl.program_id(0)
        Hp = H_pad

        # ---- attention + GRU once, on the first vocab tile ----
        @pl.when(j == 0)
        def _attention_and_gru():
            h32 = hid_ref[...]                                   # (B,Hp) f32
            hbf = h32.astype(jnp.bfloat16)
            emb_bf = emb_ref[...]                                # (B,Ep) bf16

            # Context-independent MXU work first (overlaps the attention
            # softmax dependency chain).
            gi_x = jnp.dot(emb_bf, wxe_ref[...],
                           preferred_element_type=jnp.float32)              # (B,3Hp)
            gh = jnp.dot(hbf, whh_ref[...],
                         preferred_element_type=jnp.float32) + bhh_ref[...]  # (B,3Hp)
            part_h = jnp.dot(hbf, wah_ref[...],
                             preferred_element_type=jnp.float32)            # (B,Hp)

            # energy = relu(h @ Wh + enc @ We + b)  (MXU, fp32 accumulate)
            enc2 = enc_ref[...]                                  # (B*Tp,Hp) bf16
            part_e = jnp.dot(enc2, wae_ref[...],
                             preferred_element_type=jnp.float32)            # (B*Tp,Hp)
            energy = jnp.maximum(
                part_e.reshape(B_pad, T_pad, H_pad)
                + part_h[:, None, :] + ba_ref[...][None, :, :], 0.0)        # (B,Tp,Hp)

            # TODO(synk): score reduction kept on VPU/XLU (mult by v + lane
            # reduce); the MXU (B*T,H)@(H,1) form needs a sublane->lane
            # relayout of the tiny (B,T) result which is not worth it here.
            scores = jnp.sum(energy * v_ref[...][None, :, :], axis=-1)      # (B,Tp)
            t_idx = jax.lax.broadcasted_iota(jnp.int32, scores.shape, 1)
            scores = jnp.where(t_idx < T, scores, -1e30)                    # mask pad T

            m = jnp.max(scores, axis=1, keepdims=True)
            ex = jnp.exp(scores - m)
            denom = jnp.sum(ex, axis=1, keepdims=True)
            aw = ex * pl.reciprocal(denom, approx=True)                     # (B,Tp)
            aw_ref[...] = aw

            # context = attention-weighted sum over T  -> batched MXU matmul
            enc3 = enc2.reshape(B_pad, T_pad, H_pad)
            ctx = jnp.einsum('bqt,bth->bqh',
                             aw[:, None, :].astype(jnp.bfloat16), enc3,
                             preferred_element_type=jnp.float32)
            ctx = ctx.reshape(B_pad, H_pad)                                 # (B,Hp) f32
            ctx_bf = ctx.astype(jnp.bfloat16)

            # single-step GRU (PyTorch gate order r, z, n); no concat scratch
            gi = (gi_x + jnp.dot(ctx_bf, wxc_ref[...],
                                 preferred_element_type=jnp.float32)
                  + bih_ref[...])
            r = jax.nn.sigmoid(gi[:, 0:Hp] + gh[:, 0:Hp])
            z = jax.nn.sigmoid(gi[:, Hp:2 * Hp] + gh[:, Hp:2 * Hp])
            n = jnp.tanh(gi[:, 2 * Hp:3 * Hp] + r * gh[:, 2 * Hp:3 * Hp])
            h_new = (1.0 - z) * n + z * h32                                 # (B,Hp)
            nh_ref[...] = h_new

            # stash [h_new ; context] (bf16) for the streamed output head
            x2h_scr[:, 0:Hp] = h_new.astype(jnp.bfloat16)
            x2h_scr[:, Hp:2 * Hp] = ctx_bf
            m_scr[...] = jnp.full((B_pad, 1), -1e30, jnp.float32)
            l_scr[...] = jnp.zeros((B_pad, 1), jnp.float32)

        # ---- streamed output-projection tile + online log-sum-exp ----
        logits = (jnp.dot(x2h_scr[...], wo_ref[...],
                          preferred_element_type=jnp.float32)
                  + bo_ref[...])                                            # (B,TILE_V)
        logits_ref[...] = logits                                            # streamed out
        m_prev = m_scr[...]
        m_new = jnp.maximum(m_prev, jnp.max(logits, axis=1, keepdims=True))
        l_scr[...] = (l_scr[...] * jnp.exp(m_prev - m_new)
                      + jnp.sum(jnp.exp(logits - m_new), axis=1, keepdims=True))
        m_scr[...] = m_new

        # ---- emit the log-sum-exp once; log_softmax subtraction in wrapper ----
        @pl.when(j == pl.num_programs(0) - 1)
        def _finalize():
            lse_ref[...] = m_scr[...] + jnp.log(l_scr[...])                 # (B,1)

    const_shapes = [
        (B_pad, E_pad),              # emb
        (B_pad, H_pad),              # hid
        (B_pad * T_pad, H_pad),      # enc
        (H_pad, H_pad),              # wah
        (H_pad, H_pad),              # wae
        (1, H_pad),                  # ba
        (1, H_pad),                  # v
        (E_pad, 3 * H_pad),          # wxe
        (H_pad, 3 * H_pad),          # wxc
        (H_pad, 3 * H_pad),          # whh
        (1, 3 * H_pad),              # bih
        (1, 3 * H_pad),              # bhh
    ]

    def _run(single_buffer_constants):
        def const_spec(shape):
            if single_buffer_constants:
                return pl.BlockSpec(shape, lambda j: (0, 0),
                                    pipeline_mode=pl.Buffered(1))
            return pl.BlockSpec(shape, lambda j: (0, 0))

        in_specs = [const_spec(s) for s in const_shapes] + [
            pl.BlockSpec((2 * H_pad, TILE_V), lambda j: (0, j)),            # wo (streamed)
            pl.BlockSpec((1, TILE_V), lambda j: (0, j)),                    # bo (streamed)
        ]
        out_specs = [
            pl.BlockSpec((B_pad, TILE_V), lambda j: (0, j)),                # logits (streamed)
            pl.BlockSpec((B_pad, 1), lambda j: (0, 0)),                     # lse
            pl.BlockSpec((B_pad, H_pad), lambda j: (0, 0)),                 # new hidden
            pl.BlockSpec((B_pad, T_pad), lambda j: (0, 0)),                 # attn weights
        ]
        grid_spec = pltpu.PrefetchScalarGridSpec(
            num_scalar_prefetch=0,
            grid=(num_v,),
            in_specs=in_specs,
            out_specs=out_specs,
            scratch_shapes=[
                pltpu.VMEM((B_pad, 2 * H_pad), jnp.bfloat16),               # [h_new; ctx]
                pltpu.VMEM((B_pad, 1), jnp.float32),                        # running max
                pltpu.VMEM((B_pad, 1), jnp.float32),                        # running sumexp
            ],
        )
        outs = pl.pallas_call(
            kernel,
            out_shape=(jax.ShapeDtypeStruct((B_pad, V_pad), jnp.float32),
                       jax.ShapeDtypeStruct((B_pad, 1), jnp.float32),
                       jax.ShapeDtypeStruct((B_pad, H_pad), jnp.float32),
                       jax.ShapeDtypeStruct((B_pad, T_pad), jnp.float32)),
            grid_spec=grid_spec,
            compiler_params=pltpu.CompilerParams(
                # V axis carries the online log-sum-exp state -> sequential.
                dimension_semantics=("arbitrary",),
                vmem_limit_bytes=vmem_limit),
        )(emb_p, hid_p, enc2d, wah, wae, ba, vv, wxe, wxc, whh, bih, bhh, wo, bo)
        return jax.block_until_ready(outs)

    try:
        logits_full, lse, nh_full, aw_full = _run(True)
    except Exception:
        # pl.Buffered(1) single-buffering of resident operands not available
        # on this jax version -> fall back to default double buffering.
        logits_full, lse, nh_full, aw_full = _run(False)

    logp = logits_full[:B, :V] - lse[:B]          # log_softmax = logits - lse
    hidden = nh_full[:B, :H][None, :, :]          # (1, B, H) like PyTorch GRU hidden
    attn_weights = aw_full[:B, :T][:, None, :]    # (B, 1, T)
    return logp, hidden, attn_weights


# ----------------------------------------------------------------------------
# Pure-JAX fp32 reference (mirrors the PyTorch forward) for a correctness check
# ----------------------------------------------------------------------------
def reference_forward(params, input_ids, last_hidden, encoder_outputs):
    T, B, H = encoder_outputs.shape
    embedded = jnp.take(params['embed_w'], input_ids, axis=0)        # (B, E)
    hidden = last_hidden[-1]                                         # (B, H)
    enc_bf = jnp.transpose(encoder_outputs, (1, 0, 2))               # (B, T, H)

    h_rep = jnp.broadcast_to(hidden[:, None, :], (B, T, H))
    cat = jnp.concatenate([h_rep, enc_bf], axis=2)                   # (B, T, 2H)
    energy = jax.nn.relu(jnp.einsum('bti,oi->bto', cat, params['attn_W'])
                         + params['attn_b'])
    scores = jnp.einsum('bth,h->bt', energy, params['v'])
    aw = jax.nn.softmax(scores, axis=1)                              # (B, T)
    context = jnp.einsum('bt,bth->bh', aw, enc_bf)                   # (B, H)

    x = jnp.concatenate([embedded, context], axis=1)                 # (B, E+H)
    gi = x @ params['W_ih'].T + params['b_ih']
    gh = hidden @ params['W_hh'].T + params['b_hh']
    r = jax.nn.sigmoid(gi[:, :H] + gh[:, :H])
    z = jax.nn.sigmoid(gi[:, H:2 * H] + gh[:, H:2 * H])
    n = jnp.tanh(gi[:, 2 * H:] + r * gh[:, 2 * H:])
    h_new = (1.0 - z) * n + z * hidden

    out_in = jnp.concatenate([h_new, context], axis=1)
    logits = out_in @ params['out_W'].T + params['out_b']
    logp = jax.nn.log_softmax(logits, axis=1)
    return logp, h_new[None], aw[:, None, :]


if __name__ == "__main__":
    embed_size, hidden_size, output_size = 16, 32, 32
    B, T = 2, 8

    key = jax.random.PRNGKey(0)
    pkey, k1, k2, k3 = jax.random.split(key, 4)
    params = init_params(pkey, embed_size, hidden_size, output_size)

    input_ids = jax.random.randint(k1, (B,), 0, output_size, dtype=jnp.int32)
    last_hidden = jax.random.normal(k2, (1, B, hidden_size), jnp.float32)
    encoder_outputs = jax.random.normal(k3, (T, B, hidden_size), jnp.float32)

    logp, hidden, attn_w = attn_decoder_forward(params, input_ids,
                                                last_hidden, encoder_outputs)
    jax.block_until_ready((logp, hidden, attn_w))

    ref_logp, ref_hidden, ref_aw = reference_forward(params, input_ids,
                                                     last_hidden, encoder_outputs)
    assert logp.shape == (B, output_size)
    assert hidden.shape == (1, B, hidden_size)
    assert attn_w.shape == (B, 1, T)
    # bf16 MXU operands -> bf16-level tolerances (elementwise math stays fp32).
    assert jnp.allclose(logp, ref_logp, atol=5e-2, rtol=5e-2), "log-softmax mismatch"
    assert jnp.allclose(hidden, ref_hidden, atol=5e-2, rtol=5e-2), "GRU hidden mismatch"
    assert jnp.allclose(attn_w, ref_aw, atol=2e-2), "attention weights mismatch"

    print("KERNEL_OK")
</pallas_src>

<mosaic_0001>
module attributes {stable_mosaic.version = 11 : i64} {
  func.func @kernel(%arg0: i32, %arg1: memref<8x128xbf16, #tpu.memory_space<vmem>>, %arg2: memref<8x128xf32, #tpu.memory_space<vmem>>, %arg3: memref<1024x128xbf16, #tpu.memory_space<vmem>>, %arg4: memref<128x128xbf16, #tpu.memory_space<vmem>>, %arg5: memref<128x128xbf16, #tpu.memory_space<vmem>>, %arg6: memref<1x128xf32, #tpu.memory_space<vmem>>, %arg7: memref<1x128xf32, #tpu.memory_space<vmem>>, %arg8: memref<128x384xbf16, #tpu.memory_space<vmem>>, %arg9: memref<128x384xbf16, #tpu.memory_space<vmem>>, %arg10: memref<128x384xbf16, #tpu.memory_space<vmem>>, %arg11: memref<1x384xf32, #tpu.memory_space<vmem>>, %arg12: memref<1x384xf32, #tpu.memory_space<vmem>>, %arg13: memref<256x128xbf16, #tpu.memory_space<vmem>>, %arg14: memref<1x128xf32, #tpu.memory_space<vmem>>, %arg15: memref<8x128xf32, #tpu.memory_space<vmem>>, %arg16: memref<8x1xf32, #tpu.memory_space<vmem>>, %arg17: memref<8x128xf32, #tpu.memory_space<vmem>>, %arg18: memref<8x128xf32, #tpu.memory_space<vmem>>, %arg19: memref<8x256xbf16, #tpu.memory_space<vmem>>, %arg20: memref<8x1xf32, #tpu.memory_space<vmem>>, %arg21: memref<8x1xf32, #tpu.memory_space<vmem>>) attributes {dimension_semantics = [#tpu.dimension_semantics<arbitrary>], iteration_bounds = array<i64: 1>, scalar_prefetch = 0 : i64, scratch_operands = 3 : i64, tpu.core_type = #tpu.core_type<tc>, window_params = [{pipeline_mode = #tpu.pipeline_mode<synchronous>, transform_indices = @transform_0, window_bounds = array<i64: 8, 128>}, {pipeline_mode = #tpu.pipeline_mode<synchronous>, transform_indices = @transform_1, window_bounds = array<i64: 8, 128>}, {pipeline_mode = #tpu.pipeline_mode<synchronous>, transform_indices = @transform_2, window_bounds = array<i64: 1024, 128>}, {pipeline_mode = #tpu.pipeline_mode<synchronous>, transform_indices = @transform_3, window_bounds = array<i64: 128, 128>}, {pipeline_mode = #tpu.pipeline_mode<synchronous>, transform_indices = @transform_4, window_bounds = array<i64: 128, 128>}, {pipeline_mode = #tpu.pipeline_mode<synchronous>, transform_indices = @transform_5, window_bounds = array<i64: 1, 128>}, {pipeline_mode = #tpu.pipeline_mode<synchronous>, transform_indices = @transform_6, window_bounds = array<i64: 1, 128>}, {pipeline_mode = #tpu.pipeline_mode<synchronous>, transform_indices = @transform_7, window_bounds = array<i64: 128, 384>}, {pipeline_mode = #tpu.pipeline_mode<synchronous>, transform_indices = @transform_8, window_bounds = array<i64: 128, 384>}, {pipeline_mode = #tpu.pipeline_mode<synchronous>, transform_indices = @transform_9, window_bounds = array<i64: 128, 384>}, {pipeline_mode = #tpu.pipeline_mode<synchronous>, transform_indices = @transform_10, window_bounds = array<i64: 1, 384>}, {pipeline_mode = #tpu.pipeline_mode<synchronous>, transform_indices = @transform_11, window_bounds = array<i64: 1, 384>}, {transform_indices = @transform_12, window_bounds = array<i64: 256, 128>}, {transform_indices = @transform_13, window_bounds = array<i64: 1, 128>}, {transform_indices = @transform_14, window_bounds = array<i64: 8, 128>}, {pipeline_mode = #tpu.pipeline_mode<synchronous>, transform_indices = @transform_15, window_bounds = array<i64: 8, 1>}, {pipeline_mode = #tpu.pipeline_mode<synchronous>, transform_indices = @transform_16, window_bounds = array<i64: 8, 128>}, {pipeline_mode = #tpu.pipeline_mode<synchronous>, transform_indices = @transform_17, window_bounds = array<i64: 8, 128>}]} {
    %c0_i32 = arith.constant 0 : i32
    %0 = arith.cmpi eq, %arg0, %c0_i32 : i32
    %1 = arith.extui %0 : i1 to i32
    %c0_i32_0 = arith.constant 0 : i32
    %2 = arith.cmpi ne, %1, %c0_i32_0 : i32
    scf.if %2 {
      %c0_20 = arith.constant 0 : index
      %c0_21 = arith.constant 0 : index
      %29 = vector.load %arg2[%c0_20, %c0_21] : memref<8x128xf32, #tpu.memory_space<vmem>>, vector<8x128xf32>
      %30 = arith.truncf %29 : vector<8x128xf32> to vector<8x128xbf16>
      %c0_22 = arith.constant 0 : index
      %c0_23 = arith.constant 0 : index
      %31 = vector.load %arg1[%c0_22, %c0_23] : memref<8x128xbf16, #tpu.memory_space<vmem>>, vector<8x128xbf16>
      %c0_24 = arith.constant 0 : index
      %c0_25 = arith.constant 0 : index
      %32 = vector.load %arg8[%c0_24, %c0_25] : memref<128x384xbf16, #tpu.memory_space<vmem>>, vector<128x384xbf16>
      %cst_26 = arith.constant dense<0.000000e+00> : vector<8x384xf32>
      %33 = tpu.matmul %31, %32, %cst_26 {dimension_numbers = #tpu.dot_dimension_numbers<[1], [0], [0], [1], [0, 0, 1, 1], [], []>} : vector<8x128xbf16>, vector<128x384xbf16>, vector<8x384xf32> -> vector<8x384xf32>
      %c0_27 = arith.constant 0 : index
      %c0_28 = arith.constant 0 : index
      %34 = vector.load %arg10[%c0_27, %c0_28] : memref<128x384xbf16, #tpu.memory_space<vmem>>, vector<128x384xbf16>
      %cst_29 = arith.constant dense<0.000000e+00> : vector<8x384xf32>
      %35 = tpu.matmul %30, %34, %cst_29 {dimension_numbers = #tpu.dot_dimension_numbers<[1], [0], [0], [1], [0, 0, 1, 1], [], []>} : vector<8x128xbf16>, vector<128x384xbf16>, vector<8x384xf32> -> vector<8x384xf32>
      %c0_30 = arith.constant 0 : index
      %c0_31 = arith.constant 0 : index
      %36 = vector.load %arg12[%c0_30, %c0_31] : memref<1x384xf32, #tpu.memory_space<vmem>>, vector<1x384xf32>
      %37 = vector.broadcast %36 : vector<1x384xf32> to vector<8x384xf32>
      %38 = arith.addf %35, %37 : vector<8x384xf32>
      %c0_32 = arith.constant 0 : index
      %c0_33 = arith.constant 0 : index
      %39 = vector.load %arg4[%c0_32, %c0_33] : memref<128x128xbf16, #tpu.memory_space<vmem>>, vector<128x128xbf16>
      %cst_34 = arith.constant dense<0.000000e+00> : vector<8x128xf32>
      %40 = tpu.matmul %30, %39, %cst_34 {dimension_numbers = #tpu.dot_dimension_numbers<[1], [0], [0], [1], [0, 0, 1, 1], [], []>} : vector<8x128xbf16>, vector<128x128xbf16>, vector<8x128xf32> -> vector<8x128xf32>
      %c0_35 = arith.constant 0 : index
      %c0_36 = arith.constant 0 : index
      %41 = vector.load %arg3[%c0_35, %c0_36] : memref<1024x128xbf16, #tpu.memory_space<vmem>>, vector<1024x128xbf16>
      %c0_37 = arith.constant 0 : index
      %c0_38 = arith.constant 0 : index
      %42 = vector.load %arg5[%c0_37, %c0_38] : memref<128x128xbf16, #tpu.memory_space<vmem>>, vector<128x128xbf16>
      %cst_39 = arith.constant dense<0.000000e+00> : vector<1024x128xf32>
      %43 = tpu.matmul %41, %42, %cst_39 {dimension_numbers = #tpu.dot_dimension_numbers<[1], [0], [0], [1], [0, 0, 1, 1], [], []>} : vector<1024x128xbf16>, vector<128x128xbf16>, vector<1024x128xf32> -> vector<1024x128xf32>
      %44 = vector.shape_cast %43 : vector<1024x128xf32> to vector<8x128x128xf32>
      %45 = vector.shape_cast %40 : vector<8x128xf32> to vector<8x1x128xf32>
      %46 = vector.broadcast %45 : vector<8x1x128xf32> to vector<8x128x128xf32>
      %47 = arith.addf %44, %46 : vector<8x128x128xf32>
      %c0_40 = arith.constant 0 : index
      %c0_41 = arith.constant 0 : index
      %48 = vector.load %arg6[%c0_40, %c0_41] : memref<1x128xf32, #tpu.memory_space<vmem>>, vector<1x128xf32>
      %49 = vector.shape_cast %48 : vector<1x128xf32> to vector<1x1x128xf32>
      %50 = vector.broadcast %49 : vector<1x1x128xf32> to vector<8x128x128xf32>
      %51 = arith.addf %47, %50 : vector<8x128x128xf32>
      %cst_42 = arith.constant 0.000000e+00 : f32
      %52 = vector.broadcast %cst_42 : f32 to vector<8x128x128xf32>
      %53 = arith.maximumf %51, %52 : vector<8x128x128xf32>
      %c0_43 = arith.constant 0 : index
      %c0_44 = arith.constant 0 : index
      %54 = vector.load %arg7[%c0_43, %c0_44] : memref<1x128xf32, #tpu.memory_space<vmem>>, vector<1x128xf32>
      %55 = vector.shape_cast %54 : vector<1x128xf32> to vector<1x1x128xf32>
      %56 = vector.broadcast %55 : vector<1x1x128xf32> to vector<8x128x128xf32>
      %57 = arith.mulf %53, %56 : vector<8x128x128xf32>
      %cst_45 = arith.constant dense<0.000000e+00> : vector<8x128xf32>
      %58 = vector.multi_reduction <add>, %57, %cst_45 [2] : vector<8x128x128xf32> to vector<8x128xf32>
      %59 = tpu.iota {dimensions = array<i32: 1>} : vector<8x128xi32>
      %c8_i32 = arith.constant 8 : i32
      %60 = vector.broadcast %c8_i32 : i32 to vector<8x128xi32>
      %61 = arith.cmpi slt, %59, %60 : vector<8x128xi32>
      %cst_46 = arith.constant -1.000000e+30 : f32
      %62 = vector.broadcast %cst_46 : f32 to vector<8x128xf32>
      %63 = arith.select %61, %58, %62 : vector<8x128xi1>, vector<8x128xf32>
      %cst_47 = arith.constant dense<0xFF800000> : vector<8xf32>
      %64 = vector.multi_reduction <maximumf>, %63, %cst_47 [1] : vector<8x128xf32> to vector<8xf32>
      %65 = vector.shape_cast %64 : vector<8xf32> to vector<8x1xf32>
      %66 = vector.broadcast %65 : vector<8x1xf32> to vector<8x128xf32>
      %67 = arith.subf %63, %66 : vector<8x128xf32>
      %68 = math.exp %67 : vector<8x128xf32>
      %cst_48 = arith.constant dense<0.000000e+00> : vector<8xf32>
      %69 = vector.multi_reduction <add>, %68, %cst_48 [1] : vector<8x128xf32> to vector<8xf32>
      %70 = vector.shape_cast %69 : vector<8xf32> to vector<8x1xf32>
      %71 = tpu.reciprocal %70 {approx = true} : vector<8x1xf32> -> vector<8x1xf32>
      %72 = vector.broadcast %71 : vector<8x1xf32> to vector<8x128xf32>
      %73 = arith.mulf %68, %72 : vector<8x128xf32>
      %c0_49 = arith.constant 0 : index
      %c0_50 = arith.constant 0 : index
      %74 = vector.load %arg18[%c0_49, %c0_50] : memref<8x128xf32, #tpu.memory_space<vmem>>, vector<8x128xf32>
      tpu.vector_store %arg18[%c0_49, %c0_50], %73 {strides = array<i32>} : memref<8x128xf32, #tpu.memory_space<vmem>>, vector<8x128xf32>,
      %75 = vector.shape_cast %41 : vector<1024x128xbf16> to vector<8x128x128xbf16>
      %76 = vector.shape_cast %73 : vector<8x128xf32> to vector<8x1x128xf32>
      %77 = arith.truncf %76 : vector<8x1x128xf32> to vector<8x1x128xbf16>
      "tpu.trace_start"() <{level = 10 : i32, message = "bqt,bth->bqh"}> : () -> ()
      %cst_51 = arith.constant dense<0.000000e+00> : vector<8x1x128xf32>
      %78 = tpu.matmul %77, %75, %cst_51 {dimension_numbers = #tpu.dot_dimension_numbers<[2], [1], [1], [2], [0, 0, 0, 1, 1, 2], [0], [0]>} : vector<8x1x128xbf16>, vector<8x128x128xbf16>, vector<8x1x128xf32> -> vector<8x1x128xf32>
      "tpu.trace_stop"() : () -> ()
      %79 = vector.shape_cast %78 : vector<8x1x128xf32> to vector<8x128xf32>
      %80 = arith.truncf %79 : vector<8x128xf32> to vector<8x128xbf16>
      %c0_52 = arith.constant 0 : index
      %c0_53 = arith.constant 0 : index
      %81 = vector.load %arg9[%c0_52, %c0_53] : memref<128x384xbf16, #tpu.memory_space<vmem>>, vector<128x384xbf16>
      %cst_54 = arith.constant dense<0.000000e+00> : vector<8x384xf32>
      %82 = tpu.matmul %80, %81, %cst_54 {dimension_numbers = #tpu.dot_dimension_numbers<[1], [0], [0], [1], [0, 0, 1, 1], [], []>} : vector<8x128xbf16>, vector<128x384xbf16>, vector<8x384xf32> -> vector<8x384xf32>
      %83 = arith.addf %33, %82 : vector<8x384xf32>
      %c0_55 = arith.constant 0 : index
      %c0_56 = arith.constant 0 : index
      %84 = vector.load %arg11[%c0_55, %c0_56] : memref<1x384xf32, #tpu.memory_space<vmem>>, vector<1x384xf32>
      %85 = vector.broadcast %84 : vector<1x384xf32> to vector<8x384xf32>
      %86 = arith.addf %83, %85 : vector<8x384xf32>
      %87 = vector.extract_strided_slice %86 {offsets = [0, 0], sizes = [8, 128], strides = [1, 1]} : vector<8x384xf32> to vector<8x128xf32>
      %88 = vector.extract_strided_slice %38 {offsets = [0, 0], sizes = [8, 128], strides = [1, 1]} : vector<8x384xf32> to vector<8x128xf32>
      %89 = arith.addf %87, %88 : vector<8x128xf32>
      %90 = arith.negf %89 : vector<8x128xf32>
      %91 = math.exp %90 : vector<8x128xf32>
      %cst_57 = arith.constant 1.000000e+00 : f32
      %92 = vector.broadcast %cst_57 : f32 to vector<8x128xf32>
      %93 = arith.addf %92, %91 : vector<8x128xf32>
      %94 = arith.divf %92, %93 : vector<8x128xf32>
      %95 = vector.extract_strided_slice %86 {offsets = [0, 128], sizes = [8, 128], strides = [1, 1]} : vector<8x384xf32> to vector<8x128xf32>
      %96 = vector.extract_strided_slice %38 {offsets = [0, 128], sizes = [8, 128], strides = [1, 1]} : vector<8x384xf32> to vector<8x128xf32>
      %97 = arith.addf %95, %96 : vector<8x128xf32>
      %98 = arith.negf %97 : vector<8x128xf32>
      %99 = math.exp %98 : vector<8x128xf32>
      %cst_58 = arith.constant 1.000000e+00 : f32
      %100 = vector.broadcast %cst_58 : f32 to vector<8x128xf32>
      %101 = arith.addf %100, %99 : vector<8x128xf32>
      %102 = arith.divf %100, %101 : vector<8x128xf32>
      %103 = vector.extract_strided_slice %86 {offsets = [0, 256], sizes = [8, 128], strides = [1, 1]} : vector<8x384xf32> to vector<8x128xf32>
      %104 = vector.extract_strided_slice %38 {offsets = [0, 256], sizes = [8, 128], strides = [1, 1]} : vector<8x384xf32> to vector<8x128xf32>
      %105 = arith.mulf %94, %104 : vector<8x128xf32>
      %106 = arith.addf %103, %105 : vector<8x128xf32>
      %107 = math.tanh %106 : vector<8x128xf32>
      %cst_59 = arith.constant 1.000000e+00 : f32
      %108 = vector.broadcast %cst_59 : f32 to vector<8x128xf32>
      %109 = arith.subf %108, %102 : vector<8x128xf32>
      %110 = arith.mulf %109, %107 : vector<8x128xf32>
      %111 = arith.mulf %102, %29 : vector<8x128xf32>
      %112 = arith.addf %110, %111 : vector<8x128xf32>
      %c0_60 = arith.constant 0 : index
      %c0_61 = arith.constant 0 : index
      %113 = vector.load %arg17[%c0_60, %c0_61] : memref<8x128xf32, #tpu.memory_space<vmem>>, vector<8x128xf32>
      tpu.vector_store %arg17[%c0_60, %c0_61], %112 {strides = array<i32>} : memref<8x128xf32, #tpu.memory_space<vmem>>, vector<8x128xf32>,
      %114 = arith.truncf %112 : vector<8x128xf32> to vector<8x128xbf16>
      %c0_62 = arith.constant 0 : index
      %c0_63 = arith.constant 0 : index
      %115 = vector.load %arg19[%c0_62, %c0_63] : memref<8x256xbf16, #tpu.memory_space<vmem>>, vector<8x128xbf16>
      tpu.vector_store %arg19[%c0_62, %c0_63], %114 {strides = array<i32>} : memref<8x256xbf16, #tpu.memory_space<vmem>>, vector<8x128xbf16>,
      %c0_64 = arith.constant 0 : index
      %c128 = arith.constant 128 : index
      %116 = vector.load %arg19[%c0_64, %c128] : memref<8x256xbf16, #tpu.memory_space<vmem>>, vector<8x128xbf16>
      tpu.vector_store %arg19[%c0_64, %c128], %80 {strides = array<i32>} : memref<8x256xbf16, #tpu.memory_space<vmem>>, vector<8x128xbf16>,
      %cst_65 = arith.constant -1.000000e+30 : f32
      %117 = vector.broadcast %cst_65 : f32 to vector<8x1xf32>
      %c0_66 = arith.constant 0 : index
      %c0_67 = arith.constant 0 : index
      %118 = vector.load %arg20[%c0_66, %c0_67] : memref<8x1xf32, #tpu.memory_space<vmem>>, vector<8x1xf32>
      tpu.vector_store %arg20[%c0_66, %c0_67], %117 {strides = array<i32>} : memref<8x1xf32, #tpu.memory_space<vmem>>, vector<8x1xf32>,
      %cst_68 = arith.constant 0.000000e+00 : f32
      %119 = vector.broadcast %cst_68 : f32 to vector<8x1xf32>
      %c0_69 = arith.constant 0 : index
      %c0_70 = arith.constant 0 : index
      %120 = vector.load %arg21[%c0_69, %c0_70] : memref<8x1xf32, #tpu.memory_space<vmem>>, vector<8x1xf32>
      tpu.vector_store %arg21[%c0_69, %c0_70], %119 {strides = array<i32>} : memref<8x1xf32, #tpu.memory_space<vmem>>, vector<8x1xf32>,
    } else {
    }
    %c0 = arith.constant 0 : index
    %c0_1 = arith.constant 0 : index
    %3 = vector.load %arg19[%c0, %c0_1] : memref<8x256xbf16, #tpu.memory_space<vmem>>, vector<8x256xbf16>
    %c0_2 = arith.constant 0 : index
    %c0_3 = arith.constant 0 : index
    %4 = vector.load %arg13[%c0_2, %c0_3] : memref<256x128xbf16, #tpu.memory_space<vmem>>, vector<256x128xbf16>
    %cst = arith.constant dense<0.000000e+00> : vector<8x128xf32>
    %5 = tpu.matmul %3, %4, %cst {dimension_numbers = #tpu.dot_dimension_numbers<[1], [0], [0], [1], [0, 0, 1, 1], [], []>} : vector<8x256xbf16>, vector<256x128xbf16>, vector<8x128xf32> -> vector<8x128xf32>
    %c0_4 = arith.constant 0 : index
    %c0_5 = arith.constant 0 : index
    %6 = vector.load %arg14[%c0_4, %c0_5] : memref<1x128xf32, #tpu.memory_space<vmem>>, vector<1x128xf32>
    %7 = vector.broadcast %6 : vector<1x128xf32> to vector<8x128xf32>
    %8 = arith.addf %5, %7 : vector<8x128xf32>
    %c0_6 = arith.constant 0 : index
    %c0_7 = arith.constant 0 : index
    %9 = vector.load %arg15[%c0_6, %c0_7] : memref<8x128xf32, #tpu.memory_space<vmem>>, vector<8x128xf32>
    tpu.vector_store %arg15[%c0_6, %c0_7], %8 {strides = array<i32>} : memref<8x128xf32, #tpu.memory_space<vmem>>, vector<8x128xf32>,
    %c0_8 = arith.constant 0 : index
    %c0_9 = arith.constant 0 : index
    %10 = vector.load %arg20[%c0_8, %c0_9] : memref<8x1xf32, #tpu.memory_space<vmem>>, vector<8x1xf32>
    %cst_10 = arith.constant dense<0xFF800000> : vector<8xf32>
    %11 = vector.multi_reduction <maximumf>, %8, %cst_10 [1] : vector<8x128xf32> to vector<8xf32>
    %12 = vector.shape_cast %11 : vector<8xf32> to vector<8x1xf32>
    %13 = arith.maximumf %10, %12 : vector<8x1xf32>
    %c0_11 = arith.constant 0 : index
    %c0_12 = arith.constant 0 : index
    %14 = vector.load %arg21[%c0_11, %c0_12] : memref<8x1xf32, #tpu.memory_space<vmem>>, vector<8x1xf32>
    %15 = arith.subf %10, %13 : vector<8x1xf32>
    %16 = math.exp %15 : vector<8x1xf32>
    %17 = arith.mulf %14, %16 : vector<8x1xf32>
    %18 = vector.broadcast %13 : vector<8x1xf32> to vector<8x128xf32>
    %19 = arith.subf %8, %18 : vector<8x128xf32>
    %20 = math.exp %19 : vector<8x128xf32>
    %cst_13 = arith.constant dense<0.000000e+00> : vector<8xf32>
    %21 = vector.multi_reduction <add>, %20, %cst_13 [1] : vector<8x128xf32> to vector<8xf32>
    %22 = vector.shape_cast %21 : vector<8xf32> to vector<8x1xf32>
    %23 = arith.addf %17, %22 : vector<8x1xf32>
    %c0_14 = arith.constant 0 : index
    %c0_15 = arith.constant 0 : index
    %24 = vector.load %arg21[%c0_14, %c0_15] : memref<8x1xf32, #tpu.memory_space<vmem>>, vector<8x1xf32>
    tpu.vector_store %arg21[%c0_14, %c0_15], %23 {strides = array<i32>} : memref<8x1xf32, #tpu.memory_space<vmem>>, vector<8x1xf32>,
    %c0_16 = arith.constant 0 : index
    %c0_17 = arith.constant 0 : index
    %25 = vector.load %arg20[%c0_16, %c0_17] : memref<8x1xf32, #tpu.memory_space<vmem>>, vector<8x1xf32>
    tpu.vector_store %arg20[%c0_16, %c0_17], %13 {strides = array<i32>} : memref<8x1xf32, #tpu.memory_space<vmem>>, vector<8x1xf32>,
    %c0_i32_18 = arith.constant 0 : i32
    %26 = arith.cmpi eq, %arg0, %c0_i32_18 : i32
    %27 = arith.extui %26 : i1 to i32
    %c0_i32_19 = arith.constant 0 : i32
    %28 = arith.cmpi ne, %27, %c0_i32_19 : i32
    scf.if %28 {
      %c0_20 = arith.constant 0 : index
      %c0_21 = arith.constant 0 : index
      %29 = vector.load %arg20[%c0_20, %c0_21] : memref<8x1xf32, #tpu.memory_space<vmem>>, vector<8x1xf32>
      %c0_22 = arith.constant 0 : index
      %c0_23 = arith.constant 0 : index
      %30 = vector.load %arg21[%c0_22, %c0_23] : memref<8x1xf32, #tpu.memory_space<vmem>>, vector<8x1xf32>
      %31 = math.log %30 : vector<8x1xf32>
      %32 = arith.addf %29, %31 : vector<8x1xf32>
      %c0_24 = arith.constant 0 : index
      %c0_25 = arith.constant 0 : index
      %33 = vector.load %arg16[%c0_24, %c0_25] : memref<8x1xf32, #tpu.memory_space<vmem>>, vector<8x1xf32>
      tpu.vector_store %arg16[%c0_24, %c0_25], %32 {strides = array<i32>} : memref<8x1xf32, #tpu.memory_space<vmem>>, vector<8x1xf32>,
    } else {
    }
    return
  }
  func.func @transform_0(%arg0: i32) -> (i32, i32) {
    %c0_i32 = arith.constant 0 : i32
    %c0_i32_0 = arith.constant 0 : i32
    %c0_i32_1 = arith.constant 0 : i32
    return %c0_i32, %c0_i32_0 : i32, i32
  }
  func.func @transform_1(%arg0: i32) -> (i32, i32) {
    %c0_i32 = arith.constant 0 : i32
    %c0_i32_0 = arith.constant 0 : i32
    %c0_i32_1 = arith.constant 0 : i32
    return %c0_i32, %c0_i32_0 : i32, i32
  }
  func.func @transform_2(%arg0: i32) -> (i32, i32) {
    %c0_i32 = arith.constant 0 : i32
    %c0_i32_0 = arith.constant 0 : i32
    %c0_i32_1 = arith.constant 0 : i32
    return %c0_i32, %c0_i32_0 : i32, i32
  }
  func.func @transform_3(%arg0: i32) -> (i32, i32) {
    %c0_i32 = arith.constant 0 : i32
    %c0_i32_0 = arith.constant 0 : i32
    %c0_i32_1 = arith.constant 0 : i32
    return %c0_i32, %c0_i32_0 : i32, i32
  }
  func.func @transform_4(%arg0: i32) -> (i32, i32) {
    %c0_i32 = arith.constant 0 : i32
    %c0_i32_0 = arith.constant 0 : i32
    %c0_i32_1 = arith.constant 0 : i32
    return %c0_i32, %c0_i32_0 : i32, i32
  }
  func.func @transform_5(%arg0: i32) -> (i32, i32) {
    %c0_i32 = arith.constant 0 : i32
    %c0_i32_0 = arith.constant 0 : i32
    %c0_i32_1 = arith.constant 0 : i32
    return %c0_i32, %c0_i32_0 : i32, i32
  }
  func.func @transform_6(%arg0: i32) -> (i32, i32) {
    %c0_i32 = arith.constant 0 : i32
    %c0_i32_0 = arith.constant 0 : i32
    %c0_i32_1 = arith.constant 0 : i32
    return %c0_i32, %c0_i32_0 : i32, i32
  }
  func.func @transform_7(%arg0: i32) -> (i32, i32) {
    %c0_i32 = arith.constant 0 : i32
    %c0_i32_0 = arith.constant 0 : i32
    %c0_i32_1 = arith.constant 0 : i32
    return %c0_i32, %c0_i32_0 : i32, i32
  }
  func.func @transform_8(%arg0: i32) -> (i32, i32) {
    %c0_i32 = arith.constant 0 : i32
    %c0_i32_0 = arith.constant 0 : i32
    %c0_i32_1 = arith.constant 0 : i32
    return %c0_i32, %c0_i32_0 : i32, i32
  }
  func.func @transform_9(%arg0: i32) -> (i32, i32) {
    %c0_i32 = arith.constant 0 : i32
    %c0_i32_0 = arith.constant 0 : i32
    %c0_i32_1 = arith.constant 0 : i32
    return %c0_i32, %c0_i32_0 : i32, i32
  }
  func.func @transform_10(%arg0: i32) -> (i32, i32) {
    %c0_i32 = arith.constant 0 : i32
    %c0_i32_0 = arith.constant 0 : i32
    %c0_i32_1 = arith.constant 0 : i32
    return %c0_i32, %c0_i32_0 : i32, i32
  }
  func.func @transform_11(%arg0: i32) -> (i32, i32) {
    %c0_i32 = arith.constant 0 : i32
    %c0_i32_0 = arith.constant 0 : i32
    %c0_i32_1 = arith.constant 0 : i32
    return %c0_i32, %c0_i32_0 : i32, i32
  }
  func.func @transform_12(%arg0: i32) -> (i32, i32) {
    %c0_i32 = arith.constant 0 : i32
    %c0_i32_0 = arith.constant 0 : i32
    return %c0_i32, %arg0 : i32, i32
  }
  func.func @transform_13(%arg0: i32) -> (i32, i32) {
    %c0_i32 = arith.constant 0 : i32
    %c0_i32_0 = arith.constant 0 : i32
    return %c0_i32, %arg0 : i32, i32
  }
  func.func @transform_14(%arg0: i32) -> (i32, i32) {
    %c0_i32 = arith.constant 0 : i32
    %c0_i32_0 = arith.constant 0 : i32
    return %c0_i32, %arg0 : i32, i32
  }
  func.func @transform_15(%arg0: i32) -> (i32, i32) {
    %c0_i32 = arith.constant 0 : i32
    %c0_i32_0 = arith.constant 0 : i32
    %c0_i32_1 = arith.constant 0 : i32
    return %c0_i32, %c0_i32_0 : i32, i32
  }
  func.func @transform_16(%arg0: i32) -> (i32, i32) {
    %c0_i32 = arith.constant 0 : i32
    %c0_i32_0 = arith.constant 0 : i32
    %c0_i32_1 = arith.constant 0 : i32
    return %c0_i32, %c0_i32_0 : i32, i32
  }
  func.func @transform_17(%arg0: i32) -> (i32, i32) {
    %c0_i32 = arith.constant 0 : i32
    %c0_i32_0 = arith.constant 0 : i32
    %c0_i32_1 = arith.constant 0 : i32
    return %c0_i32, %c0_i32_0 : i32, i32
  }
}

module attributes {stable_mosaic.version = 11 : i64} {
  func.func @kernel(%arg0: i32, %arg1: memref<8x128xbf16, #tpu.memory_space<vmem>>, %arg2: memref<8x128xf32, #tpu.memory_space<vmem>>, %arg3: memref<1024x128xbf16, #tpu.memory_space<vmem>>, %arg4: memref<128x128xbf16, #tpu.memory_space<vmem>>, %arg5: memref<128x128xbf16, #tpu.memory_space<vmem>>, %arg6: memref<1x128xf32, #tpu.memory_space<vmem>>, %arg7: memref<1x128xf32, #tpu.memory_space<vmem>>, %arg8: memref<128x384xbf16, #tpu.memory_space<vmem>>, %arg9: memref<128x384xbf16, #tpu.memory_space<vmem>>, %arg10: memref<128x384xbf16, #tpu.memory_space<vmem>>, %arg11: memref<1x384xf32, #tpu.memory_space<vmem>>, %arg12: memref<1x384xf32, #tpu.memory_space<vmem>>, %arg13: memref<256x128xbf16, #tpu.memory_space<vmem>>, %arg14: memref<1x128xf32, #tpu.memory_space<vmem>>, %arg15: memref<8x128xf32, #tpu.memory_space<vmem>>, %arg16: memref<8x1xf32, #tpu.memory_space<vmem>>, %arg17: memref<8x128xf32, #tpu.memory_space<vmem>>, %arg18: memref<8x128xf32, #tpu.memory_space<vmem>>, %arg19: memref<8x256xbf16, #tpu.memory_space<vmem>>, %arg20: memref<8x1xf32, #tpu.memory_space<vmem>>, %arg21: memref<8x1xf32, #tpu.memory_space<vmem>>) attributes {dimension_semantics = [#tpu.dimension_semantics<arbitrary>], iteration_bounds = array<i64: 1>, scalar_prefetch = 0 : i64, scratch_operands = 3 : i64, tpu.core_type = #tpu.core_type<tc>, window_params = [{pipeline_mode = #tpu.pipeline_mode<synchronous>, transform_indices = @transform_0, window_bounds = array<i64: 8, 128>}, {pipeline_mode = #tpu.pipeline_mode<synchronous>, transform_indices = @transform_1, window_bounds = array<i64: 8, 128>}, {pipeline_mode = #tpu.pipeline_mode<synchronous>, transform_indices = @transform_2, window_bounds = array<i64: 1024, 128>}, {pipeline_mode = #tpu.pipeline_mode<synchronous>, transform_indices = @transform_3, window_bounds = array<i64: 128, 128>}, {pipeline_mode = #tpu.pipeline_mode<synchronous>, transform_indices = @transform_4, window_bounds = array<i64: 128, 128>}, {pipeline_mode = #tpu.pipeline_mode<synchronous>, transform_indices = @transform_5, window_bounds = array<i64: 1, 128>}, {pipeline_mode = #tpu.pipeline_mode<synchronous>, transform_indices = @transform_6, window_bounds = array<i64: 1, 128>}, {pipeline_mode = #tpu.pipeline_mode<synchronous>, transform_indices = @transform_7, window_bounds = array<i64: 128, 384>}, {pipeline_mode = #tpu.pipeline_mode<synchronous>, transform_indices = @transform_8, window_bounds = array<i64: 128, 384>}, {pipeline_mode = #tpu.pipeline_mode<synchronous>, transform_indices = @transform_9, window_bounds = array<i64: 128, 384>}, {pipeline_mode = #tpu.pipeline_mode<synchronous>, transform_indices = @transform_10, window_bounds = array<i64: 1, 384>}, {pipeline_mode = #tpu.pipeline_mode<synchronous>, transform_indices = @transform_11, window_bounds = array<i64: 1, 384>}, {transform_indices = @transform_12, window_bounds = array<i64: 256, 128>}, {transform_indices = @transform_13, window_bounds = array<i64: 1, 128>}, {transform_indices = @transform_14, window_bounds = array<i64: 8, 128>}, {pipeline_mode = #tpu.pipeline_mode<synchronous>, transform_indices = @transform_15, window_bounds = array<i64: 8, 1>}, {pipeline_mode = #tpu.pipeline_mode<synchronous>, transform_indices = @transform_16, window_bounds = array<i64: 8, 128>}, {pipeline_mode = #tpu.pipeline_mode<synchronous>, transform_indices = @transform_17, window_bounds = array<i64: 8, 128>}]} {
    %c0_i32 = arith.constant 0 : i32
    %0 = arith.cmpi eq, %arg0, %c0_i32 : i32
    %1 = arith.extui %0 : i1 to i32
    %c0_i32_0 = arith.constant 0 : i32
    %2 = arith.cmpi ne, %1, %c0_i32_0 : i32
    scf.if %2 {
      %c0_20 = arith.constant 0 : index
      %c0_21 = arith.constant 0 : index
      %29 = vector.load %arg2[%c0_20, %c0_21] : memref<8x128xf32, #tpu.memory_space<vmem>>, vector<8x128xf32>
      %30 = arith.truncf %29 : vector<8x128xf32> to vector<8x128xbf16>
      %c0_22 = arith.constant 0 : index
      %c0_23 = arith.constant 0 : index
      %31 = vector.load %arg1[%c0_22, %c0_23] : memref<8x128xbf16, #tpu.memory_space<vmem>>, vector<8x128xbf16>
      %c0_24 = arith.constant 0 : index
      %c0_25 = arith.constant 0 : index
      %32 = vector.load %arg8[%c0_24, %c0_25] : memref<128x384xbf16, #tpu.memory_space<vmem>>, vector<128x384xbf16>
      %cst_26 = arith.constant dense<0.000000e+00> : vector<8x384xf32>
      %33 = tpu.matmul %31, %32, %cst_26 {dimension_numbers = #tpu.dot_dimension_numbers<[1], [0], [0], [1], [0, 0, 1, 1], [], []>} : vector<8x128xbf16>, vector<128x384xbf16>, vector<8x384xf32> -> vector<8x384xf32>
      %c0_27 = arith.constant 0 : index
      %c0_28 = arith.constant 0 : index
      %34 = vector.load %arg10[%c0_27, %c0_28] : memref<128x384xbf16, #tpu.memory_space<vmem>>, vector<128x384xbf16>
      %cst_29 = arith.constant dense<0.000000e+00> : vector<8x384xf32>
      %35 = tpu.matmul %30, %34, %cst_29 {dimension_numbers = #tpu.dot_dimension_numbers<[1], [0], [0], [1], [0, 0, 1, 1], [], []>} : vector<8x128xbf16>, vector<128x384xbf16>, vector<8x384xf32> -> vector<8x384xf32>
      %c0_30 = arith.constant 0 : index
      %c0_31 = arith.constant 0 : index
      %36 = vector.load %arg12[%c0_30, %c0_31] : memref<1x384xf32, #tpu.memory_space<vmem>>, vector<1x384xf32>
      %37 = vector.broadcast %36 : vector<1x384xf32> to vector<8x384xf32>
      %38 = arith.addf %35, %37 : vector<8x384xf32>
      %c0_32 = arith.constant 0 : index
      %c0_33 = arith.constant 0 : index
      %39 = vector.load %arg4[%c0_32, %c0_33] : memref<128x128xbf16, #tpu.memory_space<vmem>>, vector<128x128xbf16>
      %cst_34 = arith.constant dense<0.000000e+00> : vector<8x128xf32>
      %40 = tpu.matmul %30, %39, %cst_34 {dimension_numbers = #tpu.dot_dimension_numbers<[1], [0], [0], [1], [0, 0, 1, 1], [], []>} : vector<8x128xbf16>, vector<128x128xbf16>, vector<8x128xf32> -> vector<8x128xf32>
      %c0_35 = arith.constant 0 : index
      %c0_36 = arith.constant 0 : index
      %41 = vector.load %arg3[%c0_35, %c0_36] : memref<1024x128xbf16, #tpu.memory_space<vmem>>, vector<1024x128xbf16>
      %c0_37 = arith.constant 0 : index
      %c0_38 = arith.constant 0 : index
      %42 = vector.load %arg5[%c0_37, %c0_38] : memref<128x128xbf16, #tpu.memory_space<vmem>>, vector<128x128xbf16>
      %cst_39 = arith.constant dense<0.000000e+00> : vector<1024x128xf32>
      %43 = tpu.matmul %41, %42, %cst_39 {dimension_numbers = #tpu.dot_dimension_numbers<[1], [0], [0], [1], [0, 0, 1, 1], [], []>} : vector<1024x128xbf16>, vector<128x128xbf16>, vector<1024x128xf32> -> vector<1024x128xf32>
      %44 = vector.shape_cast %43 : vector<1024x128xf32> to vector<8x128x128xf32>
      %45 = vector.shape_cast %40 : vector<8x128xf32> to vector<8x1x128xf32>
      %46 = vector.broadcast %45 : vector<8x1x128xf32> to vector<8x128x128xf32>
      %47 = arith.addf %44, %46 : vector<8x128x128xf32>
      %c0_40 = arith.constant 0 : index
      %c0_41 = arith.constant 0 : index
      %48 = vector.load %arg6[%c0_40, %c0_41] : memref<1x128xf32, #tpu.memory_space<vmem>>, vector<1x128xf32>
      %49 = vector.shape_cast %48 : vector<1x128xf32> to vector<1x1x128xf32>
      %50 = vector.broadcast %49 : vector<1x1x128xf32> to vector<8x128x128xf32>
      %51 = arith.addf %47, %50 : vector<8x128x128xf32>
      %cst_42 = arith.constant 0.000000e+00 : f32
      %52 = vector.broadcast %cst_42 : f32 to vector<8x128x128xf32>
      %53 = arith.maximumf %51, %52 : vector<8x128x128xf32>
      %c0_43 = arith.constant 0 : index
      %c0_44 = arith.constant 0 : index
      %54 = vector.load %arg7[%c0_43, %c0_44] : memref<1x128xf32, #tpu.memory_space<vmem>>, vector<1x128xf32>
      %55 = vector.shape_cast %54 : vector<1x128xf32> to vector<1x1x128xf32>
      %56 = vector.broadcast %55 : vector<1x1x128xf32> to vector<8x128x128xf32>
      %57 = arith.mulf %53, %56 : vector<8x128x128xf32>
      %cst_45 = arith.constant dense<0.000000e+00> : vector<8x128xf32>
      %58 = vector.multi_reduction <add>, %57, %cst_45 [2] : vector<8x128x128xf32> to vector<8x128xf32>
      %59 = tpu.iota {dimensions = array<i32: 1>} : vector<8x128xi32>
      %c8_i32 = arith.constant 8 : i32
      %60 = vector.broadcast %c8_i32 : i32 to vector<8x128xi32>
      %61 = arith.cmpi slt, %59, %60 : vector<8x128xi32>
      %cst_46 = arith.constant -1.000000e+30 : f32
      %62 = vector.broadcast %cst_46 : f32 to vector<8x128xf32>
      %63 = arith.select %61, %58, %62 : vector<8x128xi1>, vector<8x128xf32>
      %cst_47 = arith.constant dense<0xFF800000> : vector<8xf32>
      %64 = vector.multi_reduction <maximumf>, %63, %cst_47 [1] : vector<8x128xf32> to vector<8xf32>
      %65 = vector.shape_cast %64 : vector<8xf32> to vector<8x1xf32>
      %66 = vector.broadcast %65 : vector<8x1xf32> to vector<8x128xf32>
      %67 = arith.subf %63, %66 : vector<8x128xf32>
      %68 = math.exp %67 : vector<8x128xf32>
      %cst_48 = arith.constant dense<0.000000e+00> : vector<8xf32>
      %69 = vector.multi_reduction <add>, %68, %cst_48 [1] : vector<8x128xf32> to vector<8xf32>
      %70 = vector.shape_cast %69 : vector<8xf32> to vector<8x1xf32>
      %71 = tpu.reciprocal %70 {approx = true} : vector<8x1xf32> -> vector<8x1xf32>
      %72 = vector.broadcast %71 : vector<8x1xf32> to vector<8x128xf32>
      %73 = arith.mulf %68, %72 : vector<8x128xf32>
      %c0_49 = arith.constant 0 : index
      %c0_50 = arith.constant 0 : index
      %74 = vector.load %arg18[%c0_49, %c0_50] : memref<8x128xf32, #tpu.memory_space<vmem>>, vector<8x128xf32>
      tpu.vector_store %arg18[%c0_49, %c0_50], %73 {strides = array<i32>} : memref<8x128xf32, #tpu.memory_space<vmem>>, vector<8x128xf32>,
      %75 = vector.shape_cast %41 : vector<1024x128xbf16> to vector<8x128x128xbf16>
      %76 = vector.shape_cast %73 : vector<8x128xf32> to vector<8x1x128xf32>
      %77 = arith.truncf %76 : vector<8x1x128xf32> to vector<8x1x128xbf16>
      "tpu.trace_start"() <{level = 10 : i32, message = "bqt,bth->bqh"}> : () -> ()
      %cst_51 = arith.constant dense<0.000000e+00> : vector<8x1x128xf32>
      %78 = tpu.matmul %77, %75, %cst_51 {dimension_numbers = #tpu.dot_dimension_numbers<[2], [1], [1], [2], [0, 0, 0, 1, 1, 2], [0], [0]>} : vector<8x1x128xbf16>, vector<8x128x128xbf16>, vector<8x1x128xf32> -> vector<8x1x128xf32>
      "tpu.trace_stop"() : () -> ()
      %79 = vector.shape_cast %78 : vector<8x1x128xf32> to vector<8x128xf32>
      %80 = arith.truncf %79 : vector<8x128xf32> to vector<8x128xbf16>
      %c0_52 = arith.constant 0 : index
      %c0_53 = arith.constant 0 : index
      %81 = vector.load %arg9[%c0_52, %c0_53] : memref<128x384xbf16, #tpu.memory_space<vmem>>, vector<128x384xbf16>
      %cst_54 = arith.constant dense<0.000000e+00> : vector<8x384xf32>
      %82 = tpu.matmul %80, %81, %cst_54 {dimension_numbers = #tpu.dot_dimension_numbers<[1], [0], [0], [1], [0, 0, 1, 1], [], []>} : vector<8x128xbf16>, vector<128x384xbf16>, vector<8x384xf32> -> vector<8x384xf32>
      %83 = arith.addf %33, %82 : vector<8x384xf32>
      %c0_55 = arith.constant 0 : index
      %c0_56 = arith.constant 0 : index
      %84 = vector.load %arg11[%c0_55, %c0_56] : memref<1x384xf32, #tpu.memory_space<vmem>>, vector<1x384xf32>
      %85 = vector.broadcast %84 : vector<1x384xf32> to vector<8x384xf32>
      %86 = arith.addf %83, %85 : vector<8x384xf32>
      %87 = vector.extract_strided_slice %86 {offsets = [0, 0], sizes = [8, 128], strides = [1, 1]} : vector<8x384xf32> to vector<8x128xf32>
      %88 = vector.extract_strided_slice %38 {offsets = [0, 0], sizes = [8, 128], strides = [1, 1]} : vector<8x384xf32> to vector<8x128xf32>
      %89 = arith.addf %87, %88 : vector<8x128xf32>
      %90 = arith.negf %89 : vector<8x128xf32>
      %91 = math.exp %90 : vector<8x128xf32>
      %cst_57 = arith.constant 1.000000e+00 : f32
      %92 = vector.broadcast %cst_57 : f32 to vector<8x128xf32>
      %93 = arith.addf %92, %91 : vector<8x128xf32>
      %94 = arith.divf %92, %93 : vector<8x128xf32>
      %95 = vector.extract_strided_slice %86 {offsets = [0, 128], sizes = [8, 128], strides = [1, 1]} : vector<8x384xf32> to vector<8x128xf32>
      %96 = vector.extract_strided_slice %38 {offsets = [0, 128], sizes = [8, 128], strides = [1, 1]} : vector<8x384xf32> to vector<8x128xf32>
      %97 = arith.addf %95, %96 : vector<8x128xf32>
      %98 = arith.negf %97 : vector<8x128xf32>
      %99 = math.exp %98 : vector<8x128xf32>
      %cst_58 = arith.constant 1.000000e+00 : f32
      %100 = vector.broadcast %cst_58 : f32 to vector<8x128xf32>
      %101 = arith.addf %100, %99 : vector<8x128xf32>
      %102 = arith.divf %100, %101 : vector<8x128xf32>
      %103 = vector.extract_strided_slice %86 {offsets = [0, 256], sizes = [8, 128], strides = [1, 1]} : vector<8x384xf32> to vector<8x128xf32>
      %104 = vector.extract_strided_slice %38 {offsets = [0, 256], sizes = [8, 128], strides = [1, 1]} : vector<8x384xf32> to vector<8x128xf32>
      %105 = arith.mulf %94, %104 : vector<8x128xf32>
      %106 = arith.addf %103, %105 : vector<8x128xf32>
      %107 = math.tanh %106 : vector<8x128xf32>
      %cst_59 = arith.constant 1.000000e+00 : f32
      %108 = vector.broadcast %cst_59 : f32 to vector<8x128xf32>
      %109 = arith.subf %108, %102 : vector<8x128xf32>
      %110 = arith.mulf %109, %107 : vector<8x128xf32>
      %111 = arith.mulf %102, %29 : vector<8x128xf32>
      %112 = arith.addf %110, %111 : vector<8x128xf32>
      %c0_60 = arith.constant 0 : index
      %c0_61 = arith.constant 0 : index
      %113 = vector.load %arg17[%c0_60, %c0_61] : memref<8x128xf32, #tpu.memory_space<vmem>>, vector<8x128xf32>
      tpu.vector_store %arg17[%c0_60, %c0_61], %112 {strides = array<i32>} : memref<8x128xf32, #tpu.memory_space<vmem>>, vector<8x128xf32>,
      %114 = arith.truncf %112 : vector<8x128xf32> to vector<8x128xbf16>
      %c0_62 = arith.constant 0 : index
      %c0_63 = arith.constant 0 : index
      %115 = vector.load %arg19[%c0_62, %c0_63] : memref<8x256xbf16, #tpu.memory_space<vmem>>, vector<8x128xbf16>
      tpu.vector_store %arg19[%c0_62, %c0_63], %114 {strides = array<i32>} : memref<8x256xbf16, #tpu.memory_space<vmem>>, vector<8x128xbf16>,
      %c0_64 = arith.constant 0 : index
      %c128 = arith.constant 128 : index
      %116 = vector.load %arg19[%c0_64, %c128] : memref<8x256xbf16, #tpu.memory_space<vmem>>, vector<8x128xbf16>
      tpu.vector_store %arg19[%c0_64, %c128], %80 {strides = array<i32>} : memref<8x256xbf16, #tpu.memory_space<vmem>>, vector<8x128xbf16>,
      %cst_65 = arith.constant -1.000000e+30 : f32
      %117 = vector.broadcast %cst_65 : f32 to vector<8x1xf32>
      %c0_66 = arith.constant 0 : index
      %c0_67 = arith.constant 0 : index
      %118 = vector.load %arg20[%c0_66, %c0_67] : memref<8x1xf32, #tpu.memory_space<vmem>>, vector<8x1xf32>
      tpu.vector_store %arg20[%c0_66, %c0_67], %117 {strides = array<i32>} : memref<8x1xf32, #tpu.memory_space<vmem>>, vector<8x1xf32>,
      %cst_68 = arith.constant 0.000000e+00 : f32
      %119 = vector.broadcast %cst_68 : f32 to vector<8x1xf32>
      %c0_69 = arith.constant 0 : index
      %c0_70 = arith.constant 0 : index
      %120 = vector.load %arg21[%c0_69, %c0_70] : memref<8x1xf32, #tpu.memory_space<vmem>>, vector<8x1xf32>
      tpu.vector_store %arg21[%c0_69, %c0_70], %119 {strides = array<i32>} : memref<8x1xf32, #tpu.memory_space<vmem>>, vector<8x1xf32>,
    } else {
    }
    %c0 = arith.constant 0 : index
    %c0_1 = arith.constant 0 : index
    %3 = vector.load %arg19[%c0, %c0_1] : memref<8x256xbf16, #tpu.memory_space<vmem>>, vector<8x256xbf16>
    %c0_2 = arith.constant 0 : index
    %c0_3 = arith.constant 0 : index
    %4 = vector.load %arg13[%c0_2, %c0_3] : memref<256x128xbf16, #tpu.memory_space<vmem>>, vector<256x128xbf16>
    %cst = arith.constant dense<0.000000e+00> : vector<8x128xf32>
    %5 = tpu.matmul %3, %4, %cst {dimension_numbers = #tpu.dot_dimension_numbers<[1], [0], [0], [1], [0, 0, 1, 1], [], []>} : vector<8x256xbf16>, vector<256x128xbf16>, vector<8x128xf32> -> vector<8x128xf32>
    %c0_4 = arith.constant 0 : index
    %c0_5 = arith.constant 0 : index
    %6 = vector.load %arg14[%c0_4, %c0_5] : memref<1x128xf32, #tpu.memory_space<vmem>>, vector<1x128xf32>
    %7 = vector.broadcast %6 : vector<1x128xf32> to vector<8x128xf32>
    %8 = arith.addf %5, %7 : vector<8x128xf32>
    %c0_6 = arith.constant 0 : index
    %c0_7 = arith.constant 0 : index
    %9 = vector.load %arg15[%c0_6, %c0_7] : memref<8x128xf32, #tpu.memory_space<vmem>>, vector<8x128xf32>
    tpu.vector_store %arg15[%c0_6, %c0_7], %8 {strides = array<i32>} : memref<8x128xf32, #tpu.memory_space<vmem>>, vector<8x128xf32>,
    %c0_8 = arith.constant 0 : index
    %c0_9 = arith.constant 0 : index
    %10 = vector.load %arg20[%c0_8, %c0_9] : memref<8x1xf32, #tpu.memory_space<vmem>>, vector<8x1xf32>
    %cst_10 = arith.constant dense<0xFF800000> : vector<8xf32>
    %11 = vector.multi_reduction <maximumf>, %8, %cst_10 [1] : vector<8x128xf32> to vector<8xf32>
    %12 = vector.shape_cast %11 : vector<8xf32> to vector<8x1xf32>
    %13 = arith.maximumf %10, %12 : vector<8x1xf32>
    %c0_11 = arith.constant 0 : index
    %c0_12 = arith.constant 0 : index
    %14 = vector.load %arg21[%c0_11, %c0_12] : memref<8x1xf32, #tpu.memory_space<vmem>>, vector<8x1xf32>
    %15 = arith.subf %10, %13 : vector<8x1xf32>
    %16 = math.exp %15 : vector<8x1xf32>
    %17 = arith.mulf %14, %16 : vector<8x1xf32>
    %18 = vector.broadcast %13 : vector<8x1xf32> to vector<8x128xf32>
    %19 = arith.subf %8, %18 : vector<8x128xf32>
    %20 = math.exp %19 : vector<8x128xf32>
    %cst_13 = arith.constant dense<0.000000e+00> : vector<8xf32>
    %21 = vector.multi_reduction <add>, %20, %cst_13 [1] : vector<8x128xf32> to vector<8xf32>
    %22 = vector.shape_cast %21 : vector<8xf32> to vector<8x1xf32>
    %23 = arith.addf %17, %22 : vector<8x1xf32>
    %c0_14 = arith.constant 0 : index
    %c0_15 = arith.constant 0 : index
    %24 = vector.load %arg21[%c0_14, %c0_15] : memref<8x1xf32, #tpu.memory_space<vmem>>, vector<8x1xf32>
    tpu.vector_store %arg21[%c0_14, %c0_15], %23 {strides = array<i32>} : memref<8x1xf32, #tpu.memory_space<vmem>>, vector<8x1xf32>,
    %c0_16 = arith.constant 0 : index
    %c0_17 = arith.constant 0 : index
    %25 = vector.load %arg20[%c0_16, %c0_17] : memref<8x1xf32, #tpu.memory_space<vmem>>, vector<8x1xf32>
    tpu.vector_store %arg20[%c0_16, %c0_17], %13 {strides = array<i32>} : memref<8x1xf32, #tpu.memory_space<vmem>>, vector<8x1xf32>,
    %c0_i32_18 = arith.constant 0 : i32
    %26 = arith.cmpi eq, %arg0, %c0_i32_18 : i32
    %27 = arith.extui %26 : i1 to i32
    %c0_i32_19 = arith.constant 0 : i32
    %28 = arith.cmpi ne, %27, %c0_i32_19 : i32
    scf.if %28 {
      %c0_20 = arith.constant 0 : index
      %c0_21 = arith.constant 0 : index
      %29 = vector.load %arg20[%c0_20, %c0_21] : memref<8x1xf32, #tpu.memory_space<vmem>>, vector<8x1xf32>
      %c0_22 = arith.constant 0 : index
      %c0_23 = arith.constant 0 : index
      %30 = vector.load %arg21[%c0_22, %c0_23] : memref<8x1xf32, #tpu.memory_space<vmem>>, vector<8x1xf32>
      %31 = math.log %30 : vector<8x1xf32>
      %32 = arith.addf %29, %31 : vector<8x1xf32>
      %c0_24 = arith.constant 0 : index
      %c0_25 = arith.constant 0 : index
      %33 = vector.load %arg16[%c0_24, %c0_25] : memref<8x1xf32, #tpu.memory_space<vmem>>, vector<8x1xf32>
      tpu.vector_store %arg16[%c0_24, %c0_25], %32 {strides = array<i32>} : memref<8x1xf32, #tpu.memory_space<vmem>>, vector<8x1xf32>,
    } else {
    }
    return
  }
  func.func @transform_0(%arg0: i32) -> (i32, i32) {
    %c0_i32 = arith.constant 0 : i32
    %c0_i32_0 = arith.constant 0 : i32
    %c0_i32_1 = arith.constant 0 : i32
    return %c0_i32, %c0_i32_0 : i32, i32
  }
  func.func @transform_1(%arg0: i32) -> (i32, i32) {
    %c0_i32 = arith.constant 0 : i32
    %c0_i32_0 = arith.constant 0 : i32
    %c0_i32_1 = arith.constant 0 : i32
    return %c0_i32, %c0_i32_0 : i32, i32
  }
  func.func @transform_2(%arg0: i32) -> (i32, i32) {
    %c0_i32 = arith.constant 0 : i32
    %c0_i32_0 = arith.constant 0 : i32
    %c0_i32_1 = arith.constant 0 : i32
    return %c0_i32, %c0_i32_0 : i32, i32
  }
  func.func @transform_3(%arg0: i32) -> (i32, i32) {
    %c0_i32 = arith.constant 0 : i32
    %c0_i32_0 = arith.constant 0 : i32
    %c0_i32_1 = arith.constant 0 : i32
    return %c0_i32, %c0_i32_0 : i32, i32
  }
  func.func @transform_4(%arg0: i32) -> (i32, i32) {
    %c0_i32 = arith.constant 0 : i32
    %c0_i32_0 = arith.constant 0 : i32
    %c0_i32_1 = arith.constant 0 : i32
    return %c0_i32, %c0_i32_0 : i32, i32
  }
  func.func @transform_5(%arg0: i32) -> (i32, i32) {
    %c0_i32 = arith.constant 0 : i32
    %c0_i32_0 = arith.constant 0 : i32
    %c0_i32_1 = arith.constant 0 : i32
    return %c0_i32, %c0_i32_0 : i32, i32
  }
  func.func @transform_6(%arg0: i32) -> (i32, i32) {
    %c0_i32 = arith.constant 0 : i32
    %c0_i32_0 = arith.constant 0 : i32
    %c0_i32_1 = arith.constant 0 : i32
    return %c0_i32, %c0_i32_0 : i32, i32
  }
  func.func @transform_7(%arg0: i32) -> (i32, i32) {
    %c0_i32 = arith.constant 0 : i32
    %c0_i32_0 = arith.constant 0 : i32
    %c0_i32_1 = arith.constant 0 : i32
    return %c0_i32, %c0_i32_0 : i32, i32
  }
  func.func @transform_8(%arg0: i32) -> (i32, i32) {
    %c0_i32 = arith.constant 0 : i32
    %c0_i32_0 = arith.constant 0 : i32
    %c0_i32_1 = arith.constant 0 : i32
    return %c0_i32, %c0_i32_0 : i32, i32
  }
  func.func @transform_9(%arg0: i32) -> (i32, i32) {
    %c0_i32 = arith.constant 0 : i32
    %c0_i32_0 = arith.constant 0 : i32
    %c0_i32_1 = arith.constant 0 : i32
    return %c0_i32, %c0_i32_0 : i32, i32
  }
  func.func @transform_10(%arg0: i32) -> (i32, i32) {
    %c0_i32 = arith.constant 0 : i32
    %c0_i32_0 = arith.constant 0 : i32
    %c0_i32_1 = arith.constant 0 : i32
    return %c0_i32, %c0_i32_0 : i32, i32
  }
  func.func @transform_11(%arg0: i32) -> (i32, i32) {
    %c0_i32 = arith.constant 0 : i32
    %c0_i32_0 = arith.constant 0 : i32
    %c0_i32_1 = arith.constant 0 : i32
    return %c0_i32, %c0_i32_0 : i32, i32
  }
  func.func @transform_12(%arg0: i32) -> (i32, i32) {
    %c0_i32 = arith.constant 0 : i32
    %c0_i32_0 = arith.constant 0 : i32
    return %c0_i32, %arg0 : i32, i32
  }
  func.func @transform_13(%arg0: i32) -> (i32, i32) {
    %c0_i32 = arith.constant 0 : i32
    %c0_i32_0 = arith.constant 0 : i32
    return %c0_i32, %arg0 : i32, i32
  }
  func.func @transform_14(%arg0: i32) -> (i32, i32) {
    %c0_i32 = arith.constant 0 : i32
    %c0_i32_0 = arith.constant 0 : i32
    return %c0_i32, %arg0 : i32, i32
  }
  func.func @transform_15(%arg0: i32) -> (i32, i32) {
    %c0_i32 = arith.constant 0 : i32
    %c0_i32_0 = arith.constant 0 : i32
    %c0_i32_1 = arith.constant 0 : i32
    return %c0_i32, %c0_i32_0 : i32, i32
  }
  func.func @transform_16(%arg0: i32) -> (i32, i32) {
    %c0_i32 = arith.constant 0 : i32
    %c0_i32_0 = arith.constant 0 : i32
    %c0_i32_1 = arith.constant 0 : i32
    return %c0_i32, %c0_i32_0 : i32, i32
  }
  func.func @transform_17(%arg0: i32) -> (i32, i32) {
    %c0_i32 = arith.constant 0 : i32
    %c0_i32_0 = arith.constant 0 : i32
    %c0_i32_1 = arith.constant 0 : i32
    return %c0_i32, %c0_i32_0 : i32, i32
  }
}

</mosaic_0001>

<llo_original>
// kernel: tpu_custom_call.1
$region0: #{tpu_custom_call.1}
  #allocation0 [shape = 'u32[]', space=smem, size = 0x4, offset = 0x4, fixed_abs, tag = 'smem constant byte address 0x4 - core index']
  #allocation1 [shape = 'u32[144,128]{1,0:T(1,128)}', space=vmem, size = 0x12000, scoped, tag = 'internal scratch']
  #allocation2 [shape = 'bf16[8,256]{1,0:T(8,128)(2,1)}', space=vmem, size = 0x1000, scoped, tag = 'scratch operand']
  #allocation3 [shape = 'f32[8,1]{1,0:T(8,128)}', space=vmem, size = 0x1000, scoped, tag = 'scratch operand']
  #allocation4 [shape = 'f32[8,1]{1,0:T(8,128)}', space=vmem, size = 0x1000, scoped, tag = 'scratch operand']
  %s0 = inlined_call_operand.hbm [shape: bf16[8,128], index: 0, kind: input, shape index: {}]
  %s1 = inlined_call_operand.hbm [shape: f32[8,128], index: 1, kind: input, shape index: {}]
  %s2 = inlined_call_operand.hbm [shape: bf16[1024,128], index: 2, kind: input, shape index: {}]
  %s3 = inlined_call_operand.hbm [shape: bf16[128,128], index: 3, kind: input, shape index: {}]
  %s4 = inlined_call_operand.hbm [shape: bf16[128,128], index: 4, kind: input, shape index: {}]
  %s5 = inlined_call_operand.vmem [shape: f32[1,128], index: 5, kind: input, shape index: {}]
  %s6 = inlined_call_operand.vmem [shape: f32[1,128], index: 6, kind: input, shape index: {}]
  %s7 = inlined_call_operand.hbm [shape: bf16[128,384], index: 7, kind: input, shape index: {}]
  %s8 = inlined_call_operand.hbm [shape: bf16[128,384], index: 8, kind: input, shape index: {}]
  %s9 = inlined_call_operand.hbm [shape: bf16[128,384], index: 9, kind: input, shape index: {}]
  %s10 = inlined_call_operand.vmem [shape: f32[1,384], index: 10, kind: input, shape index: {}]
  %s11 = inlined_call_operand.vmem [shape: f32[1,384], index: 11, kind: input, shape index: {}]
  %s12 = inlined_call_operand.hbm [shape: bf16[256,128], index: 12, kind: input, shape index: {}]
  %s13 = inlined_call_operand.vmem [shape: f32[1,128], index: 13, kind: input, shape index: {}]
  %s14 = inlined_call_operand.hbm [shape: f32[8,128], index: 14, kind: output, shape index: {0}]
  %s15 = inlined_call_operand.vmem [shape: f32[8,1], index: 15, kind: output, shape index: {1}]
  %s16 = inlined_call_operand.hbm [shape: f32[8,128], index: 16, kind: output, shape index: {2}]
  %s17 = inlined_call_operand.hbm [shape: f32[8,128], index: 17, kind: output, shape index: {3}]
  %18 = xla_tuple %s14, %s15, %s16, %s17
  %s19 = sld [smem:[#allocation0]]
  $region134: #{tpu_custom_call.1} parent=0
    _
  %s21 = ssub.s32 1, %s19
  %s22 = scalar_select 0, %s21, %s19
  $region1: #{tpu_custom_call.1} parent=0
    #allocation5 [shape = 'u8[2048]{0}', space=vmem, size = 0x800, scoped, tag = 'input window, operand 0, single buffered']
    #allocation6 [shape = 's32[1]{0}', space=sflag, size = 0x4, scoped, tag = 'scoped memory for tpu_custom_call.1']
    #allocation7 [shape = 's32[1]{0}', space=sflag, size = 0x4, scoped, tag = 'scoped memory for tpu_custom_call.1']
    #allocation8 [shape = 'u8[4096]{0}', space=vmem, size = 0x1000, scoped, tag = 'input window, operand 1, single buffered']
    #allocation9 [shape = 's32[1]{0}', space=sflag, size = 0x4, scoped, tag = 'scoped memory for tpu_custom_call.1']
    #allocation10 [shape = 'u8[262144]{0}', space=vmem, size = 0x40000, scoped, tag = 'input window, operand 2, single buffered']
    #allocation11 [shape = 'u8[32768]{0}', space=vmem, size = 0x8000, scoped, tag = 'input window, operand 3, single buffered']
    #allocation12 [shape = 's32[1]{0}', space=sflag, size = 0x4, scoped, tag = 'scoped memory for tpu_custom_call.1']
    #allocation13 [shape = 'u8[32768]{0}', space=vmem, size = 0x8000, scoped, tag = 'input window, operand 4, single buffered']
    #allocation14 [shape = 'u8[98304]{0}', space=vmem, size = 0x18000, scoped, tag = 'input window, operand 7, single buffered']
    #allocation15 [shape = 's32[1]{0}', space=sflag, size = 0x4, scoped, tag = 'scoped memory for tpu_custom_call.1']
    #allocation16 [shape = 'u8[98304]{0}', space=vmem, size = 0x18000, scoped, tag = 'input window, operand 8, single buffered']
    #allocation17 [shape = 'u8[98304]{0}', space=vmem, size = 0x18000, scoped, tag = 'input window, operand 9, single buffered']
    #allocation18 [shape = 's32[1]{0}', space=sflag, size = 0x4, scoped, tag = 'scoped memory for tpu_custom_call.1']
    #allocation19 [shape = 'u8[65536]{0}', space=vmem, size = 0x10000, scoped, tag = 'input window, operand 12, single buffered']
    #allocation20 [shape = 'u8[4096]{0}', space=vmem, size = 0x1000, scoped, tag = 'output window, operand 0, single buffered']
    #allocation21 [shape = 'u8[4096]{0}', space=vmem, size = 0x1000, scoped, tag = 'output window, operand 2, single buffered']
    #allocation22 [shape = 's32[1]{0}', space=sflag, size = 0x4, scoped, tag = 'scoped memory for tpu_custom_call.1']
    #allocation23 [shape = 'u8[4096]{0}', space=vmem, size = 0x1000, scoped, tag = 'output window, operand 3, single buffered']
    %23 = vsyncpa [#allocation6], 0
    %24 = vsyncpa [#allocation9], 0
    %25 = vsyncpa [#allocation12], 0
    %26 = vsyncpa [#allocation15], 0
    %27 = vsyncpa [#allocation18], 0
    %28 = vsyncpa [#allocation7], 0
    %29 = vsyncpa [#allocation22], 0
    // Predicated region
    $region2: #{tpu_custom_call.1} parent=1 // pred_check
      _
    $region3: #{tpu_custom_call.1} parent=1 // pred_check_branch
      %31 = sbr.rel (0) target = $region5
    $region4: #{tpu_custom_call.1} parent=1 // pred_region
      %s33 = ssub.s32 64, 64
      %34 = vsyncadd [#allocation6], %s33
      %s36 = sshll.u32 [#allocation5], 4
      %s37 = int_to_ptr.vmem [resolvable:$true] %s36
      %39 = dma.hbm_to_vmem [thread:$0]  %s0, 64, %s37, [#allocation6]
    $region5: #{tpu_custom_call.1} parent=1 // pred_fallthru
      _
    // Predicated region
    $region6: #{tpu_custom_call.1} parent=1 // pred_check
      _
    $region7: #{tpu_custom_call.1} parent=1 // pred_check_branch
      %41 = sbr.rel (0) target = $region9
    $region8: #{tpu_custom_call.1} parent=1 // pred_region
      %s43 = ssub.s32 128, 128
      %44 = vsyncadd [#allocation9], %s43
      %s46 = sshll.u32 [#allocation8], 4
      %s47 = int_to_ptr.vmem [resolvable:$true] %s46
      %49 = dma.hbm_to_vmem [thread:$0]  %s1, 128, %s47, [#allocation9]
    $region9: #{tpu_custom_call.1} parent=1 // pred_fallthru
      _
    // Predicated region
    $region10: #{tpu_custom_call.1} parent=1 // pred_check
      _
    $region11: #{tpu_custom_call.1} parent=1 // pred_check_branch
      %51 = sbr.rel (0) target = $region13
    $region12: #{tpu_custom_call.1} parent=1 // pred_region
      %s53 = ssub.s32 8192, 8192
      %54 = vsyncadd [#allocation9], %s53
      %s55 = sshll.u32 [#allocation10], 4
      %s56 = int_to_ptr.vmem [resolvable:$true] %s55
      %61 = dma.hbm_to_vmem [thread:$0]  %s2, 8192, %s56, [#allocation9], 64, 64, 4
    $region13: #{tpu_custom_call.1} parent=1 // pred_fallthru
      _
    // Predicated region
    $region14: #{tpu_custom_call.1} parent=1 // pred_check
      _
    $region15: #{tpu_custom_call.1} parent=1 // pred_check_branch
      %63 = sbr.rel (0) target = $region17
    $region16: #{tpu_custom_call.1} parent=1 // pred_region
      %s65 = ssub.s32 1024, 1024
      %66 = vsyncadd [#allocation12], %s65
      %s67 = sshll.u32 [#allocation11], 4
      %s68 = int_to_ptr.vmem [resolvable:$true] %s67
      %73 = dma.hbm_to_vmem [thread:$0]  %s3, 1024, %s68, [#allocation12], 64, 64, 4
    $region17: #{tpu_custom_call.1} parent=1 // pred_fallthru
      _
    // Predicated region
    $region18: #{tpu_custom_call.1} parent=1 // pred_check
      _
    $region19: #{tpu_custom_call.1} parent=1 // pred_check_branch
      %75 = sbr.rel (0) target = $region21
    $region20: #{tpu_custom_call.1} parent=1 // pred_region
      %s77 = ssub.s32 1024, 1024
      %78 = vsyncadd [#allocation12], %s77
      %s79 = sshll.u32 [#allocation13], 4
      %s80 = int_to_ptr.vmem [resolvable:$true] %s79
      %85 = dma.hbm_to_vmem [thread:$0]  %s4, 1024, %s80, [#allocation12], 64, 64, 4
    $region21: #{tpu_custom_call.1} parent=1 // pred_fallthru
      _
    // Predicated region
    $region22: #{tpu_custom_call.1} parent=1 // pred_check
      _
    $region23: #{tpu_custom_call.1} parent=1 // pred_check_branch
      %87 = sbr.rel (0) target = $region25
    $region24: #{tpu_custom_call.1} parent=1 // pred_region
      _
    $region25: #{tpu_custom_call.1} parent=1 // pred_fallthru
      _
    // Predicated region
    $region26: #{tpu_custom_call.1} parent=1 // pred_check
      _
    $region27: #{tpu_custom_call.1} parent=1 // pred_check_branch
      %89 = sbr.rel (0) target = $region29
    $region28: #{tpu_custom_call.1} parent=1 // pred_region
      _
    $region29: #{tpu_custom_call.1} parent=1 // pred_fallthru
      _
    // Predicated region
    $region30: #{tpu_custom_call.1} parent=1 // pred_check
      _
    $region31: #{tpu_custom_call.1} parent=1 // pred_check_branch
      %91 = sbr.rel (0) target = $region33
    $region32: #{tpu_custom_call.1} parent=1 // pred_region
      %s93 = ssub.s32 3072, 3072
      %94 = vsyncadd [#allocation15], %s93
      %s95 = sshll.u32 [#allocation14], 4
      %s96 = int_to_ptr.vmem [resolvable:$true] %s95
      %101 = dma.hbm_to_vmem [thread:$0]  %s7, 3072, %s96, [#allocation15], 192, 192, 12
    $region33: #{tpu_custom_call.1} parent=1 // pred_fallthru
      _
    // Predicated region
    $region34: #{tpu_custom_call.1} parent=1 // pred_check
      _
    $region35: #{tpu_custom_call.1} parent=1 // pred_check_branch
      %103 = sbr.rel (0) target = $region37
    $region36: #{tpu_custom_call.1} parent=1 // pred_region
      %s105 = ssub.s32 3072, 3072
      %106 = vsyncadd [#allocation15], %s105
      %s107 = sshll.u32 [#allocation16], 4
      %s108 = int_to_ptr.vmem [resolvable:$true] %s107
      %113 = dma.hbm_to_vmem [thread:$0]  %s8, 3072, %s108, [#allocation15], 192, 192, 12
    $region37: #{tpu_custom_call.1} parent=1 // pred_fallthru
      _
    // Predicated region
    $region38: #{tpu_custom_call.1} parent=1 // pred_check
      _
    $region39: #{tpu_custom_call.1} parent=1 // pred_check_branch
      %115 = sbr.rel (0) target = $region41
    $region40: #{tpu_custom_call.1} parent=1 // pred_region
      %s117 = ssub.s32 3072, 3072
      %118 = vsyncadd [#allocation18], %s117
      %s119 = sshll.u32 [#allocation17], 4
      %s120 = int_to_ptr.vmem [resolvable:$true] %s119
      %125 = dma.hbm_to_vmem [thread:$0]  %s9, 3072, %s120, [#allocation18], 192, 192, 12
    $region41: #{tpu_custom_call.1} parent=1 // pred_fallthru
      _
    // Predicated region
    $region42: #{tpu_custom_call.1} parent=1 // pred_check
      _
    $region43: #{tpu_custom_call.1} parent=1 // pred_check_branch
      %127 = sbr.rel (0) target = $region45
    $region44: #{tpu_custom_call.1} parent=1 // pred_region
      _
    $region45: #{tpu_custom_call.1} parent=1 // pred_fallthru
      _
    // Predicated region
    $region46: #{tpu_custom_call.1} parent=1 // pred_check
      _
    $region47: #{tpu_custom_call.1} parent=1 // pred_check_branch
      %129 = sbr.rel (0) target = $region49
    $region48: #{tpu_custom_call.1} parent=1 // pred_region
      _
    $region49: #{tpu_custom_call.1} parent=1 // pred_fallthru
      _
    // Predicated region
    $region50: #{tpu_custom_call.1} parent=1 // pred_check
      _
    $region51: #{tpu_custom_call.1} parent=1 // pred_check_branch
      %131 = sbr.rel (0) target = $region53
    $region52: #{tpu_custom_call.1} parent=1 // pred_region
      %s133 = ssub.s32 2048, 2048
      %134 = vsyncadd [#allocation18], %s133
      %s135 = sshll.u32 [#allocation19], 4
      %s136 = int_to_ptr.vmem [resolvable:$true] %s135
      %141 = dma.hbm_to_vmem [thread:$0]  %s12, 2048, %s136, [#allocation18], 64, 64, 4
    $region53: #{tpu_custom_call.1} parent=1 // pred_fallthru
      _
    // Predicated region
    $region54: #{tpu_custom_call.1} parent=1 // pred_check
      _
    $region55: #{tpu_custom_call.1} parent=1 // pred_check_branch
      %143 = sbr.rel (0) target = $region57
    $region56: #{tpu_custom_call.1} parent=1 // pred_region
      _
    $region57: #{tpu_custom_call.1} parent=1 // pred_fallthru
      _
    // Predicated region
    $region58: #{tpu_custom_call.1} parent=1 // pred_check
      _
    $region59: #{tpu_custom_call.1} parent=1 // pred_check_branch
      %145 = sbr.rel (0) target = $region61
    $region60: #{tpu_custom_call.1} parent=1 // pred_region
      %146 = dma.done [#allocation6], 64
    $region61: #{tpu_custom_call.1} parent=1 // pred_fallthru
      _
    // Predicated region
    $region62: #{tpu_custom_call.1} parent=1 // pred_check
      _
    $region63: #{tpu_custom_call.1} parent=1 // pred_check_branch
      %148 = sbr.rel (0) target = $region65
    $region64: #{tpu_custom_call.1} parent=1 // pred_region
      %149 = dma.done [#allocation9], 128
    $region65: #{tpu_custom_call.1} parent=1 // pred_fallthru
      _
    // Predicated region
    $region66: #{tpu_custom_call.1} parent=1 // pred_check
      _
    $region67: #{tpu_custom_call.1} parent=1 // pred_check_branch
      %151 = sbr.rel (0) target = $region69
    $region68: #{tpu_custom_call.1} parent=1 // pred_region
      %152 = dma.done [#allocation9], 8192
    $region69: #{tpu_custom_call.1} parent=1 // pred_fallthru
      _
    // Predicated region
    $region70: #{tpu_custom_call.1} parent=1 // pred_check
      _
    $region71: #{tpu_custom_call.1} parent=1 // pred_check_branch
      %154 = sbr.rel (0) target = $region73
    $region72: #{tpu_custom_call.1} parent=1 // pred_region
      %155 = dma.done [#allocation12], 1024
    $region73: #{tpu_custom_call.1} parent=1 // pred_fallthru
      _
    // Predicated region
    $region74: #{tpu_custom_call.1} parent=1 // pred_check
      _
    $region75: #{tpu_custom_call.1} parent=1 // pred_check_branch
      %157 = sbr.rel (0) target = $region77
    $region76: #{tpu_custom_call.1} parent=1 // pred_region
      %158 = dma.done [#allocation12], 1024
    $region77: #{tpu_custom_call.1} parent=1 // pred_fallthru
      _
    // Predicated region
    $region78: #{tpu_custom_call.1} parent=1 // pred_check
      _
    $region79: #{tpu_custom_call.1} parent=1 // pred_check_branch
      %160 = sbr.rel (0) target = $region81
    $region80: #{tpu_custom_call.1} parent=1 // pred_region
      %161 = dma.done [#allocation15], 3072
    $region81: #{tpu_custom_call.1} parent=1 // pred_fallthru
      _
    // Predicated region
    $region82: #{tpu_custom_call.1} parent=1 // pred_check
      _
    $region83: #{tpu_custom_call.1} parent=1 // pred_check_branch
      %163 = sbr.rel (0) target = $region85
    $region84: #{tpu_custom_call.1} parent=1 // pred_region
      %164 = dma.done [#allocation15], 3072
    $region85: #{tpu_custom_call.1} parent=1 // pred_fallthru
      _
    // Predicated region
    $region86: #{tpu_custom_call.1} parent=1 // pred_check
      _
    $region87: #{tpu_custom_call.1} parent=1 // pred_check_branch
      %166 = sbr.rel (0) target = $region89
    $region88: #{tpu_custom_call.1} parent=1 // pred_region
      %167 = dma.done [#allocation18], 3072
    $region89: #{tpu_custom_call.1} parent=1 // pred_fallthru
      _
    // Predicated region
    $region90: #{tpu_custom_call.1} parent=1 // pred_check
      _
    $region91: #{tpu_custom_call.1} parent=1 // pred_check_branch
      %169 = sbr.rel (0) target = $region93
    $region92: #{tpu_custom_call.1} parent=1 // pred_region
      %170 = dma.done [#allocation18], 2048
    $region93: #{tpu_custom_call.1} parent=1 // pred_fallthru
      _
    %p172 = scmp.eq.s32.totalorder 0, 0
    // Predicated region
    $region94: #{tpu_custom_call.1} parent=1 // pred_check
      %p173 = pneg %p172
    $region95: #{tpu_custom_call.1} parent=1 // pred_check_branch
      %175 = sbr.rel (%p173) target = $region97
    $region96: #{tpu_custom_call.1} parent=1 // pred_region
      %v176 = vld [vmem:[#allocation8] sm:$0xff]
      %v177 = vpack.c.bf16 %v176, %v176
      %v178 = vld [vmem:[#allocation5] sm:$0xf]
      %v179 = vld [vmem:[#allocation14] sm:$0xff]
      %v180 = vld [vmem:[#allocation14 + $0x8] sm:$0xf]
      %v181 = vld [vmem:[#allocation14 + $0xc] sm:$0xff]
      %v182 = vld [vmem:[#allocation14 + $0x14] sm:$0xf]
      %v183 = vld [vmem:[#allocation14 + $0x18] sm:$0xff]
      %v184 = vld [vmem:[#allocation14 + $0x20] sm:$0xf]
      %v185 = vld [vmem:[#allocation14 + $0x24] sm:$0xff]
      %v186 = vld [vmem:[#allocation14 + $0x2c] sm:$0xf]
      %v187 = vld [vmem:[#allocation14 + $0x30] sm:$0xff]
      %v188 = vld [vmem:[#allocation14 + $0x38] sm:$0xf]
      %v189 = vld [vmem:[#allocation14 + $0x3c] sm:$0xff]
      %v190 = vld [vmem:[#allocation14 + $0x44] sm:$0xf]
      %v191 = vld [vmem:[#allocation14 + $0x48] sm:$0xff]
      %v192 = vld [vmem:[#allocation14 + $0x50] sm:$0xf]
      %v193 = vld [vmem:[#allocation14 + $0x54] sm:$0xff]
      %v194 = vld [vmem:[#allocation14 + $0x5c] sm:$0xf]
      %v195 = vld [vmem:[#allocation14 + $0x60] sm:$0xff]
      %v196 = vld [vmem:[#allocation14 + $0x68] sm:$0xf]
      %v197 = vld [vmem:[#allocation14 + $0x6c] sm:$0xff]
      %v198 = vld [vmem:[#allocation14 + $0x74] sm:$0xf]
      %v199 = vld [vmem:[#allocation14 + $0x78] sm:$0xff]
      %v200 = vld [vmem:[#allocation14 + $0x80] sm:$0xf]
      %v201 = vld [vmem:[#allocation14 + $0x84] sm:$0xff]
      %v202 = vld [vmem:[#allocation14 + $0x8c] sm:$0xf]
      %v203 = vld [vmem:[#allocation14 + $0x90] sm:$0xff]
      %v204 = vld [vmem:[#allocation14 + $0x98] sm:$0xf]
      %v205 = vld [vmem:[#allocation14 + $0x9c] sm:$0xff]
      %v206 = vld [vmem:[#allocation14 + $0xa4] sm:$0xf]
      %v207 = vld [vmem:[#allocation14 + $0xa8] sm:$0xff]
      %v208 = vld [vmem:[#allocation14 + $0xb0] sm:$0xf]
      %v209 = vld [vmem:[#allocation14 + $0xb4] sm:$0xff]
      %v210 = vld [vmem:[#allocation14 + $0xbc] sm:$0xf]
      %v211 = vld [vmem:[#allocation17] sm:$0xff]
      %v212 = vld [vmem:[#allocation17 + $0x8] sm:$0xf]
      %v213 = vld [vmem:[#allocation17 + $0xc] sm:$0xff]
      %v214 = vld [vmem:[#allocation17 + $0x14] sm:$0xf]
      %v215 = vld [vmem:[#allocation17 + $0x18] sm:$0xff]
      %v216 = vld [vmem:[#allocation17 + $0x20] sm:$0xf]
      %v217 = vld [vmem:[#allocation17 + $0x24] sm:$0xff]
      %v218 = vld [vmem:[#allocation17 + $0x2c] sm:$0xf]
      %v219 = vld [vmem:[#allocation17 + $0x30] sm:$0xff]
      %v220 = vld [vmem:[#allocation17 + $0x38] sm:$0xf]
      %v221 = vld [vmem:[#allocation17 + $0x3c] sm:$0xff]
      %v222 = vld [vmem:[#allocation17 + $0x44] sm:$0xf]
      %v223 = vld [vmem:[#allocation17 + $0x48] sm:$0xff]
      %v224 = vld [vmem:[#allocation17 + $0x50] sm:$0xf]
      %v225 = vld [vmem:[#allocation17 + $0x54] sm:$0xff]
      %v226 = vld [vmem:[#allocation17 + $0x5c] sm:$0xf]
      %v227 = vld [vmem:[#allocation17 + $0x60] sm:$0xff]
      %v228 = vld [vmem:[#allocation17 + $0x68] sm:$0xf]
      %v229 = vld [vmem:[#allocation17 + $0x6c] sm:$0xff]
      %v230 = vld [vmem:[#allocation17 + $0x74] sm:$0xf]
      %v231 = vld [vmem:[#allocation17 + $0x78] sm:$0xff]
      %v232 = vld [vmem:[#allocation17 + $0x80] sm:$0xf]
      %v233 = vld [vmem:[#allocation17 + $0x84] sm:$0xff]
      %v234 = vld [vmem:[#allocation17 + $0x8c] sm:$0xf]
      %v235 = vld [vmem:[#allocation17 + $0x90] sm:$0xff]
      %v236 = vld [vmem:[#allocation17 + $0x98] sm:$0xf]
      %v237 = vld [vmem:[#allocation17 + $0x9c] sm:$0xff]
      %v238 = vld [vmem:[#allocation17 + $0xa4] sm:$0xf]
      %v239 = vld [vmem:[#allocation17 + $0xa8] sm:$0xff]
      %v240 = vld [vmem:[#allocation17 + $0xb0] sm:$0xf]
      %v241 = vld [vmem:[#allocation17 + $0xb4] sm:$0xff]
      %v242 = vld [vmem:[#allocation17 + $0xbc] sm:$0xf]
      %v243 = vld [vmem:[%s11] sm:$0x7]
      %v245 = vlaneseq
      %v246 = vshrl.u32 %v245, 7
      %v247 = vsub.s32 0, %v246
      %v248 = vrot.slane %v243, %v247
      %v249 = vlaneseq
      %v250 = vshrl.u32 %v249, 7
      %v251 = vsub.s32 1, %v250
      %v252 = vrot.slane %v243, %v251
      %v253 = vlaneseq
      %v254 = vshrl.u32 %v253, 7
      %v255 = vsub.s32 2, %v254
      %v256 = vrot.slane %v243, %v255
      %v292 = vunpack.c.l.b16 %v211
      %v293 = vunpack.c.h.b16 %v211
      %v294 = vunpack.c.l.b16 %v212
      %v295 = vunpack.c.l.b16 %v213
      %v296 = vunpack.c.h.b16 %v213
      %v297 = vunpack.c.l.b16 %v214
      %v298 = vunpack.c.l.b16 %v215
      %v299 = vunpack.c.h.b16 %v215
      %v300 = vunpack.c.l.b16 %v216
      %v301 = vunpack.c.l.b16 %v217
      %v302 = vunpack.c.h.b16 %v217
      %v303 = vunpack.c.l.b16 %v218
      %v304 = vunpack.c.l.b16 %v219
      %v305 = vunpack.c.h.b16 %v219
      %v306 = vunpack.c.l.b16 %v220
      %v307 = vunpack.c.l.b16 %v221
      %v308 = vunpack.c.h.b16 %v221
      %v309 = vunpack.c.l.b16 %v222
      %v310 = vunpack.c.l.b16 %v223
      %v311 = vunpack.c.h.b16 %v223
      %v312 = vunpack.c.l.b16 %v224
      %v313 = vunpack.c.l.b16 %v225
      %v314 = vunpack.c.h.b16 %v225
      %v315 = vunpack.c.l.b16 %v226
      %v316 = vunpack.c.l.b16 %v227
      %v317 = vunpack.c.h.b16 %v227
      %v318 = vunpack.c.l.b16 %v228
      %v319 = vunpack.c.l.b16 %v229
      %v320 = vunpack.c.h.b16 %v229
      %v321 = vunpack.c.l.b16 %v230
      %v322 = vunpack.c.l.b16 %v231
      %v323 = vunpack.c.h.b16 %v231
      %v324 = vunpack.c.l.b16 %v232
      %v325 = vunpack.c.l.b16 %v233
      %v326 = vunpack.c.h.b16 %v233
      %v327 = vunpack.c.l.b16 %v234
      %v328 = vunpack.c.l.b16 %v235
      %v329 = vunpack.c.h.b16 %v235
      %v330 = vunpack.c.l.b16 %v236
      %v331 = vunpack.c.l.b16 %v237
      %v332 = vunpack.c.h.b16 %v237
      %v333 = vunpack.c.l.b16 %v238
      %v334 = vunpack.c.l.b16 %v239
      %v335 = vunpack.c.h.b16 %v239
      %v336 = vunpack.c.l.b16 %v240
      %v337 = vunpack.c.l.b16 %v241
      %v338 = vunpack.c.h.b16 %v241
      %v339 = vunpack.c.l.b16 %v242
      %v340 = vpack.c.b16 %v295, %v292
      %v341 = vpack.c.b16 %v296, %v293
      %v342 = vpack.c.b16 %v297, %v294
      %v343 = vpack.c.b16 %v301, %v298
      %v344 = vpack.c.b16 %v302, %v299
      %v345 = vpack.c.b16 %v303, %v300
      %v346 = vpack.c.b16 %v307, %v304
      %v347 = vpack.c.b16 %v308, %v305
      %v348 = vpack.c.b16 %v309, %v306
      %v349 = vpack.c.b16 %v313, %v310
      %v350 = vpack.c.b16 %v314, %v311
      %v351 = vpack.c.b16 %v315, %v312
      %v352 = vpack.c.b16 %v319, %v316
      %v353 = vpack.c.b16 %v320, %v317
      %v354 = vpack.c.b16 %v321, %v318
      %v355 = vpack.c.b16 %v325, %v322
      %v356 = vpack.c.b16 %v326, %v323
      %v357 = vpack.c.b16 %v327, %v324
      %v358 = vpack.c.b16 %v331, %v328
      %v359 = vpack.c.b16 %v332, %v329
      %v360 = vpack.c.b16 %v333, %v330
      %v361 = vpack.c.b16 %v337, %v334
      %v362 = vpack.c.b16 %v338, %v335
      %v363 = vpack.c.b16 %v339, %v336
      %388 = vmatprep.subr.bf16.mxu0 %v341
      %389 = vmatpush1.bf16.msra.mxu0 %v340
      %390 = vmatprep.subr.bf16.mxu0 %v344
      %391 = vmatpush1.bf16.msra.mxu0 %v343
      %392 = vmatprep.subr.bf16.mxu0 %v347
      %393 = vmatpush1.bf16.msra.mxu0 %v346
      %394 = vmatprep.subr.bf16.mxu0 %v350
      %395 = vmatpush1.bf16.msra.mxu0 %v349
      %396 = vmatprep.subr.bf16.mxu0 %v353
      %397 = vmatpush1.bf16.msra.mxu0 %v352
      %398 = vmatprep.subr.bf16.mxu0 %v356
      %399 = vmatpush1.bf16.msra.mxu0 %v355
      %400 = vmatprep.subr.bf16.mxu0 %v359
      %401 = vmatpush1.bf16.msra.mxu0 %v358
      %402 = vmatprep.subr.bf16.mxu0 %v362
      %403 = vmatpush1.bf16.msra.mxu0 %v361
      %404 = vmatprep.subr.bf16.mxu0 0
      %405 = vmatpush1.bf16.msra.mxu0 0
      %406 = vmatprep.subr.bf16.mxu0 0
      %407 = vmatpush1.bf16.msra.mxu0 0
      %408 = vmatprep.subr.bf16.mxu0 0
      %409 = vmatpush1.bf16.msra.mxu0 0
      %410 = vmatprep.subr.bf16.mxu0 0
      %411 = vmatpush1.bf16.msra.mxu0 0
      %412 = vmatprep.subr.bf16.mxu0 0
      %413 = vmatpush1.bf16.msra.mxu0 0
      %414 = vmatprep.subr.bf16.mxu0 0
      %415 = vmatpush1.bf16.msra.mxu0 0
      %416 = vmatprep.subr.bf16.mxu0 0
      %417 = vmatpush1.bf16.msra.mxu0 0
      %418 = vmatprep.subr.bf16.mxu0 0
      %419 = vmatpush1.bf16.msra.mxu0 0
      %420 = vmatprep.mubr.bf16.mxu0 0
      %421 = vmatmul.mubr.bf16.gmra.mrb[0].mxu0 %v177
      %v422 = vpop.f32.mrb[0].mxu0
      %v423 = vadd.f32 %v248, %v422
      %v424 = vpop.f32.mrb[0].mxu0
      %v425 = vadd.f32 %v252, %v424
      %v426 = vpop.f32.mrb[0].mxu0
      %v427 = vpop.f32.mrb[0].mxu0
      %428 = vdwg.mxu0
      %429 = vmatprep.subr.bf16.mxu0 0
      %430 = vmatpush1.bf16.msra.mxu0 %v342
      %431 = vmatprep.subr.bf16.mxu0 0
      %432 = vmatpush1.bf16.msra.mxu0 %v345
      %433 = vmatprep.subr.bf16.mxu0 0
      %434 = vmatpush1.bf16.msra.mxu0 %v348
      %435 = vmatprep.subr.bf16.mxu0 0
      %436 = vmatpush1.bf16.msra.mxu0 %v351
      %437 = vmatprep.subr.bf16.mxu0 0
      %438 = vmatpush1.bf16.msra.mxu0 %v354
      %439 = vmatprep.subr.bf16.mxu0 0
      %440 = vmatpush1.bf16.msra.mxu0 %v357
      %441 = vmatprep.subr.bf16.mxu0 0
      %442 = vmatpush1.bf16.msra.mxu0 %v360
      %443 = vmatprep.subr.bf16.mxu0 0
      %444 = vmatpush1.bf16.msra.mxu0 %v363
      %445 = vmatprep.subr.bf16.mxu0 0
      %446 = vmatpush1.bf16.msra.mxu0 0
      %447 = vmatprep.subr.bf16.mxu0 0
      %448 = vmatpush1.bf16.msra.mxu0 0
      %449 = vmatprep.subr.bf16.mxu0 0
      %450 = vmatpush1.bf16.msra.mxu0 0
      %451 = vmatprep.subr.bf16.mxu0 0
      %452 = vmatpush1.bf16.msra.mxu0 0
      %453 = vmatprep.subr.bf16.mxu0 0
      %454 = vmatpush1.bf16.msra.mxu0 0
      %455 = vmatprep.subr.bf16.mxu0 0
      %456 = vmatpush1.bf16.msra.mxu0 0
      %457 = vmatprep.subr.bf16.mxu0 0
      %458 = vmatpush1.bf16.msra.mxu0 0
      %459 = vmatprep.subr.bf16.mxu0 0
      %460 = vmatpush1.bf16.msra.mxu0 0
      %461 = vmatprep.mubr.bf16.mxu0 0
      %462 = vmatmul.mubr.bf16.gmra.mrb[0].mxu0 %v177
      %v463 = vpop.f32.mrb[0].mxu0
      %v464 = vadd.f32 %v256, %v463
      %v465 = vpop.f32.mrb[0].mxu0
      %v466 = vpop.f32.mrb[0].mxu0
      %v467 = vpop.f32.mrb[0].mxu0
      %468 = vdwg.mxu0
      %v469 = vld [vmem:[#allocation11] sm:$0xf]
      %v470 = vld [vmem:[#allocation11 + $0x4] sm:$0xf]
      %v471 = vld [vmem:[#allocation11 + $0x8] sm:$0xf]
      %v472 = vld [vmem:[#allocation11 + $0xc] sm:$0xf]
      %v473 = vld [vmem:[#allocation11 + $0x10] sm:$0xf]
      %v474 = vld [vmem:[#allocation11 + $0x14] sm:$0xf]
      %v475 = vld [vmem:[#allocation11 + $0x18] sm:$0xf]
      %v476 = vld [vmem:[#allocation11 + $0x1c] sm:$0xf]
      %v477 = vld [vmem:[#allocation11 + $0x20] sm:$0xf]
      %v478 = vld [vmem:[#allocation11 + $0x24] sm:$0xf]
      %v479 = vld [vmem:[#allocation11 + $0x28] sm:$0xf]
      %v480 = vld [vmem:[#allocation11 + $0x2c] sm:$0xf]
      %v481 = vld [vmem:[#allocation11 + $0x30] sm:$0xf]
      %v482 = vld [vmem:[#allocation11 + $0x34] sm:$0xf]
      %v483 = vld [vmem:[#allocation11 + $0x38] sm:$0xf]
      %v484 = vld [vmem:[#allocation11 + $0x3c] sm:$0xf]
      %v501 = vunpack.c.l.b16 %v469
      %v502 = vunpack.c.l.b16 %v470
      %v503 = vunpack.c.l.b16 %v471
      %v504 = vunpack.c.l.b16 %v472
      %v505 = vunpack.c.l.b16 %v473
      %v506 = vunpack.c.l.b16 %v474
      %v507 = vunpack.c.l.b16 %v475
      %v508 = vunpack.c.l.b16 %v476
      %v509 = vunpack.c.l.b16 %v477
      %v510 = vunpack.c.l.b16 %v478
      %v511 = vunpack.c.l.b16 %v479
      %v512 = vunpack.c.l.b16 %v480
      %v513 = vunpack.c.l.b16 %v481
      %v514 = vunpack.c.l.b16 %v482
      %v515 = vunpack.c.l.b16 %v483
      %v516 = vunpack.c.l.b16 %v484
      %v517 = vpack.c.b16 %v502, %v501
      %v518 = vpack.c.b16 %v504, %v503
      %v519 = vpack.c.b16 %v506, %v505
      %v520 = vpack.c.b16 %v508, %v507
      %v521 = vpack.c.b16 %v510, %v509
      %v522 = vpack.c.b16 %v512, %v511
      %v523 = vpack.c.b16 %v514, %v513
      %v524 = vpack.c.b16 %v516, %v515
      %533 = vmatprep.subr.bf16.mxu0 0
      %534 = vmatpush1.bf16.msra.mxu0 %v517
      %535 = vmatprep.subr.bf16.mxu0 0
      %536 = vmatpush1.bf16.msra.mxu0 %v518
      %537 = vmatprep.subr.bf16.mxu0 0
      %538 = vmatpush1.bf16.msra.mxu0 %v519
      %539 = vmatprep.subr.bf16.mxu0 0
      %540 = vmatpush1.bf16.msra.mxu0 %v520
      %541 = vmatprep.subr.bf16.mxu0 0
      %542 = vmatpush1.bf16.msra.mxu0 %v521
      %543 = vmatprep.subr.bf16.mxu0 0
      %544 = vmatpush1.bf16.msra.mxu0 %v522
      %545 = vmatprep.subr.bf16.mxu0 0
      %546 = vmatpush1.bf16.msra.mxu0 %v523
      %547 = vmatprep.subr.bf16.mxu0 0
      %548 = vmatpush1.bf16.msra.mxu0 %v524
      %549 = vmatprep.subr.bf16.mxu0 0
      %550 = vmatpush1.bf16.msra.mxu0 0
      %551 = vmatprep.subr.bf16.mxu0 0
      %552 = vmatpush1.bf16.msra.mxu0 0
      %553 = vmatprep.subr.bf16.mxu0 0
      %554 = vmatpush1.bf16.msra.mxu0 0
      %555 = vmatprep.subr.bf16.mxu0 0
      %556 = vmatpush1.bf16.msra.mxu0 0
      %557 = vmatprep.subr.bf16.mxu0 0
      %558 = vmatpush1.bf16.msra.mxu0 0
      %559 = vmatprep.subr.bf16.mxu0 0
      %560 = vmatpush1.bf16.msra.mxu0 0
      %561 = vmatprep.subr.bf16.mxu0 0
      %562 = vmatpush1.bf16.msra.mxu0 0
      %563 = vmatprep.subr.bf16.mxu0 0
      %564 = vmatpush1.bf16.msra.mxu0 0
      %565 = vmatprep.mubr.bf16.mxu0 0
      %566 = vmatmul.mubr.bf16.gmra.mrb[0].mxu0 %v177
      %v567 = vpop.f32.mrb[0].mxu0
      %v568 = vadd.f32 0.0, %v567
      %v569 = vpop.f32.mrb[0].mxu0
      %v570 = vpop.f32.mrb[0].mxu0
      %v571 = vpop.f32.mrb[0].mxu0
      %572 = vdwg.mxu0
      %v573 = vld [vmem:[#allocation10] sm:$0xf]
      %v574 = vld [vmem:[#allocation10 + $0x4] sm:$0xf]
      %v575 = vld [vmem:[#allocation10 + $0x8] sm:$0xf]
      %v576 = vld [vmem:[#allocation10 + $0xc] sm:$0xf]
      %v577 = vld [vmem:[#allocation10 + $0x10] sm:$0xf]
      %v578 = vld [vmem:[#allocation10 + $0x14] sm:$0xf]
      %v579 = vld [vmem:[#allocation10 + $0x18] sm:$0xf]
      %v580 = vld [vmem:[#allocation10 + $0x1c] sm:$0xf]
      %v581 = vld [vmem:[#allocation10 + $0x20] sm:$0xf]
      %v582 = vld [vmem:[#allocation10 + $0x24] sm:$0xf]
      %v583 = vld [vmem:[#allocation10 + $0x28] sm:$0xf]
      %v584 = vld [vmem:[#allocation10 + $0x2c] sm:$0xf]
      %v585 = vld [vmem:[#allocation10 + $0x30] sm:$0xf]
      %v586 = vld [vmem:[#allocation10 + $0x34] sm:$0xf]
      %v587 = vld [vmem:[#allocation10 + $0x38] sm:$0xf]
      %v588 = vld [vmem:[#allocation10 + $0x3c] sm:$0xf]
      %v589 = vld [vmem:[#allocation10 + $0x40] sm:$0xf]
      %v590 = vld [vmem:[#allocation10 + $0x44] sm:$0xf]
      %v591 = vld [vmem:[#allocation10 + $0x48] sm:$0xf]
      %v592 = vld [vmem:[#allocation10 + $0x4c] sm:$0xf]
      %v593 = vld [vmem:[#allocation10 + $0x50] sm:$0xf]
      %v594 = vld [vmem:[#allocation10 + $0x54] sm:$0xf]
      %v595 = vld [vmem:[#allocation10 + $0x58] sm:$0xf]
      %v596 = vld [vmem:[#allocation10 + $0x5c] sm:$0xf]
      %v597 = vld [vmem:[#allocation10 + $0x60] sm:$0xf]
      %v598 = vld [vmem:[#allocation10 + $0x64] sm:$0xf]
      %v599 = vld [vmem:[#allocation10 + $0x68] sm:$0xf]
      %v600 = vld [vmem:[#allocation10 + $0x6c] sm:$0xf]
      %v601 = vld [vmem:[#allocation10 + $0x70] sm:$0xf]
      %v602 = vld [vmem:[#allocation10 + $0x74] sm:$0xf]
      %v603 = vld [vmem:[#allocation10 + $0x78] sm:$0xf]
      %v604 = vld [vmem:[#allocation10 + $0x7c] sm:$0xf]
      %v605 = vld [vmem:[#allocation10 + $0x80] sm:$0xf]
      %v606 = vld [vmem:[#allocation10 + $0x84] sm:$0xf]
      %v607 = vld [vmem:[#allocation10 + $0x88] sm:$0xf]
      %v608 = vld [vmem:[#allocation10 + $0x8c] sm:$0xf]
      %v609 = vld [vmem:[#allocation10 + $0x90] sm:$0xf]
      %v610 = vld [vmem:[#allocation10 + $0x94] sm:$0xf]
      %v611 = vld [vmem:[#allocation10 + $0x98] sm:$0xf]
      %v612 = vld [vmem:[#allocation10 + $0x9c] sm:$0xf]
      %v613 = vld [vmem:[#allocation10 + $0xa0] sm:$0xf]
      %v614 = vld [vmem:[#allocation10 + $0xa4] sm:$0xf]
      %v615 = vld [vmem:[#allocation10 + $0xa8] sm:$0xf]
      %v616 = vld [vmem:[#allocation10 + $0xac] sm:$0xf]
      %v617 = vld [vmem:[#allocation10 + $0xb0] sm:$0xf]
      %v618 = vld [vmem:[#allocation10 + $0xb4] sm:$0xf]
      %v619 = vld [vmem:[#allocation10 + $0xb8] sm:$0xf]
      %v620 = vld [vmem:[#allocation10 + $0xbc] sm:$0xf]
      %v621 = vld [vmem:[#allocation10 + $0xc0] sm:$0xf]
      %v622 = vld [vmem:[#allocation10 + $0xc4] sm:$0xf]
      %v623 = vld [vmem:[#allocation10 + $0xc8] sm:$0xf]
      %v624 = vld [vmem:[#allocation10 + $0xcc] sm:$0xf]
      %v625 = vld [vmem:[#allocation10 + $0xd0] sm:$0xf]
      %v626 = vld [vmem:[#allocation10 + $0xd4] sm:$0xf]
      %v627 = vld [vmem:[#allocation10 + $0xd8] sm:$0xf]
      %v628 = vld [vmem:[#allocation10 + $0xdc] sm:$0xf]
      %v629 = vld [vmem:[#allocation10 + $0xe0] sm:$0xf]
      %v630 = vld [vmem:[#allocation10 + $0xe4] sm:$0xf]
      %v631 = vld [vmem:[#allocation10 + $0xe8] sm:$0xf]
      %v632 = vld [vmem:[#allocation10 + $0xec] sm:$0xf]
      %v633 = vld [vmem:[#allocation10 + $0xf0] sm:$0xf]
      %v634 = vld [vmem:[#allocation10 + $0xf4] sm:$0xf]
      %v635 = vld [vmem:[#allocation10 + $0xf8] sm:$0xf]
      %v636 = vld [vmem:[#allocation10 + $0xfc] sm:$0xf]
      %v637 = vld [vmem:[#allocation10 + $0x100] sm:$0xf]
      %v638 = vld [vmem:[#allocation10 + $0x104] sm:$0xf]
      %v639 = vld [vmem:[#allocation10 + $0x108] sm:$0xf]
      %v640 = vld [vmem:[#allocation10 + $0x10c] sm:$0xf]
      %v641 = vld [vmem:[#allocation10 + $0x110] sm:$0xf]
      %v642 = vld [vmem:[#allocation10 + $0x114] sm:$0xf]
      %v643 = vld [vmem:[#allocation10 + $0x118] sm:$0xf]
      %v644 = vld [vmem:[#allocation10 + $0x11c] sm:$0xf]
      %v645 = vld [vmem:[#allocation10 + $0x120] sm:$0xf]
      %v646 = vld [vmem:[#allocation10 + $0x124] sm:$0xf]
      %v647 = vld [vmem:[#allocation10 + $0x128] sm:$0xf]
      %v648 = vld [vmem:[#allocation10 + $0x12c] sm:$0xf]
      %v649 = vld [vmem:[#allocation10 + $0x130] sm:$0xf]
      %v650 = vld [vmem:[#allocation10 + $0x134] sm:$0xf]
      %v651 = vld [vmem:[#allocation10 + $0x138] sm:$0xf]
      %v652 = vld [vmem:[#allocation10 + $0x13c] sm:$0xf]
      %v653 = vld [vmem:[#allocation10 + $0x140] sm:$0xf]
      %v654 = vld [vmem:[#allocation10 + $0x144] sm:$0xf]
      %v655 = vld [vmem:[#allocation10 + $0x148] sm:$0xf]
      %v656 = vld [vmem:[#allocation10 + $0x14c] sm:$0xf]
      %v657 = vld [vmem:[#allocation10 + $0x150] sm:$0xf]
      %v658 = vld [vmem:[#allocation10 + $0x154] sm:$0xf]
      %v659 = vld [vmem:[#allocation10 + $0x158] sm:$0xf]
      %v660 = vld [vmem:[#allocation10 + $0x15c] sm:$0xf]
      %v661 = vld [vmem:[#allocation10 + $0x160] sm:$0xf]
      %v662 = vld [vmem:[#allocation10 + $0x164] sm:$0xf]
      %v663 = vld [vmem:[#allocation10 + $0x168] sm:$0xf]
      %v664 = vld [vmem:[#allocation10 + $0x16c] sm:$0xf]
      %v665 = vld [vmem:[#allocation10 + $0x170] sm:$0xf]
      %v666 = vld [vmem:[#allocation10 + $0x174] sm:$0xf]
      %v667 = vld [vmem:[#allocation10 + $0x178] sm:$0xf]
      %v668 = vld [vmem:[#allocation10 + $0x17c] sm:$0xf]
      %v669 = vld [vmem:[#allocation10 + $0x180] sm:$0xf]
      %v670 = vld [vmem:[#allocation10 + $0x184] sm:$0xf]
      %v671 = vld [vmem:[#allocation10 + $0x188] sm:$0xf]
      %v672 = vld [vmem:[#allocation10 + $0x18c] sm:$0xf]
      %v673 = vld [vmem:[#allocation10 + $0x190] sm:$0xf]
      %v674 = vld [vmem:[#allocation10 + $0x194] sm:$0xf]
      %v675 = vld [vmem:[#allocation10 + $0x198] sm:$0xf]
      %v676 = vld [vmem:[#allocation10 + $0x19c] sm:$0xf]
      %v677 = vld [vmem:[#allocation10 + $0x1a0] sm:$0xf]
      %v678 = vld [vmem:[#allocation10 + $0x1a4] sm:$0xf]
      %v679 = vld [vmem:[#allocation10 + $0x1a8] sm:$0xf]
      %v680 = vld [vmem:[#allocation10 + $0x1ac] sm:$0xf]
      %v681 = vld [vmem:[#allocation10 + $0x1b0] sm:$0xf]
      %v682 = vld [vmem:[#allocation10 + $0x1b4] sm:$0xf]
      %v683 = vld [vmem:[#allocation10 + $0x1b8] sm:$0xf]
      %v684 = vld [vmem:[#allocation10 + $0x1bc] sm:$0xf]
      %v685 = vld [vmem:[#allocation10 + $0x1c0] sm:$0xf]
      %v686 = vld [vmem:[#allocation10 + $0x1c4] sm:$0xf]
      %v687 = vld [vmem:[#allocation10 + $0x1c8] sm:$0xf]
      %v688 = vld [vmem:[#allocation10 + $0x1cc] sm:$0xf]
      %v689 = vld [vmem:[#allocation10 + $0x1d0] sm:$0xf]
      %v690 = vld [vmem:[#allocation10 + $0x1d4] sm:$0xf]
      %v691 = vld [vmem:[#allocation10 + $0x1d8] sm:$0xf]
      %v692 = vld [vmem:[#allocation10 + $0x1dc] sm:$0xf]
      %v693 = vld [vmem:[#allocation10 + $0x1e0] sm:$0xf]
      %v694 = vld [vmem:[#allocation10 + $0x1e4] sm:$0xf]
      %v695 = vld [vmem:[#allocation10 + $0x1e8] sm:$0xf]
      %v696 = vld [vmem:[#allocation10 + $0x1ec] sm:$0xf]
      %v697 = vld [vmem:[#allocation10 + $0x1f0] sm:$0xf]
      %v698 = vld [vmem:[#allocation10 + $0x1f4] sm:$0xf]
      %v699 = vld [vmem:[#allocation10 + $0x1f8] sm:$0xf]
      %v700 = vld [vmem:[#allocation10 + $0x1fc] sm:$0xf]
      %v701 = vld [vmem:[#allocation13] sm:$0xf]
      %v702 = vld [vmem:[#allocation13 + $0x4] sm:$0xf]
      %v703 = vld [vmem:[#allocation13 + $0x8] sm:$0xf]
      %v704 = vld [vmem:[#allocation13 + $0xc] sm:$0xf]
      %v705 = vld [vmem:[#allocation13 + $0x10] sm:$0xf]
      %v706 = vld [vmem:[#allocation13 + $0x14] sm:$0xf]
      %v707 = vld [vmem:[#allocation13 + $0x18] sm:$0xf]
      %v708 = vld [vmem:[#allocation13 + $0x1c] sm:$0xf]
      %v709 = vld [vmem:[#allocation13 + $0x20] sm:$0xf]
      %v710 = vld [vmem:[#allocation13 + $0x24] sm:$0xf]
      %v711 = vld [vmem:[#allocation13 + $0x28] sm:$0xf]
      %v712 = vld [vmem:[#allocation13 + $0x2c] sm:$0xf]
      %v713 = vld [vmem:[#allocation13 + $0x30] sm:$0xf]
      %v714 = vld [vmem:[#allocation13 + $0x34] sm:$0xf]
      %v715 = vld [vmem:[#allocation13 + $0x38] sm:$0xf]
      %v716 = vld [vmem:[#allocation13 + $0x3c] sm:$0xf]
      %v845 = vunpack.c.l.b16 %v573
      %v846 = vunpack.c.l.b16 %v574
      %v847 = vunpack.c.l.b16 %v575
      %v848 = vunpack.c.l.b16 %v576
      %v849 = vunpack.c.l.b16 %v577
      %v850 = vunpack.c.l.b16 %v578
      %v851 = vunpack.c.l.b16 %v579
      %v852 = vunpack.c.l.b16 %v580
      %v853 = vunpack.c.l.b16 %v581
      %v854 = vunpack.c.l.b16 %v582
      %v855 = vunpack.c.l.b16 %v583
      %v856 = vunpack.c.l.b16 %v584
      %v857 = vunpack.c.l.b16 %v585
      %v858 = vunpack.c.l.b16 %v586
      %v859 = vunpack.c.l.b16 %v587
      %v860 = vunpack.c.l.b16 %v588
      %v861 = vunpack.c.l.b16 %v589
      %v862 = vunpack.c.l.b16 %v590
      %v863 = vunpack.c.l.b16 %v591
      %v864 = vunpack.c.l.b16 %v592
      %v865 = vunpack.c.l.b16 %v593
      %v866 = vunpack.c.l.b16 %v594
      %v867 = vunpack.c.l.b16 %v595
      %v868 = vunpack.c.l.b16 %v596
      %v869 = vunpack.c.l.b16 %v597
      %v870 = vunpack.c.l.b16 %v598
      %v871 = vunpack.c.l.b16 %v599
      %v872 = vunpack.c.l.b16 %v600
      %v873 = vunpack.c.l.b16 %v601
      %v874 = vunpack.c.l.b16 %v602
      %v875 = vunpack.c.l.b16 %v603
      %v876 = vunpack.c.l.b16 %v604
      %v877 = vunpack.c.l.b16 %v605
      %v878 = vunpack.c.l.b16 %v606
      %v879 = vunpack.c.l.b16 %v607
      %v880 = vunpack.c.l.b16 %v608
      %v881 = vunpack.c.l.b16 %v609
      %v882 = vunpack.c.l.b16 %v610
      %v883 = vunpack.c.l.b16 %v611
      %v884 = vunpack.c.l.b16 %v612
      %v885 = vunpack.c.l.b16 %v613
      %v886 = vunpack.c.l.b16 %v614
      %v887 = vunpack.c.l.b16 %v615
      %v888 = vunpack.c.l.b16 %v616
      %v889 = vunpack.c.l.b16 %v617
      %v890 = vunpack.c.l.b16 %v618
      %v891 = vunpack.c.l.b16 %v619
      %v892 = vunpack.c.l.b16 %v620
      %v893 = vunpack.c.l.b16 %v621
      %v894 = vunpack.c.l.b16 %v622
      %v895 = vunpack.c.l.b16 %v623
      %v896 = vunpack.c.l.b16 %v624
      %v897 = vunpack.c.l.b16 %v625
      %v898 = vunpack.c.l.b16 %v626
      %v899 = vunpack.c.l.b16 %v627
      %v900 = vunpack.c.l.b16 %v628
      %v901 = vunpack.c.l.b16 %v629
      %v902 = vunpack.c.l.b16 %v630
      %v903 = vunpack.c.l.b16 %v631
      %v904 = vunpack.c.l.b16 %v632
      %v905 = vunpack.c.l.b16 %v633
      %v906 = vunpack.c.l.b16 %v634
      %v907 = vunpack.c.l.b16 %v635
      %v908 = vunpack.c.l.b16 %v636
      %v909 = vunpack.c.l.b16 %v637
      %v910 = vunpack.c.l.b16 %v638
      %v911 = vunpack.c.l.b16 %v639
      %v912 = vunpack.c.l.b16 %v640
      %v913 = vunpack.c.l.b16 %v641
      %v914 = vunpack.c.l.b16 %v642
      %v915 = vunpack.c.l.b16 %v643
      %v916 = vunpack.c.l.b16 %v644
      %v917 = vunpack.c.l.b16 %v645
      %v918 = vunpack.c.l.b16 %v646
      %v919 = vunpack.c.l.b16 %v647
      %v920 = vunpack.c.l.b16 %v648
      %v921 = vunpack.c.l.b16 %v649
      %v922 = vunpack.c.l.b16 %v650
      %v923 = vunpack.c.l.b16 %v651
      %v924 = vunpack.c.l.b16 %v652
      %v925 = vunpack.c.l.b16 %v653
      %v926 = vunpack.c.l.b16 %v654
      %v927 = vunpack.c.l.b16 %v655
      %v928 = vunpack.c.l.b16 %v656
      %v929 = vunpack.c.l.b16 %v657
      %v930 = vunpack.c.l.b16 %v658
      %v931 = vunpack.c.l.b16 %v659
      %v932 = vunpack.c.l.b16 %v660
      %v933 = vunpack.c.l.b16 %v661
      %v934 = vunpack.c.l.b16 %v662
      %v935 = vunpack.c.l.b16 %v663
      %v936 = vunpack.c.l.b16 %v664
      %v937 = vunpack.c.l.b16 %v665
      %v938 = vunpack.c.l.b16 %v666
      %v939 = vunpack.c.l.b16 %v667
      %v940 = vunpack.c.l.b16 %v668
      %v941 = vunpack.c.l.b16 %v669
      %v942 = vunpack.c.l.b16 %v670
      %v943 = vunpack.c.l.b16 %v671
      %v944 = vunpack.c.l.b16 %v672
      %v945 = vunpack.c.l.b16 %v673
      %v946 = vunpack.c.l.b16 %v674
      %v947 = vunpack.c.l.b16 %v675
      %v948 = vunpack.c.l.b16 %v676
      %v949 = vunpack.c.l.b16 %v677
      %v950 = vunpack.c.l.b16 %v678
      %v951 = vunpack.c.l.b16 %v679
      %v952 = vunpack.c.l.b16 %v680
      %v953 = vunpack.c.l.b16 %v681
      %v954 = vunpack.c.l.b16 %v682
      %v955 = vunpack.c.l.b16 %v683
      %v956 = vunpack.c.l.b16 %v684
      %v957 = vunpack.c.l.b16 %v685
      %v958 = vunpack.c.l.b16 %v686
      %v959 = vunpack.c.l.b16 %v687
      %v960 = vunpack.c.l.b16 %v688
      %v961 = vunpack.c.l.b16 %v689
      %v962 = vunpack.c.l.b16 %v690
      %v963 = vunpack.c.l.b16 %v691
      %v964 = vunpack.c.l.b16 %v692
      %v965 = vunpack.c.l.b16 %v693
      %v966 = vunpack.c.l.b16 %v694
      %v967 = vunpack.c.l.b16 %v695
      %v968 = vunpack.c.l.b16 %v696
      %v969 = vunpack.c.l.b16 %v697
      %v970 = vunpack.c.l.b16 %v698
      %v971 = vunpack.c.l.b16 %v699
      %v972 = vunpack.c.l.b16 %v700
      %v973 = vpack.c.b16 %v846, %v845
      %v974 = vpack.c.b16 %v848, %v847
      %v975 = vpack.c.b16 %v850, %v849
      %v976 = vpack.c.b16 %v852, %v851
      %v977 = vpack.c.b16 %v854, %v853
      %v978 = vpack.c.b16 %v856, %v855
      %v979 = vpack.c.b16 %v858, %v857
      %v980 = vpack.c.b16 %v860, %v859
      %v981 = vpack.c.b16 %v862, %v861
      %v982 = vpack.c.b16 %v864, %v863
      %v983 = vpack.c.b16 %v866, %v865
      %v984 = vpack.c.b16 %v868, %v867
      %v985 = vpack.c.b16 %v870, %v869
      %v986 = vpack.c.b16 %v872, %v871
      %v987 = vpack.c.b16 %v874, %v873
      %v988 = vpack.c.b16 %v876, %v875
      %v989 = vpack.c.b16 %v878, %v877
      %v990 = vpack.c.b16 %v880, %v879
      %v991 = vpack.c.b16 %v882, %v881
      %v992 = vpack.c.b16 %v884, %v883
      %v993 = vpack.c.b16 %v886, %v885
      %v994 = vpack.c.b16 %v888, %v887
      %v995 = vpack.c.b16 %v890, %v889
      %v996 = vpack.c.b16 %v892, %v891
      %v997 = vpack.c.b16 %v894, %v893
      %v998 = vpack.c.b16 %v896, %v895
      %v999 = vpack.c.b16 %v898, %v897
      %v1000 = vpack.c.b16 %v900, %v899
      %v1001 = vpack.c.b16 %v902, %v901
      %v1002 = vpack.c.b16 %v904, %v903
      %v1003 = vpack.c.b16 %v906, %v905
      %v1004 = vpack.c.b16 %v908, %v907
      %v1005 = vpack.c.b16 %v910, %v909
      %v1006 = vpack.c.b16 %v912, %v911
      %v1007 = vpack.c.b16 %v914, %v913
      %v1008 = vpack.c.b16 %v916, %v915
      %v1009 = vpack.c.b16 %v918, %v917
      %v1010 = vpack.c.b16 %v920, %v919
      %v1011 = vpack.c.b16 %v922, %v921
      %v1012 = vpack.c.b16 %v924, %v923
      %v1013 = vpack.c.b16 %v926, %v925
      %v1014 = vpack.c.b16 %v928, %v927
      %v1015 = vpack.c.b16 %v930, %v929
      %v1016 = vpack.c.b16 %v932, %v931
      %v1017 = vpack.c.b16 %v934, %v933
      %v1018 = vpack.c.b16 %v936, %v935
      %v1019 = vpack.c.b16 %v938, %v937
      %v1020 = vpack.c.b16 %v940, %v939
      %v1021 = vpack.c.b16 %v942, %v941
      %v1022 = vpack.c.b16 %v944, %v943
      %v1023 = vpack.c.b16 %v946, %v945
      %v1024 = vpack.c.b16 %v948, %v947
      %v1025 = vpack.c.b16 %v950, %v949
      %v1026 = vpack.c.b16 %v952, %v951
      %v1027 = vpack.c.b16 %v954, %v953
      %v1028 = vpack.c.b16 %v956, %v955
      %v1029 = vpack.c.b16 %v958, %v957
      %v1030 = vpack.c.b16 %v960, %v959
      %v1031 = vpack.c.b16 %v962, %v961
      %v1032 = vpack.c.b16 %v964, %v963
      %v1033 = vpack.c.b16 %v966, %v965
      %v1034 = vpack.c.b16 %v968, %v967
      %v1035 = vpack.c.b16 %v970, %v969
      %v1036 = vpack.c.b16 %v972, %v971
      %v1117 = vunpack.c.l.b16 %v701
      %v1118 = vunpack.c.l.b16 %v702
      %v1119 = vunpack.c.l.b16 %v703
      %v1120 = vunpack.c.l.b16 %v704
      %v1121 = vunpack.c.l.b16 %v705
      %v1122 = vunpack.c.l.b16 %v706
      %v1123 = vunpack.c.l.b16 %v707
      %v1124 = vunpack.c.l.b16 %v708
      %v1125 = vunpack.c.l.b16 %v709
      %v1126 = vunpack.c.l.b16 %v710
      %v1127 = vunpack.c.l.b16 %v711
      %v1128 = vunpack.c.l.b16 %v712
      %v1129 = vunpack.c.l.b16 %v713
      %v1130 = vunpack.c.l.b16 %v714
      %v1131 = vunpack.c.l.b16 %v715
      %v1132 = vunpack.c.l.b16 %v716
      %v1133 = vpack.c.b16 %v1118, %v1117
      %v1134 = vpack.c.b16 %v1120, %v1119
      %v1135 = vpack.c.b16 %v1122, %v1121
      %v1136 = vpack.c.b16 %v1124, %v1123
      %v1137 = vpack.c.b16 %v1126, %v1125
      %v1138 = vpack.c.b16 %v1128, %v1127
      %v1139 = vpack.c.b16 %v1130, %v1129
      %v1140 = vpack.c.b16 %v1132, %v1131
      %1149 = vmatprep.subr.bf16.mxu0 0
      %1150 = vmatpush1.bf16.msra.mxu0 %v1133
      %1151 = vmatprep.subr.bf16.mxu0 0
      %1152 = vmatpush1.bf16.msra.mxu0 %v1134
      %1153 = vmatprep.subr.bf16.mxu0 0
      %1154 = vmatpush1.bf16.msra.mxu0 %v1135
      %1155 = vmatprep.subr.bf16.mxu0 0
      %1156 = vmatpush1.bf16.msra.mxu0 %v1136
      %1157 = vmatprep.subr.bf16.mxu0 0
      %1158 = vmatpush1.bf16.msra.mxu0 %v1137
      %1159 = vmatprep.subr.bf16.mxu0 0
      %1160 = vmatpush1.bf16.msra.mxu0 %v1138
      %1161 = vmatprep.subr.bf16.mxu0 0
      %1162 = vmatpush1.bf16.msra.mxu0 %v1139
      %1163 = vmatprep.subr.bf16.mxu0 0
      %1164 = vmatpush1.bf16.msra.mxu0 %v1140
      %1165 = vmatprep.subr.bf16.mxu0 0
      %1166 = vmatpush1.bf16.msra.mxu0 0
      %1167 = vmatprep.subr.bf16.mxu0 0
      %1168 = vmatpush1.bf16.msra.mxu0 0
      %1169 = vmatprep.subr.bf16.mxu0 0
      %1170 = vmatpush1.bf16.msra.mxu0 0
      %1171 = vmatprep.subr.bf16.mxu0 0
      %1172 = vmatpush1.bf16.msra.mxu0 0
      %1173 = vmatprep.subr.bf16.mxu0 0
      %1174 = vmatpush1.bf16.msra.mxu0 0
      %1175 = vmatprep.subr.bf16.mxu0 0
      %1176 = vmatpush1.bf16.msra.mxu0 0
      %1177 = vmatprep.subr.bf16.mxu0 0
      %1178 = vmatpush1.bf16.msra.mxu0 0
      %1179 = vmatprep.subr.bf16.mxu0 0
      %1180 = vmatpush1.bf16.msra.mxu0 0
      %1181 = vmatprep.mubr.bf16.mxu0 0
      %1182 = vmatmul.mubr.bf16.gmra.mrb[0].mxu0 %v973
      %v1183 = vpop.f32.mrb[0].mxu0
      %v1184 = vadd.f32 0.0, %v1183
      %v1185 = vpop.f32.mrb[0].mxu0
      %v1186 = vpop.f32.mrb[0].mxu0
      %v1187 = vadd.f32 0.0, %v1186
      %v1188 = vpop.f32.mrb[0].mxu0
      %1189 = vmatprep.mubr.bf16.mxu0 0
      %1190 = vmatmul.mubr.bf16.gmra.mrb[0].mxu0 %v974
      %v1191 = vpop.f32.mrb[0].mxu0
      %v1192 = vadd.f32 0.0, %v1191
      %v1193 = vpop.f32.mrb[0].mxu0
      %v1194 = vpop.f32.mrb[0].mxu0
      %v1195 = vadd.f32 0.0, %v1194
      %v1196 = vpop.f32.mrb[0].mxu0
      %1197 = vmatprep.mubr.bf16.mxu0 0
      %1198 = vmatmul.mubr.bf16.gmra.mrb[0].mxu0 %v975
      %v1199 = vpop.f32.mrb[0].mxu0
      %v1200 = vadd.f32 0.0, %v1199
      %v1201 = vpop.f32.mrb[0].mxu0
      %v1202 = vpop.f32.mrb[0].mxu0
      %v1203 = vadd.f32 0.0, %v1202
      %v1204 = vpop.f32.mrb[0].mxu0
      %1205 = vmatprep.mubr.bf16.mxu0 0
      %1206 = vmatmul.mubr.bf16.gmra.mrb[0].mxu0 %v976
      %v1207 = vpop.f32.mrb[0].mxu0
      %v1208 = vadd.f32 0.0, %v1207
      %v1209 = vpop.f32.mrb[0].mxu0
      %v1210 = vpop.f32.mrb[0].mxu0
      %v1211 = vadd.f32 0.0, %v1210
      %v1212 = vpop.f32.mrb[0].mxu0
      %1213 = vmatprep.mubr.bf16.mxu0 0
      %1214 = vmatmul.mubr.bf16.gmra.mrb[0].mxu0 %v977
      %v1215 = vpop.f32.mrb[0].mxu0
      %v1216 = vadd.f32 0.0, %v1215
      %v1217 = vpop.f32.mrb[0].mxu0
      %v1218 = vpop.f32.mrb[0].mxu0
      %v1219 = vadd.f32 0.0, %v1218
      %v1220 = vpop.f32.mrb[0].mxu0
      %1221 = vmatprep.mubr.bf16.mxu0 0
      %1222 = vmatmul.mubr.bf16.gmra.mrb[0].mxu0 %v978
      %v1223 = vpop.f32.mrb[0].mxu0
      %v1224 = vadd.f32 0.0, %v1223
      %v1225 = vpop.f32.mrb[0].mxu0
      %v1226 = vpop.f32.mrb[0].mxu0
      %v1227 = vadd.f32 0.0, %v1226
      %v1228 = vpop.f32.mrb[0].mxu0
      %1229 = vmatprep.mubr.bf16.mxu0 0
      %1230 = vmatmul.mubr.bf16.gmra.mrb[0].mxu0 %v979
      %v1231 = vpop.f32.mrb[0].mxu0
      %v1232 = vadd.f32 0.0, %v1231
      %v1233 = vpop.f32.mrb[0].mxu0
      %v1234 = vpop.f32.mrb[0].mxu0
      %v1235 = vadd.f32 0.0, %v1234
      %v1236 = vpop.f32.mrb[0].mxu0
      %1237 = vmatprep.mubr.bf16.mxu0 0
      %1238 = vmatmul.mubr.bf16.gmra.mrb[0].mxu0 %v980
      %v1239 = vpop.f32.mrb[0].mxu0
      %v1240 = vadd.f32 0.0, %v1239
      %v1241 = vpop.f32.mrb[0].mxu0
      %v1242 = vpop.f32.mrb[0].mxu0
      %v1243 = vadd.f32 0.0, %v1242
      %v1244 = vpop.f32.mrb[0].mxu0
      %1245 = vmatprep.mubr.bf16.mxu0 0
      %1246 = vmatmul.mubr.bf16.gmra.mrb[0].mxu0 %v981
      %v1247 = vpop.f32.mrb[0].mxu0
      %v1248 = vadd.f32 0.0, %v1247
      %v1249 = vpop.f32.mrb[0].mxu0
      %v1250 = vpop.f32.mrb[0].mxu0
      %v1251 = vadd.f32 0.0, %v1250
      %v1252 = vpop.f32.mrb[0].mxu0
      %1253 = vmatprep.mubr.bf16.mxu0 0
      %1254 = vmatmul.mubr.bf16.gmra.mrb[0].mxu0 %v982
      %v1255 = vpop.f32.mrb[0].mxu0
      %v1256 = vadd.f32 0.0, %v1255
      %v1257 = vpop.f32.mrb[0].mxu0
      %v1258 = vpop.f32.mrb[0].mxu0
      %v1259 = vadd.f32 0.0, %v1258
      %v1260 = vpop.f32.mrb[0].mxu0
      %1261 = vmatprep.mubr.bf16.mxu0 0
      %1262 = vmatmul.mubr.bf16.gmra.mrb[0].mxu0 %v983
      %v1263 = vpop.f32.mrb[0].mxu0
      %v1264 = vadd.f32 0.0, %v1263
      %v1265 = vpop.f32.mrb[0].mxu0
      %v1266 = vpop.f32.mrb[0].mxu0
      %v1267 = vadd.f32 0.0, %v1266
      %v1268 = vpop.f32.mrb[0].mxu0
      %1269 = vmatprep.mubr.bf16.mxu0 0
      %1270 = vmatmul.mubr.bf16.gmra.mrb[0].mxu0 %v984
      %v1271 = vpop.f32.mrb[0].mxu0
      %v1272 = vadd.f32 0.0, %v1271
      %v1273 = vpop.f32.mrb[0].mxu0
      %v1274 = vpop.f32.mrb[0].mxu0
      %v1275 = vadd.f32 0.0, %v1274
      %v1276 = vpop.f32.mrb[0].mxu0
      %1277 = vmatprep.mubr.bf16.mxu0 0
      %1278 = vmatmul.mubr.bf16.gmra.mrb[0].mxu0 %v985
      %v1279 = vpop.f32.mrb[0].mxu0
      %v1280 = vadd.f32 0.0, %v1279
      %v1281 = vpop.f32.mrb[0].mxu0
      %v1282 = vpop.f32.mrb[0].mxu0
      %v1283 = vadd.f32 0.0, %v1282
      %v1284 = vpop.f32.mrb[0].mxu0
      %1285 = vmatprep.mubr.bf16.mxu0 0
      %1286 = vmatmul.mubr.bf16.gmra.mrb[0].mxu0 %v986
      %v1287 = vpop.f32.mrb[0].mxu0
      %v1288 = vadd.f32 0.0, %v1287
      %v1289 = vpop.f32.mrb[0].mxu0
      %v1290 = vpop.f32.mrb[0].mxu0
      %v1291 = vadd.f32 0.0, %v1290
      %v1292 = vpop.f32.mrb[0].mxu0
      %1293 = vmatprep.mubr.bf16.mxu0 0
      %1294 = vmatmul.mubr.bf16.gmra.mrb[0].mxu0 %v987
      %v1295 = vpop.f32.mrb[0].mxu0
      %v1296 = vadd.f32 0.0, %v1295
      %v1297 = vpop.f32.mrb[0].mxu0
      %v1298 = vpop.f32.mrb[0].mxu0
      %v1299 = vadd.f32 0.0, %v1298
      %v1300 = vpop.f32.mrb[0].mxu0
      %1301 = vmatprep.mubr.bf16.mxu0 0
      %1302 = vmatmul.mubr.bf16.gmra.mrb[0].mxu0 %v988
      %v1303 = vpop.f32.mrb[0].mxu0
      %v1304 = vadd.f32 0.0, %v1303
      %v1305 = vpop.f32.mrb[0].mxu0
      %v1306 = vpop.f32.mrb[0].mxu0
      %v1307 = vadd.f32 0.0, %v1306
      %v1308 = vpop.f32.mrb[0].mxu0
      %1309 = vmatprep.mubr.bf16.mxu0 0
      %1310 = vmatmul.mubr.bf16.gmra.mrb[0].mxu0 %v989
      %v1311 = vpop.f32.mrb[0].mxu0
      %v1312 = vadd.f32 0.0, %v1311
      %v1313 = vpop.f32.mrb[0].mxu0
      %v1314 = vpop.f32.mrb[0].mxu0
      %v1315 = vadd.f32 0.0, %v1314
      %v1316 = vpop.f32.mrb[0].mxu0
      %1317 = vmatprep.mubr.bf16.mxu0 0
      %1318 = vmatmul.mubr.bf16.gmra.mrb[0].mxu0 %v990
      %v1319 = vpop.f32.mrb[0].mxu0
      %v1320 = vadd.f32 0.0, %v1319
      %v1321 = vpop.f32.mrb[0].mxu0
      %v1322 = vpop.f32.mrb[0].mxu0
      %v1323 = vadd.f32 0.0, %v1322
      %v1324 = vpop.f32.mrb[0].mxu0
      %1325 = vmatprep.mubr.bf16.mxu0 0
      %1326 = vmatmul.mubr.bf16.gmra.mrb[0].mxu0 %v991
      %v1327 = vpop.f32.mrb[0].mxu0
      %v1328 = vadd.f32 0.0, %v1327
      %v1329 = vpop.f32.mrb[0].mxu0
      %v1330 = vpop.f32.mrb[0].mxu0
      %v1331 = vadd.f32 0.0, %v1330
      %v1332 = vpop.f32.mrb[0].mxu0
      %1333 = vmatprep.mubr.bf16.mxu0 0
      %1334 = vmatmul.mubr.bf16.gmra.mrb[0].mxu0 %v992
      %v1335 = vpop.f32.mrb[0].mxu0
      %v1336 = vadd.f32 0.0, %v1335
      %v1337 = vpop.f32.mrb[0].mxu0
      %v1338 = vpop.f32.mrb[0].mxu0
      %v1339 = vadd.f32 0.0, %v1338
      %v1340 = vpop.f32.mrb[0].mxu0
      %1341 = vmatprep.mubr.bf16.mxu0 0
      %1342 = vmatmul.mubr.bf16.gmra.mrb[0].mxu0 %v993
      %v1343 = vpop.f32.mrb[0].mxu0
      %v1344 = vadd.f32 0.0, %v1343
      %v1345 = vpop.f32.mrb[0].mxu0
      %v1346 = vpop.f32.mrb[0].mxu0
      %v1347 = vadd.f32 0.0, %v1346
      %v1348 = vpop.f32.mrb[0].mxu0
      %1349 = vmatprep.mubr.bf16.mxu0 0
      %1350 = vmatmul.mubr.bf16.gmra.mrb[0].mxu0 %v994
      %v1351 = vpop.f32.mrb[0].mxu0
      %v1352 = vadd.f32 0.0, %v1351
      %v1353 = vpop.f32.mrb[0].mxu0
      %v1354 = vpop.f32.mrb[0].mxu0
      %v1355 = vadd.f32 0.0, %v1354
      %v1356 = vpop.f32.mrb[0].mxu0
      %1357 = vmatprep.mubr.bf16.mxu0 0
      %1358 = vmatmul.mubr.bf16.gmra.mrb[0].mxu0 %v995
      %v1359 = vpop.f32.mrb[0].mxu0
      %v1360 = vadd.f32 0.0, %v1359
      %v1361 = vpop.f32.mrb[0].mxu0
      %v1362 = vpop.f32.mrb[0].mxu0
      %v1363 = vadd.f32 0.0, %v1362
      %v1364 = vpop.f32.mrb[0].mxu0
      %1365 = vmatprep.mubr.bf16.mxu0 0
      %1366 = vmatmul.mubr.bf16.gmra.mrb[0].mxu0 %v996
      %v1367 = vpop.f32.mrb[0].mxu0
      %v1368 = vadd.f32 0.0, %v1367
      %v1369 = vpop.f32.mrb[0].mxu0
      %v1370 = vpop.f32.mrb[0].mxu0
      %v1371 = vadd.f32 0.0, %v1370
      %v1372 = vpop.f32.mrb[0].mxu0
      %1373 = vmatprep.mubr.bf16.mxu0 0
      %1374 = vmatmul.mubr.bf16.gmra.mrb[0].mxu0 %v997
      %v1375 = vpop.f32.mrb[0].mxu0
      %v1376 = vadd.f32 0.0, %v1375
      %v1377 = vpop.f32.mrb[0].mxu0
      %v1378 = vpop.f32.mrb[0].mxu0
      %v1379 = vadd.f32 0.0, %v1378
      %v1380 = vpop.f32.mrb[0].mxu0
      %1381 = vmatprep.mubr.bf16.mxu0 0
      %1382 = vmatmul.mubr.bf16.gmra.mrb[0].mxu0 %v998
      %v1383 = vpop.f32.mrb[0].mxu0
      %v1384 = vadd.f32 0.0, %v1383
      %v1385 = vpop.f32.mrb[0].mxu0
      %v1386 = vpop.f32.mrb[0].mxu0
      %v1387 = vadd.f32 0.0, %v1386
      %v1388 = vpop.f32.mrb[0].mxu0
      %1389 = vmatprep.mubr.bf16.mxu0 0
      %1390 = vmatmul.mubr.bf16.gmra.mrb[0].mxu0 %v999
      %v1391 = vpop.f32.mrb[0].mxu0
      %v1392 = vadd.f32 0.0, %v1391
      %v1393 = vpop.f32.mrb[0].mxu0
      %v1394 = vpop.f32.mrb[0].mxu0
      %v1395 = vadd.f32 0.0, %v1394
      %v1396 = vpop.f32.mrb[0].mxu0
      %1397 = vmatprep.mubr.bf16.mxu0 0
      %1398 = vmatmul.mubr.bf16.gmra.mrb[0].mxu0 %v1000
      %v1399 = vpop.f32.mrb[0].mxu0
      %v1400 = vadd.f32 0.0, %v1399
      %v1401 = vpop.f32.mrb[0].mxu0
      %v1402 = vpop.f32.mrb[0].mxu0
      %v1403 = vadd.f32 0.0, %v1402
      %v1404 = vpop.f32.mrb[0].mxu0
      %1405 = vmatprep.mubr.bf16.mxu0 0
      %1406 = vmatmul.mubr.bf16.gmra.mrb[0].mxu0 %v1001
      %v1407 = vpop.f32.mrb[0].mxu0
      %v1408 = vadd.f32 0.0, %v1407
      %v1409 = vpop.f32.mrb[0].mxu0
      %v1410 = vpop.f32.mrb[0].mxu0
      %v1411 = vadd.f32 0.0, %v1410
      %v1412 = vpop.f32.mrb[0].mxu0
      %1413 = vmatprep.mubr.bf16.mxu0 0
      %1414 = vmatmul.mubr.bf16.gmra.mrb[0].mxu0 %v1002
      %v1415 = vpop.f32.mrb[0].mxu0
      %v1416 = vadd.f32 0.0, %v1415
      %v1417 = vpop.f32.mrb[0].mxu0
      %v1418 = vpop.f32.mrb[0].mxu0
      %v1419 = vadd.f32 0.0, %v1418
      %v1420 = vpop.f32.mrb[0].mxu0
      %1421 = vmatprep.mubr.bf16.mxu0 0
      %1422 = vmatmul.mubr.bf16.gmra.mrb[0].mxu0 %v1003
      %v1423 = vpop.f32.mrb[0].mxu0
      %v1424 = vadd.f32 0.0, %v1423
      %v1425 = vpop.f32.mrb[0].mxu0
      %v1426 = vpop.f32.mrb[0].mxu0
      %v1427 = vadd.f32 0.0, %v1426
      %v1428 = vpop.f32.mrb[0].mxu0
      %1429 = vmatprep.mubr.bf16.mxu0 0
      %1430 = vmatmul.mubr.bf16.gmra.mrb[0].mxu0 %v1004
      %v1431 = vpop.f32.mrb[0].mxu0
      %v1432 = vadd.f32 0.0, %v1431
      %v1433 = vpop.f32.mrb[0].mxu0
      %v1434 = vpop.f32.mrb[0].mxu0
      %v1435 = vadd.f32 0.0, %v1434
      %v1436 = vpop.f32.mrb[0].mxu0
      %1437 = vmatprep.mubr.bf16.mxu0 0
      %1438 = vmatmul.mubr.bf16.gmra.mrb[0].mxu0 %v1005
      %v1439 = vpop.f32.mrb[0].mxu0
      %v1440 = vadd.f32 0.0, %v1439
      %v1441 = vpop.f32.mrb[0].mxu0
      %v1442 = vpop.f32.mrb[0].mxu0
      %v1443 = vadd.f32 0.0, %v1442
      %v1444 = vpop.f32.mrb[0].mxu0
      %1445 = vmatprep.mubr.bf16.mxu0 0
      %1446 = vmatmul.mubr.bf16.gmra.mrb[0].mxu0 %v1006
      %v1447 = vpop.f32.mrb[0].mxu0
      %v1448 = vadd.f32 0.0, %v1447
      %v1449 = vpop.f32.mrb[0].mxu0
      %v1450 = vpop.f32.mrb[0].mxu0
      %v1451 = vadd.f32 0.0, %v1450
      %v1452 = vpop.f32.mrb[0].mxu0
      %1453 = vmatprep.mubr.bf16.mxu0 0
      %1454 = vmatmul.mubr.bf16.gmra.mrb[0].mxu0 %v1007
      %v1455 = vpop.f32.mrb[0].mxu0
      %v1456 = vadd.f32 0.0, %v1455
      %v1457 = vpop.f32.mrb[0].mxu0
      %v1458 = vpop.f32.mrb[0].mxu0
      %v1459 = vadd.f32 0.0, %v1458
      %v1460 = vpop.f32.mrb[0].mxu0
      %1461 = vmatprep.mubr.bf16.mxu0 0
      %1462 = vmatmul.mubr.bf16.gmra.mrb[0].mxu0 %v1008
      %v1463 = vpop.f32.mrb[0].mxu0
      %v1464 = vadd.f32 0.0, %v1463
      %v1465 = vpop.f32.mrb[0].mxu0
      %v1466 = vpop.f32.mrb[0].mxu0
      %v1467 = vadd.f32 0.0, %v1466
      %v1468 = vpop.f32.mrb[0].mxu0
      %1469 = vmatprep.mubr.bf16.mxu0 0
      %1470 = vmatmul.mubr.bf16.gmra.mrb[0].mxu0 %v1009
      %v1471 = vpop.f32.mrb[0].mxu0
      %v1472 = vadd.f32 0.0, %v1471
      %v1473 = vpop.f32.mrb[0].mxu0
      %v1474 = vpop.f32.mrb[0].mxu0
      %v1475 = vadd.f32 0.0, %v1474
      %v1476 = vpop.f32.mrb[0].mxu0
      %1477 = vmatprep.mubr.bf16.mxu0 0
      %1478 = vmatmul.mubr.bf16.gmra.mrb[0].mxu0 %v1010
      %v1479 = vpop.f32.mrb[0].mxu0
      %v1480 = vadd.f32 0.0, %v1479
      %v1481 = vpop.f32.mrb[0].mxu0
      %v1482 = vpop.f32.mrb[0].mxu0
      %v1483 = vadd.f32 0.0, %v1482
      %v1484 = vpop.f32.mrb[0].mxu0
      %1485 = vmatprep.mubr.bf16.mxu0 0
      %1486 = vmatmul.mubr.bf16.gmra.mrb[0].mxu0 %v1011
      %v1487 = vpop.f32.mrb[0].mxu0
      %v1488 = vadd.f32 0.0, %v1487
      %v1489 = vpop.f32.mrb[0].mxu0
      %v1490 = vpop.f32.mrb[0].mxu0
      %v1491 = vadd.f32 0.0, %v1490
      %v1492 = vpop.f32.mrb[0].mxu0
      %1493 = vmatprep.mubr.bf16.mxu0 0
      %1494 = vmatmul.mubr.bf16.gmra.mrb[0].mxu0 %v1012
      %v1495 = vpop.f32.mrb[0].mxu0
      %v1496 = vadd.f32 0.0, %v1495
      %v1497 = vpop.f32.mrb[0].mxu0
      %v1498 = vpop.f32.mrb[0].mxu0
      %v1499 = vadd.f32 0.0, %v1498
      %v1500 = vpop.f32.mrb[0].mxu0
      %1501 = vmatprep.mubr.bf16.mxu0 0
      %1502 = vmatmul.mubr.bf16.gmra.mrb[0].mxu0 %v1013
      %v1503 = vpop.f32.mrb[0].mxu0
      %v1504 = vadd.f32 0.0, %v1503
      %v1505 = vpop.f32.mrb[0].mxu0
      %v1506 = vpop.f32.mrb[0].mxu0
      %v1507 = vadd.f32 0.0, %v1506
      %v1508 = vpop.f32.mrb[0].mxu0
      %1509 = vmatprep.mubr.bf16.mxu0 0
      %1510 = vmatmul.mubr.bf16.gmra.mrb[0].mxu0 %v1014
      %v1511 = vpop.f32.mrb[0].mxu0
      %v1512 = vadd.f32 0.0, %v1511
      %v1513 = vpop.f32.mrb[0].mxu0
      %v1514 = vpop.f32.mrb[0].mxu0
      %v1515 = vadd.f32 0.0, %v1514
      %v1516 = vpop.f32.mrb[0].mxu0
      %1517 = vmatprep.mubr.bf16.mxu0 0
      %1518 = vmatmul.mubr.bf16.gmra.mrb[0].mxu0 %v1015
      %v1519 = vpop.f32.mrb[0].mxu0
      %v1520 = vadd.f32 0.0, %v1519
      %v1521 = vpop.f32.mrb[0].mxu0
      %v1522 = vpop.f32.mrb[0].mxu0
      %v1523 = vadd.f32 0.0, %v1522
      %v1524 = vpop.f32.mrb[0].mxu0
      %1525 = vmatprep.mubr.bf16.mxu0 0
      %1526 = vmatmul.mubr.bf16.gmra.mrb[0].mxu0 %v1016
      %v1527 = vpop.f32.mrb[0].mxu0
      %v1528 = vadd.f32 0.0, %v1527
      %v1529 = vpop.f32.mrb[0].mxu0
      %v1530 = vpop.f32.mrb[0].mxu0
      %v1531 = vadd.f32 0.0, %v1530
      %v1532 = vpop.f32.mrb[0].mxu0
      %1533 = vmatprep.mubr.bf16.mxu0 0
      %1534 = vmatmul.mubr.bf16.gmra.mrb[0].mxu0 %v1017
      %v1535 = vpop.f32.mrb[0].mxu0
      %v1536 = vadd.f32 0.0, %v1535
      %v1537 = vpop.f32.mrb[0].mxu0
      %v1538 = vpop.f32.mrb[0].mxu0
      %v1539 = vadd.f32 0.0, %v1538
      %v1540 = vpop.f32.mrb[0].mxu0
      %1541 = vmatprep.mubr.bf16.mxu0 0
      %1542 = vmatmul.mubr.bf16.gmra.mrb[0].mxu0 %v1018
      %v1543 = vpop.f32.mrb[0].mxu0
      %v1544 = vadd.f32 0.0, %v1543
      %v1545 = vpop.f32.mrb[0].mxu0
      %v1546 = vpop.f32.mrb[0].mxu0
      %v1547 = vadd.f32 0.0, %v1546
      %v1548 = vpop.f32.mrb[0].mxu0
      %1549 = vmatprep.mubr.bf16.mxu0 0
      %1550 = vmatmul.mubr.bf16.gmra.mrb[0].mxu0 %v1019
      %v1551 = vpop.f32.mrb[0].mxu0
      %v1552 = vadd.f32 0.0, %v1551
      %v1553 = vpop.f32.mrb[0].mxu0
      %v1554 = vpop.f32.mrb[0].mxu0
      %v1555 = vadd.f32 0.0, %v1554
      %v1556 = vpop.f32.mrb[0].mxu0
      %1557 = vmatprep.mubr.bf16.mxu0 0
      %1558 = vmatmul.mubr.bf16.gmra.mrb[0].mxu0 %v1020
      %v1559 = vpop.f32.mrb[0].mxu0
      %v1560 = vadd.f32 0.0, %v1559
      %v1561 = vpop.f32.mrb[0].mxu0
      %v1562 = vpop.f32.mrb[0].mxu0
      %v1563 = vadd.f32 0.0, %v1562
      %v1564 = vpop.f32.mrb[0].mxu0
      %1565 = vmatprep.mubr.bf16.mxu0 0
      %1566 = vmatmul.mubr.bf16.gmra.mrb[0].mxu0 %v1021
      %v1567 = vpop.f32.mrb[0].mxu0
      %v1568 = vadd.f32 0.0, %v1567
      %v1569 = vpop.f32.mrb[0].mxu0
      %v1570 = vpop.f32.mrb[0].mxu0
      %v1571 = vadd.f32 0.0, %v1570
      %v1572 = vpop.f32.mrb[0].mxu0
      %1573 = vmatprep.mubr.bf16.mxu0 0
      %1574 = vmatmul.mubr.bf16.gmra.mrb[0].mxu0 %v1022
      %v1575 = vpop.f32.mrb[0].mxu0
      %v1576 = vadd.f32 0.0, %v1575
      %v1577 = vpop.f32.mrb[0].mxu0
      %v1578 = vpop.f32.mrb[0].mxu0
      %v1579 = vadd.f32 0.0, %v1578
      %v1580 = vpop.f32.mrb[0].mxu0
      %1581 = vmatprep.mubr.bf16.mxu0 0
      %1582 = vmatmul.mubr.bf16.gmra.mrb[0].mxu0 %v1023
      %v1583 = vpop.f32.mrb[0].mxu0
      %v1584 = vadd.f32 0.0, %v1583
      %v1585 = vpop.f32.mrb[0].mxu0
      %v1586 = vpop.f32.mrb[0].mxu0
      %v1587 = vadd.f32 0.0, %v1586
      %v1588 = vpop.f32.mrb[0].mxu0
      %1589 = vmatprep.mubr.bf16.mxu0 0
      %1590 = vmatmul.mubr.bf16.gmra.mrb[0].mxu0 %v1024
      %v1591 = vpop.f32.mrb[0].mxu0
      %v1592 = vadd.f32 0.0, %v1591
      %v1593 = vpop.f32.mrb[0].mxu0
      %v1594 = vpop.f32.mrb[0].mxu0
      %v1595 = vadd.f32 0.0, %v1594
      %v1596 = vpop.f32.mrb[0].mxu0
      %1597 = vmatprep.mubr.bf16.mxu0 0
      %1598 = vmatmul.mubr.bf16.gmra.mrb[0].mxu0 %v1025
      %v1599 = vpop.f32.mrb[0].mxu0
      %v1600 = vadd.f32 0.0, %v1599
      %v1601 = vpop.f32.mrb[0].mxu0
      %v1602 = vpop.f32.mrb[0].mxu0
      %v1603 = vadd.f32 0.0, %v1602
      %v1604 = vpop.f32.mrb[0].mxu0
      %1605 = vmatprep.mubr.bf16.mxu0 0
      %1606 = vmatmul.mubr.bf16.gmra.mrb[0].mxu0 %v1026
      %v1607 = vpop.f32.mrb[0].mxu0
      %v1608 = vadd.f32 0.0, %v1607
      %v1609 = vpop.f32.mrb[0].mxu0
      %v1610 = vpop.f32.mrb[0].mxu0
      %v1611 = vadd.f32 0.0, %v1610
      %v1612 = vpop.f32.mrb[0].mxu0
      %1613 = vmatprep.mubr.bf16.mxu0 0
      %1614 = vmatmul.mubr.bf16.gmra.mrb[0].mxu0 %v1027
      %v1615 = vpop.f32.mrb[0].mxu0
      %v1616 = vadd.f32 0.0, %v1615
      %v1617 = vpop.f32.mrb[0].mxu0
      %v1618 = vpop.f32.mrb[0].mxu0
      %v1619 = vadd.f32 0.0, %v1618
      %v1620 = vpop.f32.mrb[0].mxu0
      %1621 = vmatprep.mubr.bf16.mxu0 0
      %1622 = vmatmul.mubr.bf16.gmra.mrb[0].mxu0 %v1028
      %v1623 = vpop.f32.mrb[0].mxu0
      %v1624 = vadd.f32 0.0, %v1623
      %v1625 = vpop.f32.mrb[0].mxu0
      %v1626 = vpop.f32.mrb[0].mxu0
      %v1627 = vadd.f32 0.0, %v1626
      %v1628 = vpop.f32.mrb[0].mxu0
      %1629 = vmatprep.mubr.bf16.mxu0 0
      %1630 = vmatmul.mubr.bf16.gmra.mrb[0].mxu0 %v1029
      %v1631 = vpop.f32.mrb[0].mxu0
      %v1632 = vadd.f32 0.0, %v1631
      %v1633 = vpop.f32.mrb[0].mxu0
      %v1634 = vpop.f32.mrb[0].mxu0
      %v1635 = vadd.f32 0.0, %v1634
      %v1636 = vpop.f32.mrb[0].mxu0
      %1637 = vmatprep.mubr.bf16.mxu0 0
      %1638 = vmatmul.mubr.bf16.gmra.mrb[0].mxu0 %v1030
      %v1639 = vpop.f32.mrb[0].mxu0
      %v1640 = vadd.f32 0.0, %v1639
      %v1641 = vpop.f32.mrb[0].mxu0
      %v1642 = vpop.f32.mrb[0].mxu0
      %v1643 = vadd.f32 0.0, %v1642
      %v1644 = vpop.f32.mrb[0].mxu0
      %1645 = vmatprep.mubr.bf16.mxu0 0
      %1646 = vmatmul.mubr.bf16.gmra.mrb[0].mxu0 %v1031
      %v1647 = vpop.f32.mrb[0].mxu0
      %v1648 = vadd.f32 0.0, %v1647
      %v1649 = vpop.f32.mrb[0].mxu0
      %v1650 = vpop.f32.mrb[0].mxu0
      %v1651 = vadd.f32 0.0, %v1650
      %v1652 = vpop.f32.mrb[0].mxu0
      %1653 = vmatprep.mubr.bf16.mxu0 0
      %1654 = vmatmul.mubr.bf16.gmra.mrb[0].mxu0 %v1032
      %v1655 = vpop.f32.mrb[0].mxu0
      %v1656 = vadd.f32 0.0, %v1655
      %v1657 = vpop.f32.mrb[0].mxu0
      %v1658 = vpop.f32.mrb[0].mxu0
      %v1659 = vadd.f32 0.0, %v1658
      %v1660 = vpop.f32.mrb[0].mxu0
      %1661 = vmatprep.mubr.bf16.mxu0 0
      %1662 = vmatmul.mubr.bf16.gmra.mrb[0].mxu0 %v1033
      %v1663 = vpop.f32.mrb[0].mxu0
      %v1664 = vadd.f32 0.0, %v1663
      %v1665 = vpop.f32.mrb[0].mxu0
      %v1666 = vpop.f32.mrb[0].mxu0
      %v1667 = vadd.f32 0.0, %v1666
      %v1668 = vpop.f32.mrb[0].mxu0
      %1669 = vmatprep.mubr.bf16.mxu0 0
      %1670 = vmatmul.mubr.bf16.gmra.mrb[0].mxu0 %v1034
      %v1671 = vpop.f32.mrb[0].mxu0
      %v1672 = vadd.f32 0.0, %v1671
      %v1673 = vpop.f32.mrb[0].mxu0
      %v1674 = vpop.f32.mrb[0].mxu0
      %v1675 = vadd.f32 0.0, %v1674
      %v1676 = vpop.f32.mrb[0].mxu0
      %1677 = vmatprep.mubr.bf16.mxu0 0
      %1678 = vmatmul.mubr.bf16.gmra.mrb[0].mxu0 %v1035
      %v1679 = vpop.f32.mrb[0].mxu0
      %v1680 = vadd.f32 0.0, %v1679
      %v1681 = vpop.f32.mrb[0].mxu0
      %v1682 = vpop.f32.mrb[0].mxu0
      %v1683 = vadd.f32 0.0, %v1682
      %v1684 = vpop.f32.mrb[0].mxu0
      %1685 = vmatprep.mubr.bf16.mxu0 0
      %1686 = vmatmul.mubr.bf16.gmra.mrb[0].mxu0 %v1036
      %v1687 = vpop.f32.mrb[0].mxu0
      %v1688 = vadd.f32 0.0, %v1687
      %v1689 = vpop.f32.mrb[0].mxu0
      %v1690 = vpop.f32.mrb[0].mxu0
      %v1691 = vadd.f32 0.0, %v1690
      %v1692 = vpop.f32.mrb[0].mxu0
      %1693 = vdwg.mxu0
      %v1695 = vcombine.high %v568, %v568
      %v1697 = vunpack.c.l.s4 1966171168
      %v1698 = vunpack.c.0.s8 %v1697
      %v1699 = vlaneseq
      %v1700 = vshrl.u32 %v1699, 7
      %v1701 = vsub.s32 %v1698, %v1700
      %v1702 = vrot.slane %v568, %v1701
      %v1704 = vunpack.c.l.s4 1966171168
      %v1705 = vunpack.c.0.s8 %v1704
      %v1706 = vlaneseq
      %v1707 = vshrl.u32 %v1706, 7
      %v1708 = vsub.s32 %v1705, %v1707
      %v1709 = vrot.slane %v1695, %v1708
      %v1710 = vcombine.high %v1702, %v1702
      %v1711 = vcombine.high %v1709, %v1709
      %v1713 = vunpack.c.l.s4 1966171168
      %v1714 = vunpack.c.0.s8 %v1713
      %v1715 = vlaneseq
      %v1716 = vshrl.u32 %v1715, 7
      %v1717 = vsub.s32 %v1714, %v1716
      %v1718 = vrot.slane %v1702, %v1717
      %v1720 = vunpack.c.l.s4 1966171168
      %v1721 = vunpack.c.0.s8 %v1720
      %v1722 = vlaneseq
      %v1723 = vshrl.u32 %v1722, 7
      %v1724 = vsub.s32 %v1721, %v1723
      %v1725 = vrot.slane %v1709, %v1724
      %v1727 = vunpack.c.l.s4 1966171168
      %v1728 = vunpack.c.0.s8 %v1727
      %v1729 = vlaneseq
      %v1730 = vshrl.u32 %v1729, 7
      %v1731 = vsub.s32 %v1728, %v1730
      %v1732 = vrot.slane %v1710, %v1731
      %v1734 = vunpack.c.l.s4 1966171168
      %v1735 = vunpack.c.0.s8 %v1734
      %v1736 = vlaneseq
      %v1737 = vshrl.u32 %v1736, 7
      %v1738 = vsub.s32 %v1735, %v1737
      %v1739 = vrot.slane %v1711, %v1738
      %v1740 = vcombine.high %v1718, %v1718
      %v1741 = vcombine.high %v1725, %v1725
      %v1742 = vcombine.high %v1732, %v1732
      %v1743 = vcombine.high %v1739, %v1739
      %v1744 = vlaneseq
      %v1745 = vshrl.u32 %v1744, 7
      %v1746 = vsub.s32 0, %v1745
      %v1747 = vrot.slane %v1718, %v1746
      %v1748 = vlaneseq
      %v1749 = vshrl.u32 %v1748, 7
      %v1750 = vsub.s32 0, %v1749
      %v1751 = vrot.slane %v1732, %v1750
      %v1752 = vlaneseq
      %v1753 = vshrl.u32 %v1752, 7
      %v1754 = vsub.s32 0, %v1753
      %v1755 = vrot.slane %v1740, %v1754
      %v1756 = vlaneseq
      %v1757 = vshrl.u32 %v1756, 7
      %v1758 = vsub.s32 0, %v1757
      %v1759 = vrot.slane %v1742, %v1758
      %v1760 = vlaneseq
      %v1761 = vshrl.u32 %v1760, 7
      %v1762 = vsub.s32 0, %v1761
      %v1763 = vrot.slane %v1725, %v1762
      %v1764 = vlaneseq
      %v1765 = vshrl.u32 %v1764, 7
      %v1766 = vsub.s32 0, %v1765
      %v1767 = vrot.slane %v1739, %v1766
      %v1768 = vlaneseq
      %v1769 = vshrl.u32 %v1768, 7
      %v1770 = vsub.s32 0, %v1769
      %v1771 = vrot.slane %v1741, %v1770
      %v1772 = vlaneseq
      %v1773 = vshrl.u32 %v1772, 7
      %v1774 = vsub.s32 0, %v1773
      %v1775 = vrot.slane %v1743, %v1774
      %v1784 = vadd.f32 %v1184, %v1747
      %v1785 = vadd.f32 %v1187, %v1747
      %v1786 = vadd.f32 %v1192, %v1747
      %v1787 = vadd.f32 %v1195, %v1747
      %v1788 = vadd.f32 %v1200, %v1747
      %v1789 = vadd.f32 %v1203, %v1747
      %v1790 = vadd.f32 %v1208, %v1747
      %v1791 = vadd.f32 %v1211, %v1747
      %v1792 = vadd.f32 %v1216, %v1747
      %v1793 = vadd.f32 %v1219, %v1747
      %v1794 = vadd.f32 %v1224, %v1747
      %v1795 = vadd.f32 %v1227, %v1747
      %v1796 = vadd.f32 %v1232, %v1747
      %v1797 = vadd.f32 %v1235, %v1747
      %v1798 = vadd.f32 %v1240, %v1747
      %v1799 = vadd.f32 %v1243, %v1747
      %v1800 = vadd.f32 %v1248, %v1751
      %v1801 = vadd.f32 %v1251, %v1751
      %v1802 = vadd.f32 %v1256, %v1751
      %v1803 = vadd.f32 %v1259, %v1751
      %v1804 = vadd.f32 %v1264, %v1751
      %v1805 = vadd.f32 %v1267, %v1751
      %v1806 = vadd.f32 %v1272, %v1751
      %v1807 = vadd.f32 %v1275, %v1751
      %v1808 = vadd.f32 %v1280, %v1751
      %v1809 = vadd.f32 %v1283, %v1751
      %v1810 = vadd.f32 %v1288, %v1751
      %v1811 = vadd.f32 %v1291, %v1751
      %v1812 = vadd.f32 %v1296, %v1751
      %v1813 = vadd.f32 %v1299, %v1751
      %v1814 = vadd.f32 %v1304, %v1751
      %v1815 = vadd.f32 %v1307, %v1751
      %v1816 = vadd.f32 %v1312, %v1755
      %v1817 = vadd.f32 %v1315, %v1755
      %v1818 = vadd.f32 %v1320, %v1755
      %v1819 = vadd.f32 %v1323, %v1755
      %v1820 = vadd.f32 %v1328, %v1755
      %v1821 = vadd.f32 %v1331, %v1755
      %v1822 = vadd.f32 %v1336, %v1755
      %v1823 = vadd.f32 %v1339, %v1755
      %v1824 = vadd.f32 %v1344, %v1755
      %v1825 = vadd.f32 %v1347, %v1755
      %v1826 = vadd.f32 %v1352, %v1755
      %v1827 = vadd.f32 %v1355, %v1755
      %v1828 = vadd.f32 %v1360, %v1755
      %v1829 = vadd.f32 %v1363, %v1755
      %v1830 = vadd.f32 %v1368, %v1755
      %v1831 = vadd.f32 %v1371, %v1755
      %v1832 = vadd.f32 %v1376, %v1759
      %v1833 = vadd.f32 %v1379, %v1759
      %v1834 = vadd.f32 %v1384, %v1759
      %v1835 = vadd.f32 %v1387, %v1759
      %v1836 = vadd.f32 %v1392, %v1759
      %v1837 = vadd.f32 %v1395, %v1759
      %v1838 = vadd.f32 %v1400, %v1759
      %v1839 = vadd.f32 %v1403, %v1759
      %v1840 = vadd.f32 %v1408, %v1759
      %v1841 = vadd.f32 %v1411, %v1759
      %v1842 = vadd.f32 %v1416, %v1759
      %v1843 = vadd.f32 %v1419, %v1759
      %v1844 = vadd.f32 %v1424, %v1759
      %v1845 = vadd.f32 %v1427, %v1759
      %v1846 = vadd.f32 %v1432, %v1759
      %v1847 = vadd.f32 %v1435, %v1759
      %v1848 = vadd.f32 %v1440, %v1763
      %v1849 = vadd.f32 %v1443, %v1763
      %v1850 = vadd.f32 %v1448, %v1763
      %v1851 = vadd.f32 %v1451, %v1763
      %v1852 = vadd.f32 %v1456, %v1763
      %v1853 = vadd.f32 %v1459, %v1763
      %v1854 = vadd.f32 %v1464, %v1763
      %v1855 = vadd.f32 %v1467, %v1763
      %v1856 = vadd.f32 %v1472, %v1763
      %v1857 = vadd.f32 %v1475, %v1763
      %v1858 = vadd.f32 %v1480, %v1763
      %v1859 = vadd.f32 %v1483, %v1763
      %v1860 = vadd.f32 %v1488, %v1763
      %v1861 = vadd.f32 %v1491, %v1763
      %v1862 = vadd.f32 %v1496, %v1763
      %v1863 = vadd.f32 %v1499, %v1763
      %v1864 = vadd.f32 %v1504, %v1767
      %v1865 = vadd.f32 %v1507, %v1767
      %v1866 = vadd.f32 %v1512, %v1767
      %v1867 = vadd.f32 %v1515, %v1767
      %v1868 = vadd.f32 %v1520, %v1767
      %v1869 = vadd.f32 %v1523, %v1767
      %v1870 = vadd.f32 %v1528, %v1767
      %v1871 = vadd.f32 %v1531, %v1767
      %v1872 = vadd.f32 %v1536, %v1767
      %v1873 = vadd.f32 %v1539, %v1767
      %v1874 = vadd.f32 %v1544, %v1767
      %v1875 = vadd.f32 %v1547, %v1767
      %v1876 = vadd.f32 %v1552, %v1767
      %v1877 = vadd.f32 %v1555, %v1767
      %v1878 = vadd.f32 %v1560, %v1767
      %v1879 = vadd.f32 %v1563, %v1767
      %v1880 = vadd.f32 %v1568, %v1771
      %v1881 = vadd.f32 %v1571, %v1771
      %v1882 = vadd.f32 %v1576, %v1771
      %v1883 = vadd.f32 %v1579, %v1771
      %v1884 = vadd.f32 %v1584, %v1771
      %v1885 = vadd.f32 %v1587, %v1771
      %v1886 = vadd.f32 %v1592, %v1771
      %v1887 = vadd.f32 %v1595, %v1771
      %v1888 = vadd.f32 %v1600, %v1771
      %v1889 = vadd.f32 %v1603, %v1771
      %v1890 = vadd.f32 %v1608, %v1771
      %v1891 = vadd.f32 %v1611, %v1771
      %v1892 = vadd.f32 %v1616, %v1771
      %v1893 = vadd.f32 %v1619, %v1771
      %v1894 = vadd.f32 %v1624, %v1771
      %v1895 = vadd.f32 %v1627, %v1771
      %v1896 = vadd.f32 %v1632, %v1775
      %v1897 = vadd.f32 %v1635, %v1775
      %v1898 = vadd.f32 %v1640, %v1775
      %v1899 = vadd.f32 %v1643, %v1775
      %v1900 = vadd.f32 %v1648, %v1775
      %v1901 = vadd.f32 %v1651, %v1775
      %v1902 = vadd.f32 %v1656, %v1775
      %v1903 = vadd.f32 %v1659, %v1775
      %v1904 = vadd.f32 %v1664, %v1775
      %v1905 = vadd.f32 %v1667, %v1775
      %v1906 = vadd.f32 %v1672, %v1775
      %v1907 = vadd.f32 %v1675, %v1775
      %v1908 = vadd.f32 %v1680, %v1775
      %v1909 = vadd.f32 %v1683, %v1775
      %v1910 = vadd.f32 %v1688, %v1775
      %v1911 = vadd.f32 %v1691, %v1775
      %v1912 = vld [vmem:[%s5] sm:$0x1]
      %v1914 = vlaneseq
      %v1915 = vshrl.u32 %v1914, 7
      %v1916 = vsub.s32 0, %v1915
      %v1917 = vrot.slane %v1912, %v1916
      %v1919 = vadd.f32 %v1784, %v1917
      %v1920 = vadd.f32 %v1785, %v1917
      %v1921 = vadd.f32 %v1786, %v1917
      %v1922 = vadd.f32 %v1787, %v1917
      %v1923 = vadd.f32 %v1788, %v1917
      %v1924 = vadd.f32 %v1789, %v1917
      %v1925 = vadd.f32 %v1790, %v1917
      %v1926 = vadd.f32 %v1791, %v1917
      %v1927 = vadd.f32 %v1792, %v1917
      %v1928 = vadd.f32 %v1793, %v1917
      %v1929 = vadd.f32 %v1794, %v1917
      %v1930 = vadd.f32 %v1795, %v1917
      %v1931 = vadd.f32 %v1796, %v1917
      %v1932 = vadd.f32 %v1797, %v1917
      %v1933 = vadd.f32 %v1798, %v1917
      %v1934 = vadd.f32 %v1799, %v1917
      %v1935 = vadd.f32 %v1800, %v1917
      %v1936 = vadd.f32 %v1801, %v1917
      %v1937 = vadd.f32 %v1802, %v1917
      %v1938 = vadd.f32 %v1803, %v1917
      %v1939 = vadd.f32 %v1804, %v1917
      %v1940 = vadd.f32 %v1805, %v1917
      %v1941 = vadd.f32 %v1806, %v1917
      %v1942 = vadd.f32 %v1807, %v1917
      %v1943 = vadd.f32 %v1808, %v1917
      %v1944 = vadd.f32 %v1809, %v1917
      %v1945 = vadd.f32 %v1810, %v1917
      %v1946 = vadd.f32 %v1811, %v1917
      %v1947 = vadd.f32 %v1812, %v1917
      %v1948 = vadd.f32 %v1813, %v1917
      %v1949 = vadd.f32 %v1814, %v1917
      %v1950 = vadd.f32 %v1815, %v1917
      %v1951 = vadd.f32 %v1816, %v1917
      %v1952 = vadd.f32 %v1817, %v1917
      %v1953 = vadd.f32 %v1818, %v1917
      %v1954 = vadd.f32 %v1819, %v1917
      %v1955 = vadd.f32 %v1820, %v1917
      %v1956 = vadd.f32 %v1821, %v1917
      %v1957 = vadd.f32 %v1822, %v1917
      %v1958 = vadd.f32 %v1823, %v1917
      %v1959 = vadd.f32 %v1824, %v1917
      %v1960 = vadd.f32 %v1825, %v1917
      %v1961 = vadd.f32 %v1826, %v1917
      %v1962 = vadd.f32 %v1827, %v1917
      %v1963 = vadd.f32 %v1828, %v1917
      %v1964 = vadd.f32 %v1829, %v1917
      %v1965 = vadd.f32 %v1830, %v1917
      %v1966 = vadd.f32 %v1831, %v1917
      %v1967 = vadd.f32 %v1832, %v1917
      %v1968 = vadd.f32 %v1833, %v1917
      %v1969 = vadd.f32 %v1834, %v1917
      %v1970 = vadd.f32 %v1835, %v1917
      %v1971 = vadd.f32 %v1836, %v1917
      %v1972 = vadd.f32 %v1837, %v1917
      %v1973 = vadd.f32 %v1838, %v1917
      %v1974 = vadd.f32 %v1839, %v1917
      %v1975 = vadd.f32 %v1840, %v1917
      %v1976 = vadd.f32 %v1841, %v1917
      %v1977 = vadd.f32 %v1842, %v1917
      %v1978 = vadd.f32 %v1843, %v1917
      %v1979 = vadd.f32 %v1844, %v1917
      %v1980 = vadd.f32 %v1845, %v1917
      %v1981 = vadd.f32 %v1846, %v1917
      %v1982 = vadd.f32 %v1847, %v1917
      %v1983 = vadd.f32 %v1848, %v1917
      %v1984 = vadd.f32 %v1849, %v1917
      %v1985 = vadd.f32 %v1850, %v1917
      %v1986 = vadd.f32 %v1851, %v1917
      %v1987 = vadd.f32 %v1852, %v1917
      %v1988 = vadd.f32 %v1853, %v1917
      %v1989 = vadd.f32 %v1854, %v1917
      %v1990 = vadd.f32 %v1855, %v1917
      %v1991 = vadd.f32 %v1856, %v1917
      %v1992 = vadd.f32 %v1857, %v1917
      %v1993 = vadd.f32 %v1858, %v1917
      %v1994 = vadd.f32 %v1859, %v1917
      %v1995 = vadd.f32 %v1860, %v1917
      %v1996 = vadd.f32 %v1861, %v1917
      %v1997 = vadd.f32 %v1862, %v1917
      %v1998 = vadd.f32 %v1863, %v1917
      %v1999 = vadd.f32 %v1864, %v1917
      %v2000 = vadd.f32 %v1865, %v1917
      %v2001 = vadd.f32 %v1866, %v1917
      %v2002 = vadd.f32 %v1867, %v1917
      %v2003 = vadd.f32 %v1868, %v1917
      %v2004 = vadd.f32 %v1869, %v1917
      %v2005 = vadd.f32 %v1870, %v1917
      %v2006 = vadd.f32 %v1871, %v1917
      %v2007 = vadd.f32 %v1872, %v1917
      %v2008 = vadd.f32 %v1873, %v1917
      %v2009 = vadd.f32 %v1874, %v1917
      %v2010 = vadd.f32 %v1875, %v1917
      %v2011 = vadd.f32 %v1876, %v1917
      %v2012 = vadd.f32 %v1877, %v1917
      %v2013 = vadd.f32 %v1878, %v1917
      %v2014 = vadd.f32 %v1879, %v1917
      %v2015 = vadd.f32 %v1880, %v1917
      %v2016 = vadd.f32 %v1881, %v1917
      %v2017 = vadd.f32 %v1882, %v1917
      %v2018 = vadd.f32 %v1883, %v1917
      %v2019 = vadd.f32 %v1884, %v1917
      %v2020 = vadd.f32 %v1885, %v1917
      %v2021 = vadd.f32 %v1886, %v1917
      %v2022 = vadd.f32 %v1887, %v1917
      %v2023 = vadd.f32 %v1888, %v1917
      %v2024 = vadd.f32 %v1889, %v1917
      %v2025 = vadd.f32 %v1890, %v1917
      %v2026 = vadd.f32 %v1891, %v1917
      %v2027 = vadd.f32 %v1892, %v1917
      %v2028 = vadd.f32 %v1893, %v1917
      %v2029 = vadd.f32 %v1894, %v1917
      %v2030 = vadd.f32 %v1895, %v1917
      %v2031 = vadd.f32 %v1896, %v1917
      %v2032 = vadd.f32 %v1897, %v1917
      %v2033 = vadd.f32 %v1898, %v1917
      %v2034 = vadd.f32 %v1899, %v1917
      %v2035 = vadd.f32 %v1900, %v1917
      %v2036 = vadd.f32 %v1901, %v1917
      %v2037 = vadd.f32 %v1902, %v1917
      %v2038 = vadd.f32 %v1903, %v1917
      %v2039 = vadd.f32 %v1904, %v1917
      %v2040 = vadd.f32 %v1905, %v1917
      %v2041 = vadd.f32 %v1906, %v1917
      %v2042 = vadd.f32 %v1907, %v1917
      %v2043 = vadd.f32 %v1908, %v1917
      %v2044 = vadd.f32 %v1909, %v1917
      %v2045 = vadd.f32 %v1910, %v1917
      %v2046 = vadd.f32 %v1911, %v1917
      %v2047 = vmax.f32 %v1919, 0.0
      %v2048 = vmax.f32 %v1920, 0.0
      %v2049 = vmax.f32 %v1921, 0.0
      %v2050 = vmax.f32 %v1922, 0.0
      %v2051 = vmax.f32 %v1923, 0.0
      %v2052 = vmax.f32 %v1924, 0.0
      %v2053 = vmax.f32 %v1925, 0.0
      %v2054 = vmax.f32 %v1926, 0.0
      %v2055 = vmax.f32 %v1927, 0.0
      %v2056 = vmax.f32 %v1928, 0.0
      %v2057 = vmax.f32 %v1929, 0.0
      %v2058 = vmax.f32 %v1930, 0.0
      %v2059 = vmax.f32 %v1931, 0.0
      %v2060 = vmax.f32 %v1932, 0.0
      %v2061 = vmax.f32 %v1933, 0.0
      %v2062 = vmax.f32 %v1934, 0.0
      %v2063 = vmax.f32 %v1935, 0.0
      %v2064 = vmax.f32 %v1936, 0.0
      %v2065 = vmax.f32 %v1937, 0.0
      %v2066 = vmax.f32 %v1938, 0.0
      %v2067 = vmax.f32 %v1939, 0.0
      %v2068 = vmax.f32 %v1940, 0.0
      %v2069 = vmax.f32 %v1941, 0.0
      %v2070 = vmax.f32 %v1942, 0.0
      %v2071 = vmax.f32 %v1943, 0.0
      %v2072 = vmax.f32 %v1944, 0.0
      %v2073 = vmax.f32 %v1945, 0.0
      %v2074 = vmax.f32 %v1946, 0.0
      %v2075 = vmax.f32 %v1947, 0.0
      %v2076 = vmax.f32 %v1948, 0.0
      %v2077 = vmax.f32 %v1949, 0.0
      %v2078 = vmax.f32 %v1950, 0.0
      %v2079 = vmax.f32 %v1951, 0.0
      %v2080 = vmax.f32 %v1952, 0.0
      %v2081 = vmax.f32 %v1953, 0.0
      %v2082 = vmax.f32 %v1954, 0.0
      %v2083 = vmax.f32 %v1955, 0.0
      %v2084 = vmax.f32 %v1956, 0.0
      %v2085 = vmax.f32 %v1957, 0.0
      %v2086 = vmax.f32 %v1958, 0.0
      %v2087 = vmax.f32 %v1959, 0.0
      %v2088 = vmax.f32 %v1960, 0.0
      %v2089 = vmax.f32 %v1961, 0.0
      %v2090 = vmax.f32 %v1962, 0.0
      %v2091 = vmax.f32 %v1963, 0.0
      %v2092 = vmax.f32 %v1964, 0.0
      %v2093 = vmax.f32 %v1965, 0.0
      %v2094 = vmax.f32 %v1966, 0.0
      %v2095 = vmax.f32 %v1967, 0.0
      %v2096 = vmax.f32 %v1968, 0.0
      %v2097 = vmax.f32 %v1969, 0.0
      %v2098 = vmax.f32 %v1970, 0.0
      %v2099 = vmax.f32 %v1971, 0.0
      %v2100 = vmax.f32 %v1972, 0.0
      %v2101 = vmax.f32 %v1973, 0.0
      %v2102 = vmax.f32 %v1974, 0.0
      %v2103 = vmax.f32 %v1975, 0.0
      %v2104 = vmax.f32 %v1976, 0.0
      %v2105 = vmax.f32 %v1977, 0.0
      %v2106 = vmax.f32 %v1978, 0.0
      %v2107 = vmax.f32 %v1979, 0.0
      %v2108 = vmax.f32 %v1980, 0.0
      %v2109 = vmax.f32 %v1981, 0.0
      %v2110 = vmax.f32 %v1982, 0.0
      %v2111 = vmax.f32 %v1983, 0.0
      %v2112 = vmax.f32 %v1984, 0.0
      %v2113 = vmax.f32 %v1985, 0.0
      %v2114 = vmax.f32 %v1986, 0.0
      %v2115 = vmax.f32 %v1987, 0.0
      %v2116 = vmax.f32 %v1988, 0.0
      %v2117 = vmax.f32 %v1989, 0.0
      %v2118 = vmax.f32 %v1990, 0.0
      %v2119 = vmax.f32 %v1991, 0.0
      %v2120 = vmax.f32 %v1992, 0.0
      %v2121 = vmax.f32 %v1993, 0.0
      %v2122 = vmax.f32 %v1994, 0.0
      %v2123 = vmax.f32 %v1995, 0.0
      %v2124 = vmax.f32 %v1996, 0.0
      %v2125 = vmax.f32 %v1997, 0.0
      %v2126 = vmax.f32 %v1998, 0.0
      %v2127 = vmax.f32 %v1999, 0.0
      %v2128 = vmax.f32 %v2000, 0.0
      %v2129 = vmax.f32 %v2001, 0.0
      %v2130 = vmax.f32 %v2002, 0.0
      %v2131 = vmax.f32 %v2003, 0.0
      %v2132 = vmax.f32 %v2004, 0.0
      %v2133 = vmax.f32 %v2005, 0.0
      %v2134 = vmax.f32 %v2006, 0.0
      %v2135 = vmax.f32 %v2007, 0.0
      %v2136 = vmax.f32 %v2008, 0.0
      %v2137 = vmax.f32 %v2009, 0.0
      %v2138 = vmax.f32 %v2010, 0.0
      %v2139 = vmax.f32 %v2011, 0.0
      %v2140 = vmax.f32 %v2012, 0.0
      %v2141 = vmax.f32 %v2013, 0.0
      %v2142 = vmax.f32 %v2014, 0.0
      %v2143 = vmax.f32 %v2015, 0.0
      %v2144 = vmax.f32 %v2016, 0.0
      %v2145 = vmax.f32 %v2017, 0.0
      %v2146 = vmax.f32 %v2018, 0.0
      %v2147 = vmax.f32 %v2019, 0.0
      %v2148 = vmax.f32 %v2020, 0.0
      %v2149 = vmax.f32 %v2021, 0.0
      %v2150 = vmax.f32 %v2022, 0.0
      %v2151 = vmax.f32 %v2023, 0.0
      %v2152 = vmax.f32 %v2024, 0.0
      %v2153 = vmax.f32 %v2025, 0.0
      %v2154 = vmax.f32 %v2026, 0.0
      %v2155 = vmax.f32 %v2027, 0.0
      %v2156 = vmax.f32 %v2028, 0.0
      %v2157 = vmax.f32 %v2029, 0.0
      %v2158 = vmax.f32 %v2030, 0.0
      %v2159 = vmax.f32 %v2031, 0.0
      %v2160 = vmax.f32 %v2032, 0.0
      %v2161 = vmax.f32 %v2033, 0.0
      %v2162 = vmax.f32 %v2034, 0.0
      %v2163 = vmax.f32 %v2035, 0.0
      %v2164 = vmax.f32 %v2036, 0.0
      %v2165 = vmax.f32 %v2037, 0.0
      %v2166 = vmax.f32 %v2038, 0.0
      %v2167 = vmax.f32 %v2039, 0.0
      %v2168 = vmax.f32 %v2040, 0.0
      %v2169 = vmax.f32 %v2041, 0.0
      %v2170 = vmax.f32 %v2042, 0.0
      %v2171 = vmax.f32 %v2043, 0.0
      %v2172 = vmax.f32 %v2044, 0.0
      %v2173 = vmax.f32 %v2045, 0.0
      %v2174 = vmax.f32 %v2046, 0.0
      %v2175 = vld [vmem:[%s6] sm:$0x1]
      %v2177 = vlaneseq
      %v2178 = vshrl.u32 %v2177, 7
      %v2179 = vsub.s32 0, %v2178
      %v2180 = vrot.slane %v2175, %v2179
      %v2182 = vmul.f32 %v2047, %v2180
      %v2183 = vmul.f32 %v2048, %v2180
      %v2184 = vmul.f32 %v2049, %v2180
      %v2185 = vmul.f32 %v2050, %v2180
      %v2186 = vmul.f32 %v2051, %v2180
      %v2187 = vmul.f32 %v2052, %v2180
      %v2188 = vmul.f32 %v2053, %v2180
      %v2189 = vmul.f32 %v2054, %v2180
      %v2190 = vmul.f32 %v2055, %v2180
      %v2191 = vmul.f32 %v2056, %v2180
      %v2192 = vmul.f32 %v2057, %v2180
      %v2193 = vmul.f32 %v2058, %v2180
      %v2194 = vmul.f32 %v2059, %v2180
      %v2195 = vmul.f32 %v2060, %v2180
      %v2196 = vmul.f32 %v2061, %v2180
      %v2197 = vmul.f32 %v2062, %v2180
      %v2198 = vmul.f32 %v2063, %v2180
      %v2199 = vmul.f32 %v2064, %v2180
      %v2200 = vmul.f32 %v2065, %v2180
      %v2201 = vmul.f32 %v2066, %v2180
      %v2202 = vmul.f32 %v2067, %v2180
      %v2203 = vmul.f32 %v2068, %v2180
      %v2204 = vmul.f32 %v2069, %v2180
      %v2205 = vmul.f32 %v2070, %v2180
      %v2206 = vmul.f32 %v2071, %v2180
      %v2207 = vmul.f32 %v2072, %v2180
      %v2208 = vmul.f32 %v2073, %v2180
      %v2209 = vmul.f32 %v2074, %v2180
      %v2210 = vmul.f32 %v2075, %v2180
      %v2211 = vmul.f32 %v2076, %v2180
      %v2212 = vmul.f32 %v2077, %v2180
      %v2213 = vmul.f32 %v2078, %v2180
      %v2214 = vmul.f32 %v2079, %v2180
      %v2215 = vmul.f32 %v2080, %v2180
      %v2216 = vmul.f32 %v2081, %v2180
      %v2217 = vmul.f32 %v2082, %v2180
      %v2218 = vmul.f32 %v2083, %v2180
      %v2219 = vmul.f32 %v2084, %v2180
      %v2220 = vmul.f32 %v2085, %v2180
      %v2221 = vmul.f32 %v2086, %v2180
      %v2222 = vmul.f32 %v2087, %v2180
      %v2223 = vmul.f32 %v2088, %v2180
      %v2224 = vmul.f32 %v2089, %v2180
      %v2225 = vmul.f32 %v2090, %v2180
      %v2226 = vmul.f32 %v2091, %v2180
      %v2227 = vmul.f32 %v2092, %v2180
      %v2228 = vmul.f32 %v2093, %v2180
      %v2229 = vmul.f32 %v2094, %v2180
      %v2230 = vmul.f32 %v2095, %v2180
      %v2231 = vmul.f32 %v2096, %v2180
      %v2232 = vmul.f32 %v2097, %v2180
      %v2233 = vmul.f32 %v2098, %v2180
      %v2234 = vmul.f32 %v2099, %v2180
      %v2235 = vmul.f32 %v2100, %v2180
      %v2236 = vmul.f32 %v2101, %v2180
      %v2237 = vmul.f32 %v2102, %v2180
      %v2238 = vmul.f32 %v2103, %v2180
      %v2239 = vmul.f32 %v2104, %v2180
      %v2240 = vmul.f32 %v2105, %v2180
      %v2241 = vmul.f32 %v2106, %v2180
      %v2242 = vmul.f32 %v2107, %v2180
      %v2243 = vmul.f32 %v2108, %v2180
      %v2244 = vmul.f32 %v2109, %v2180
      %v2245 = vmul.f32 %v2110, %v2180
      %v2246 = vmul.f32 %v2111, %v2180
      %v2247 = vmul.f32 %v2112, %v2180
      %v2248 = vmul.f32 %v2113, %v2180
      %v2249 = vmul.f32 %v2114, %v2180
      %v2250 = vmul.f32 %v2115, %v2180
      %v2251 = vmul.f32 %v2116, %v2180
      %v2252 = vmul.f32 %v2117, %v2180
      %v2253 = vmul.f32 %v2118, %v2180
      %v2254 = vmul.f32 %v2119, %v2180
      %v2255 = vmul.f32 %v2120, %v2180
      %v2256 = vmul.f32 %v2121, %v2180
      %v2257 = vmul.f32 %v2122, %v2180
      %v2258 = vmul.f32 %v2123, %v2180
      %v2259 = vmul.f32 %v2124, %v2180
      %v2260 = vmul.f32 %v2125, %v2180
      %v2261 = vmul.f32 %v2126, %v2180
      %v2262 = vmul.f32 %v2127, %v2180
      %v2263 = vmul.f32 %v2128, %v2180
      %v2264 = vmul.f32 %v2129, %v2180
      %v2265 = vmul.f32 %v2130, %v2180
      %v2266 = vmul.f32 %v2131, %v2180
      %v2267 = vmul.f32 %v2132, %v2180
      %v2268 = vmul.f32 %v2133, %v2180
      %v2269 = vmul.f32 %v2134, %v2180
      %v2270 = vmul.f32 %v2135, %v2180
      %v2271 = vmul.f32 %v2136, %v2180
      %v2272 = vmul.f32 %v2137, %v2180
      %v2273 = vmul.f32 %v2138, %v2180
      %v2274 = vmul.f32 %v2139, %v2180
      %v2275 = vmul.f32 %v2140, %v2180
      %v2276 = vmul.f32 %v2141, %v2180
      %v2277 = vmul.f32 %v2142, %v2180
      %v2278 = vmul.f32 %v2143, %v2180
      %v2279 = vmul.f32 %v2144, %v2180
      %v2280 = vmul.f32 %v2145, %v2180
      %v2281 = vmul.f32 %v2146, %v2180
      %v2282 = vmul.f32 %v2147, %v2180
      %v2283 = vmul.f32 %v2148, %v2180
      %v2284 = vmul.f32 %v2149, %v2180
      %v2285 = vmul.f32 %v2150, %v2180
      %v2286 = vmul.f32 %v2151, %v2180
      %v2287 = vmul.f32 %v2152, %v2180
      %v2288 = vmul.f32 %v2153, %v2180
      %v2289 = vmul.f32 %v2154, %v2180
      %v2290 = vmul.f32 %v2155, %v2180
      %v2291 = vmul.f32 %v2156, %v2180
      %v2292 = vmul.f32 %v2157, %v2180
      %v2293 = vmul.f32 %v2158, %v2180
      %v2294 = vmul.f32 %v2159, %v2180
      %v2295 = vmul.f32 %v2160, %v2180
      %v2296 = vmul.f32 %v2161, %v2180
      %v2297 = vmul.f32 %v2162, %v2180
      %v2298 = vmul.f32 %v2163, %v2180
      %v2299 = vmul.f32 %v2164, %v2180
      %v2300 = vmul.f32 %v2165, %v2180
      %v2301 = vmul.f32 %v2166, %v2180
      %v2302 = vmul.f32 %v2167, %v2180
      %v2303 = vmul.f32 %v2168, %v2180
      %v2304 = vmul.f32 %v2169, %v2180
      %v2305 = vmul.f32 %v2170, %v2180
      %v2306 = vmul.f32 %v2171, %v2180
      %v2307 = vmul.f32 %v2172, %v2180
      %v2308 = vmul.f32 %v2173, %v2180
      %v2309 = vmul.f32 %v2174, %v2180
      %2310 = vadd.xlane.f32.xlu0 %v2182
      %v2311 = vpop.xlane.xlu0 %2310
      %2312 = vadd.xlane.f32.xlu0 %v2183
      %v2313 = vpop.xlane.xlu0 %2312
      %2314 = vadd.xlane.f32.xlu0 %v2184
      %v2315 = vpop.xlane.xlu0 %2314
      %2316 = vadd.xlane.f32.xlu0 %v2185
      %v2317 = vpop.xlane.xlu0 %2316
      %2318 = vadd.xlane.f32.xlu0 %v2186
      %v2319 = vpop.xlane.xlu0 %2318
      %2320 = vadd.xlane.f32.xlu0 %v2187
      %v2321 = vpop.xlane.xlu0 %2320
      %2322 = vadd.xlane.f32.xlu0 %v2188
      %v2323 = vpop.xlane.xlu0 %2322
      %2324 = vadd.xlane.f32.xlu0 %v2189
      %v2325 = vpop.xlane.xlu0 %2324
      %2326 = vadd.xlane.f32.xlu0 %v2190
      %v2327 = vpop.xlane.xlu0 %2326
      %2328 = vadd.xlane.f32.xlu0 %v2191
      %v2329 = vpop.xlane.xlu0 %2328
      %2330 = vadd.xlane.f32.xlu0 %v2192
      %v2331 = vpop.xlane.xlu0 %2330
      %2332 = vadd.xlane.f32.xlu0 %v2193
      %v2333 = vpop.xlane.xlu0 %2332
      %2334 = vadd.xlane.f32.xlu0 %v2194
      %v2335 = vpop.xlane.xlu0 %2334
      %2336 = vadd.xlane.f32.xlu0 %v2195
      %v2337 = vpop.xlane.xlu0 %2336
      %2338 = vadd.xlane.f32.xlu0 %v2196
      %v2339 = vpop.xlane.xlu0 %2338
      %2340 = vadd.xlane.f32.xlu0 %v2197
      %v2341 = vpop.xlane.xlu0 %2340
      %2342 = vadd.xlane.f32.xlu0 %v2198
      %v2343 = vpop.xlane.xlu0 %2342
      %2344 = vadd.xlane.f32.xlu0 %v2199
      %v2345 = vpop.xlane.xlu0 %2344
      %2346 = vadd.xlane.f32.xlu0 %v2200
      %v2347 = vpop.xlane.xlu0 %2346
      %2348 = vadd.xlane.f32.xlu0 %v2201
      %v2349 = vpop.xlane.xlu0 %2348
      %2350 = vadd.xlane.f32.xlu0 %v2202
      %v2351 = vpop.xlane.xlu0 %2350
      %2352 = vadd.xlane.f32.xlu0 %v2203
      %v2353 = vpop.xlane.xlu0 %2352
      %2354 = vadd.xlane.f32.xlu0 %v2204
      %v2355 = vpop.xlane.xlu0 %2354
      %2356 = vadd.xlane.f32.xlu0 %v2205
      %v2357 = vpop.xlane.xlu0 %2356
      %2358 = vadd.xlane.f32.xlu0 %v2206
      %v2359 = vpop.xlane.xlu0 %2358
      %2360 = vadd.xlane.f32.xlu0 %v2207
      %v2361 = vpop.xlane.xlu0 %2360
      %2362 = vadd.xlane.f32.xlu0 %v2208
      %v2363 = vpop.xlane.xlu0 %2362
      %2364 = vadd.xlane.f32.xlu0 %v2209
      %v2365 = vpop.xlane.xlu0 %2364
      %2366 = vadd.xlane.f32.xlu0 %v2210
      %v2367 = vpop.xlane.xlu0 %2366
      %2368 = vadd.xlane.f32.xlu0 %v2211
      %v2369 = vpop.xlane.xlu0 %2368
      %2370 = vadd.xlane.f32.xlu0 %v2212
      %v2371 = vpop.xlane.xlu0 %2370
      %2372 = vadd.xlane.f32.xlu0 %v2213
      %v2373 = vpop.xlane.xlu0 %2372
      %2374 = vadd.xlane.f32.xlu0 %v2214
      %v2375 = vpop.xlane.xlu0 %2374
      %2376 = vadd.xlane.f32.xlu0 %v2215
      %v2377 = vpop.xlane.xlu0 %2376
      %2378 = vadd.xlane.f32.xlu0 %v2216
      %v2379 = vpop.xlane.xlu0 %2378
      %2380 = vadd.xlane.f32.xlu0 %v2217
      %v2381 = vpop.xlane.xlu0 %2380
      %2382 = vadd.xlane.f32.xlu0 %v2218
      %v2383 = vpop.xlane.xlu0 %2382
      %2384 = vadd.xlane.f32.xlu0 %v2219
      %v2385 = vpop.xlane.xlu0 %2384
      %2386 = vadd.xlane.f32.xlu0 %v2220
      %v2387 = vpop.xlane.xlu0 %2386
      %2388 = vadd.xlane.f32.xlu0 %v2221
      %v2389 = vpop.xlane.xlu0 %2388
      %2390 = vadd.xlane.f32.xlu0 %v2222
      %v2391 = vpop.xlane.xlu0 %2390
      %2392 = vadd.xlane.f32.xlu0 %v2223
      %v2393 = vpop.xlane.xlu0 %2392
      %2394 = vadd.xlane.f32.xlu0 %v2224
      %v2395 = vpop.xlane.xlu0 %2394
      %2396 = vadd.xlane.f32.xlu0 %v2225
      %v2397 = vpop.xlane.xlu0 %2396
      %2398 = vadd.xlane.f32.xlu0 %v2226
      %v2399 = vpop.xlane.xlu0 %2398
      %2400 = vadd.xlane.f32.xlu0 %v2227
      %v2401 = vpop.xlane.xlu0 %2400
      %2402 = vadd.xlane.f32.xlu0 %v2228
      %v2403 = vpop.xlane.xlu0 %2402
      %2404 = vadd.xlane.f32.xlu0 %v2229
      %v2405 = vpop.xlane.xlu0 %2404
      %2406 = vadd.xlane.f32.xlu0 %v2230
      %v2407 = vpop.xlane.xlu0 %2406
      %2408 = vadd.xlane.f32.xlu0 %v2231
      %v2409 = vpop.xlane.xlu0 %2408
      %2410 = vadd.xlane.f32.xlu0 %v2232
      %v2411 = vpop.xlane.xlu0 %2410
      %2412 = vadd.xlane.f32.xlu0 %v2233
      %v2413 = vpop.xlane.xlu0 %2412
      %2414 = vadd.xlane.f32.xlu0 %v2234
      %v2415 = vpop.xlane.xlu0 %2414
      %2416 = vadd.xlane.f32.xlu0 %v2235
      %v2417 = vpop.xlane.xlu0 %2416
      %2418 = vadd.xlane.f32.xlu0 %v2236
      %v2419 = vpop.xlane.xlu0 %2418
      %2420 = vadd.xlane.f32.xlu0 %v2237
      %v2421 = vpop.xlane.xlu0 %2420
      %2422 = vadd.xlane.f32.xlu0 %v2238
      %v2423 = vpop.xlane.xlu0 %2422
      %2424 = vadd.xlane.f32.xlu0 %v2239
      %v2425 = vpop.xlane.xlu0 %2424
      %2426 = vadd.xlane.f32.xlu0 %v2240
      %v2427 = vpop.xlane.xlu0 %2426
      %2428 = vadd.xlane.f32.xlu0 %v2241
      %v2429 = vpop.xlane.xlu0 %2428
      %2430 = vadd.xlane.f32.xlu0 %v2242
      %v2431 = vpop.xlane.xlu0 %2430
      %2432 = vadd.xlane.f32.xlu0 %v2243
      %v2433 = vpop.xlane.xlu0 %2432
      %2434 = vadd.xlane.f32.xlu0 %v2244
      %v2435 = vpop.xlane.xlu0 %2434
      %2436 = vadd.xlane.f32.xlu0 %v2245
      %v2437 = vpop.xlane.xlu0 %2436
      %2438 = vadd.xlane.f32.xlu0 %v2246
      %v2439 = vpop.xlane.xlu0 %2438
      %2440 = vadd.xlane.f32.xlu0 %v2247
      %v2441 = vpop.xlane.xlu0 %2440
      %2442 = vadd.xlane.f32.xlu0 %v2248
      %v2443 = vpop.xlane.xlu0 %2442
      %2444 = vadd.xlane.f32.xlu0 %v2249
      %v2445 = vpop.xlane.xlu0 %2444
      %2446 = vadd.xlane.f32.xlu0 %v2250
      %v2447 = vpop.xlane.xlu0 %2446
      %2448 = vadd.xlane.f32.xlu0 %v2251
      %v2449 = vpop.xlane.xlu0 %2448
      %2450 = vadd.xlane.f32.xlu0 %v2252
      %v2451 = vpop.xlane.xlu0 %2450
      %2452 = vadd.xlane.f32.xlu0 %v2253
      %v2453 = vpop.xlane.xlu0 %2452
      %2454 = vadd.xlane.f32.xlu0 %v2254
      %v2455 = vpop.xlane.xlu0 %2454
      %2456 = vadd.xlane.f32.xlu0 %v2255
      %v2457 = vpop.xlane.xlu0 %2456
      %2458 = vadd.xlane.f32.xlu0 %v2256
      %v2459 = vpop.xlane.xlu0 %2458
      %2460 = vadd.xlane.f32.xlu0 %v2257
      %v2461 = vpop.xlane.xlu0 %2460
      %2462 = vadd.xlane.f32.xlu0 %v2258
      %v2463 = vpop.xlane.xlu0 %2462
      %2464 = vadd.xlane.f32.xlu0 %v2259
      %v2465 = vpop.xlane.xlu0 %2464
      %2466 = vadd.xlane.f32.xlu0 %v2260
      %v2467 = vpop.xlane.xlu0 %2466
      %2468 = vadd.xlane.f32.xlu0 %v2261
      %v2469 = vpop.xlane.xlu0 %2468
      %2470 = vadd.xlane.f32.xlu0 %v2262
      %v2471 = vpop.xlane.xlu0 %2470
      %2472 = vadd.xlane.f32.xlu0 %v2263
      %v2473 = vpop.xlane.xlu0 %2472
      %2474 = vadd.xlane.f32.xlu0 %v2264
      %v2475 = vpop.xlane.xlu0 %2474
      %2476 = vadd.xlane.f32.xlu0 %v2265
      %v2477 = vpop.xlane.xlu0 %2476
      %2478 = vadd.xlane.f32.xlu0 %v2266
      %v2479 = vpop.xlane.xlu0 %2478
      %2480 = vadd.xlane.f32.xlu0 %v2267
      %v2481 = vpop.xlane.xlu0 %2480
      %2482 = vadd.xlane.f32.xlu0 %v2268
      %v2483 = vpop.xlane.xlu0 %2482
      %2484 = vadd.xlane.f32.xlu0 %v2269
      %v2485 = vpop.xlane.xlu0 %2484
      %2486 = vadd.xlane.f32.xlu0 %v2270
      %v2487 = vpop.xlane.xlu0 %2486
      %2488 = vadd.xlane.f32.xlu0 %v2271
      %v2489 = vpop.xlane.xlu0 %2488
      %2490 = vadd.xlane.f32.xlu0 %v2272
      %v2491 = vpop.xlane.xlu0 %2490
      %2492 = vadd.xlane.f32.xlu0 %v2273
      %v2493 = vpop.xlane.xlu0 %2492
      %2494 = vadd.xlane.f32.xlu0 %v2274
      %v2495 = vpop.xlane.xlu0 %2494
      %2496 = vadd.xlane.f32.xlu0 %v2275
      %v2497 = vpop.xlane.xlu0 %2496
      %2498 = vadd.xlane.f32.xlu0 %v2276
      %v2499 = vpop.xlane.xlu0 %2498
      %2500 = vadd.xlane.f32.xlu0 %v2277
      %v2501 = vpop.xlane.xlu0 %2500
      %2502 = vadd.xlane.f32.xlu0 %v2278
      %v2503 = vpop.xlane.xlu0 %2502
      %2504 = vadd.xlane.f32.xlu0 %v2279
      %v2505 = vpop.xlane.xlu0 %2504
      %2506 = vadd.xlane.f32.xlu0 %v2280
      %v2507 = vpop.xlane.xlu0 %2506
      %2508 = vadd.xlane.f32.xlu0 %v2281
      %v2509 = vpop.xlane.xlu0 %2508
      %2510 = vadd.xlane.f32.xlu0 %v2282
      %v2511 = vpop.xlane.xlu0 %2510
      %2512 = vadd.xlane.f32.xlu0 %v2283
      %v2513 = vpop.xlane.xlu0 %2512
      %2514 = vadd.xlane.f32.xlu0 %v2284
      %v2515 = vpop.xlane.xlu0 %2514
      %2516 = vadd.xlane.f32.xlu0 %v2285
      %v2517 = vpop.xlane.xlu0 %2516
      %2518 = vadd.xlane.f32.xlu0 %v2286
      %v2519 = vpop.xlane.xlu0 %2518
      %2520 = vadd.xlane.f32.xlu0 %v2287
      %v2521 = vpop.xlane.xlu0 %2520
      %2522 = vadd.xlane.f32.xlu0 %v2288
      %v2523 = vpop.xlane.xlu0 %2522
      %2524 = vadd.xlane.f32.xlu0 %v2289
      %v2525 = vpop.xlane.xlu0 %2524
      %2526 = vadd.xlane.f32.xlu0 %v2290
      %v2527 = vpop.xlane.xlu0 %2526
      %2528 = vadd.xlane.f32.xlu0 %v2291
      %v2529 = vpop.xlane.xlu0 %2528
      %2530 = vadd.xlane.f32.xlu0 %v2292
      %v2531 = vpop.xlane.xlu0 %2530
      %2532 = vadd.xlane.f32.xlu0 %v2293
      %v2533 = vpop.xlane.xlu0 %2532
      %2534 = vadd.xlane.f32.xlu0 %v2294
      %v2535 = vpop.xlane.xlu0 %2534
      %2536 = vadd.xlane.f32.xlu0 %v2295
      %v2537 = vpop.xlane.xlu0 %2536
      %2538 = vadd.xlane.f32.xlu0 %v2296
      %v2539 = vpop.xlane.xlu0 %2538
      %2540 = vadd.xlane.f32.xlu0 %v2297
      %v2541 = vpop.xlane.xlu0 %2540
      %2542 = vadd.xlane.f32.xlu0 %v2298
      %v2543 = vpop.xlane.xlu0 %2542
      %2544 = vadd.xlane.f32.xlu0 %v2299
      %v2545 = vpop.xlane.xlu0 %2544
      %2546 = vadd.xlane.f32.xlu0 %v2300
      %v2547 = vpop.xlane.xlu0 %2546
      %2548 = vadd.xlane.f32.xlu0 %v2301
      %v2549 = vpop.xlane.xlu0 %2548
      %2550 = vadd.xlane.f32.xlu0 %v2302
      %v2551 = vpop.xlane.xlu0 %2550
      %2552 = vadd.xlane.f32.xlu0 %v2303
      %v2553 = vpop.xlane.xlu0 %2552
      %2554 = vadd.xlane.f32.xlu0 %v2304
      %v2555 = vpop.xlane.xlu0 %2554
      %2556 = vadd.xlane.f32.xlu0 %v2305
      %v2557 = vpop.xlane.xlu0 %2556
      %2558 = vadd.xlane.f32.xlu0 %v2306
      %v2559 = vpop.xlane.xlu0 %2558
      %2560 = vadd.xlane.f32.xlu0 %v2307
      %v2561 = vpop.xlane.xlu0 %2560
      %2562 = vadd.xlane.f32.xlu0 %v2308
      %v2563 = vpop.xlane.xlu0 %2562
      %2564 = vadd.xlane.f32.xlu0 %v2309
      %v2565 = vpop.xlane.xlu0 %2564
      %v2566 = vlaneseq
      %v2567 = vand.u32 %v2566, 127
      %vm2568 = vcmp.lt.s32.totalorder %v2567, 8
      %v2697 = vlaneseq
      %v2698 = vshrl.u32 %v2697, 7
      %v2699 = vsub.s32 %v2567, %v2698
      %v2700 = vrot.slane %v2311, %v2699
      %v2701 = vadd.s32 %v2567, 4294967288
      %v2702 = vlaneseq
      %v2703 = vshrl.u32 %v2702, 7
      %v2704 = vsub.s32 %v2701, %v2703
      %v2705 = vrot.slane %v2313, %v2704
      %vm2706 = vcmask 130112
      %v2707 = vsel %vm2706, %v2705, %v2700
      %v2708 = vadd.s32 %v2567, 4294967280
      %v2709 = vlaneseq
      %v2710 = vshrl.u32 %v2709, 7
      %v2711 = vsub.s32 %v2708, %v2710
      %v2712 = vrot.slane %v2315, %v2711
      %vm2713 = vcmask 195712
      %v2714 = vsel %vm2713, %v2712, %v2707
      %v2715 = vadd.s32 %v2567, 4294967272
      %v2716 = vlaneseq
      %v2717 = vshrl.u32 %v2716, 7
      %v2718 = vsub.s32 %v2715, %v2717
      %v2719 = vrot.slane %v2317, %v2718
      %vm2720 = vcmask 261312
      %v2721 = vsel %vm2720, %v2719, %v2714
      %v2722 = vadd.s32 %v2567, 4294967264
      %v2723 = vlaneseq
      %v2724 = vshrl.u32 %v2723, 7
      %v2725 = vsub.s32 %v2722, %v2724
      %v2726 = vrot.slane %v2319, %v2725
      %vm2727 = vcmask 326912
      %v2728 = vsel %vm2727, %v2726, %v2721
      %v2729 = vadd.s32 %v2567, 4294967256
      %v2730 = vlaneseq
      %v2731 = vshrl.u32 %v2730, 7
      %v2732 = vsub.s32 %v2729, %v2731
      %v2733 = vrot.slane %v2321, %v2732
      %vm2734 = vcmask 392512
      %v2735 = vsel %vm2734, %v2733, %v2728
      %v2736 = vadd.s32 %v2567, 4294967248
      %v2737 = vlaneseq
      %v2738 = vshrl.u32 %v2737, 7
      %v2739 = vsub.s32 %v2736, %v2738
      %v2740 = vrot.slane %v2323, %v2739
      %vm2741 = vcmask 458112
      %v2742 = vsel %vm2741, %v2740, %v2735
      %v2743 = vadd.s32 %v2567, 4294967240
      %v2744 = vlaneseq
      %v2745 = vshrl.u32 %v2744, 7
      %v2746 = vsub.s32 %v2743, %v2745
      %v2747 = vrot.slane %v2325, %v2746
      %vm2748 = vcmask 523712
      %v2749 = vsel %vm2748, %v2747, %v2742
      %v2750 = vadd.s32 %v2567, 4294967232
      %v2751 = vlaneseq
      %v2752 = vshrl.u32 %v2751, 7
      %v2753 = vsub.s32 %v2750, %v2752
      %v2754 = vrot.slane %v2327, %v2753
      %vm2755 = vcmask 589312
      %v2756 = vsel %vm2755, %v2754, %v2749
      %v2757 = vadd.s32 %v2567, 4294967224
      %v2758 = vlaneseq
      %v2759 = vshrl.u32 %v2758, 7
      %v2760 = vsub.s32 %v2757, %v2759
      %v2761 = vrot.slane %v2329, %v2760
      %vm2762 = vcmask 654912
      %v2763 = vsel %vm2762, %v2761, %v2756
      %v2764 = vadd.s32 %v2567, 4294967216
      %v2765 = vlaneseq
      %v2766 = vshrl.u32 %v2765, 7
      %v2767 = vsub.s32 %v2764, %v2766
      %v2768 = vrot.slane %v2331, %v2767
      %vm2769 = vcmask 720512
      %v2770 = vsel %vm2769, %v2768, %v2763
      %v2771 = vadd.s32 %v2567, 4294967208
      %v2772 = vlaneseq
      %v2773 = vshrl.u32 %v2772, 7
      %v2774 = vsub.s32 %v2771, %v2773
      %v2775 = vrot.slane %v2333, %v2774
      %vm2776 = vcmask 786112
      %v2777 = vsel %vm2776, %v2775, %v2770
      %v2778 = vadd.s32 %v2567, 4294967200
      %v2779 = vlaneseq
      %v2780 = vshrl.u32 %v2779, 7
      %v2781 = vsub.s32 %v2778, %v2780
      %v2782 = vrot.slane %v2335, %v2781
      %vm2783 = vcmask 851712
      %v2784 = vsel %vm2783, %v2782, %v2777
      %v2785 = vadd.s32 %v2567, 4294967192
      %v2786 = vlaneseq
      %v2787 = vshrl.u32 %v2786, 7
      %v2788 = vsub.s32 %v2785, %v2787
      %v2789 = vrot.slane %v2337, %v2788
      %vm2790 = vcmask 917312
      %v2791 = vsel %vm2790, %v2789, %v2784
      %v2792 = vadd.s32 %v2567, 4294967184
      %v2793 = vlaneseq
      %v2794 = vshrl.u32 %v2793, 7
      %v2795 = vsub.s32 %v2792, %v2794
      %v2796 = vrot.slane %v2339, %v2795
      %vm2797 = vcmask 982912
      %v2798 = vsel %vm2797, %v2796, %v2791
      %v2799 = vadd.s32 %v2567, 4294967176
      %v2800 = vlaneseq
      %v2801 = vshrl.u32 %v2800, 7
      %v2802 = vsub.s32 %v2799, %v2801
      %v2803 = vrot.slane %v2341, %v2802
      %vm2804 = vcmask 1048512
      %v2805 = vsel %vm2804, %v2803, %v2798
      %v2806 = vlaneseq
      %v2807 = vshrl.u32 %v2806, 7
      %v2808 = vsub.s32 %v2567, %v2807
      %v2809 = vrot.slane %v2343, %v2808
      %v2810 = vlaneseq
      %v2811 = vshrl.u32 %v2810, 7
      %v2812 = vsub.s32 %v2701, %v2811
      %v2813 = vrot.slane %v2345, %v2812
      %v2814 = vsel %vm2706, %v2813, %v2809
      %v2815 = vlaneseq
      %v2816 = vshrl.u32 %v2815, 7
      %v2817 = vsub.s32 %v2708, %v2816
      %v2818 = vrot.slane %v2347, %v2817
      %v2819 = vsel %vm2713, %v2818, %v2814
      %v2820 = vlaneseq
      %v2821 = vshrl.u32 %v2820, 7
      %v2822 = vsub.s32 %v2715, %v2821
      %v2823 = vrot.slane %v2349, %v2822
      %v2824 = vsel %vm2720, %v2823, %v2819
      %v2825 = vlaneseq
      %v2826 = vshrl.u32 %v2825, 7
      %v2827 = vsub.s32 %v2722, %v2826
      %v2828 = vrot.slane %v2351, %v2827
      %v2829 = vsel %vm2727, %v2828, %v2824
      %v2830 = vlaneseq
      %v2831 = vshrl.u32 %v2830, 7
      %v2832 = vsub.s32 %v2729, %v2831
      %v2833 = vrot.slane %v2353, %v2832
      %v2834 = vsel %vm2734, %v2833, %v2829
      %v2835 = vlaneseq
      %v2836 = vshrl.u32 %v2835, 7
      %v2837 = vsub.s32 %v2736, %v2836
      %v2838 = vrot.slane %v2355, %v2837
      %v2839 = vsel %vm2741, %v2838, %v2834
      %v2840 = vlaneseq
      %v2841 = vshrl.u32 %v2840, 7
      %v2842 = vsub.s32 %v2743, %v2841
      %v2843 = vrot.slane %v2357, %v2842
      %v2844 = vsel %vm2748, %v2843, %v2839
      %v2845 = vlaneseq
      %v2846 = vshrl.u32 %v2845, 7
      %v2847 = vsub.s32 %v2750, %v2846
      %v2848 = vrot.slane %v2359, %v2847
      %v2849 = vsel %vm2755, %v2848, %v2844
      %v2850 = vlaneseq
      %v2851 = vshrl.u32 %v2850, 7
      %v2852 = vsub.s32 %v2757, %v2851
      %v2853 = vrot.slane %v2361, %v2852
      %v2854 = vsel %vm2762, %v2853, %v2849
      %v2855 = vlaneseq
      %v2856 = vshrl.u32 %v2855, 7
      %v2857 = vsub.s32 %v2764, %v2856
      %v2858 = vrot.slane %v2363, %v2857
      %v2859 = vsel %vm2769, %v2858, %v2854
      %v2860 = vlaneseq
      %v2861 = vshrl.u32 %v2860, 7
      %v2862 = vsub.s32 %v2771, %v2861
      %v2863 = vrot.slane %v2365, %v2862
      %v2864 = vsel %vm2776, %v2863, %v2859
      %v2865 = vlaneseq
      %v2866 = vshrl.u32 %v2865, 7
      %v2867 = vsub.s32 %v2778, %v2866
      %v2868 = vrot.slane %v2367, %v2867
      %v2869 = vsel %vm2783, %v2868, %v2864
      %v2870 = vlaneseq
      %v2871 = vshrl.u32 %v2870, 7
      %v2872 = vsub.s32 %v2785, %v2871
      %v2873 = vrot.slane %v2369, %v2872
      %v2874 = vsel %vm2790, %v2873, %v2869
      %v2875 = vlaneseq
      %v2876 = vshrl.u32 %v2875, 7
      %v2877 = vsub.s32 %v2792, %v2876
      %v2878 = vrot.slane %v2371, %v2877
      %v2879 = vsel %vm2797, %v2878, %v2874
      %v2880 = vlaneseq
      %v2881 = vshrl.u32 %v2880, 7
      %v2882 = vsub.s32 %v2799, %v2881
      %v2883 = vrot.slane %v2373, %v2882
      %v2884 = vsel %vm2804, %v2883, %v2879
      %v2885 = vlaneseq
      %v2886 = vshrl.u32 %v2885, 7
      %v2887 = vsub.s32 %v2567, %v2886
      %v2888 = vrot.slane %v2375, %v2887
      %v2889 = vlaneseq
      %v2890 = vshrl.u32 %v2889, 7
      %v2891 = vsub.s32 %v2701, %v2890
      %v2892 = vrot.slane %v2377, %v2891
      %v2893 = vsel %vm2706, %v2892, %v2888
      %v2894 = vlaneseq
      %v2895 = vshrl.u32 %v2894, 7
      %v2896 = vsub.s32 %v2708, %v2895
      %v2897 = vrot.slane %v2379, %v2896
      %v2898 = vsel %vm2713, %v2897, %v2893
      %v2899 = vlaneseq
      %v2900 = vshrl.u32 %v2899, 7
      %v2901 = vsub.s32 %v2715, %v2900
      %v2902 = vrot.slane %v2381, %v2901
      %v2903 = vsel %vm2720, %v2902, %v2898
      %v2904 = vlaneseq
      %v2905 = vshrl.u32 %v2904, 7
      %v2906 = vsub.s32 %v2722, %v2905
      %v2907 = vrot.slane %v2383, %v2906
      %v2908 = vsel %vm2727, %v2907, %v2903
      %v2909 = vlaneseq
      %v2910 = vshrl.u32 %v2909, 7
      %v2911 = vsub.s32 %v2729, %v2910
      %v2912 = vrot.slane %v2385, %v2911
      %v2913 = vsel %vm2734, %v2912, %v2908
      %v2914 = vlaneseq
      %v2915 = vshrl.u32 %v2914, 7
      %v2916 = vsub.s32 %v2736, %v2915
      %v2917 = vrot.slane %v2387, %v2916
      %v2918 = vsel %vm2741, %v2917, %v2913
      %v2919 = vlaneseq
      %v2920 = vshrl.u32 %v2919, 7
      %v2921 = vsub.s32 %v2743, %v2920
      %v2922 = vrot.slane %v2389, %v2921
      %v2923 = vsel %vm2748, %v2922, %v2918
      %v2924 = vlaneseq
      %v2925 = vshrl.u32 %v2924, 7
      %v2926 = vsub.s32 %v2750, %v2925
      %v2927 = vrot.slane %v2391, %v2926
      %v2928 = vsel %vm2755, %v2927, %v2923
      %v2929 = vlaneseq
      %v2930 = vshrl.u32 %v2929, 7
      %v2931 = vsub.s32 %v2757, %v2930
      %v2932 = vrot.slane %v2393, %v2931
      %v2933 = vsel %vm2762, %v2932, %v2928
      %v2934 = vlaneseq
      %v2935 = vshrl.u32 %v2934, 7
      %v2936 = vsub.s32 %v2764, %v2935
      %v2937 = vrot.slane %v2395, %v2936
      %v2938 = vsel %vm2769, %v2937, %v2933
      %v2939 = vlaneseq
      %v2940 = vshrl.u32 %v2939, 7
      %v2941 = vsub.s32 %v2771, %v2940
      %v2942 = vrot.slane %v2397, %v2941
      %v2943 = vsel %vm2776, %v2942, %v2938
      %v2944 = vlaneseq
      %v2945 = vshrl.u32 %v2944, 7
      %v2946 = vsub.s32 %v2778, %v2945
      %v2947 = vrot.slane %v2399, %v2946
      %v2948 = vsel %vm2783, %v2947, %v2943
      %v2949 = vlaneseq
      %v2950 = vshrl.u32 %v2949, 7
      %v2951 = vsub.s32 %v2785, %v2950
      %v2952 = vrot.slane %v2401, %v2951
      %v2953 = vsel %vm2790, %v2952, %v2948
      %v2954 = vlaneseq
      %v2955 = vshrl.u32 %v2954, 7
      %v2956 = vsub.s32 %v2792, %v2955
      %v2957 = vrot.slane %v2403, %v2956
      %v2958 = vsel %vm2797, %v2957, %v2953
      %v2959 = vlaneseq
      %v2960 = vshrl.u32 %v2959, 7
      %v2961 = vsub.s32 %v2799, %v2960
      %v2962 = vrot.slane %v2405, %v2961
      %v2963 = vsel %vm2804, %v2962, %v2958
      %v2964 = vlaneseq
      %v2965 = vshrl.u32 %v2964, 7
      %v2966 = vsub.s32 %v2567, %v2965
      %v2967 = vrot.slane %v2407, %v2966
      %v2968 = vlaneseq
      %v2969 = vshrl.u32 %v2968, 7
      %v2970 = vsub.s32 %v2701, %v2969
      %v2971 = vrot.slane %v2409, %v2970
      %v2972 = vsel %vm2706, %v2971, %v2967
      %v2973 = vlaneseq
      %v2974 = vshrl.u32 %v2973, 7
      %v2975 = vsub.s32 %v2708, %v2974
      %v2976 = vrot.slane %v2411, %v2975
      %v2977 = vsel %vm2713, %v2976, %v2972
      %v2978 = vlaneseq
      %v2979 = vshrl.u32 %v2978, 7
      %v2980 = vsub.s32 %v2715, %v2979
      %v2981 = vrot.slane %v2413, %v2980
      %v2982 = vsel %vm2720, %v2981, %v2977
      %v2983 = vlaneseq
      %v2984 = vshrl.u32 %v2983, 7
      %v2985 = vsub.s32 %v2722, %v2984
      %v2986 = vrot.slane %v2415, %v2985
      %v2987 = vsel %vm2727, %v2986, %v2982
      %v2988 = vlaneseq
      %v2989 = vshrl.u32 %v2988, 7
      %v2990 = vsub.s32 %v2729, %v2989
      %v2991 = vrot.slane %v2417, %v2990
      %v2992 = vsel %vm2734, %v2991, %v2987
      %v2993 = vlaneseq
      %v2994 = vshrl.u32 %v2993, 7
      %v2995 = vsub.s32 %v2736, %v2994
      %v2996 = vrot.slane %v2419, %v2995
      %v2997 = vsel %vm2741, %v2996, %v2992
      %v2998 = vlaneseq
      %v2999 = vshrl.u32 %v2998, 7
      %v3000 = vsub.s32 %v2743, %v2999
      %v3001 = vrot.slane %v2421, %v3000
      %v3002 = vsel %vm2748, %v3001, %v2997
      %v3003 = vlaneseq
      %v3004 = vshrl.u32 %v3003, 7
      %v3005 = vsub.s32 %v2750, %v3004
      %v3006 = vrot.slane %v2423, %v3005
      %v3007 = vsel %vm2755, %v3006, %v3002
      %v3008 = vlaneseq
      %v3009 = vshrl.u32 %v3008, 7
      %v3010 = vsub.s32 %v2757, %v3009
      %v3011 = vrot.slane %v2425, %v3010
      %v3012 = vsel %vm2762, %v3011, %v3007
      %v3013 = vlaneseq
      %v3014 = vshrl.u32 %v3013, 7
      %v3015 = vsub.s32 %v2764, %v3014
      %v3016 = vrot.slane %v2427, %v3015
      %v3017 = vsel %vm2769, %v3016, %v3012
      %v3018 = vlaneseq
      %v3019 = vshrl.u32 %v3018, 7
      %v3020 = vsub.s32 %v2771, %v3019
      %v3021 = vrot.slane %v2429, %v3020
      %v3022 = vsel %vm2776, %v3021, %v3017
      %v3023 = vlaneseq
      %v3024 = vshrl.u32 %v3023, 7
      %v3025 = vsub.s32 %v2778, %v3024
      %v3026 = vrot.slane %v2431, %v3025
      %v3027 = vsel %vm2783, %v3026, %v3022
      %v3028 = vlaneseq
      %v3029 = vshrl.u32 %v3028, 7
      %v3030 = vsub.s32 %v2785, %v3029
      %v3031 = vrot.slane %v2433, %v3030
      %v3032 = vsel %vm2790, %v3031, %v3027
      %v3033 = vlaneseq
      %v3034 = vshrl.u32 %v3033, 7
      %v3035 = vsub.s32 %v2792, %v3034
      %v3036 = vrot.slane %v2435, %v3035
      %v3037 = vsel %vm2797, %v3036, %v3032
      %v3038 = vlaneseq
      %v3039 = vshrl.u32 %v3038, 7
      %v3040 = vsub.s32 %v2799, %v3039
      %v3041 = vrot.slane %v2437, %v3040
      %v3042 = vsel %vm2804, %v3041, %v3037
      %v3043 = vlaneseq
      %v3044 = vshrl.u32 %v3043, 7
      %v3045 = vsub.s32 %v2567, %v3044
      %v3046 = vrot.slane %v2439, %v3045
      %v3047 = vlaneseq
      %v3048 = vshrl.u32 %v3047, 7
      %v3049 = vsub.s32 %v2701, %v3048
      %v3050 = vrot.slane %v2441, %v3049
      %v3051 = vsel %vm2706, %v3050, %v3046
      %v3052 = vlaneseq
      %v3053 = vshrl.u32 %v3052, 7
      %v3054 = vsub.s32 %v2708, %v3053
      %v3055 = vrot.slane %v2443, %v3054
      %v3056 = vsel %vm2713, %v3055, %v3051
      %v3057 = vlaneseq
      %v3058 = vshrl.u32 %v3057, 7
      %v3059 = vsub.s32 %v2715, %v3058
      %v3060 = vrot.slane %v2445, %v3059
      %v3061 = vsel %vm2720, %v3060, %v3056
      %v3062 = vlaneseq
      %v3063 = vshrl.u32 %v3062, 7
      %v3064 = vsub.s32 %v2722, %v3063
      %v3065 = vrot.slane %v2447, %v3064
      %v3066 = vsel %vm2727, %v3065, %v3061
      %v3067 = vlaneseq
      %v3068 = vshrl.u32 %v3067, 7
      %v3069 = vsub.s32 %v2729, %v3068
      %v3070 = vrot.slane %v2449, %v3069
      %v3071 = vsel %vm2734, %v3070, %v3066
      %v3072 = vlaneseq
      %v3073 = vshrl.u32 %v3072, 7
      %v3074 = vsub.s32 %v2736, %v3073
      %v3075 = vrot.slane %v2451, %v3074
      %v3076 = vsel %vm2741, %v3075, %v3071
      %v3077 = vlaneseq
      %v3078 = vshrl.u32 %v3077, 7
      %v3079 = vsub.s32 %v2743, %v3078
      %v3080 = vrot.slane %v2453, %v3079
      %v3081 = vsel %vm2748, %v3080, %v3076
      %v3082 = vlaneseq
      %v3083 = vshrl.u32 %v3082, 7
      %v3084 = vsub.s32 %v2750, %v3083
      %v3085 = vrot.slane %v2455, %v3084
      %v3086 = vsel %vm2755, %v3085, %v3081
      %v3087 = vlaneseq
      %v3088 = vshrl.u32 %v3087, 7
      %v3089 = vsub.s32 %v2757, %v3088
      %v3090 = vrot.slane %v2457, %v3089
      %v3091 = vsel %vm2762, %v3090, %v3086
      %v3092 = vlaneseq
      %v3093 = vshrl.u32 %v3092, 7
      %v3094 = vsub.s32 %v2764, %v3093
      %v3095 = vrot.slane %v2459, %v3094
      %v3096 = vsel %vm2769, %v3095, %v3091
      %v3097 = vlaneseq
      %v3098 = vshrl.u32 %v3097, 7
      %v3099 = vsub.s32 %v2771, %v3098
      %v3100 = vrot.slane %v2461, %v3099
      %v3101 = vsel %vm2776, %v3100, %v3096
      %v3102 = vlaneseq
      %v3103 = vshrl.u32 %v3102, 7
      %v3104 = vsub.s32 %v2778, %v3103
      %v3105 = vrot.slane %v2463, %v3104
      %v3106 = vsel %vm2783, %v3105, %v3101
      %v3107 = vlaneseq
      %v3108 = vshrl.u32 %v3107, 7
      %v3109 = vsub.s32 %v2785, %v3108
      %v3110 = vrot.slane %v2465, %v3109
      %v3111 = vsel %vm2790, %v3110, %v3106
      %v3112 = vlaneseq
      %v3113 = vshrl.u32 %v3112, 7
      %v3114 = vsub.s32 %v2792, %v3113
      %v3115 = vrot.slane %v2467, %v3114
      %v3116 = vsel %vm2797, %v3115, %v3111
      %v3117 = vlaneseq
      %v3118 = vshrl.u32 %v3117, 7
      %v3119 = vsub.s32 %v2799, %v3118
      %v3120 = vrot.slane %v2469, %v3119
      %v3121 = vsel %vm2804, %v3120, %v3116
      %v3122 = vlaneseq
      %v3123 = vshrl.u32 %v3122, 7
      %v3124 = vsub.s32 %v2567, %v3123
      %v3125 = vrot.slane %v2471, %v3124
      %v3126 = vlaneseq
      %v3127 = vshrl.u32 %v3126, 7
      %v3128 = vsub.s32 %v2701, %v3127
      %v3129 = vrot.slane %v2473, %v3128
      %v3130 = vsel %vm2706, %v3129, %v3125
      %v3131 = vlaneseq
      %v3132 = vshrl.u32 %v3131, 7
      %v3133 = vsub.s32 %v2708, %v3132
      %v3134 = vrot.slane %v2475, %v3133
      %v3135 = vsel %vm2713, %v3134, %v3130
      %v3136 = vlaneseq
      %v3137 = vshrl.u32 %v3136, 7
      %v3138 = vsub.s32 %v2715, %v3137
      %v3139 = vrot.slane %v2477, %v3138
      %v3140 = vsel %vm2720, %v3139, %v3135
      %v3141 = vlaneseq
      %v3142 = vshrl.u32 %v3141, 7
      %v3143 = vsub.s32 %v2722, %v3142
      %v3144 = vrot.slane %v2479, %v3143
      %v3145 = vsel %vm2727, %v3144, %v3140
      %v3146 = vlaneseq
      %v3147 = vshrl.u32 %v3146, 7
      %v3148 = vsub.s32 %v2729, %v3147
      %v3149 = vrot.slane %v2481, %v3148
      %v3150 = vsel %vm2734, %v3149, %v3145
      %v3151 = vlaneseq
      %v3152 = vshrl.u32 %v3151, 7
      %v3153 = vsub.s32 %v2736, %v3152
      %v3154 = vrot.slane %v2483, %v3153
      %v3155 = vsel %vm2741, %v3154, %v3150
      %v3156 = vlaneseq
      %v3157 = vshrl.u32 %v3156, 7
      %v3158 = vsub.s32 %v2743, %v3157
      %v3159 = vrot.slane %v2485, %v3158
      %v3160 = vsel %vm2748, %v3159, %v3155
      %v3161 = vlaneseq
      %v3162 = vshrl.u32 %v3161, 7
      %v3163 = vsub.s32 %v2750, %v3162
      %v3164 = vrot.slane %v2487, %v3163
      %v3165 = vsel %vm2755, %v3164, %v3160
      %v3166 = vlaneseq
      %v3167 = vshrl.u32 %v3166, 7
      %v3168 = vsub.s32 %v2757, %v3167
      %v3169 = vrot.slane %v2489, %v3168
      %v3170 = vsel %vm2762, %v3169, %v3165
      %v3171 = vlaneseq
      %v3172 = vshrl.u32 %v3171, 7
      %v3173 = vsub.s32 %v2764, %v3172
      %v3174 = vrot.slane %v2491, %v3173
      %v3175 = vsel %vm2769, %v3174, %v3170
      %v3176 = vlaneseq
      %v3177 = vshrl.u32 %v3176, 7
      %v3178 = vsub.s32 %v2771, %v3177
      %v3179 = vrot.slane %v2493, %v3178
      %v3180 = vsel %vm2776, %v3179, %v3175
      %v3181 = vlaneseq
      %v3182 = vshrl.u32 %v3181, 7
      %v3183 = vsub.s32 %v2778, %v3182
      %v3184 = vrot.slane %v2495, %v3183
      %v3185 = vsel %vm2783, %v3184, %v3180
      %v3186 = vlaneseq
      %v3187 = vshrl.u32 %v3186, 7
      %v3188 = vsub.s32 %v2785, %v3187
      %v3189 = vrot.slane %v2497, %v3188
      %v3190 = vsel %vm2790, %v3189, %v3185
      %v3191 = vlaneseq
      %v3192 = vshrl.u32 %v3191, 7
      %v3193 = vsub.s32 %v2792, %v3192
      %v3194 = vrot.slane %v2499, %v3193
      %v3195 = vsel %vm2797, %v3194, %v3190
      %v3196 = vlaneseq
      %v3197 = vshrl.u32 %v3196, 7
      %v3198 = vsub.s32 %v2799, %v3197
      %v3199 = vrot.slane %v2501, %v3198
      %v3200 = vsel %vm2804, %v3199, %v3195
      %v3201 = vlaneseq
      %v3202 = vshrl.u32 %v3201, 7
      %v3203 = vsub.s32 %v2567, %v3202
      %v3204 = vrot.slane %v2503, %v3203
      %v3205 = vlaneseq
      %v3206 = vshrl.u32 %v3205, 7
      %v3207 = vsub.s32 %v2701, %v3206
      %v3208 = vrot.slane %v2505, %v3207
      %v3209 = vsel %vm2706, %v3208, %v3204
      %v3210 = vlaneseq
      %v3211 = vshrl.u32 %v3210, 7
      %v3212 = vsub.s32 %v2708, %v3211
      %v3213 = vrot.slane %v2507, %v3212
      %v3214 = vsel %vm2713, %v3213, %v3209
      %v3215 = vlaneseq
      %v3216 = vshrl.u32 %v3215, 7
      %v3217 = vsub.s32 %v2715, %v3216
      %v3218 = vrot.slane %v2509, %v3217
      %v3219 = vsel %vm2720, %v3218, %v3214
      %v3220 = vlaneseq
      %v3221 = vshrl.u32 %v3220, 7
      %v3222 = vsub.s32 %v2722, %v3221
      %v3223 = vrot.slane %v2511, %v3222
      %v3224 = vsel %vm2727, %v3223, %v3219
      %v3225 = vlaneseq
      %v3226 = vshrl.u32 %v3225, 7
      %v3227 = vsub.s32 %v2729, %v3226
      %v3228 = vrot.slane %v2513, %v3227
      %v3229 = vsel %vm2734, %v3228, %v3224
      %v3230 = vlaneseq
      %v3231 = vshrl.u32 %v3230, 7
      %v3232 = vsub.s32 %v2736, %v3231
      %v3233 = vrot.slane %v2515, %v3232
      %v3234 = vsel %vm2741, %v3233, %v3229
      %v3235 = vlaneseq
      %v3236 = vshrl.u32 %v3235, 7
      %v3237 = vsub.s32 %v2743, %v3236
      %v3238 = vrot.slane %v2517, %v3237
      %v3239 = vsel %vm2748, %v3238, %v3234
      %v3240 = vlaneseq
      %v3241 = vshrl.u32 %v3240, 7
      %v3242 = vsub.s32 %v2750, %v3241
      %v3243 = vrot.slane %v2519, %v3242
      %v3244 = vsel %vm2755, %v3243, %v3239
      %v3245 = vlaneseq
      %v3246 = vshrl.u32 %v3245, 7
      %v3247 = vsub.s32 %v2757, %v3246
      %v3248 = vrot.slane %v2521, %v3247
      %v3249 = vsel %vm2762, %v3248, %v3244
      %v3250 = vlaneseq
      %v3251 = vshrl.u32 %v3250, 7
      %v3252 = vsub.s32 %v2764, %v3251
      %v3253 = vrot.slane %v2523, %v3252
      %v3254 = vsel %vm2769, %v3253, %v3249
      %v3255 = vlaneseq
      %v3256 = vshrl.u32 %v3255, 7
      %v3257 = vsub.s32 %v2771, %v3256
      %v3258 = vrot.slane %v2525, %v3257
      %v3259 = vsel %vm2776, %v3258, %v3254
      %v3260 = vlaneseq
      %v3261 = vshrl.u32 %v3260, 7
      %v3262 = vsub.s32 %v2778, %v3261
      %v3263 = vrot.slane %v2527, %v3262
      %v3264 = vsel %vm2783, %v3263, %v3259
      %v3265 = vlaneseq
      %v3266 = vshrl.u32 %v3265, 7
      %v3267 = vsub.s32 %v2785, %v3266
      %v3268 = vrot.slane %v2529, %v3267
      %v3269 = vsel %vm2790, %v3268, %v3264
      %v3270 = vlaneseq
      %v3271 = vshrl.u32 %v3270, 7
      %v3272 = vsub.s32 %v2792, %v3271
      %v3273 = vrot.slane %v2531, %v3272
      %v3274 = vsel %vm2797, %v3273, %v3269
      %v3275 = vlaneseq
      %v3276 = vshrl.u32 %v3275, 7
      %v3277 = vsub.s32 %v2799, %v3276
      %v3278 = vrot.slane %v2533, %v3277
      %v3279 = vsel %vm2804, %v3278, %v3274
      %v3280 = vlaneseq
      %v3281 = vshrl.u32 %v3280, 7
      %v3282 = vsub.s32 %v2567, %v3281
      %v3283 = vrot.slane %v2535, %v3282
      %v3284 = vlaneseq
      %v3285 = vshrl.u32 %v3284, 7
      %v3286 = vsub.s32 %v2701, %v3285
      %v3287 = vrot.slane %v2537, %v3286
      %v3288 = vsel %vm2706, %v3287, %v3283
      %v3289 = vlaneseq
      %v3290 = vshrl.u32 %v3289, 7
      %v3291 = vsub.s32 %v2708, %v3290
      %v3292 = vrot.slane %v2539, %v3291
      %v3293 = vsel %vm2713, %v3292, %v3288
      %v3294 = vlaneseq
      %v3295 = vshrl.u32 %v3294, 7
      %v3296 = vsub.s32 %v2715, %v3295
      %v3297 = vrot.slane %v2541, %v3296
      %v3298 = vsel %vm2720, %v3297, %v3293
      %v3299 = vlaneseq
      %v3300 = vshrl.u32 %v3299, 7
      %v3301 = vsub.s32 %v2722, %v3300
      %v3302 = vrot.slane %v2543, %v3301
      %v3303 = vsel %vm2727, %v3302, %v3298
      %v3304 = vlaneseq
      %v3305 = vshrl.u32 %v3304, 7
      %v3306 = vsub.s32 %v2729, %v3305
      %v3307 = vrot.slane %v2545, %v3306
      %v3308 = vsel %vm2734, %v3307, %v3303
      %v3309 = vlaneseq
      %v3310 = vshrl.u32 %v3309, 7
      %v3311 = vsub.s32 %v2736, %v3310
      %v3312 = vrot.slane %v2547, %v3311
      %v3313 = vsel %vm2741, %v3312, %v3308
      %v3314 = vlaneseq
      %v3315 = vshrl.u32 %v3314, 7
      %v3316 = vsub.s32 %v2743, %v3315
      %v3317 = vrot.slane %v2549, %v3316
      %v3318 = vsel %vm2748, %v3317, %v3313
      %v3319 = vlaneseq
      %v3320 = vshrl.u32 %v3319, 7
      %v3321 = vsub.s32 %v2750, %v3320
      %v3322 = vrot.slane %v2551, %v3321
      %v3323 = vsel %vm2755, %v3322, %v3318
      %v3324 = vlaneseq
      %v3325 = vshrl.u32 %v3324, 7
      %v3326 = vsub.s32 %v2757, %v3325
      %v3327 = vrot.slane %v2553, %v3326
      %v3328 = vsel %vm2762, %v3327, %v3323
      %v3329 = vlaneseq
      %v3330 = vshrl.u32 %v3329, 7
      %v3331 = vsub.s32 %v2764, %v3330
      %v3332 = vrot.slane %v2555, %v3331
      %v3333 = vsel %vm2769, %v3332, %v3328
      %v3334 = vlaneseq
      %v3335 = vshrl.u32 %v3334, 7
      %v3336 = vsub.s32 %v2771, %v3335
      %v3337 = vrot.slane %v2557, %v3336
      %v3338 = vsel %vm2776, %v3337, %v3333
      %v3339 = vlaneseq
      %v3340 = vshrl.u32 %v3339, 7
      %v3341 = vsub.s32 %v2778, %v3340
      %v3342 = vrot.slane %v2559, %v3341
      %v3343 = vsel %vm2783, %v3342, %v3338
      %v3344 = vlaneseq
      %v3345 = vshrl.u32 %v3344, 7
      %v3346 = vsub.s32 %v2785, %v3345
      %v3347 = vrot.slane %v2561, %v3346
      %v3348 = vsel %vm2790, %v3347, %v3343
      %v3349 = vlaneseq
      %v3350 = vshrl.u32 %v3349, 7
      %v3351 = vsub.s32 %v2792, %v3350
      %v3352 = vrot.slane %v2563, %v3351
      %v3353 = vsel %vm2797, %v3352, %v3348
      %v3354 = vlaneseq
      %v3355 = vshrl.u32 %v3354, 7
      %v3356 = vsub.s32 %v2799, %v3355
      %v3357 = vrot.slane %v2565, %v3356
      %v3358 = vsel %vm2804, %v3357, %v3353
      %vm3359 = vcmask 1041409
      %v3360 = vsel %vm3359, %v2884, %v2805
      %vm3361 = vcmask 1042434
      %v3362 = vsel %vm3361, %v2963, %v3360
      %vm3363 = vcmask 1043459
      %v3364 = vsel %vm3363, %v3042, %v3362
      %vm3365 = vcmask 1044484
      %v3366 = vsel %vm3365, %v3121, %v3364
      %vm3367 = vcmask 1045509
      %v3368 = vsel %vm3367, %v3200, %v3366
      %vm3369 = vcmask 1046534
      %v3370 = vsel %vm3369, %v3279, %v3368
      %vm3371 = vcmask 1047559
      %v3372 = vsel %vm3371, %v3358, %v3370
      %v3374 = vsel %vm2568, %v3372, -1e+30
      %3375 = vmax.xlane.f32.xlu0 %v3374
      %v3376 = vpop.xlane.xlu0 %3375
      %v3377 = vsub.f32 %v3374, %v3376
      %v3378 = vmul.f32 %v3377, 1.442695
      %v3379 = vpow.pop %v3378
      %3380 = vadd.xlane.f32.xlu0 %v3379
      %v3381 = vpop.xlane.xlu0 %3380
      %v3382 = vrcp.pop %v3381
      %v3383 = vmul.f32 %v3379, %v3382
      %3384 = vst [vmem:[#allocation23] sm:$0xff] %v3383
      %v3386 = vcombine.high %v3383, %v3383
      %v3388 = vunpack.c.l.s4 1966171168
      %v3389 = vunpack.c.0.s8 %v3388
      %v3390 = vlaneseq
      %v3391 = vshrl.u32 %v3390, 7
      %v3392 = vsub.s32 %v3389, %v3391
      %v3393 = vrot.slane %v3383, %v3392
      %v3395 = vunpack.c.l.s4 1966171168
      %v3396 = vunpack.c.0.s8 %v3395
      %v3397 = vlaneseq
      %v3398 = vshrl.u32 %v3397, 7
      %v3399 = vsub.s32 %v3396, %v3398
      %v3400 = vrot.slane %v3386, %v3399
      %v3401 = vcombine.high %v3393, %v3393
      %v3402 = vcombine.high %v3400, %v3400
      %v3404 = vunpack.c.l.s4 1966171168
      %v3405 = vunpack.c.0.s8 %v3404
      %v3406 = vlaneseq
      %v3407 = vshrl.u32 %v3406, 7
      %v3408 = vsub.s32 %v3405, %v3407
      %v3409 = vrot.slane %v3393, %v3408
      %v3411 = vunpack.c.l.s4 1966171168
      %v3412 = vunpack.c.0.s8 %v3411
      %v3413 = vlaneseq
      %v3414 = vshrl.u32 %v3413, 7
      %v3415 = vsub.s32 %v3412, %v3414
      %v3416 = vrot.slane %v3400, %v3415
      %v3418 = vunpack.c.l.s4 1966171168
      %v3419 = vunpack.c.0.s8 %v3418
      %v3420 = vlaneseq
      %v3421 = vshrl.u32 %v3420, 7
      %v3422 = vsub.s32 %v3419, %v3421
      %v3423 = vrot.slane %v3401, %v3422
      %v3425 = vunpack.c.l.s4 1966171168
      %v3426 = vunpack.c.0.s8 %v3425
      %v3427 = vlaneseq
      %v3428 = vshrl.u32 %v3427, 7
      %v3429 = vsub.s32 %v3426, %v3428
      %v3430 = vrot.slane %v3402, %v3429
      %v3431 = vcombine.high %v3409, %v3409
      %v3432 = vcombine.high %v3416, %v3416
      %v3433 = vcombine.high %v3423, %v3423
      %v3434 = vcombine.high %v3430, %v3430
      %v3443 = vpack.c.bf16 %v3409, %v3409
      %v3444 = vpack.c.bf16 %v3423, %v3423
      %v3445 = vpack.c.bf16 %v3431, %v3431
      %v3446 = vpack.c.bf16 %v3433, %v3433
      %v3447 = vpack.c.bf16 %v3416, %v3416
      %v3448 = vpack.c.bf16 %v3430, %v3430
      %v3449 = vpack.c.bf16 %v3432, %v3432
      %v3450 = vpack.c.bf16 %v3434, %v3434
      %3451 = vmatprep.subr.bf16.mxu0 0
      %3452 = vmatpush1.bf16.msra.mxu0 %v973
      %3453 = vmatprep.subr.bf16.mxu0 0
      %3454 = vmatpush1.bf16.msra.mxu0 %v974
      %3455 = vmatprep.subr.bf16.mxu0 0
      %3456 = vmatpush1.bf16.msra.mxu0 %v975
      %3457 = vmatprep.subr.bf16.mxu0 0
      %3458 = vmatpush1.bf16.msra.mxu0 %v976
      %3459 = vmatprep.subr.bf16.mxu0 0
      %3460 = vmatpush1.bf16.msra.mxu0 %v977
      %3461 = vmatprep.subr.bf16.mxu0 0
      %3462 = vmatpush1.bf16.msra.mxu0 %v978
      %3463 = vmatprep.subr.bf16.mxu0 0
      %3464 = vmatpush1.bf16.msra.mxu0 %v979
      %3465 = vmatprep.subr.bf16.mxu0 0
      %3466 = vmatpush1.bf16.msra.mxu0 %v980
      %3467 = vmatprep.subr.bf16.mxu0 0
      %3468 = vmatpush1.bf16.msra.mxu0 0
      %3469 = vmatprep.subr.bf16.mxu0 0
      %3470 = vmatpush1.bf16.msra.mxu0 0
      %3471 = vmatprep.subr.bf16.mxu0 0
      %3472 = vmatpush1.bf16.msra.mxu0 0
      %3473 = vmatprep.subr.bf16.mxu0 0
      %3474 = vmatpush1.bf16.msra.mxu0 0
      %3475 = vmatprep.subr.bf16.mxu0 0
      %3476 = vmatpush1.bf16.msra.mxu0 0
      %3477 = vmatprep.subr.bf16.mxu0 0
      %3478 = vmatpush1.bf16.msra.mxu0 0
      %3479 = vmatprep.subr.bf16.mxu0 0
      %3480 = vmatpush1.bf16.msra.mxu0 0
      %3481 = vmatprep.subr.bf16.mxu0 0
      %3482 = vmatpush1.bf16.msra.mxu0 0
      %3483 = vmatprep.mubr.bf16.mxu0 0
      %3484 = vmatmul.mubr.bf16.gmra.mrb[0].mxu0 %v3443
      %v3485 = vpop.f32.mrb[0].mxu0
      %v3486 = vadd.f32 0.0, %v3485
      %v3487 = vpop.f32.mrb[0].mxu0
      %v3488 = vpop.f32.mrb[0].mxu0
      %v3489 = vpop.f32.mrb[0].mxu0
      %3490 = vdwg.mxu0
      %3491 = vmatprep.subr.bf16.mxu0 0
      %3492 = vmatpush1.bf16.msra.mxu0 %v981
      %3493 = vmatprep.subr.bf16.mxu0 0
      %3494 = vmatpush1.bf16.msra.mxu0 %v982
      %3495 = vmatprep.subr.bf16.mxu0 0
      %3496 = vmatpush1.bf16.msra.mxu0 %v983
      %3497 = vmatprep.subr.bf16.mxu0 0
      %3498 = vmatpush1.bf16.msra.mxu0 %v984
      %3499 = vmatprep.subr.bf16.mxu0 0
      %3500 = vmatpush1.bf16.msra.mxu0 %v985
      %3501 = vmatprep.subr.bf16.mxu0 0
      %3502 = vmatpush1.bf16.msra.mxu0 %v986
      %3503 = vmatprep.subr.bf16.mxu0 0
      %3504 = vmatpush1.bf16.msra.mxu0 %v987
      %3505 = vmatprep.subr.bf16.mxu0 0
      %3506 = vmatpush1.bf16.msra.mxu0 %v988
      %3507 = vmatprep.subr.bf16.mxu0 0
      %3508 = vmatpush1.bf16.msra.mxu0 0
      %3509 = vmatprep.subr.bf16.mxu0 0
      %3510 = vmatpush1.bf16.msra.mxu0 0
      %3511 = vmatprep.subr.bf16.mxu0 0
      %3512 = vmatpush1.bf16.msra.mxu0 0
      %3513 = vmatprep.subr.bf16.mxu0 0
      %3514 = vmatpush1.bf16.msra.mxu0 0
      %3515 = vmatprep.subr.bf16.mxu0 0
      %3516 = vmatpush1.bf16.msra.mxu0 0
      %3517 = vmatprep.subr.bf16.mxu0 0
      %3518 = vmatpush1.bf16.msra.mxu0 0
      %3519 = vmatprep.subr.bf16.mxu0 0
      %3520 = vmatpush1.bf16.msra.mxu0 0
      %3521 = vmatprep.subr.bf16.mxu0 0
      %3522 = vmatpush1.bf16.msra.mxu0 0
      %3523 = vmatprep.mubr.bf16.mxu0 0
      %3524 = vmatmul.mubr.bf16.gmra.mrb[0].mxu0 %v3444
      %v3525 = vpop.f32.mrb[0].mxu0
      %v3526 = vadd.f32 0.0, %v3525
      %v3527 = vpop.f32.mrb[0].mxu0
      %v3528 = vpop.f32.mrb[0].mxu0
      %v3529 = vpop.f32.mrb[0].mxu0
      %3530 = vdwg.mxu0
      %3531 = vmatprep.subr.bf16.mxu0 0
      %3532 = vmatpush1.bf16.msra.mxu0 %v989
      %3533 = vmatprep.subr.bf16.mxu0 0
      %3534 = vmatpush1.bf16.msra.mxu0 %v990
      %3535 = vmatprep.subr.bf16.mxu0 0
      %3536 = vmatpush1.bf16.msra.mxu0 %v991
      %3537 = vmatprep.subr.bf16.mxu0 0
      %3538 = vmatpush1.bf16.msra.mxu0 %v992
      %3539 = vmatprep.subr.bf16.mxu0 0
      %3540 = vmatpush1.bf16.msra.mxu0 %v993
      %3541 = vmatprep.subr.bf16.mxu0 0
      %3542 = vmatpush1.bf16.msra.mxu0 %v994
      %3543 = vmatprep.subr.bf16.mxu0 0
      %3544 = vmatpush1.bf16.msra.mxu0 %v995
      %3545 = vmatprep.subr.bf16.mxu0 0
      %3546 = vmatpush1.bf16.msra.mxu0 %v996
      %3547 = vmatprep.subr.bf16.mxu0 0
      %3548 = vmatpush1.bf16.msra.mxu0 0
      %3549 = vmatprep.subr.bf16.mxu0 0
      %3550 = vmatpush1.bf16.msra.mxu0 0
      %3551 = vmatprep.subr.bf16.mxu0 0
      %3552 = vmatpush1.bf16.msra.mxu0 0
      %3553 = vmatprep.subr.bf16.mxu0 0
      %3554 = vmatpush1.bf16.msra.mxu0 0
      %3555 = vmatprep.subr.bf16.mxu0 0
      %3556 = vmatpush1.bf16.msra.mxu0 0
      %3557 = vmatprep.subr.bf16.mxu0 0
      %3558 = vmatpush1.bf16.msra.mxu0 0
      %3559 = vmatprep.subr.bf16.mxu0 0
      %3560 = vmatpush1.bf16.msra.mxu0 0
      %3561 = vmatprep.subr.bf16.mxu0 0
      %3562 = vmatpush1.bf16.msra.mxu0 0
      %3563 = vmatprep.mubr.bf16.mxu0 0
      %3564 = vmatmul.mubr.bf16.gmra.mrb[0].mxu0 %v3445
      %v3565 = vpop.f32.mrb[0].mxu0
      %v3566 = vadd.f32 0.0, %v3565
      %v3567 = vpop.f32.mrb[0].mxu0
      %v3568 = vpop.f32.mrb[0].mxu0
      %v3569 = vpop.f32.mrb[0].mxu0
      %3570 = vdwg.mxu0
      %3571 = vmatprep.subr.bf16.mxu0 0
      %3572 = vmatpush1.bf16.msra.mxu0 %v997
      %3573 = vmatprep.subr.bf16.mxu0 0
      %3574 = vmatpush1.bf16.msra.mxu0 %v998
      %3575 = vmatprep.subr.bf16.mxu0 0
      %3576 = vmatpush1.bf16.msra.mxu0 %v999
      %3577 = vmatprep.subr.bf16.mxu0 0
      %3578 = vmatpush1.bf16.msra.mxu0 %v1000
      %3579 = vmatprep.subr.bf16.mxu0 0
      %3580 = vmatpush1.bf16.msra.mxu0 %v1001
      %3581 = vmatprep.subr.bf16.mxu0 0
      %3582 = vmatpush1.bf16.msra.mxu0 %v1002
      %3583 = vmatprep.subr.bf16.mxu0 0
      %3584 = vmatpush1.bf16.msra.mxu0 %v1003
      %3585 = vmatprep.subr.bf16.mxu0 0
      %3586 = vmatpush1.bf16.msra.mxu0 %v1004
      %3587 = vmatprep.subr.bf16.mxu0 0
      %3588 = vmatpush1.bf16.msra.mxu0 0
      %3589 = vmatprep.subr.bf16.mxu0 0
      %3590 = vmatpush1.bf16.msra.mxu0 0
      %3591 = vmatprep.subr.bf16.mxu0 0
      %3592 = vmatpush1.bf16.msra.mxu0 0
      %3593 = vmatprep.subr.bf16.mxu0 0
      %3594 = vmatpush1.bf16.msra.mxu0 0
      %3595 = vmatprep.subr.bf16.mxu0 0
      %3596 = vmatpush1.bf16.msra.mxu0 0
      %3597 = vmatprep.subr.bf16.mxu0 0
      %3598 = vmatpush1.bf16.msra.mxu0 0
      %3599 = vmatprep.subr.bf16.mxu0 0
      %3600 = vmatpush1.bf16.msra.mxu0 0
      %3601 = vmatprep.subr.bf16.mxu0 0
      %3602 = vmatpush1.bf16.msra.mxu0 0
      %3603 = vmatprep.mubr.bf16.mxu0 0
      %3604 = vmatmul.mubr.bf16.gmra.mrb[0].mxu0 %v3446
      %v3605 = vpop.f32.mrb[0].mxu0
      %v3606 = vadd.f32 0.0, %v3605
      %v3607 = vpop.f32.mrb[0].mxu0
      %v3608 = vpop.f32.mrb[0].mxu0
      %v3609 = vpop.f32.mrb[0].mxu0
      %3610 = vdwg.mxu0
      %3611 = vmatprep.subr.bf16.mxu0 0
      %3612 = vmatpush1.bf16.msra.mxu0 %v1005
      %3613 = vmatprep.subr.bf16.mxu0 0
      %3614 = vmatpush1.bf16.msra.mxu0 %v1006
      %3615 = vmatprep.subr.bf16.mxu0 0
      %3616 = vmatpush1.bf16.msra.mxu0 %v1007
      %3617 = vmatprep.subr.bf16.mxu0 0
      %3618 = vmatpush1.bf16.msra.mxu0 %v1008
      %3619 = vmatprep.subr.bf16.mxu0 0
      %3620 = vmatpush1.bf16.msra.mxu0 %v1009
      %3621 = vmatprep.subr.bf16.mxu0 0
      %3622 = vmatpush1.bf16.msra.mxu0 %v1010
      %3623 = vmatprep.subr.bf16.mxu0 0
      %3624 = vmatpush1.bf16.msra.mxu0 %v1011
      %3625 = vmatprep.subr.bf16.mxu0 0
      %3626 = vmatpush1.bf16.msra.mxu0 %v1012
      %3627 = vmatprep.subr.bf16.mxu0 0
      %3628 = vmatpush1.bf16.msra.mxu0 0
      %3629 = vmatprep.subr.bf16.mxu0 0
      %3630 = vmatpush1.bf16.msra.mxu0 0
      %3631 = vmatprep.subr.bf16.mxu0 0
      %3632 = vmatpush1.bf16.msra.mxu0 0
      %3633 = vmatprep.subr.bf16.mxu0 0
      %3634 = vmatpush1.bf16.msra.mxu0 0
      %3635 = vmatprep.subr.bf16.mxu0 0
      %3636 = vmatpush1.bf16.msra.mxu0 0
      %3637 = vmatprep.subr.bf16.mxu0 0
      %3638 = vmatpush1.bf16.msra.mxu0 0
      %3639 = vmatprep.subr.bf16.mxu0 0
      %3640 = vmatpush1.bf16.msra.mxu0 0
      %3641 = vmatprep.subr.bf16.mxu0 0
      %3642 = vmatpush1.bf16.msra.mxu0 0
      %3643 = vmatprep.mubr.bf16.mxu0 0
      %3644 = vmatmul.mubr.bf16.gmra.mrb[0].mxu0 %v3447
      %v3645 = vpop.f32.mrb[0].mxu0
      %v3646 = vadd.f32 0.0, %v3645
      %v3647 = vpop.f32.mrb[0].mxu0
      %v3648 = vpop.f32.mrb[0].mxu0
      %v3649 = vpop.f32.mrb[0].mxu0
      %3650 = vdwg.mxu0
      %3651 = vmatprep.subr.bf16.mxu0 0
      %3652 = vmatpush1.bf16.msra.mxu0 %v1013
      %3653 = vmatprep.subr.bf16.mxu0 0
      %3654 = vmatpush1.bf16.msra.mxu0 %v1014
      %3655 = vmatprep.subr.bf16.mxu0 0
      %3656 = vmatpush1.bf16.msra.mxu0 %v1015
      %3657 = vmatprep.subr.bf16.mxu0 0
      %3658 = vmatpush1.bf16.msra.mxu0 %v1016
      %3659 = vmatprep.subr.bf16.mxu0 0
      %3660 = vmatpush1.bf16.msra.mxu0 %v1017
      %3661 = vmatprep.subr.bf16.mxu0 0
      %3662 = vmatpush1.bf16.msra.mxu0 %v1018
      %3663 = vmatprep.subr.bf16.mxu0 0
      %3664 = vmatpush1.bf16.msra.mxu0 %v1019
      %3665 = vmatprep.subr.bf16.mxu0 0
      %3666 = vmatpush1.bf16.msra.mxu0 %v1020
      %3667 = vmatprep.subr.bf16.mxu0 0
      %3668 = vmatpush1.bf16.msra.mxu0 0
      %3669 = vmatprep.subr.bf16.mxu0 0
      %3670 = vmatpush1.bf16.msra.mxu0 0
      %3671 = vmatprep.subr.bf16.mxu0 0
      %3672 = vmatpush1.bf16.msra.mxu0 0
      %3673 = vmatprep.subr.bf16.mxu0 0
      %3674 = vmatpush1.bf16.msra.mxu0 0
      %3675 = vmatprep.subr.bf16.mxu0 0
      %3676 = vmatpush1.bf16.msra.mxu0 0
      %3677 = vmatprep.subr.bf16.mxu0 0
      %3678 = vmatpush1.bf16.msra.mxu0 0
      %3679 = vmatprep.subr.bf16.mxu0 0
      %3680 = vmatpush1.bf16.msra.mxu0 0
      %3681 = vmatprep.subr.bf16.mxu0 0
      %3682 = vmatpush1.bf16.msra.mxu0 0
      %3683 = vmatprep.mubr.bf16.mxu0 0
      %3684 = vmatmul.mubr.bf16.gmra.mrb[0].mxu0 %v3448
      %v3685 = vpop.f32.mrb[0].mxu0
      %v3686 = vadd.f32 0.0, %v3685
      %v3687 = vpop.f32.mrb[0].mxu0
      %v3688 = vpop.f32.mrb[0].mxu0
      %v3689 = vpop.f32.mrb[0].mxu0
      %3690 = vdwg.mxu0
      %3691 = vmatprep.subr.bf16.mxu0 0
      %3692 = vmatpush1.bf16.msra.mxu0 %v1021
      %3693 = vmatprep.subr.bf16.mxu0 0
      %3694 = vmatpush1.bf16.msra.mxu0 %v1022
      %3695 = vmatprep.subr.bf16.mxu0 0
      %3696 = vmatpush1.bf16.msra.mxu0 %v1023
      %3697 = vmatprep.subr.bf16.mxu0 0
      %3698 = vmatpush1.bf16.msra.mxu0 %v1024
      %3699 = vmatprep.subr.bf16.mxu0 0
      %3700 = vmatpush1.bf16.msra.mxu0 %v1025
      %3701 = vmatprep.subr.bf16.mxu0 0
      %3702 = vmatpush1.bf16.msra.mxu0 %v1026
      %3703 = vmatprep.subr.bf16.mxu0 0
      %3704 = vmatpush1.bf16.msra.mxu0 %v1027
      %3705 = vmatprep.subr.bf16.mxu0 0
      %3706 = vmatpush1.bf16.msra.mxu0 %v1028
      %3707 = vmatprep.subr.bf16.mxu0 0
      %3708 = vmatpush1.bf16.msra.mxu0 0
      %3709 = vmatprep.subr.bf16.mxu0 0
      %3710 = vmatpush1.bf16.msra.mxu0 0
      %3711 = vmatprep.subr.bf16.mxu0 0
      %3712 = vmatpush1.bf16.msra.mxu0 0
      %3713 = vmatprep.subr.bf16.mxu0 0
      %3714 = vmatpush1.bf16.msra.mxu0 0
      %3715 = vmatprep.subr.bf16.mxu0 0
      %3716 = vmatpush1.bf16.msra.mxu0 0
      %3717 = vmatprep.subr.bf16.mxu0 0
      %3718 = vmatpush1.bf16.msra.mxu0 0
      %3719 = vmatprep.subr.bf16.mxu0 0
      %3720 = vmatpush1.bf16.msra.mxu0 0
      %3721 = vmatprep.subr.bf16.mxu0 0
      %3722 = vmatpush1.bf16.msra.mxu0 0
      %3723 = vmatprep.mubr.bf16.mxu0 0
      %3724 = vmatmul.mubr.bf16.gmra.mrb[0].mxu0 %v3449
      %v3725 = vpop.f32.mrb[0].mxu0
      %v3726 = vadd.f32 0.0, %v3725
      %v3727 = vpop.f32.mrb[0].mxu0
      %v3728 = vpop.f32.mrb[0].mxu0
      %v3729 = vpop.f32.mrb[0].mxu0
      %3730 = vdwg.mxu0
      %3731 = vmatprep.subr.bf16.mxu0 0
      %3732 = vmatpush1.bf16.msra.mxu0 %v1029
      %3733 = vmatprep.subr.bf16.mxu0 0
      %3734 = vmatpush1.bf16.msra.mxu0 %v1030
      %3735 = vmatprep.subr.bf16.mxu0 0
      %3736 = vmatpush1.bf16.msra.mxu0 %v1031
      %3737 = vmatprep.subr.bf16.mxu0 0
      %3738 = vmatpush1.bf16.msra.mxu0 %v1032
      %3739 = vmatprep.subr.bf16.mxu0 0
      %3740 = vmatpush1.bf16.msra.mxu0 %v1033
      %3741 = vmatprep.subr.bf16.mxu0 0
      %3742 = vmatpush1.bf16.msra.mxu0 %v1034
      %3743 = vmatprep.subr.bf16.mxu0 0
      %3744 = vmatpush1.bf16.msra.mxu0 %v1035
      %3745 = vmatprep.subr.bf16.mxu0 0
      %3746 = vmatpush1.bf16.msra.mxu0 %v1036
      %3747 = vmatprep.subr.bf16.mxu0 0
      %3748 = vmatpush1.bf16.msra.mxu0 0
      %3749 = vmatprep.subr.bf16.mxu0 0
      %3750 = vmatpush1.bf16.msra.mxu0 0
      %3751 = vmatprep.subr.bf16.mxu0 0
      %3752 = vmatpush1.bf16.msra.mxu0 0
      %3753 = vmatprep.subr.bf16.mxu0 0
      %3754 = vmatpush1.bf16.msra.mxu0 0
      %3755 = vmatprep.subr.bf16.mxu0 0
      %3756 = vmatpush1.bf16.msra.mxu0 0
      %3757 = vmatprep.subr.bf16.mxu0 0
      %3758 = vmatpush1.bf16.msra.mxu0 0
      %3759 = vmatprep.subr.bf16.mxu0 0
      %3760 = vmatpush1.bf16.msra.mxu0 0
      %3761 = vmatprep.subr.bf16.mxu0 0
      %3762 = vmatpush1.bf16.msra.mxu0 0
      %3763 = vmatprep.mubr.bf16.mxu0 0
      %3764 = vmatmul.mubr.bf16.gmra.mrb[0].mxu0 %v3450
      %v3765 = vpop.f32.mrb[0].mxu0
      %v3766 = vadd.f32 0.0, %v3765
      %v3767 = vpop.f32.mrb[0].mxu0
      %v3768 = vpop.f32.mrb[0].mxu0
      %v3769 = vpop.f32.mrb[0].mxu0
      %3770 = vdwg.mxu0
      %v3771 = vpack.c.bf16 %v3486, %v3486
      %v3772 = vpack.c.bf16 %v3526, %v3526
      %v3773 = vpack.c.bf16 %v3566, %v3566
      %v3774 = vpack.c.bf16 %v3606, %v3606
      %v3775 = vpack.c.bf16 %v3646, %v3646
      %v3776 = vpack.c.bf16 %v3686, %v3686
      %v3777 = vpack.c.bf16 %v3726, %v3726
      %v3778 = vpack.c.bf16 %v3766, %v3766
      %v3779 = vld [vmem:[#allocation16] sm:$0xff]
      %v3780 = vld [vmem:[#allocation16 + $0x8] sm:$0xf]
      %v3781 = vld [vmem:[#allocation16 + $0xc] sm:$0xff]
      %v3782 = vld [vmem:[#allocation16 + $0x14] sm:$0xf]
      %v3783 = vld [vmem:[#allocation16 + $0x18] sm:$0xff]
      %v3784 = vld [vmem:[#allocation16 + $0x20] sm:$0xf]
      %v3785 = vld [vmem:[#allocation16 + $0x24] sm:$0xff]
      %v3786 = vld [vmem:[#allocation16 + $0x2c] sm:$0xf]
      %v3787 = vld [vmem:[#allocation16 + $0x30] sm:$0xff]
      %v3788 = vld [vmem:[#allocation16 + $0x38] sm:$0xf]
      %v3789 = vld [vmem:[#allocation16 + $0x3c] sm:$0xff]
      %v3790 = vld [vmem:[#allocation16 + $0x44] sm:$0xf]
      %v3791 = vld [vmem:[#allocation16 + $0x48] sm:$0xff]
      %v3792 = vld [vmem:[#allocation16 + $0x50] sm:$0xf]
      %v3793 = vld [vmem:[#allocation16 + $0x54] sm:$0xff]
      %v3794 = vld [vmem:[#allocation16 + $0x5c] sm:$0xf]
      %v3795 = vld [vmem:[#allocation16 + $0x60] sm:$0xff]
      %v3796 = vld [vmem:[#allocation16 + $0x68] sm:$0xf]
      %v3797 = vld [vmem:[#allocation16 + $0x6c] sm:$0xff]
      %v3798 = vld [vmem:[#allocation16 + $0x74] sm:$0xf]
      %v3799 = vld [vmem:[#allocation16 + $0x78] sm:$0xff]
      %v3800 = vld [vmem:[#allocation16 + $0x80] sm:$0xf]
      %v3801 = vld [vmem:[#allocation16 + $0x84] sm:$0xff]
      %v3802 = vld [vmem:[#allocation16 + $0x8c] sm:$0xf]
      %v3803 = vld [vmem:[#allocation16 + $0x90] sm:$0xff]
      %v3804 = vld [vmem:[#allocation16 + $0x98] sm:$0xf]
      %v3805 = vld [vmem:[#allocation16 + $0x9c] sm:$0xff]
      %v3806 = vld [vmem:[#allocation16 + $0xa4] sm:$0xf]
      %v3807 = vld [vmem:[#allocation16 + $0xa8] sm:$0xff]
      %v3808 = vld [vmem:[#allocation16 + $0xb0] sm:$0xf]
      %v3809 = vld [vmem:[#allocation16 + $0xb4] sm:$0xff]
      %v3810 = vld [vmem:[#allocation16 + $0xbc] sm:$0xf]
      %v3819 = vunpack.c.l.b16 %v3771
      %v3820 = vunpack.c.l.b16 %v3772
      %v3821 = vunpack.c.l.b16 %v3773
      %v3822 = vunpack.c.l.b16 %v3774
      %v3823 = vunpack.c.l.b16 %v3775
      %v3824 = vunpack.c.l.b16 %v3776
      %v3825 = vunpack.c.l.b16 %v3777
      %v3826 = vunpack.c.l.b16 %v3778
      %v3827 = vrot.slane %v3820, 7
      %v3828 = vsel %vm3359, %v3827, %v3819
      %v3829 = vrot.slane %v3821, 6
      %v3830 = vsel %vm3361, %v3829, %v3828
      %v3831 = vrot.slane %v3822, 5
      %v3832 = vsel %vm3363, %v3831, %v3830
      %v3833 = vrot.slane %v3823, 4
      %v3834 = vsel %vm3365, %v3833, %v3832
      %v3835 = vrot.slane %v3824, 3
      %v3836 = vsel %vm3367, %v3835, %v3834
      %v3837 = vrot.slane %v3825, 2
      %v3838 = vsel %vm3369, %v3837, %v3836
      %v3839 = vrot.slane %v3826, 1
      %v3840 = vsel %vm3371, %v3839, %v3838
      %v3841 = vpack.c.b16 %v3840, %v3840
      %v3875 = vunpack.c.l.b16 %v3779
      %v3876 = vunpack.c.h.b16 %v3779
      %v3877 = vunpack.c.l.b16 %v3780
      %v3878 = vunpack.c.l.b16 %v3781
      %v3879 = vunpack.c.h.b16 %v3781
      %v3880 = vunpack.c.l.b16 %v3782
      %v3881 = vunpack.c.l.b16 %v3783
      %v3882 = vunpack.c.h.b16 %v3783
      %v3883 = vunpack.c.l.b16 %v3784
      %v3884 = vunpack.c.l.b16 %v3785
      %v3885 = vunpack.c.h.b16 %v3785
      %v3886 = vunpack.c.l.b16 %v3786
      %v3887 = vunpack.c.l.b16 %v3787
      %v3888 = vunpack.c.h.b16 %v3787
      %v3889 = vunpack.c.l.b16 %v3788
      %v3890 = vunpack.c.l.b16 %v3789
      %v3891 = vunpack.c.h.b16 %v3789
      %v3892 = vunpack.c.l.b16 %v3790
      %v3893 = vunpack.c.l.b16 %v3791
      %v3894 = vunpack.c.h.b16 %v3791
      %v3895 = vunpack.c.l.b16 %v3792
      %v3896 = vunpack.c.l.b16 %v3793
      %v3897 = vunpack.c.h.b16 %v3793
      %v3898 = vunpack.c.l.b16 %v3794
      %v3899 = vunpack.c.l.b16 %v3795
      %v3900 = vunpack.c.h.b16 %v3795
      %v3901 = vunpack.c.l.b16 %v3796
      %v3902 = vunpack.c.l.b16 %v3797
      %v3903 = vunpack.c.h.b16 %v3797
      %v3904 = vunpack.c.l.b16 %v3798
      %v3905 = vunpack.c.l.b16 %v3799
      %v3906 = vunpack.c.h.b16 %v3799
      %v3907 = vunpack.c.l.b16 %v3800
      %v3908 = vunpack.c.l.b16 %v3801
      %v3909 = vunpack.c.h.b16 %v3801
      %v3910 = vunpack.c.l.b16 %v3802
      %v3911 = vunpack.c.l.b16 %v3803
      %v3912 = vunpack.c.h.b16 %v3803
      %v3913 = vunpack.c.l.b16 %v3804
      %v3914 = vunpack.c.l.b16 %v3805
      %v3915 = vunpack.c.h.b16 %v3805
      %v3916 = vunpack.c.l.b16 %v3806
      %v3917 = vunpack.c.l.b16 %v3807
      %v3918 = vunpack.c.h.b16 %v3807
      %v3919 = vunpack.c.l.b16 %v3808
      %v3920 = vunpack.c.l.b16 %v3809
      %v3921 = vunpack.c.h.b16 %v3809
      %v3922 = vunpack.c.l.b16 %v3810
      %v3923 = vpack.c.b16 %v3878, %v3875
      %v3924 = vpack.c.b16 %v3879, %v3876
      %v3925 = vpack.c.b16 %v3880, %v3877
      %v3926 = vpack.c.b16 %v3884, %v3881
      %v3927 = vpack.c.b16 %v3885, %v3882
      %v3928 = vpack.c.b16 %v3886, %v3883
      %v3929 = vpack.c.b16 %v3890, %v3887
      %v3930 = vpack.c.b16 %v3891, %v3888
      %v3931 = vpack.c.b16 %v3892, %v3889
      %v3932 = vpack.c.b16 %v3896, %v3893
      %v3933 = vpack.c.b16 %v3897, %v3894
      %v3934 = vpack.c.b16 %v3898, %v3895
      %v3935 = vpack.c.b16 %v3902, %v3899
      %v3936 = vpack.c.b16 %v3903, %v3900
      %v3937 = vpack.c.b16 %v3904, %v3901
      %v3938 = vpack.c.b16 %v3908, %v3905
      %v3939 = vpack.c.b16 %v3909, %v3906
      %v3940 = vpack.c.b16 %v3910, %v3907
      %v3941 = vpack.c.b16 %v3914, %v3911
      %v3942 = vpack.c.b16 %v3915, %v3912
      %v3943 = vpack.c.b16 %v3916, %v3913
      %v3944 = vpack.c.b16 %v3920, %v3917
      %v3945 = vpack.c.b16 %v3921, %v3918
      %v3946 = vpack.c.b16 %v3922, %v3919
      %3971 = vmatprep.subr.bf16.mxu0 %v3924
      %3972 = vmatpush1.bf16.msra.mxu0 %v3923
      %3973 = vmatprep.subr.bf16.mxu0 %v3927
      %3974 = vmatpush1.bf16.msra.mxu0 %v3926
      %3975 = vmatprep.subr.bf16.mxu0 %v3930
      %3976 = vmatpush1.bf16.msra.mxu0 %v3929
      %3977 = vmatprep.subr.bf16.mxu0 %v3933
      %3978 = vmatpush1.bf16.msra.mxu0 %v3932
      %3979 = vmatprep.subr.bf16.mxu0 %v3936
      %3980 = vmatpush1.bf16.msra.mxu0 %v3935
      %3981 = vmatprep.subr.bf16.mxu0 %v3939
      %3982 = vmatpush1.bf16.msra.mxu0 %v3938
      %3983 = vmatprep.subr.bf16.mxu0 %v3942
      %3984 = vmatpush1.bf16.msra.mxu0 %v3941
      %3985 = vmatprep.subr.bf16.mxu0 %v3945
      %3986 = vmatpush1.bf16.msra.mxu0 %v3944
      %3987 = vmatprep.subr.bf16.mxu0 0
      %3988 = vmatpush1.bf16.msra.mxu0 0
      %3989 = vmatprep.subr.bf16.mxu0 0
      %3990 = vmatpush1.bf16.msra.mxu0 0
      %3991 = vmatprep.subr.bf16.mxu0 0
      %3992 = vmatpush1.bf16.msra.mxu0 0
      %3993 = vmatprep.subr.bf16.mxu0 0
      %3994 = vmatpush1.bf16.msra.mxu0 0
      %3995 = vmatprep.subr.bf16.mxu0 0
      %3996 = vmatpush1.bf16.msra.mxu0 0
      %3997 = vmatprep.subr.bf16.mxu0 0
      %3998 = vmatpush1.bf16.msra.mxu0 0
      %3999 = vmatprep.subr.bf16.mxu0 0
      %4000 = vmatpush1.bf16.msra.mxu0 0
      %4001 = vmatprep.subr.bf16.mxu0 0
      %4002 = vmatpush1.bf16.msra.mxu0 0
      %4003 = vmatprep.mubr.bf16.mxu0 0
      %4004 = vmatmul.mubr.bf16.gmra.mrb[0].mxu0 %v3841
      %v4005 = vpop.f32.mrb[0].mxu0
      %v4006 = vadd.f32 0.0, %v4005
      %v4007 = vpop.f32.mrb[0].mxu0
      %v4008 = vadd.f32 0.0, %v4007
      %v4009 = vpop.f32.mrb[0].mxu0
      %v4010 = vpop.f32.mrb[0].mxu0
      %4011 = vdwg.mxu0
      %4012 = vmatprep.subr.bf16.mxu0 0
      %4013 = vmatpush1.bf16.msra.mxu0 %v3925
      %4014 = vmatprep.subr.bf16.mxu0 0
      %4015 = vmatpush1.bf16.msra.mxu0 %v3928
      %4016 = vmatprep.subr.bf16.mxu0 0
      %4017 = vmatpush1.bf16.msra.mxu0 %v3931
      %4018 = vmatprep.subr.bf16.mxu0 0
      %4019 = vmatpush1.bf16.msra.mxu0 %v3934
      %4020 = vmatprep.subr.bf16.mxu0 0
      %4021 = vmatpush1.bf16.msra.mxu0 %v3937
      %4022 = vmatprep.subr.bf16.mxu0 0
      %4023 = vmatpush1.bf16.msra.mxu0 %v3940
      %4024 = vmatprep.subr.bf16.mxu0 0
      %4025 = vmatpush1.bf16.msra.mxu0 %v3943
      %4026 = vmatprep.subr.bf16.mxu0 0
      %4027 = vmatpush1.bf16.msra.mxu0 %v3946
      %4028 = vmatprep.subr.bf16.mxu0 0
      %4029 = vmatpush1.bf16.msra.mxu0 0
      %4030 = vmatprep.subr.bf16.mxu0 0
      %4031 = vmatpush1.bf16.msra.mxu0 0
      %4032 = vmatprep.subr.bf16.mxu0 0
      %4033 = vmatpush1.bf16.msra.mxu0 0
      %4034 = vmatprep.subr.bf16.mxu0 0
      %4035 = vmatpush1.bf16.msra.mxu0 0
      %4036 = vmatprep.subr.bf16.mxu0 0
      %4037 = vmatpush1.bf16.msra.mxu0 0
      %4038 = vmatprep.subr.bf16.mxu0 0
      %4039 = vmatpush1.bf16.msra.mxu0 0
      %4040 = vmatprep.subr.bf16.mxu0 0
      %4041 = vmatpush1.bf16.msra.mxu0 0
      %4042 = vmatprep.subr.bf16.mxu0 0
      %4043 = vmatpush1.bf16.msra.mxu0 0
      %4044 = vmatprep.mubr.bf16.mxu0 0
      %4045 = vmatmul.mubr.bf16.gmra.mrb[0].mxu0 %v3841
      %v4046 = vpop.f32.mrb[0].mxu0
      %v4047 = vadd.f32 0.0, %v4046
      %v4048 = vpop.f32.mrb[0].mxu0
      %v4049 = vpop.f32.mrb[0].mxu0
      %v4050 = vpop.f32.mrb[0].mxu0
      %4051 = vdwg.mxu0
      %v4084 = vunpack.c.l.b16 %v179
      %v4085 = vunpack.c.h.b16 %v179
      %v4086 = vunpack.c.l.b16 %v180
      %v4087 = vunpack.c.l.b16 %v181
      %v4088 = vunpack.c.h.b16 %v181
      %v4089 = vunpack.c.l.b16 %v182
      %v4090 = vunpack.c.l.b16 %v183
      %v4091 = vunpack.c.h.b16 %v183
      %v4092 = vunpack.c.l.b16 %v184
      %v4093 = vunpack.c.l.b16 %v185
      %v4094 = vunpack.c.h.b16 %v185
      %v4095 = vunpack.c.l.b16 %v186
      %v4096 = vunpack.c.l.b16 %v187
      %v4097 = vunpack.c.h.b16 %v187
      %v4098 = vunpack.c.l.b16 %v188
      %v4099 = vunpack.c.l.b16 %v189
      %v4100 = vunpack.c.h.b16 %v189
      %v4101 = vunpack.c.l.b16 %v190
      %v4102 = vunpack.c.l.b16 %v191
      %v4103 = vunpack.c.h.b16 %v191
      %v4104 = vunpack.c.l.b16 %v192
      %v4105 = vunpack.c.l.b16 %v193
      %v4106 = vunpack.c.h.b16 %v193
      %v4107 = vunpack.c.l.b16 %v194
      %v4108 = vunpack.c.l.b16 %v195
      %v4109 = vunpack.c.h.b16 %v195
      %v4110 = vunpack.c.l.b16 %v196
      %v4111 = vunpack.c.l.b16 %v197
      %v4112 = vunpack.c.h.b16 %v197
      %v4113 = vunpack.c.l.b16 %v198
      %v4114 = vunpack.c.l.b16 %v199
      %v4115 = vunpack.c.h.b16 %v199
      %v4116 = vunpack.c.l.b16 %v200
      %v4117 = vunpack.c.l.b16 %v201
      %v4118 = vunpack.c.h.b16 %v201
      %v4119 = vunpack.c.l.b16 %v202
      %v4120 = vunpack.c.l.b16 %v203
      %v4121 = vunpack.c.h.b16 %v203
      %v4122 = vunpack.c.l.b16 %v204
      %v4123 = vunpack.c.l.b16 %v205
      %v4124 = vunpack.c.h.b16 %v205
      %v4125 = vunpack.c.l.b16 %v206
      %v4126 = vunpack.c.l.b16 %v207
      %v4127 = vunpack.c.h.b16 %v207
      %v4128 = vunpack.c.l.b16 %v208
      %v4129 = vunpack.c.l.b16 %v209
      %v4130 = vunpack.c.h.b16 %v209
      %v4131 = vunpack.c.l.b16 %v210
      %v4132 = vpack.c.b16 %v4087, %v4084
      %v4133 = vpack.c.b16 %v4088, %v4085
      %v4134 = vpack.c.b16 %v4089, %v4086
      %v4135 = vpack.c.b16 %v4093, %v4090
      %v4136 = vpack.c.b16 %v4094, %v4091
      %v4137 = vpack.c.b16 %v4095, %v4092
      %v4138 = vpack.c.b16 %v4099, %v4096
      %v4139 = vpack.c.b16 %v4100, %v4097
      %v4140 = vpack.c.b16 %v4101, %v4098
      %v4141 = vpack.c.b16 %v4105, %v4102
      %v4142 = vpack.c.b16 %v4106, %v4103
      %v4143 = vpack.c.b16 %v4107, %v4104
      %v4144 = vpack.c.b16 %v4111, %v4108
      %v4145 = vpack.c.b16 %v4112, %v4109
      %v4146 = vpack.c.b16 %v4113, %v4110
      %v4147 = vpack.c.b16 %v4117, %v4114
      %v4148 = vpack.c.b16 %v4118, %v4115
      %v4149 = vpack.c.b16 %v4119, %v4116
      %v4150 = vpack.c.b16 %v4123, %v4120
      %v4151 = vpack.c.b16 %v4124, %v4121
      %v4152 = vpack.c.b16 %v4125, %v4122
      %v4153 = vpack.c.b16 %v4129, %v4126
      %v4154 = vpack.c.b16 %v4130, %v4127
      %v4155 = vpack.c.b16 %v4131, %v4128
      %4180 = vmatprep.subr.bf16.mxu0 %v4133
      %4181 = vmatpush1.bf16.msra.mxu0 %v4132
      %4182 = vmatprep.subr.bf16.mxu0 %v4136
      %4183 = vmatpush1.bf16.msra.mxu0 %v4135
      %4184 = vmatprep.subr.bf16.mxu0 %v4139
      %4185 = vmatpush1.bf16.msra.mxu0 %v4138
      %4186 = vmatprep.subr.bf16.mxu0 %v4142
      %4187 = vmatpush1.bf16.msra.mxu0 %v4141
      %4188 = vmatprep.subr.bf16.mxu0 %v4145
      %4189 = vmatpush1.bf16.msra.mxu0 %v4144
      %4190 = vmatprep.subr.bf16.mxu0 %v4148
      %4191 = vmatpush1.bf16.msra.mxu0 %v4147
      %4192 = vmatprep.subr.bf16.mxu0 %v4151
      %4193 = vmatpush1.bf16.msra.mxu0 %v4150
      %4194 = vmatprep.subr.bf16.mxu0 %v4154
      %4195 = vmatpush1.bf16.msra.mxu0 %v4153
      %4196 = vmatprep.subr.bf16.mxu0 0
      %4197 = vmatpush1.bf16.msra.mxu0 0
      %4198 = vmatprep.subr.bf16.mxu0 0
      %4199 = vmatpush1.bf16.msra.mxu0 0
      %4200 = vmatprep.subr.bf16.mxu0 0
      %4201 = vmatpush1.bf16.msra.mxu0 0
      %4202 = vmatprep.subr.bf16.mxu0 0
      %4203 = vmatpush1.bf16.msra.mxu0 0
      %4204 = vmatprep.subr.bf16.mxu0 0
      %4205 = vmatpush1.bf16.msra.mxu0 0
      %4206 = vmatprep.subr.bf16.mxu0 0
      %4207 = vmatpush1.bf16.msra.mxu0 0
      %4208 = vmatprep.subr.bf16.mxu0 0
      %4209 = vmatpush1.bf16.msra.mxu0 0
      %4210 = vmatprep.subr.bf16.mxu0 0
      %4211 = vmatpush1.bf16.msra.mxu0 0
      %4212 = vmatprep.mubr.bf16.mxu0 0
      %4213 = vmatmul.mubr.bf16.gmra.mrb[0].mxu0 %v178
      %v4214 = vpop.f32.mrb[0].mxu0
      %v4215 = vadd.f32 %v4006, %v4214
      %v4216 = vpop.f32.mrb[0].mxu0
      %v4217 = vadd.f32 %v4008, %v4216
      %v4218 = vpop.f32.mrb[0].mxu0
      %v4219 = vpop.f32.mrb[0].mxu0
      %4220 = vdwg.mxu0
      %4221 = vmatprep.subr.bf16.mxu0 0
      %4222 = vmatpush1.bf16.msra.mxu0 %v4134
      %4223 = vmatprep.subr.bf16.mxu0 0
      %4224 = vmatpush1.bf16.msra.mxu0 %v4137
      %4225 = vmatprep.subr.bf16.mxu0 0
      %4226 = vmatpush1.bf16.msra.mxu0 %v4140
      %4227 = vmatprep.subr.bf16.mxu0 0
      %4228 = vmatpush1.bf16.msra.mxu0 %v4143
      %4229 = vmatprep.subr.bf16.mxu0 0
      %4230 = vmatpush1.bf16.msra.mxu0 %v4146
      %4231 = vmatprep.subr.bf16.mxu0 0
      %4232 = vmatpush1.bf16.msra.mxu0 %v4149
      %4233 = vmatprep.subr.bf16.mxu0 0
      %4234 = vmatpush1.bf16.msra.mxu0 %v4152
      %4235 = vmatprep.subr.bf16.mxu0 0
      %4236 = vmatpush1.bf16.msra.mxu0 %v4155
      %4237 = vmatprep.subr.bf16.mxu0 0
      %4238 = vmatpush1.bf16.msra.mxu0 0
      %4239 = vmatprep.subr.bf16.mxu0 0
      %4240 = vmatpush1.bf16.msra.mxu0 0
      %4241 = vmatprep.subr.bf16.mxu0 0
      %4242 = vmatpush1.bf16.msra.mxu0 0
      %4243 = vmatprep.subr.bf16.mxu0 0
      %4244 = vmatpush1.bf16.msra.mxu0 0
      %4245 = vmatprep.subr.bf16.mxu0 0
      %4246 = vmatpush1.bf16.msra.mxu0 0
      %4247 = vmatprep.subr.bf16.mxu0 0
      %4248 = vmatpush1.bf16.msra.mxu0 0
      %4249 = vmatprep.subr.bf16.mxu0 0
      %4250 = vmatpush1.bf16.msra.mxu0 0
      %4251 = vmatprep.subr.bf16.mxu0 0
      %4252 = vmatpush1.bf16.msra.mxu0 0
      %4253 = vmatprep.mubr.bf16.mxu0 0
      %4254 = vmatmul.mubr.bf16.gmra.mrb[0].mxu0 %v178
      %v4255 = vpop.f32.mrb[0].mxu0
      %v4256 = vadd.f32 %v4047, %v4255
      %v4257 = vpop.f32.mrb[0].mxu0
      %v4258 = vpop.f32.mrb[0].mxu0
      %v4259 = vpop.f32.mrb[0].mxu0
      %4260 = vdwg.mxu0
      %v4261 = vld [vmem:[%s10] sm:$0x7]
      %v4263 = vlaneseq
      %v4264 = vshrl.u32 %v4263, 7
      %v4265 = vsub.s32 0, %v4264
      %v4266 = vrot.slane %v4261, %v4265
      %v4267 = vlaneseq
      %v4268 = vshrl.u32 %v4267, 7
      %v4269 = vsub.s32 1, %v4268
      %v4270 = vrot.slane %v4261, %v4269
      %v4271 = vlaneseq
      %v4272 = vshrl.u32 %v4271, 7
      %v4273 = vsub.s32 2, %v4272
      %v4274 = vrot.slane %v4261, %v4273
      %v4278 = vadd.f32 %v4215, %v4266
      %v4279 = vadd.f32 %v4217, %v4270
      %v4280 = vadd.f32 %v4256, %v4274
      %v4281 = vadd.f32 %v4278, %v423
      %v4282 = vxor.u32 %v4281, 2147483648
      %v4283 = vmul.f32 %v4282, 1.442695
      %v4284 = vpow.pop %v4283
      %v4285 = vadd.f32 %v4284, 1.0
      %v4286 = vrcp.pop %v4285
      %v4287 = vmul.f32 1.0, %v4286
      %v4288 = vadd.f32 %v4279, %v425
      %v4289 = vxor.u32 %v4288, 2147483648
      %v4290 = vmul.f32 %v4289, 1.442695
      %v4291 = vpow.pop %v4290
      %v4292 = vadd.f32 %v4291, 1.0
      %v4293 = vrcp.pop %v4292
      %v4294 = vmul.f32 1.0, %v4293
      %v4295 = vmul.f32 %v4287, %v464
      %v4296 = vadd.f32 %v4280, %v4295
      %v4297 = vtanh.pop %v4296
      %v4298 = vsub.f32 1.0, %v4294
      %v4299 = vmul.f32 %v4298, %v4297
      %v4300 = vmul.f32 %v4294, %v176
      %v4301 = vadd.f32 %v4299, %v4300
      %4302 = vst [vmem:[#allocation21] sm:$0xff] %v4301
      %v4303 = vpack.c.bf16 %v4301, %v4301
      %4304 = vst [vmem:[#allocation2] sm:$0xf] %v4303
      %v4305 = vpack.c.b16 %v3819, %v3819
      %v4306 = vpack.c.b16 %v3820, %v3820
      %v4307 = vpack.c.b16 %v3821, %v3821
      %v4308 = vpack.c.b16 %v3822, %v3822
      %v4309 = vpack.c.b16 %v3823, %v3823
      %v4310 = vpack.c.b16 %v3824, %v3824
      %v4311 = vpack.c.b16 %v3825, %v3825
      %v4312 = vpack.c.b16 %v3826, %v3826
      %v4313 = vunpack.c.l.b16 %v4305
      %v4314 = vunpack.c.l.b16 %v4306
      %v4315 = vunpack.c.l.b16 %v4307
      %v4316 = vunpack.c.l.b16 %v4308
      %v4317 = vunpack.c.l.b16 %v4309
      %v4318 = vunpack.c.l.b16 %v4310
      %v4319 = vunpack.c.l.b16 %v4311
      %v4320 = vunpack.c.l.b16 %v4312
      %v4321 = vrot.slane %v4314, 7
      %v4322 = vsel %vm3359, %v4321, %v4313
      %v4323 = vrot.slane %v4315, 6
      %v4324 = vsel %vm3361, %v4323, %v4322
      %v4325 = vrot.slane %v4316, 5
      %v4326 = vsel %vm3363, %v4325, %v4324
      %v4327 = vrot.slane %v4317, 4
      %v4328 = vsel %vm3365, %v4327, %v4326
      %v4329 = vrot.slane %v4318, 3
      %v4330 = vsel %vm3367, %v4329, %v4328
      %v4331 = vrot.slane %v4319, 2
      %v4332 = vsel %vm3369, %v4331, %v4330
      %v4333 = vrot.slane %v4320, 1
      %v4334 = vsel %vm3371, %v4333, %v4332
      %v4335 = vpack.c.b16 %v4334, %v4334
      %4337 = vst [vmem:[#allocation2 + $0x4] sm:$0xf] %v4335
      %vm4338 = vcmask 7168
      %4339 = vst.msk [vmem:[#allocation3] sm:$0xff] %vm4338, -1e+30
      %4340 = vst.msk [vmem:[#allocation4] sm:$0xff] %vm4338, 0.0
    $region97: #{tpu_custom_call.1} parent=1 // pred_fallthru
      _
    %v4341 = vld [vmem:[#allocation2] sm:$0xff]
    %v4342 = vld [vmem:[#allocation19] sm:$0xf]
    %v4343 = vld [vmem:[#allocation19 + $0x4] sm:$0xf]
    %v4344 = vld [vmem:[#allocation19 + $0x8] sm:$0xf]
    %v4345 = vld [vmem:[#allocation19 + $0xc] sm:$0xf]
    %v4346 = vld [vmem:[#allocation19 + $0x10] sm:$0xf]
    %v4347 = vld [vmem:[#allocation19 + $0x14] sm:$0xf]
    %v4348 = vld [vmem:[#allocation19 + $0x18] sm:$0xf]
    %v4349 = vld [vmem:[#allocation19 + $0x1c] sm:$0xf]
    %v4350 = vld [vmem:[#allocation19 + $0x20] sm:$0xf]
    %v4351 = vld [vmem:[#allocation19 + $0x24] sm:$0xf]
    %v4352 = vld [vmem:[#allocation19 + $0x28] sm:$0xf]
    %v4353 = vld [vmem:[#allocation19 + $0x2c] sm:$0xf]
    %v4354 = vld [vmem:[#allocation19 + $0x30] sm:$0xf]
    %v4355 = vld [vmem:[#allocation19 + $0x34] sm:$0xf]
    %v4356 = vld [vmem:[#allocation19 + $0x38] sm:$0xf]
    %v4357 = vld [vmem:[#allocation19 + $0x3c] sm:$0xf]
    %v4358 = vld [vmem:[#allocation19 + $0x40] sm:$0xf]
    %v4359 = vld [vmem:[#allocation19 + $0x44] sm:$0xf]
    %v4360 = vld [vmem:[#allocation19 + $0x48] sm:$0xf]
    %v4361 = vld [vmem:[#allocation19 + $0x4c] sm:$0xf]
    %v4362 = vld [vmem:[#allocation19 + $0x50] sm:$0xf]
    %v4363 = vld [vmem:[#allocation19 + $0x54] sm:$0xf]
    %v4364 = vld [vmem:[#allocation19 + $0x58] sm:$0xf]
    %v4365 = vld [vmem:[#allocation19 + $0x5c] sm:$0xf]
    %v4366 = vld [vmem:[#allocation19 + $0x60] sm:$0xf]
    %v4367 = vld [vmem:[#allocation19 + $0x64] sm:$0xf]
    %v4368 = vld [vmem:[#allocation19 + $0x68] sm:$0xf]
    %v4369 = vld [vmem:[#allocation19 + $0x6c] sm:$0xf]
    %v4370 = vld [vmem:[#allocation19 + $0x70] sm:$0xf]
    %v4371 = vld [vmem:[#allocation19 + $0x74] sm:$0xf]
    %v4372 = vld [vmem:[#allocation19 + $0x78] sm:$0xf]
    %v4373 = vld [vmem:[#allocation19 + $0x7c] sm:$0xf]
    %v4374 = vld [vmem:[%s13] sm:$0x1]
    %v4376 = vlaneseq
    %v4377 = vshrl.u32 %v4376, 7
    %v4378 = vsub.s32 0, %v4377
    %v4379 = vrot.slane %v4374, %v4378
    %v4382 = vunpack.c.l.b16 %v4341
    %v4383 = vunpack.c.h.b16 %v4341
    %v4384 = vpack.c.b16 %v4382, %v4382
    %v4385 = vpack.c.b16 %v4383, %v4383
    %v4420 = vunpack.c.l.b16 %v4342
    %v4421 = vunpack.c.l.b16 %v4343
    %v4422 = vunpack.c.l.b16 %v4344
    %v4423 = vunpack.c.l.b16 %v4345
    %v4424 = vunpack.c.l.b16 %v4346
    %v4425 = vunpack.c.l.b16 %v4347
    %v4426 = vunpack.c.l.b16 %v4348
    %v4427 = vunpack.c.l.b16 %v4349
    %v4428 = vunpack.c.l.b16 %v4350
    %v4429 = vunpack.c.l.b16 %v4351
    %v4430 = vunpack.c.l.b16 %v4352
    %v4431 = vunpack.c.l.b16 %v4353
    %v4432 = vunpack.c.l.b16 %v4354
    %v4433 = vunpack.c.l.b16 %v4355
    %v4434 = vunpack.c.l.b16 %v4356
    %v4435 = vunpack.c.l.b16 %v4357
    %v4436 = vunpack.c.l.b16 %v4358
    %v4437 = vunpack.c.l.b16 %v4359
    %v4438 = vunpack.c.l.b16 %v4360
    %v4439 = vunpack.c.l.b16 %v4361
    %v4440 = vunpack.c.l.b16 %v4362
    %v4441 = vunpack.c.l.b16 %v4363
    %v4442 = vunpack.c.l.b16 %v4364
    %v4443 = vunpack.c.l.b16 %v4365
    %v4444 = vunpack.c.l.b16 %v4366
    %v4445 = vunpack.c.l.b16 %v4367
    %v4446 = vunpack.c.l.b16 %v4368
    %v4447 = vunpack.c.l.b16 %v4369
    %v4448 = vunpack.c.l.b16 %v4370
    %v4449 = vunpack.c.l.b16 %v4371
    %v4450 = vunpack.c.l.b16 %v4372
    %v4451 = vunpack.c.l.b16 %v4373
    %v4452 = vpack.c.b16 %v4421, %v4420
    %v4453 = vpack.c.b16 %v4423, %v4422
    %v4454 = vpack.c.b16 %v4425, %v4424
    %v4455 = vpack.c.b16 %v4427, %v4426
    %v4456 = vpack.c.b16 %v4429, %v4428
    %v4457 = vpack.c.b16 %v4431, %v4430
    %v4458 = vpack.c.b16 %v4433, %v4432
    %v4459 = vpack.c.b16 %v4435, %v4434
    %v4460 = vpack.c.b16 %v4437, %v4436
    %v4461 = vpack.c.b16 %v4439, %v4438
    %v4462 = vpack.c.b16 %v4441, %v4440
    %v4463 = vpack.c.b16 %v4443, %v4442
    %v4464 = vpack.c.b16 %v4445, %v4444
    %v4465 = vpack.c.b16 %v4447, %v4446
    %v4466 = vpack.c.b16 %v4449, %v4448
    %v4467 = vpack.c.b16 %v4451, %v4450
    %4484 = vmatprep.subr.bf16.mxu0 0
    %4485 = vmatpush1.bf16.msra.mxu0 %v4452
    %4486 = vmatprep.subr.bf16.mxu0 0
    %4487 = vmatpush1.bf16.msra.mxu0 %v4453
    %4488 = vmatprep.subr.bf16.mxu0 0
    %4489 = vmatpush1.bf16.msra.mxu0 %v4454
    %4490 = vmatprep.subr.bf16.mxu0 0
    %4491 = vmatpush1.bf16.msra.mxu0 %v4455
    %4492 = vmatprep.subr.bf16.mxu0 0
    %4493 = vmatpush1.bf16.msra.mxu0 %v4456
    %4494 = vmatprep.subr.bf16.mxu0 0
    %4495 = vmatpush1.bf16.msra.mxu0 %v4457
    %4496 = vmatprep.subr.bf16.mxu0 0
    %4497 = vmatpush1.bf16.msra.mxu0 %v4458
    %4498 = vmatprep.subr.bf16.mxu0 0
    %4499 = vmatpush1.bf16.msra.mxu0 %v4459
    %4500 = vmatprep.subr.bf16.mxu0 0
    %4501 = vmatpush1.bf16.msra.mxu0 %v4460
    %4502 = vmatprep.subr.bf16.mxu0 0
    %4503 = vmatpush1.bf16.msra.mxu0 %v4461
    %4504 = vmatprep.subr.bf16.mxu0 0
    %4505 = vmatpush1.bf16.msra.mxu0 %v4462
    %4506 = vmatprep.subr.bf16.mxu0 0
    %4507 = vmatpush1.bf16.msra.mxu0 %v4463
    %4508 = vmatprep.subr.bf16.mxu0 0
    %4509 = vmatpush1.bf16.msra.mxu0 %v4464
    %4510 = vmatprep.subr.bf16.mxu0 0
    %4511 = vmatpush1.bf16.msra.mxu0 %v4465
    %4512 = vmatprep.subr.bf16.mxu0 0
    %4513 = vmatpush1.bf16.msra.mxu0 %v4466
    %4514 = vmatprep.subr.bf16.mxu0 0
    %4515 = vmatpush1.bf16.msra.mxu0 %v4467
    %4516 = vmatprep.mubr.bf16.mxu0 %v4385
    %4517 = vmatmul.mubr.bf16.gmra.mrb[0].mxu0 %v4384
    %v4518 = vpop.f32.mrb[0].mxu0
    %v4519 = vadd.f32 %v4379, %v4518
    %v4520 = vpop.f32.mrb[0].mxu0
    %v4521 = vpop.f32.mrb[0].mxu0
    %v4522 = vpop.f32.mrb[0].mxu0
    %4523 = vdwg.mxu0
    %4524 = vst [vmem:[#allocation20] sm:$0xff] %v4519
    %v4525 = vld [vmem:[#allocation3] sm:$0xff]
    %4526 = vmax.xlane.f32.xlu0 %v4519
    %v4527 = vpop.xlane.xlu0 %4526
    %v4528 = vmax.f32 %v4525, %v4527
    %v4529 = vld [vmem:[#allocation4] sm:$0xff]
    %v4530 = vsub.f32 %v4525, %v4528
    %v4531 = vmul.f32 %v4530, 1.442695
    %v4532 = vpow.pop %v4531
    %v4533 = vmul.f32 %v4529, %v4532
    %4535 = vset.pattern.permute.xlu0 0
    %4536 = vperm.xlu0 %4535, %v4528
    %v4537 = vpop.permute.xlu0 %4536
    %v4539 = vsub.f32 %v4519, %v4537
    %v4540 = vmul.f32 %v4539, 1.442695
    %v4541 = vpow.pop %v4540
    %4542 = vadd.xlane.f32.xlu0 %v4541
    %v4543 = vpop.xlane.xlu0 %4542
    %v4544 = vadd.f32 %v4533, %v4543
    %vm4545 = vcmask 7168
    %4546 = vst.msk [vmem:[#allocation4] sm:$0xff] %vm4545, %v4544
    %4547 = vst.msk [vmem:[#allocation3] sm:$0xff] %vm4545, %v4528
    // Predicated region
    $region98: #{tpu_custom_call.1} parent=1 // pred_check
      %p4548 = pneg %p172
    $region99: #{tpu_custom_call.1} parent=1 // pred_check_branch
      %4550 = sbr.rel (%p4548) target = $region101
    $region100: #{tpu_custom_call.1} parent=1 // pred_region
      %v4551 = vld [vmem:[#allocation3] sm:$0xff]
      %v4552 = vld [vmem:[#allocation4] sm:$0xff]
      %v4553 = vlog2.pop %v4552
      %v4554 = vmul.f32 %v4553, 0.6931472
      %v4555 = vadd.f32 %v4551, %v4554
      %4556 = vst.msk [vmem:[%s15] sm:$0xff] %vm4545, %v4555
    $region101: #{tpu_custom_call.1} parent=1 // pred_fallthru
      _
    // Predicated region
    $region102: #{tpu_custom_call.1} parent=1 // pred_check
      _
    $region103: #{tpu_custom_call.1} parent=1 // pred_check_branch
      %4558 = sbr.rel (0) target = $region105
    $region104: #{tpu_custom_call.1} parent=1 // pred_region
      %s4560 = ssub.s32 128, 128
      %4561 = vsyncadd [#allocation7], %s4560
      %s4563 = sshll.u32 [#allocation20], 4
      %s4564 = int_to_ptr.vmem [resolvable:$true] %s4563
      %4566 = dma.vmem_to_hbm [thread:$0]  %s4564, 128, %s14, [#allocation7]
    $region105: #{tpu_custom_call.1} parent=1 // pred_fallthru
      _
    // Predicated region
    $region106: #{tpu_custom_call.1} parent=1 // pred_check
      _
    $region107: #{tpu_custom_call.1} parent=1 // pred_check_branch
      %4568 = sbr.rel (0) target = $region109
    $region108: #{tpu_custom_call.1} parent=1 // pred_region
      _
    $region109: #{tpu_custom_call.1} parent=1 // pred_fallthru
      _
    // Predicated region
    $region110: #{tpu_custom_call.1} parent=1 // pred_check
      _
    $region111: #{tpu_custom_call.1} parent=1 // pred_check_branch
      %4570 = sbr.rel (0) target = $region113
    $region112: #{tpu_custom_call.1} parent=1 // pred_region
      %s4572 = ssub.s32 128, 128
      %4573 = vsyncadd [#allocation22], %s4572
      %s4575 = sshll.u32 [#allocation21], 4
      %s4576 = int_to_ptr.vmem [resolvable:$true] %s4575
      %4578 = dma.vmem_to_hbm [thread:$0]  %s4576, 128, %s16, [#allocation22]
    $region113: #{tpu_custom_call.1} parent=1 // pred_fallthru
      _
    // Predicated region
    $region114: #{tpu_custom_call.1} parent=1 // pred_check
      _
    $region115: #{tpu_custom_call.1} parent=1 // pred_check_branch
      %4580 = sbr.rel (0) target = $region117
    $region116: #{tpu_custom_call.1} parent=1 // pred_region
      %s4582 = ssub.s32 128, 128
      %4583 = vsyncadd [#allocation22], %s4582
      %s4585 = sshll.u32 [#allocation23], 4
      %s4586 = int_to_ptr.vmem [resolvable:$true] %s4585
      %4588 = dma.vmem_to_hbm [thread:$0]  %s4586, 128, %s17, [#allocation22]
    $region117: #{tpu_custom_call.1} parent=1 // pred_fallthru
      _
    // Predicated region
    $region118: #{tpu_custom_call.1} parent=1 // pred_check
      _
    $region119: #{tpu_custom_call.1} parent=1 // pred_check_branch
      %4590 = sbr.rel (0) target = $region121
    $region120: #{tpu_custom_call.1} parent=1 // pred_region
      %4591 = dma.done [#allocation7], 128
    $region121: #{tpu_custom_call.1} parent=1 // pred_fallthru
      _
    // Predicated region
    $region122: #{tpu_custom_call.1} parent=1 // pred_check
      _
    $region123: #{tpu_custom_call.1} parent=1 // pred_check_branch
      %4593 = sbr.rel (0) target = $region125
    $region124: #{tpu_custom_call.1} parent=1 // pred_region
      _
    $region125: #{tpu_custom_call.1} parent=1 // pred_fallthru
      _
    // Predicated region
    $region126: #{tpu_custom_call.1} parent=1 // pred_check
      _
    $region127: #{tpu_custom_call.1} parent=1 // pred_check_branch
      %4595 = sbr.rel (0) target = $region129
    $region128: #{tpu_custom_call.1} parent=1 // pred_region
      %4596 = dma.done [#allocation22], 128
    $region129: #{tpu_custom_call.1} parent=1 // pred_fallthru
      _
    // Predicated region
    $region130: #{tpu_custom_call.1} parent=1 // pred_check
      _
    $region131: #{tpu_custom_call.1} parent=1 // pred_check_branch
      %4598 = sbr.rel (0) target = $region133
    $region132: #{tpu_custom_call.1} parent=1 // pred_region
      %4599 = dma.done [#allocation22], 128
    $region133: #{tpu_custom_call.1} parent=1 // pred_fallthru
      _
    %4600 = vsyncpa [#allocation6], 1
    %4601 = vsyncpa [#allocation9], 1
    %4602 = vsyncpa [#allocation12], 1
    %4603 = vsyncpa [#allocation15], 1
    %4604 = vsyncpa [#allocation18], 1
    %4605 = vsyncpa [#allocation7], 1
    %4606 = vsyncpa [#allocation22], 1

// kernel: tpu_custom_call.1
$region0: #{tpu_custom_call.1}
  #allocation0 [shape = 'u32[]', space=smem, size = 0x4, offset = 0x4, fixed_abs, tag = 'smem constant byte address 0x4 - core index']
  #allocation1 [shape = 'u32[144,128]{1,0:T(1,128)}', space=vmem, size = 0x12000, scoped, tag = 'internal scratch']
  #allocation2 [shape = 'bf16[8,256]{1,0:T(8,128)(2,1)}', space=vmem, size = 0x1000, scoped, tag = 'scratch operand']
  #allocation3 [shape = 'f32[8,1]{1,0:T(8,128)}', space=vmem, size = 0x1000, scoped, tag = 'scratch operand']
  #allocation4 [shape = 'f32[8,1]{1,0:T(8,128)}', space=vmem, size = 0x1000, scoped, tag = 'scratch operand']
  %s0 = inlined_call_operand.hbm [shape: bf16[8,128], index: 0, kind: input, shape index: {}]
  %s1 = inlined_call_operand.hbm [shape: f32[8,128], index: 1, kind: input, shape index: {}]
  %s2 = inlined_call_operand.hbm [shape: bf16[1024,128], index: 2, kind: input, shape index: {}]
  %s3 = inlined_call_operand.hbm [shape: bf16[128,128], index: 3, kind: input, shape index: {}]
  %s4 = inlined_call_operand.hbm [shape: bf16[128,128], index: 4, kind: input, shape index: {}]
  %s5 = inlined_call_operand.vmem [shape: f32[1,128], index: 5, kind: input, shape index: {}]
  %s6 = inlined_call_operand.vmem [shape: f32[1,128], index: 6, kind: input, shape index: {}]
  %s7 = inlined_call_operand.hbm [shape: bf16[128,384], index: 7, kind: input, shape index: {}]
  %s8 = inlined_call_operand.hbm [shape: bf16[128,384], index: 8, kind: input, shape index: {}]
  %s9 = inlined_call_operand.hbm [shape: bf16[128,384], index: 9, kind: input, shape index: {}]
  %s10 = inlined_call_operand.vmem [shape: f32[1,384], index: 10, kind: input, shape index: {}]
  %s11 = inlined_call_operand.vmem [shape: f32[1,384], index: 11, kind: input, shape index: {}]
  %s12 = inlined_call_operand.hbm [shape: bf16[256,128], index: 12, kind: input, shape index: {}]
  %s13 = inlined_call_operand.vmem [shape: f32[1,128], index: 13, kind: input, shape index: {}]
  %s14 = inlined_call_operand.hbm [shape: f32[8,128], index: 14, kind: output, shape index: {0}]
  %s15 = inlined_call_operand.vmem [shape: f32[8,1], index: 15, kind: output, shape index: {1}]
  %s16 = inlined_call_operand.hbm [shape: f32[8,128], index: 16, kind: output, shape index: {2}]
  %s17 = inlined_call_operand.hbm [shape: f32[8,128], index: 17, kind: output, shape index: {3}]
  %18 = xla_tuple %s14, %s15, %s16, %s17
  %s19 = sld [smem:[#allocation0]]
  $region134: #{tpu_custom_call.1} parent=0
    _
  %s21 = ssub.s32 1, %s19
  %s22 = scalar_select 0, %s21, %s19
  $region1: #{tpu_custom_call.1} parent=0
    #allocation5 [shape = 'u8[2048]{0}', space=vmem, size = 0x800, scoped, tag = 'input window, operand 0, single buffered']
    #allocation6 [shape = 's32[1]{0}', space=sflag, size = 0x4, scoped, tag = 'scoped memory for tpu_custom_call.1']
    #allocation7 [shape = 's32[1]{0}', space=sflag, size = 0x4, scoped, tag = 'scoped memory for tpu_custom_call.1']
    #allocation8 [shape = 'u8[4096]{0}', space=vmem, size = 0x1000, scoped, tag = 'input window, operand 1, single buffered']
    #allocation9 [shape = 's32[1]{0}', space=sflag, size = 0x4, scoped, tag = 'scoped memory for tpu_custom_call.1']
    #allocation10 [shape = 'u8[262144]{0}', space=vmem, size = 0x40000, scoped, tag = 'input window, operand 2, single buffered']
    #allocation11 [shape = 'u8[32768]{0}', space=vmem, size = 0x8000, scoped, tag = 'input window, operand 3, single buffered']
    #allocation12 [shape = 's32[1]{0}', space=sflag, size = 0x4, scoped, tag = 'scoped memory for tpu_custom_call.1']
    #allocation13 [shape = 'u8[32768]{0}', space=vmem, size = 0x8000, scoped, tag = 'input window, operand 4, single buffered']
    #allocation14 [shape = 'u8[98304]{0}', space=vmem, size = 0x18000, scoped, tag = 'input window, operand 7, single buffered']
    #allocation15 [shape = 's32[1]{0}', space=sflag, size = 0x4, scoped, tag = 'scoped memory for tpu_custom_call.1']
    #allocation16 [shape = 'u8[98304]{0}', space=vmem, size = 0x18000, scoped, tag = 'input window, operand 8, single buffered']
    #allocation17 [shape = 'u8[98304]{0}', space=vmem, size = 0x18000, scoped, tag = 'input window, operand 9, single buffered']
    #allocation18 [shape = 's32[1]{0}', space=sflag, size = 0x4, scoped, tag = 'scoped memory for tpu_custom_call.1']
    #allocation19 [shape = 'u8[65536]{0}', space=vmem, size = 0x10000, scoped, tag = 'input window, operand 12, single buffered']
    #allocation20 [shape = 'u8[4096]{0}', space=vmem, size = 0x1000, scoped, tag = 'output window, operand 0, single buffered']
    #allocation21 [shape = 'u8[4096]{0}', space=vmem, size = 0x1000, scoped, tag = 'output window, operand 2, single buffered']
    #allocation22 [shape = 's32[1]{0}', space=sflag, size = 0x4, scoped, tag = 'scoped memory for tpu_custom_call.1']
    #allocation23 [shape = 'u8[4096]{0}', space=vmem, size = 0x1000, scoped, tag = 'output window, operand 3, single buffered']
    %23 = vsyncpa [#allocation6], 0
    %24 = vsyncpa [#allocation9], 0
    %25 = vsyncpa [#allocation12], 0
    %26 = vsyncpa [#allocation15], 0
    %27 = vsyncpa [#allocation18], 0
    %28 = vsyncpa [#allocation7], 0
    %29 = vsyncpa [#allocation22], 0
    // Predicated region
    $region2: #{tpu_custom_call.1} parent=1 // pred_check
      _
    $region3: #{tpu_custom_call.1} parent=1 // pred_check_branch
      %31 = sbr.rel (0) target = $region5
    $region4: #{tpu_custom_call.1} parent=1 // pred_region
      %s33 = ssub.s32 64, 64
      %34 = vsyncadd [#allocation6], %s33
      %s36 = sshll.u32 [#allocation5], 4
      %s37 = int_to_ptr.vmem [resolvable:$true] %s36
      %39 = dma.hbm_to_vmem [thread:$0]  %s0, 64, %s37, [#allocation6]
    $region5: #{tpu_custom_call.1} parent=1 // pred_fallthru
      _
    // Predicated region
    $region6: #{tpu_custom_call.1} parent=1 // pred_check
      _
    $region7: #{tpu_custom_call.1} parent=1 // pred_check_branch
      %41 = sbr.rel (0) target = $region9
    $region8: #{tpu_custom_call.1} parent=1 // pred_region
      %s43 = ssub.s32 128, 128
      %44 = vsyncadd [#allocation9], %s43
      %s46 = sshll.u32 [#allocation8], 4
      %s47 = int_to_ptr.vmem [resolvable:$true] %s46
      %49 = dma.hbm_to_vmem [thread:$0]  %s1, 128, %s47, [#allocation9]
    $region9: #{tpu_custom_call.1} parent=1 // pred_fallthru
      _
    // Predicated region
    $region10: #{tpu_custom_call.1} parent=1 // pred_check
      _
    $region11: #{tpu_custom_call.1} parent=1 // pred_check_branch
      %51 = sbr.rel (0) target = $region13
    $region12: #{tpu_custom_call.1} parent=1 // pred_region
      %s53 = ssub.s32 8192, 8192
      %54 = vsyncadd [#allocation9], %s53
      %s55 = sshll.u32 [#allocation10], 4
      %s56 = int_to_ptr.vmem [resolvable:$true] %s55
      %61 = dma.hbm_to_vmem [thread:$0]  %s2, 8192, %s56, [#allocation9], 64, 64, 4
    $region13: #{tpu_custom_call.1} parent=1 // pred_fallthru
      _
    // Predicated region
    $region14: #{tpu_custom_call.1} parent=1 // pred_check
      _
    $region15: #{tpu_custom_call.1} parent=1 // pred_check_branch
      %63 = sbr.rel (0) target = $region17
    $region16: #{tpu_custom_call.1} parent=1 // pred_region
      %s65 = ssub.s32 1024, 1024
      %66 = vsyncadd [#allocation12], %s65
      %s67 = sshll.u32 [#allocation11], 4
      %s68 = int_to_ptr.vmem [resolvable:$true] %s67
      %73 = dma.hbm_to_vmem [thread:$0]  %s3, 1024, %s68, [#allocation12], 64, 64, 4
    $region17: #{tpu_custom_call.1} parent=1 // pred_fallthru
      _
    // Predicated region
    $region18: #{tpu_custom_call.1} parent=1 // pred_check
      _
    $region19: #{tpu_custom_call.1} parent=1 // pred_check_branch
      %75 = sbr.rel (0) target = $region21
    $region20: #{tpu_custom_call.1} parent=1 // pred_region
      %s77 = ssub.s32 1024, 1024
      %78 = vsyncadd [#allocation12], %s77
      %s79 = sshll.u32 [#allocation13], 4
      %s80 = int_to_ptr.vmem [resolvable:$true] %s79
      %85 = dma.hbm_to_vmem [thread:$0]  %s4, 1024, %s80, [#allocation12], 64, 64, 4
    $region21: #{tpu_custom_call.1} parent=1 // pred_fallthru
      _
    // Predicated region
    $region22: #{tpu_custom_call.1} parent=1 // pred_check
      _
    $region23: #{tpu_custom_call.1} parent=1 // pred_check_branch
      %87 = sbr.rel (0) target = $region25
    $region24: #{tpu_custom_call.1} parent=1 // pred_region
      _
    $region25: #{tpu_custom_call.1} parent=1 // pred_fallthru
      _
    // Predicated region
    $region26: #{tpu_custom_call.1} parent=1 // pred_check
      _
    $region27: #{tpu_custom_call.1} parent=1 // pred_check_branch
      %89 = sbr.rel (0) target = $region29
    $region28: #{tpu_custom_call.1} parent=1 // pred_region
      _
    $region29: #{tpu_custom_call.1} parent=1 // pred_fallthru
      _
    // Predicated region
    $region30: #{tpu_custom_call.1} parent=1 // pred_check
      _
    $region31: #{tpu_custom_call.1} parent=1 // pred_check_branch
      %91 = sbr.rel (0) target = $region33
    $region32: #{tpu_custom_call.1} parent=1 // pred_region
      %s93 = ssub.s32 3072, 3072
      %94 = vsyncadd [#allocation15], %s93
      %s95 = sshll.u32 [#allocation14], 4
      %s96 = int_to_ptr.vmem [resolvable:$true] %s95
      %101 = dma.hbm_to_vmem [thread:$0]  %s7, 3072, %s96, [#allocation15], 192, 192, 12
    $region33: #{tpu_custom_call.1} parent=1 // pred_fallthru
      _
    // Predicated region
    $region34: #{tpu_custom_call.1} parent=1 // pred_check
      _
    $region35: #{tpu_custom_call.1} parent=1 // pred_check_branch
      %103 = sbr.rel (0) target = $region37
    $region36: #{tpu_custom_call.1} parent=1 // pred_region
      %s105 = ssub.s32 3072, 3072
      %106 = vsyncadd [#allocation15], %s105
      %s107 = sshll.u32 [#allocation16], 4
      %s108 = int_to_ptr.vmem [resolvable:$true] %s107
      %113 = dma.hbm_to_vmem [thread:$0]  %s8, 3072, %s108, [#allocation15], 192, 192, 12
    $region37: #{tpu_custom_call.1} parent=1 // pred_fallthru
      _
    // Predicated region
    $region38: #{tpu_custom_call.1} parent=1 // pred_check
      _
    $region39: #{tpu_custom_call.1} parent=1 // pred_check_branch
      %115 = sbr.rel (0) target = $region41
    $region40: #{tpu_custom_call.1} parent=1 // pred_region
      %s117 = ssub.s32 3072, 3072
      %118 = vsyncadd [#allocation18], %s117
      %s119 = sshll.u32 [#allocation17], 4
      %s120 = int_to_ptr.vmem [resolvable:$true] %s119
      %125 = dma.hbm_to_vmem [thread:$0]  %s9, 3072, %s120, [#allocation18], 192, 192, 12
    $region41: #{tpu_custom_call.1} parent=1 // pred_fallthru
      _
    // Predicated region
    $region42: #{tpu_custom_call.1} parent=1 // pred_check
      _
    $region43: #{tpu_custom_call.1} parent=1 // pred_check_branch
      %127 = sbr.rel (0) target = $region45
    $region44: #{tpu_custom_call.1} parent=1 // pred_region
      _
    $region45: #{tpu_custom_call.1} parent=1 // pred_fallthru
      _
    // Predicated region
    $region46: #{tpu_custom_call.1} parent=1 // pred_check
      _
    $region47: #{tpu_custom_call.1} parent=1 // pred_check_branch
      %129 = sbr.rel (0) target = $region49
    $region48: #{tpu_custom_call.1} parent=1 // pred_region
      _
    $region49: #{tpu_custom_call.1} parent=1 // pred_fallthru
      _
    // Predicated region
    $region50: #{tpu_custom_call.1} parent=1 // pred_check
      _
    $region51: #{tpu_custom_call.1} parent=1 // pred_check_branch
      %131 = sbr.rel (0) target = $region53
    $region52: #{tpu_custom_call.1} parent=1 // pred_region
      %s133 = ssub.s32 2048, 2048
      %134 = vsyncadd [#allocation18], %s133
      %s135 = sshll.u32 [#allocation19], 4
      %s136 = int_to_ptr.vmem [resolvable:$true] %s135
      %141 = dma.hbm_to_vmem [thread:$0]  %s12, 2048, %s136, [#allocation18], 64, 64, 4
    $region53: #{tpu_custom_call.1} parent=1 // pred_fallthru
      _
    // Predicated region
    $region54: #{tpu_custom_call.1} parent=1 // pred_check
      _
    $region55: #{tpu_custom_call.1} parent=1 // pred_check_branch
      %143 = sbr.rel (0) target = $region57
    $region56: #{tpu_custom_call.1} parent=1 // pred_region
      _
    $region57: #{tpu_custom_call.1} parent=1 // pred_fallthru
      _
    // Predicated region
    $region58: #{tpu_custom_call.1} parent=1 // pred_check
      _
    $region59: #{tpu_custom_call.1} parent=1 // pred_check_branch
      %145 = sbr.rel (0) target = $region61
    $region60: #{tpu_custom_call.1} parent=1 // pred_region
      %146 = dma.done [#allocation6], 64
    $region61: #{tpu_custom_call.1} parent=1 // pred_fallthru
      _
    // Predicated region
    $region62: #{tpu_custom_call.1} parent=1 // pred_check
      _
    $region63: #{tpu_custom_call.1} parent=1 // pred_check_branch
      %148 = sbr.rel (0) target = $region65
    $region64: #{tpu_custom_call.1} parent=1 // pred_region
      %149 = dma.done [#allocation9], 128
    $region65: #{tpu_custom_call.1} parent=1 // pred_fallthru
      _
    // Predicated region
    $region66: #{tpu_custom_call.1} parent=1 // pred_check
      _
    $region67: #{tpu_custom_call.1} parent=1 // pred_check_branch
      %151 = sbr.rel (0) target = $region69
    $region68: #{tpu_custom_call.1} parent=1 // pred_region
      %152 = dma.done [#allocation9], 8192
    $region69: #{tpu_custom_call.1} parent=1 // pred_fallthru
      _
    // Predicated region
    $region70: #{tpu_custom_call.1} parent=1 // pred_check
      _
    $region71: #{tpu_custom_call.1} parent=1 // pred_check_branch
      %154 = sbr.rel (0) target = $region73
    $region72: #{tpu_custom_call.1} parent=1 // pred_region
      %155 = dma.done [#allocation12], 1024
    $region73: #{tpu_custom_call.1} parent=1 // pred_fallthru
      _
    // Predicated region
    $region74: #{tpu_custom_call.1} parent=1 // pred_check
      _
    $region75: #{tpu_custom_call.1} parent=1 // pred_check_branch
      %157 = sbr.rel (0) target = $region77
    $region76: #{tpu_custom_call.1} parent=1 // pred_region
      %158 = dma.done [#allocation12], 1024
    $region77: #{tpu_custom_call.1} parent=1 // pred_fallthru
      _
    // Predicated region
    $region78: #{tpu_custom_call.1} parent=1 // pred_check
      _
    $region79: #{tpu_custom_call.1} parent=1 // pred_check_branch
      %160 = sbr.rel (0) target = $region81
    $region80: #{tpu_custom_call.1} parent=1 // pred_region
      %161 = dma.done [#allocation15], 3072
    $region81: #{tpu_custom_call.1} parent=1 // pred_fallthru
      _
    // Predicated region
    $region82: #{tpu_custom_call.1} parent=1 // pred_check
      _
    $region83: #{tpu_custom_call.1} parent=1 // pred_check_branch
      %163 = sbr.rel (0) target = $region85
    $region84: #{tpu_custom_call.1} parent=1 // pred_region
      %164 = dma.done [#allocation15], 3072
    $region85: #{tpu_custom_call.1} parent=1 // pred_fallthru
      _
    // Predicated region
    $region86: #{tpu_custom_call.1} parent=1 // pred_check
      _
    $region87: #{tpu_custom_call.1} parent=1 // pred_check_branch
      %166 = sbr.rel (0) target = $region89
    $region88: #{tpu_custom_call.1} parent=1 // pred_region
      %167 = dma.done [#allocation18], 3072
    $region89: #{tpu_custom_call.1} parent=1 // pred_fallthru
      _
    // Predicated region
    $region90: #{tpu_custom_call.1} parent=1 // pred_check
      _
    $region91: #{tpu_custom_call.1} parent=1 // pred_check_branch
      %169 = sbr.rel (0) target = $region93
    $region92: #{tpu_custom_call.1} parent=1 // pred_region
      %170 = dma.done [#allocation18], 2048
    $region93: #{tpu_custom_call.1} parent=1 // pred_fallthru
      _
    %p172 = scmp.eq.s32.totalorder 0, 0
    // Predicated region
    $region94: #{tpu_custom_call.1} parent=1 // pred_check
      %p173 = pneg %p172
    $region95: #{tpu_custom_call.1} parent=1 // pred_check_branch
      %175 = sbr.rel (%p173) target = $region97
    $region96: #{tpu_custom_call.1} parent=1 // pred_region
      %v176 = vld [vmem:[#allocation8] sm:$0xff]
      %v177 = vpack.c.bf16 %v176, %v176
      %v178 = vld [vmem:[#allocation5] sm:$0xf]
      %v179 = vld [vmem:[#allocation14] sm:$0xff]
      %v180 = vld [vmem:[#allocation14 + $0x8] sm:$0xf]
      %v181 = vld [vmem:[#allocation14 + $0xc] sm:$0xff]
      %v182 = vld [vmem:[#allocation14 + $0x14] sm:$0xf]
      %v183 = vld [vmem:[#allocation14 + $0x18] sm:$0xff]
      %v184 = vld [vmem:[#allocation14 + $0x20] sm:$0xf]
      %v185 = vld [vmem:[#allocation14 + $0x24] sm:$0xff]
      %v186 = vld [vmem:[#allocation14 + $0x2c] sm:$0xf]
      %v187 = vld [vmem:[#allocation14 + $0x30] sm:$0xff]
      %v188 = vld [vmem:[#allocation14 + $0x38] sm:$0xf]
      %v189 = vld [vmem:[#allocation14 + $0x3c] sm:$0xff]
      %v190 = vld [vmem:[#allocation14 + $0x44] sm:$0xf]
      %v191 = vld [vmem:[#allocation14 + $0x48] sm:$0xff]
      %v192 = vld [vmem:[#allocation14 + $0x50] sm:$0xf]
      %v193 = vld [vmem:[#allocation14 + $0x54] sm:$0xff]
      %v194 = vld [vmem:[#allocation14 + $0x5c] sm:$0xf]
      %v195 = vld [vmem:[#allocation14 + $0x60] sm:$0xff]
      %v196 = vld [vmem:[#allocation14 + $0x68] sm:$0xf]
      %v197 = vld [vmem:[#allocation14 + $0x6c] sm:$0xff]
      %v198 = vld [vmem:[#allocation14 + $0x74] sm:$0xf]
      %v199 = vld [vmem:[#allocation14 + $0x78] sm:$0xff]
      %v200 = vld [vmem:[#allocation14 + $0x80] sm:$0xf]
      %v201 = vld [vmem:[#allocation14 + $0x84] sm:$0xff]
      %v202 = vld [vmem:[#allocation14 + $0x8c] sm:$0xf]
      %v203 = vld [vmem:[#allocation14 + $0x90] sm:$0xff]
      %v204 = vld [vmem:[#allocation14 + $0x98] sm:$0xf]
      %v205 = vld [vmem:[#allocation14 + $0x9c] sm:$0xff]
      %v206 = vld [vmem:[#allocation14 + $0xa4] sm:$0xf]
      %v207 = vld [vmem:[#allocation14 + $0xa8] sm:$0xff]
      %v208 = vld [vmem:[#allocation14 + $0xb0] sm:$0xf]
      %v209 = vld [vmem:[#allocation14 + $0xb4] sm:$0xff]
      %v210 = vld [vmem:[#allocation14 + $0xbc] sm:$0xf]
      %v211 = vld [vmem:[#allocation17] sm:$0xff]
      %v212 = vld [vmem:[#allocation17 + $0x8] sm:$0xf]
      %v213 = vld [vmem:[#allocation17 + $0xc] sm:$0xff]
      %v214 = vld [vmem:[#allocation17 + $0x14] sm:$0xf]
      %v215 = vld [vmem:[#allocation17 + $0x18] sm:$0xff]
      %v216 = vld [vmem:[#allocation17 + $0x20] sm:$0xf]
      %v217 = vld [vmem:[#allocation17 + $0x24] sm:$0xff]
      %v218 = vld [vmem:[#allocation17 + $0x2c] sm:$0xf]
      %v219 = vld [vmem:[#allocation17 + $0x30] sm:$0xff]
      %v220 = vld [vmem:[#allocation17 + $0x38] sm:$0xf]
      %v221 = vld [vmem:[#allocation17 + $0x3c] sm:$0xff]
      %v222 = vld [vmem:[#allocation17 + $0x44] sm:$0xf]
      %v223 = vld [vmem:[#allocation17 + $0x48] sm:$0xff]
      %v224 = vld [vmem:[#allocation17 + $0x50] sm:$0xf]
      %v225 = vld [vmem:[#allocation17 + $0x54] sm:$0xff]
      %v226 = vld [vmem:[#allocation17 + $0x5c] sm:$0xf]
      %v227 = vld [vmem:[#allocation17 + $0x60] sm:$0xff]
      %v228 = vld [vmem:[#allocation17 + $0x68] sm:$0xf]
      %v229 = vld [vmem:[#allocation17 + $0x6c] sm:$0xff]
      %v230 = vld [vmem:[#allocation17 + $0x74] sm:$0xf]
      %v231 = vld [vmem:[#allocation17 + $0x78] sm:$0xff]
      %v232 = vld [vmem:[#allocation17 + $0x80] sm:$0xf]
      %v233 = vld [vmem:[#allocation17 + $0x84] sm:$0xff]
      %v234 = vld [vmem:[#allocation17 + $0x8c] sm:$0xf]
      %v235 = vld [vmem:[#allocation17 + $0x90] sm:$0xff]
      %v236 = vld [vmem:[#allocation17 + $0x98] sm:$0xf]
      %v237 = vld [vmem:[#allocation17 + $0x9c] sm:$0xff]
      %v238 = vld [vmem:[#allocation17 + $0xa4] sm:$0xf]
      %v239 = vld [vmem:[#allocation17 + $0xa8] sm:$0xff]
      %v240 = vld [vmem:[#allocation17 + $0xb0] sm:$0xf]
      %v241 = vld [vmem:[#allocation17 + $0xb4] sm:$0xff]
      %v242 = vld [vmem:[#allocation17 + $0xbc] sm:$0xf]
      %v243 = vld [vmem:[%s11] sm:$0x7]
      %v245 = vlaneseq
      %v246 = vshrl.u32 %v245, 7
      %v247 = vsub.s32 0, %v246
      %v248 = vrot.slane %v243, %v247
      %v249 = vlaneseq
      %v250 = vshrl.u32 %v249, 7
      %v251 = vsub.s32 1, %v250
      %v252 = vrot.slane %v243, %v251
      %v253 = vlaneseq
      %v254 = vshrl.u32 %v253, 7
      %v255 = vsub.s32 2, %v254
      %v256 = vrot.slane %v243, %v255
      %v292 = vunpack.c.l.b16 %v211
      %v293 = vunpack.c.h.b16 %v211
      %v294 = vunpack.c.l.b16 %v212
      %v295 = vunpack.c.l.b16 %v213
      %v296 = vunpack.c.h.b16 %v213
      %v297 = vunpack.c.l.b16 %v214
      %v298 = vunpack.c.l.b16 %v215
      %v299 = vunpack.c.h.b16 %v215
      %v300 = vunpack.c.l.b16 %v216
      %v301 = vunpack.c.l.b16 %v217
      %v302 = vunpack.c.h.b16 %v217
      %v303 = vunpack.c.l.b16 %v218
      %v304 = vunpack.c.l.b16 %v219
      %v305 = vunpack.c.h.b16 %v219
      %v306 = vunpack.c.l.b16 %v220
      %v307 = vunpack.c.l.b16 %v221
      %v308 = vunpack.c.h.b16 %v221
      %v309 = vunpack.c.l.b16 %v222
      %v310 = vunpack.c.l.b16 %v223
      %v311 = vunpack.c.h.b16 %v223
      %v312 = vunpack.c.l.b16 %v224
      %v313 = vunpack.c.l.b16 %v225
      %v314 = vunpack.c.h.b16 %v225
      %v315 = vunpack.c.l.b16 %v226
      %v316 = vunpack.c.l.b16 %v227
      %v317 = vunpack.c.h.b16 %v227
      %v318 = vunpack.c.l.b16 %v228
      %v319 = vunpack.c.l.b16 %v229
      %v320 = vunpack.c.h.b16 %v229
      %v321 = vunpack.c.l.b16 %v230
      %v322 = vunpack.c.l.b16 %v231
      %v323 = vunpack.c.h.b16 %v231
      %v324 = vunpack.c.l.b16 %v232
      %v325 = vunpack.c.l.b16 %v233
      %v326 = vunpack.c.h.b16 %v233
      %v327 = vunpack.c.l.b16 %v234
      %v328 = vunpack.c.l.b16 %v235
      %v329 = vunpack.c.h.b16 %v235
      %v330 = vunpack.c.l.b16 %v236
      %v331 = vunpack.c.l.b16 %v237
      %v332 = vunpack.c.h.b16 %v237
      %v333 = vunpack.c.l.b16 %v238
      %v334 = vunpack.c.l.b16 %v239
      %v335 = vunpack.c.h.b16 %v239
      %v336 = vunpack.c.l.b16 %v240
      %v337 = vunpack.c.l.b16 %v241
      %v338 = vunpack.c.h.b16 %v241
      %v339 = vunpack.c.l.b16 %v242
      %v340 = vpack.c.b16 %v295, %v292
      %v341 = vpack.c.b16 %v296, %v293
      %v342 = vpack.c.b16 %v297, %v294
      %v343 = vpack.c.b16 %v301, %v298
      %v344 = vpack.c.b16 %v302, %v299
      %v345 = vpack.c.b16 %v303, %v300
      %v346 = vpack.c.b16 %v307, %v304
      %v347 = vpack.c.b16 %v308, %v305
      %v348 = vpack.c.b16 %v309, %v306
      %v349 = vpack.c.b16 %v313, %v310
      %v350 = vpack.c.b16 %v314, %v311
      %v351 = vpack.c.b16 %v315, %v312
      %v352 = vpack.c.b16 %v319, %v316
      %v353 = vpack.c.b16 %v320, %v317
      %v354 = vpack.c.b16 %v321, %v318
      %v355 = vpack.c.b16 %v325, %v322
      %v356 = vpack.c.b16 %v326, %v323
      %v357 = vpack.c.b16 %v327, %v324
      %v358 = vpack.c.b16 %v331, %v328
      %v359 = vpack.c.b16 %v332, %v329
      %v360 = vpack.c.b16 %v333, %v330
      %v361 = vpack.c.b16 %v337, %v334
      %v362 = vpack.c.b16 %v338, %v335
      %v363 = vpack.c.b16 %v339, %v336
      %388 = vmatprep.subr.bf16.mxu0 %v341
      %389 = vmatpush1.bf16.msra.mxu0 %v340
      %390 = vmatprep.subr.bf16.mxu0 %v344
      %391 = vmatpush1.bf16.msra.mxu0 %v343
      %392 = vmatprep.subr.bf16.mxu0 %v347
      %393 = vmatpush1.bf16.msra.mxu0 %v346
      %394 = vmatprep.subr.bf16.mxu0 %v350
      %395 = vmatpush1.bf16.msra.mxu0 %v349
      %396 = vmatprep.subr.bf16.mxu0 %v353
      %397 = vmatpush1.bf16.msra.mxu0 %v352
      %398 = vmatprep.subr.bf16.mxu0 %v356
      %399 = vmatpush1.bf16.msra.mxu0 %v355
      %400 = vmatprep.subr.bf16.mxu0 %v359
      %401 = vmatpush1.bf16.msra.mxu0 %v358
      %402 = vmatprep.subr.bf16.mxu0 %v362
      %403 = vmatpush1.bf16.msra.mxu0 %v361
      %404 = vmatprep.subr.bf16.mxu0 0
      %405 = vmatpush1.bf16.msra.mxu0 0
      %406 = vmatprep.subr.bf16.mxu0 0
      %407 = vmatpush1.bf16.msra.mxu0 0
      %408 = vmatprep.subr.bf16.mxu0 0
      %409 = vmatpush1.bf16.msra.mxu0 0
      %410 = vmatprep.subr.bf16.mxu0 0
      %411 = vmatpush1.bf16.msra.mxu0 0
      %412 = vmatprep.subr.bf16.mxu0 0
      %413 = vmatpush1.bf16.msra.mxu0 0
      %414 = vmatprep.subr.bf16.mxu0 0
      %415 = vmatpush1.bf16.msra.mxu0 0
      %416 = vmatprep.subr.bf16.mxu0 0
      %417 = vmatpush1.bf16.msra.mxu0 0
      %418 = vmatprep.subr.bf16.mxu0 0
      %419 = vmatpush1.bf16.msra.mxu0 0
      %420 = vmatprep.mubr.bf16.mxu0 0
      %421 = vmatmul.mubr.bf16.gmra.mrb[0].mxu0 %v177
      %v422 = vpop.f32.mrb[0].mxu0
      %v423 = vadd.f32 %v248, %v422
      %v424 = vpop.f32.mrb[0].mxu0
      %v425 = vadd.f32 %v252, %v424
      %v426 = vpop.f32.mrb[0].mxu0
      %v427 = vpop.f32.mrb[0].mxu0
      %428 = vdwg.mxu0
      %429 = vmatprep.subr.bf16.mxu0 0
      %430 = vmatpush1.bf16.msra.mxu0 %v342
      %431 = vmatprep.subr.bf16.mxu0 0
      %432 = vmatpush1.bf16.msra.mxu0 %v345
      %433 = vmatprep.subr.bf16.mxu0 0
      %434 = vmatpush1.bf16.msra.mxu0 %v348
      %435 = vmatprep.subr.bf16.mxu0 0
      %436 = vmatpush1.bf16.msra.mxu0 %v351
      %437 = vmatprep.subr.bf16.mxu0 0
      %438 = vmatpush1.bf16.msra.mxu0 %v354
      %439 = vmatprep.subr.bf16.mxu0 0
      %440 = vmatpush1.bf16.msra.mxu0 %v357
      %441 = vmatprep.subr.bf16.mxu0 0
      %442 = vmatpush1.bf16.msra.mxu0 %v360
      %443 = vmatprep.subr.bf16.mxu0 0
      %444 = vmatpush1.bf16.msra.mxu0 %v363
      %445 = vmatprep.subr.bf16.mxu0 0
      %446 = vmatpush1.bf16.msra.mxu0 0
      %447 = vmatprep.subr.bf16.mxu0 0
      %448 = vmatpush1.bf16.msra.mxu0 0
      %449 = vmatprep.subr.bf16.mxu0 0
      %450 = vmatpush1.bf16.msra.mxu0 0
      %451 = vmatprep.subr.bf16.mxu0 0
      %452 = vmatpush1.bf16.msra.mxu0 0
      %453 = vmatprep.subr.bf16.mxu0 0
      %454 = vmatpush1.bf16.msra.mxu0 0
      %455 = vmatprep.subr.bf16.mxu0 0
      %456 = vmatpush1.bf16.msra.mxu0 0
      %457 = vmatprep.subr.bf16.mxu0 0
      %458 = vmatpush1.bf16.msra.mxu0 0
      %459 = vmatprep.subr.bf16.mxu0 0
      %460 = vmatpush1.bf16.msra.mxu0 0
      %461 = vmatprep.mubr.bf16.mxu0 0
      %462 = vmatmul.mubr.bf16.gmra.mrb[0].mxu0 %v177
      %v463 = vpop.f32.mrb[0].mxu0
      %v464 = vadd.f32 %v256, %v463
      %v465 = vpop.f32.mrb[0].mxu0
      %v466 = vpop.f32.mrb[0].mxu0
      %v467 = vpop.f32.mrb[0].mxu0
      %468 = vdwg.mxu0
      %v469 = vld [vmem:[#allocation11] sm:$0xf]
      %v470 = vld [vmem:[#allocation11 + $0x4] sm:$0xf]
      %v471 = vld [vmem:[#allocation11 + $0x8] sm:$0xf]
      %v472 = vld [vmem:[#allocation11 + $0xc] sm:$0xf]
      %v473 = vld [vmem:[#allocation11 + $0x10] sm:$0xf]
      %v474 = vld [vmem:[#allocation11 + $0x14] sm:$0xf]
      %v475 = vld [vmem:[#allocation11 + $0x18] sm:$0xf]
      %v476 = vld [vmem:[#allocation11 + $0x1c] sm:$0xf]
      %v477 = vld [vmem:[#allocation11 + $0x20] sm:$0xf]
      %v478 = vld [vmem:[#allocation11 + $0x24] sm:$0xf]
      %v479 = vld [vmem:[#allocation11 + $0x28] sm:$0xf]
      %v480 = vld [vmem:[#allocation11 + $0x2c] sm:$0xf]
      %v481 = vld [vmem:[#allocation11 + $0x30] sm:$0xf]
      %v482 = vld [vmem:[#allocation11 + $0x34] sm:$0xf]
      %v483 = vld [vmem:[#allocation11 + $0x38] sm:$0xf]
      %v484 = vld [vmem:[#allocation11 + $0x3c] sm:$0xf]
      %v501 = vunpack.c.l.b16 %v469
      %v502 = vunpack.c.l.b16 %v470
      %v503 = vunpack.c.l.b16 %v471
      %v504 = vunpack.c.l.b16 %v472
      %v505 = vunpack.c.l.b16 %v473
      %v506 = vunpack.c.l.b16 %v474
      %v507 = vunpack.c.l.b16 %v475
      %v508 = vunpack.c.l.b16 %v476
      %v509 = vunpack.c.l.b16 %v477
      %v510 = vunpack.c.l.b16 %v478
      %v511 = vunpack.c.l.b16 %v479
      %v512 = vunpack.c.l.b16 %v480
      %v513 = vunpack.c.l.b16 %v481
      %v514 = vunpack.c.l.b16 %v482
      %v515 = vunpack.c.l.b16 %v483
      %v516 = vunpack.c.l.b16 %v484
      %v517 = vpack.c.b16 %v502, %v501
      %v518 = vpack.c.b16 %v504, %v503
      %v519 = vpack.c.b16 %v506, %v505
      %v520 = vpack.c.b16 %v508, %v507
      %v521 = vpack.c.b16 %v510, %v509
      %v522 = vpack.c.b16 %v512, %v511
      %v523 = vpack.c.b16 %v514, %v513
      %v524 = vpack.c.b16 %v516, %v515
      %533 = vmatprep.subr.bf16.mxu0 0
      %534 = vmatpush1.bf16.msra.mxu0 %v517
      %535 = vmatprep.subr.bf16.mxu0 0
      %536 = vmatpush1.bf16.msra.mxu0 %v518
      %537 = vmatprep.subr.bf16.mxu0 0
      %538 = vmatpush1.bf16.msra.mxu0 %v519
      %539 = vmatprep.subr.bf16.mxu0 0
      %540 = vmatpush1.bf16.msra.mxu0 %v520
      %541 = vmatprep.subr.bf16.mxu0 0
      %542 = vmatpush1.bf16.msra.mxu0 %v521
      %543 = vmatprep.subr.bf16.mxu0 0
      %544 = vmatpush1.bf16.msra.mxu0 %v522
      %545 = vmatprep.subr.bf16.mxu0 0
      %546 = vmatpush1.bf16.msra.mxu0 %v523
      %547 = vmatprep.subr.bf16.mxu0 0
      %548 = vmatpush1.bf16.msra.mxu0 %v524
      %549 = vmatprep.subr.bf16.mxu0 0
      %550 = vmatpush1.bf16.msra.mxu0 0
      %551 = vmatprep.subr.bf16.mxu0 0
      %552 = vmatpush1.bf16.msra.mxu0 0
      %553 = vmatprep.subr.bf16.mxu0 0
      %554 = vmatpush1.bf16.msra.mxu0 0
      %555 = vmatprep.subr.bf16.mxu0 0
      %556 = vmatpush1.bf16.msra.mxu0 0
      %557 = vmatprep.subr.bf16.mxu0 0
      %558 = vmatpush1.bf16.msra.mxu0 0
      %559 = vmatprep.subr.bf16.mxu0 0
      %560 = vmatpush1.bf16.msra.mxu0 0
      %561 = vmatprep.subr.bf16.mxu0 0
      %562 = vmatpush1.bf16.msra.mxu0 0
      %563 = vmatprep.subr.bf16.mxu0 0
      %564 = vmatpush1.bf16.msra.mxu0 0
      %565 = vmatprep.mubr.bf16.mxu0 0
      %566 = vmatmul.mubr.bf16.gmra.mrb[0].mxu0 %v177
      %v567 = vpop.f32.mrb[0].mxu0
      %v568 = vadd.f32 0.0, %v567
      %v569 = vpop.f32.mrb[0].mxu0
      %v570 = vpop.f32.mrb[0].mxu0
      %v571 = vpop.f32.mrb[0].mxu0
      %572 = vdwg.mxu0
      %v573 = vld [vmem:[#allocation10] sm:$0xf]
      %v574 = vld [vmem:[#allocation10 + $0x4] sm:$0xf]
      %v575 = vld [vmem:[#allocation10 + $0x8] sm:$0xf]
      %v576 = vld [vmem:[#allocation10 + $0xc] sm:$0xf]
      %v577 = vld [vmem:[#allocation10 + $0x10] sm:$0xf]
      %v578 = vld [vmem:[#allocation10 + $0x14] sm:$0xf]
      %v579 = vld [vmem:[#allocation10 + $0x18] sm:$0xf]
      %v580 = vld [vmem:[#allocation10 + $0x1c] sm:$0xf]
      %v581 = vld [vmem:[#allocation10 + $0x20] sm:$0xf]
      %v582 = vld [vmem:[#allocation10 + $0x24] sm:$0xf]
      %v583 = vld [vmem:[#allocation10 + $0x28] sm:$0xf]
      %v584 = vld [vmem:[#allocation10 + $0x2c] sm:$0xf]
      %v585 = vld [vmem:[#allocation10 + $0x30] sm:$0xf]
      %v586 = vld [vmem:[#allocation10 + $0x34] sm:$0xf]
      %v587 = vld [vmem:[#allocation10 + $0x38] sm:$0xf]
      %v588 = vld [vmem:[#allocation10 + $0x3c] sm:$0xf]
      %v589 = vld [vmem:[#allocation10 + $0x40] sm:$0xf]
      %v590 = vld [vmem:[#allocation10 + $0x44] sm:$0xf]
      %v591 = vld [vmem:[#allocation10 + $0x48] sm:$0xf]
      %v592 = vld [vmem:[#allocation10 + $0x4c] sm:$0xf]
      %v593 = vld [vmem:[#allocation10 + $0x50] sm:$0xf]
      %v594 = vld [vmem:[#allocation10 + $0x54] sm:$0xf]
      %v595 = vld [vmem:[#allocation10 + $0x58] sm:$0xf]
      %v596 = vld [vmem:[#allocation10 + $0x5c] sm:$0xf]
      %v597 = vld [vmem:[#allocation10 + $0x60] sm:$0xf]
      %v598 = vld [vmem:[#allocation10 + $0x64] sm:$0xf]
      %v599 = vld [vmem:[#allocation10 + $0x68] sm:$0xf]
      %v600 = vld [vmem:[#allocation10 + $0x6c] sm:$0xf]
      %v601 = vld [vmem:[#allocation10 + $0x70] sm:$0xf]
      %v602 = vld [vmem:[#allocation10 + $0x74] sm:$0xf]
      %v603 = vld [vmem:[#allocation10 + $0x78] sm:$0xf]
      %v604 = vld [vmem:[#allocation10 + $0x7c] sm:$0xf]
      %v605 = vld [vmem:[#allocation10 + $0x80] sm:$0xf]
      %v606 = vld [vmem:[#allocation10 + $0x84] sm:$0xf]
      %v607 = vld [vmem:[#allocation10 + $0x88] sm:$0xf]
      %v608 = vld [vmem:[#allocation10 + $0x8c] sm:$0xf]
      %v609 = vld [vmem:[#allocation10 + $0x90] sm:$0xf]
      %v610 = vld [vmem:[#allocation10 + $0x94] sm:$0xf]
      %v611 = vld [vmem:[#allocation10 + $0x98] sm:$0xf]
      %v612 = vld [vmem:[#allocation10 + $0x9c] sm:$0xf]
      %v613 = vld [vmem:[#allocation10 + $0xa0] sm:$0xf]
      %v614 = vld [vmem:[#allocation10 + $0xa4] sm:$0xf]
      %v615 = vld [vmem:[#allocation10 + $0xa8] sm:$0xf]
      %v616 = vld [vmem:[#allocation10 + $0xac] sm:$0xf]
      %v617 = vld [vmem:[#allocation10 + $0xb0] sm:$0xf]
      %v618 = vld [vmem:[#allocation10 + $0xb4] sm:$0xf]
      %v619 = vld [vmem:[#allocation10 + $0xb8] sm:$0xf]
      %v620 = vld [vmem:[#allocation10 + $0xbc] sm:$0xf]
      %v621 = vld [vmem:[#allocation10 + $0xc0] sm:$0xf]
      %v622 = vld [vmem:[#allocation10 + $0xc4] sm:$0xf]
      %v623 = vld [vmem:[#allocation10 + $0xc8] sm:$0xf]
      %v624 = vld [vmem:[#allocation10 + $0xcc] sm:$0xf]
      %v625 = vld [vmem:[#allocation10 + $0xd0] sm:$0xf]
      %v626 = vld [vmem:[#allocation10 + $0xd4] sm:$0xf]
      %v627 = vld [vmem:[#allocation10 + $0xd8] sm:$0xf]
      %v628 = vld [vmem:[#allocation10 + $0xdc] sm:$0xf]
      %v629 = vld [vmem:[#allocation10 + $0xe0] sm:$0xf]
      %v630 = vld [vmem:[#allocation10 + $0xe4] sm:$0xf]
      %v631 = vld [vmem:[#allocation10 + $0xe8] sm:$0xf]
      %v632 = vld [vmem:[#allocation10 + $0xec] sm:$0xf]
      %v633 = vld [vmem:[#allocation10 + $0xf0] sm:$0xf]
      %v634 = vld [vmem:[#allocation10 + $0xf4] sm:$0xf]
      %v635 = vld [vmem:[#allocation10 + $0xf8] sm:$0xf]
      %v636 = vld [vmem:[#allocation10 + $0xfc] sm:$0xf]
      %v637 = vld [vmem:[#allocation10 + $0x100] sm:$0xf]
      %v638 = vld [vmem:[#allocation10 + $0x104] sm:$0xf]
      %v639 = vld [vmem:[#allocation10 + $0x108] sm:$0xf]
      %v640 = vld [vmem:[#allocation10 + $0x10c] sm:$0xf]
      %v641 = vld [vmem:[#allocation10 + $0x110] sm:$0xf]
      %v642 = vld [vmem:[#allocation10 + $0x114] sm:$0xf]
      %v643 = vld [vmem:[#allocation10 + $0x118] sm:$0xf]
      %v644 = vld [vmem:[#allocation10 + $0x11c] sm:$0xf]
      %v645 = vld [vmem:[#allocation10 + $0x120] sm:$0xf]
      %v646 = vld [vmem:[#allocation10 + $0x124] sm:$0xf]
      %v647 = vld [vmem:[#allocation10 + $0x128] sm:$0xf]
      %v648 = vld [vmem:[#allocation10 + $0x12c] sm:$0xf]
      %v649 = vld [vmem:[#allocation10 + $0x130] sm:$0xf]
      %v650 = vld [vmem:[#allocation10 + $0x134] sm:$0xf]
      %v651 = vld [vmem:[#allocation10 + $0x138] sm:$0xf]
      %v652 = vld [vmem:[#allocation10 + $0x13c] sm:$0xf]
      %v653 = vld [vmem:[#allocation10 + $0x140] sm:$0xf]
      %v654 = vld [vmem:[#allocation10 + $0x144] sm:$0xf]
      %v655 = vld [vmem:[#allocation10 + $0x148] sm:$0xf]
      %v656 = vld [vmem:[#allocation10 + $0x14c] sm:$0xf]
      %v657 = vld [vmem:[#allocation10 + $0x150] sm:$0xf]
      %v658 = vld [vmem:[#allocation10 + $0x154] sm:$0xf]
      %v659 = vld [vmem:[#allocation10 + $0x158] sm:$0xf]
      %v660 = vld [vmem:[#allocation10 + $0x15c] sm:$0xf]
      %v661 = vld [vmem:[#allocation10 + $0x160] sm:$0xf]
      %v662 = vld [vmem:[#allocation10 + $0x164] sm:$0xf]
      %v663 = vld [vmem:[#allocation10 + $0x168] sm:$0xf]
      %v664 = vld [vmem:[#allocation10 + $0x16c] sm:$0xf]
      %v665 = vld [vmem:[#allocation10 + $0x170] sm:$0xf]
      %v666 = vld [vmem:[#allocation10 + $0x174] sm:$0xf]
      %v667 = vld [vmem:[#allocation10 + $0x178] sm:$0xf]
      %v668 = vld [vmem:[#allocation10 + $0x17c] sm:$0xf]
      %v669 = vld [vmem:[#allocation10 + $0x180] sm:$0xf]
      %v670 = vld [vmem:[#allocation10 + $0x184] sm:$0xf]
      %v671 = vld [vmem:[#allocation10 + $0x188] sm:$0xf]
      %v672 = vld [vmem:[#allocation10 + $0x18c] sm:$0xf]
      %v673 = vld [vmem:[#allocation10 + $0x190] sm:$0xf]
      %v674 = vld [vmem:[#allocation10 + $0x194] sm:$0xf]
      %v675 = vld [vmem:[#allocation10 + $0x198] sm:$0xf]
      %v676 = vld [vmem:[#allocation10 + $0x19c] sm:$0xf]
      %v677 = vld [vmem:[#allocation10 + $0x1a0] sm:$0xf]
      %v678 = vld [vmem:[#allocation10 + $0x1a4] sm:$0xf]
      %v679 = vld [vmem:[#allocation10 + $0x1a8] sm:$0xf]
      %v680 = vld [vmem:[#allocation10 + $0x1ac] sm:$0xf]
      %v681 = vld [vmem:[#allocation10 + $0x1b0] sm:$0xf]
      %v682 = vld [vmem:[#allocation10 + $0x1b4] sm:$0xf]
      %v683 = vld [vmem:[#allocation10 + $0x1b8] sm:$0xf]
      %v684 = vld [vmem:[#allocation10 + $0x1bc] sm:$0xf]
      %v685 = vld [vmem:[#allocation10 + $0x1c0] sm:$0xf]
      %v686 = vld [vmem:[#allocation10 + $0x1c4] sm:$0xf]
      %v687 = vld [vmem:[#allocation10 + $0x1c8] sm:$0xf]
      %v688 = vld [vmem:[#allocation10 + $0x1cc] sm:$0xf]
      %v689 = vld [vmem:[#allocation10 + $0x1d0] sm:$0xf]
      %v690 = vld [vmem:[#allocation10 + $0x1d4] sm:$0xf]
      %v691 = vld [vmem:[#allocation10 + $0x1d8] sm:$0xf]
      %v692 = vld [vmem:[#allocation10 + $0x1dc] sm:$0xf]
      %v693 = vld [vmem:[#allocation10 + $0x1e0] sm:$0xf]
      %v694 = vld [vmem:[#allocation10 + $0x1e4] sm:$0xf]
      %v695 = vld [vmem:[#allocation10 + $0x1e8] sm:$0xf]
      %v696 = vld [vmem:[#allocation10 + $0x1ec] sm:$0xf]
      %v697 = vld [vmem:[#allocation10 + $0x1f0] sm:$0xf]
      %v698 = vld [vmem:[#allocation10 + $0x1f4] sm:$0xf]
      %v699 = vld [vmem:[#allocation10 + $0x1f8] sm:$0xf]
      %v700 = vld [vmem:[#allocation10 + $0x1fc] sm:$0xf]
      %v701 = vld [vmem:[#allocation13] sm:$0xf]
      %v702 = vld [vmem:[#allocation13 + $0x4] sm:$0xf]
      %v703 = vld [vmem:[#allocation13 + $0x8] sm:$0xf]
      %v704 = vld [vmem:[#allocation13 + $0xc] sm:$0xf]
      %v705 = vld [vmem:[#allocation13 + $0x10] sm:$0xf]
      %v706 = vld [vmem:[#allocation13 + $0x14] sm:$0xf]
      %v707 = vld [vmem:[#allocation13 + $0x18] sm:$0xf]
      %v708 = vld [vmem:[#allocation13 + $0x1c] sm:$0xf]
      %v709 = vld [vmem:[#allocation13 + $0x20] sm:$0xf]
      %v710 = vld [vmem:[#allocation13 + $0x24] sm:$0xf]
      %v711 = vld [vmem:[#allocation13 + $0x28] sm:$0xf]
      %v712 = vld [vmem:[#allocation13 + $0x2c] sm:$0xf]
      %v713 = vld [vmem:[#allocation13 + $0x30] sm:$0xf]
      %v714 = vld [vmem:[#allocation13 + $0x34] sm:$0xf]
      %v715 = vld [vmem:[#allocation13 + $0x38] sm:$0xf]
      %v716 = vld [vmem:[#allocation13 + $0x3c] sm:$0xf]
      %v845 = vunpack.c.l.b16 %v573
      %v846 = vunpack.c.l.b16 %v574
      %v847 = vunpack.c.l.b16 %v575
      %v848 = vunpack.c.l.b16 %v576
      %v849 = vunpack.c.l.b16 %v577
      %v850 = vunpack.c.l.b16 %v578
      %v851 = vunpack.c.l.b16 %v579
      %v852 = vunpack.c.l.b16 %v580
      %v853 = vunpack.c.l.b16 %v581
      %v854 = vunpack.c.l.b16 %v582
      %v855 = vunpack.c.l.b16 %v583
      %v856 = vunpack.c.l.b16 %v584
      %v857 = vunpack.c.l.b16 %v585
      %v858 = vunpack.c.l.b16 %v586
      %v859 = vunpack.c.l.b16 %v587
      %v860 = vunpack.c.l.b16 %v588
      %v861 = vunpack.c.l.b16 %v589
      %v862 = vunpack.c.l.b16 %v590
      %v863 = vunpack.c.l.b16 %v591
      %v864 = vunpack.c.l.b16 %v592
      %v865 = vunpack.c.l.b16 %v593
      %v866 = vunpack.c.l.b16 %v594
      %v867 = vunpack.c.l.b16 %v595
      %v868 = vunpack.c.l.b16 %v596
      %v869 = vunpack.c.l.b16 %v597
      %v870 = vunpack.c.l.b16 %v598
      %v871 = vunpack.c.l.b16 %v599
      %v872 = vunpack.c.l.b16 %v600
      %v873 = vunpack.c.l.b16 %v601
      %v874 = vunpack.c.l.b16 %v602
      %v875 = vunpack.c.l.b16 %v603
      %v876 = vunpack.c.l.b16 %v604
      %v877 = vunpack.c.l.b16 %v605
      %v878 = vunpack.c.l.b16 %v606
      %v879 = vunpack.c.l.b16 %v607
      %v880 = vunpack.c.l.b16 %v608
      %v881 = vunpack.c.l.b16 %v609
      %v882 = vunpack.c.l.b16 %v610
      %v883 = vunpack.c.l.b16 %v611
      %v884 = vunpack.c.l.b16 %v612
      %v885 = vunpack.c.l.b16 %v613
      %v886 = vunpack.c.l.b16 %v614
      %v887 = vunpack.c.l.b16 %v615
      %v888 = vunpack.c.l.b16 %v616
      %v889 = vunpack.c.l.b16 %v617
      %v890 = vunpack.c.l.b16 %v618
      %v891 = vunpack.c.l.b16 %v619
      %v892 = vunpack.c.l.b16 %v620
      %v893 = vunpack.c.l.b16 %v621
      %v894 = vunpack.c.l.b16 %v622
      %v895 = vunpack.c.l.b16 %v623
      %v896 = vunpack.c.l.b16 %v624
      %v897 = vunpack.c.l.b16 %v625
      %v898 = vunpack.c.l.b16 %v626
      %v899 = vunpack.c.l.b16 %v627
      %v900 = vunpack.c.l.b16 %v628
      %v901 = vunpack.c.l.b16 %v629
      %v902 = vunpack.c.l.b16 %v630
      %v903 = vunpack.c.l.b16 %v631
      %v904 = vunpack.c.l.b16 %v632
      %v905 = vunpack.c.l.b16 %v633
      %v906 = vunpack.c.l.b16 %v634
      %v907 = vunpack.c.l.b16 %v635
      %v908 = vunpack.c.l.b16 %v636
      %v909 = vunpack.c.l.b16 %v637
      %v910 = vunpack.c.l.b16 %v638
      %v911 = vunpack.c.l.b16 %v639
      %v912 = vunpack.c.l.b16 %v640
      %v913 = vunpack.c.l.b16 %v641
      %v914 = vunpack.c.l.b16 %v642
      %v915 = vunpack.c.l.b16 %v643
      %v916 = vunpack.c.l.b16 %v644
      %v917 = vunpack.c.l.b16 %v645
      %v918 = vunpack.c.l.b16 %v646
      %v919 = vunpack.c.l.b16 %v647
      %v920 = vunpack.c.l.b16 %v648
      %v921 = vunpack.c.l.b16 %v649
      %v922 = vunpack.c.l.b16 %v650
      %v923 = vunpack.c.l.b16 %v651
      %v924 = vunpack.c.l.b16 %v652
      %v925 = vunpack.c.l.b16 %v653
      %v926 = vunpack.c.l.b16 %v654
      %v927 = vunpack.c.l.b16 %v655
      %v928 = vunpack.c.l.b16 %v656
      %v929 = vunpack.c.l.b16 %v657
      %v930 = vunpack.c.l.b16 %v658
      %v931 = vunpack.c.l.b16 %v659
      %v932 = vunpack.c.l.b16 %v660
      %v933 = vunpack.c.l.b16 %v661
      %v934 = vunpack.c.l.b16 %v662
      %v935 = vunpack.c.l.b16 %v663
      %v936 = vunpack.c.l.b16 %v664
      %v937 = vunpack.c.l.b16 %v665
      %v938 = vunpack.c.l.b16 %v666
      %v939 = vunpack.c.l.b16 %v667
      %v940 = vunpack.c.l.b16 %v668
      %v941 = vunpack.c.l.b16 %v669
      %v942 = vunpack.c.l.b16 %v670
      %v943 = vunpack.c.l.b16 %v671
      %v944 = vunpack.c.l.b16 %v672
      %v945 = vunpack.c.l.b16 %v673
      %v946 = vunpack.c.l.b16 %v674
      %v947 = vunpack.c.l.b16 %v675
      %v948 = vunpack.c.l.b16 %v676
      %v949 = vunpack.c.l.b16 %v677
      %v950 = vunpack.c.l.b16 %v678
      %v951 = vunpack.c.l.b16 %v679
      %v952 = vunpack.c.l.b16 %v680
      %v953 = vunpack.c.l.b16 %v681
      %v954 = vunpack.c.l.b16 %v682
      %v955 = vunpack.c.l.b16 %v683
      %v956 = vunpack.c.l.b16 %v684
      %v957 = vunpack.c.l.b16 %v685
      %v958 = vunpack.c.l.b16 %v686
      %v959 = vunpack.c.l.b16 %v687
      %v960 = vunpack.c.l.b16 %v688
      %v961 = vunpack.c.l.b16 %v689
      %v962 = vunpack.c.l.b16 %v690
      %v963 = vunpack.c.l.b16 %v691
      %v964 = vunpack.c.l.b16 %v692
      %v965 = vunpack.c.l.b16 %v693
      %v966 = vunpack.c.l.b16 %v694
      %v967 = vunpack.c.l.b16 %v695
      %v968 = vunpack.c.l.b16 %v696
      %v969 = vunpack.c.l.b16 %v697
      %v970 = vunpack.c.l.b16 %v698
      %v971 = vunpack.c.l.b16 %v699
      %v972 = vunpack.c.l.b16 %v700
      %v973 = vpack.c.b16 %v846, %v845
      %v974 = vpack.c.b16 %v848, %v847
      %v975 = vpack.c.b16 %v850, %v849
      %v976 = vpack.c.b16 %v852, %v851
      %v977 = vpack.c.b16 %v854, %v853
      %v978 = vpack.c.b16 %v856, %v855
      %v979 = vpack.c.b16 %v858, %v857
      %v980 = vpack.c.b16 %v860, %v859
      %v981 = vpack.c.b16 %v862, %v861
      %v982 = vpack.c.b16 %v864, %v863
      %v983 = vpack.c.b16 %v866, %v865
      %v984 = vpack.c.b16 %v868, %v867
      %v985 = vpack.c.b16 %v870, %v869
      %v986 = vpack.c.b16 %v872, %v871
      %v987 = vpack.c.b16 %v874, %v873
      %v988 = vpack.c.b16 %v876, %v875
      %v989 = vpack.c.b16 %v878, %v877
      %v990 = vpack.c.b16 %v880, %v879
      %v991 = vpack.c.b16 %v882, %v881
      %v992 = vpack.c.b16 %v884, %v883
      %v993 = vpack.c.b16 %v886, %v885
      %v994 = vpack.c.b16 %v888, %v887
      %v995 = vpack.c.b16 %v890, %v889
      %v996 = vpack.c.b16 %v892, %v891
      %v997 = vpack.c.b16 %v894, %v893
      %v998 = vpack.c.b16 %v896, %v895
      %v999 = vpack.c.b16 %v898, %v897
      %v1000 = vpack.c.b16 %v900, %v899
      %v1001 = vpack.c.b16 %v902, %v901
      %v1002 = vpack.c.b16 %v904, %v903
      %v1003 = vpack.c.b16 %v906, %v905
      %v1004 = vpack.c.b16 %v908, %v907
      %v1005 = vpack.c.b16 %v910, %v909
      %v1006 = vpack.c.b16 %v912, %v911
      %v1007 = vpack.c.b16 %v914, %v913
      %v1008 = vpack.c.b16 %v916, %v915
      %v1009 = vpack.c.b16 %v918, %v917
      %v1010 = vpack.c.b16 %v920, %v919
      %v1011 = vpack.c.b16 %v922, %v921
      %v1012 = vpack.c.b16 %v924, %v923
      %v1013 = vpack.c.b16 %v926, %v925
      %v1014 = vpack.c.b16 %v928, %v927
      %v1015 = vpack.c.b16 %v930, %v929
      %v1016 = vpack.c.b16 %v932, %v931
      %v1017 = vpack.c.b16 %v934, %v933
      %v1018 = vpack.c.b16 %v936, %v935
      %v1019 = vpack.c.b16 %v938, %v937
      %v1020 = vpack.c.b16 %v940, %v939
      %v1021 = vpack.c.b16 %v942, %v941
      %v1022 = vpack.c.b16 %v944, %v943
      %v1023 = vpack.c.b16 %v946, %v945
      %v1024 = vpack.c.b16 %v948, %v947
      %v1025 = vpack.c.b16 %v950, %v949
      %v1026 = vpack.c.b16 %v952, %v951
      %v1027 = vpack.c.b16 %v954, %v953
      %v1028 = vpack.c.b16 %v956, %v955
      %v1029 = vpack.c.b16 %v958, %v957
      %v1030 = vpack.c.b16 %v960, %v959
      %v1031 = vpack.c.b16 %v962, %v961
      %v1032 = vpack.c.b16 %v964, %v963
      %v1033 = vpack.c.b16 %v966, %v965
      %v1034 = vpack.c.b16 %v968, %v967
      %v1035 = vpack.c.b16 %v970, %v969
      %v1036 = vpack.c.b16 %v972, %v971
      %v1117 = vunpack.c.l.b16 %v701
      %v1118 = vunpack.c.l.b16 %v702
      %v1119 = vunpack.c.l.b16 %v703
      %v1120 = vunpack.c.l.b16 %v704
      %v1121 = vunpack.c.l.b16 %v705
      %v1122 = vunpack.c.l.b16 %v706
      %v1123 = vunpack.c.l.b16 %v707
      %v1124 = vunpack.c.l.b16 %v708
      %v1125 = vunpack.c.l.b16 %v709
      %v1126 = vunpack.c.l.b16 %v710
      %v1127 = vunpack.c.l.b16 %v711
      %v1128 = vunpack.c.l.b16 %v712
      %v1129 = vunpack.c.l.b16 %v713
      %v1130 = vunpack.c.l.b16 %v714
      %v1131 = vunpack.c.l.b16 %v715
      %v1132 = vunpack.c.l.b16 %v716
      %v1133 = vpack.c.b16 %v1118, %v1117
      %v1134 = vpack.c.b16 %v1120, %v1119
      %v1135 = vpack.c.b16 %v1122, %v1121
      %v1136 = vpack.c.b16 %v1124, %v1123
      %v1137 = vpack.c.b16 %v1126, %v1125
      %v1138 = vpack.c.b16 %v1128, %v1127
      %v1139 = vpack.c.b16 %v1130, %v1129
      %v1140 = vpack.c.b16 %v1132, %v1131
      %1149 = vmatprep.subr.bf16.mxu0 0
      %1150 = vmatpush1.bf16.msra.mxu0 %v1133
      %1151 = vmatprep.subr.bf16.mxu0 0
      %1152 = vmatpush1.bf16.msra.mxu0 %v1134
      %1153 = vmatprep.subr.bf16.mxu0 0
      %1154 = vmatpush1.bf16.msra.mxu0 %v1135
      %1155 = vmatprep.subr.bf16.mxu0 0
      %1156 = vmatpush1.bf16.msra.mxu0 %v1136
      %1157 = vmatprep.subr.bf16.mxu0 0
      %1158 = vmatpush1.bf16.msra.mxu0 %v1137
      %1159 = vmatprep.subr.bf16.mxu0 0
      %1160 = vmatpush1.bf16.msra.mxu0 %v1138
      %1161 = vmatprep.subr.bf16.mxu0 0
      %1162 = vmatpush1.bf16.msra.mxu0 %v1139
      %1163 = vmatprep.subr.bf16.mxu0 0
      %1164 = vmatpush1.bf16.msra.mxu0 %v1140
      %1165 = vmatprep.subr.bf16.mxu0 0
      %1166 = vmatpush1.bf16.msra.mxu0 0
      %1167 = vmatprep.subr.bf16.mxu0 0
      %1168 = vmatpush1.bf16.msra.mxu0 0
      %1169 = vmatprep.subr.bf16.mxu0 0
      %1170 = vmatpush1.bf16.msra.mxu0 0
      %1171 = vmatprep.subr.bf16.mxu0 0
      %1172 = vmatpush1.bf16.msra.mxu0 0
      %1173 = vmatprep.subr.bf16.mxu0 0
      %1174 = vmatpush1.bf16.msra.mxu0 0
      %1175 = vmatprep.subr.bf16.mxu0 0
      %1176 = vmatpush1.bf16.msra.mxu0 0
      %1177 = vmatprep.subr.bf16.mxu0 0
      %1178 = vmatpush1.bf16.msra.mxu0 0
      %1179 = vmatprep.subr.bf16.mxu0 0
      %1180 = vmatpush1.bf16.msra.mxu0 0
      %1181 = vmatprep.mubr.bf16.mxu0 0
      %1182 = vmatmul.mubr.bf16.gmra.mrb[0].mxu0 %v973
      %v1183 = vpop.f32.mrb[0].mxu0
      %v1184 = vadd.f32 0.0, %v1183
      %v1185 = vpop.f32.mrb[0].mxu0
      %v1186 = vpop.f32.mrb[0].mxu0
      %v1187 = vadd.f32 0.0, %v1186
      %v1188 = vpop.f32.mrb[0].mxu0
      %1189 = vmatprep.mubr.bf16.mxu0 0
      %1190 = vmatmul.mubr.bf16.gmra.mrb[0].mxu0 %v974
      %v1191 = vpop.f32.mrb[0].mxu0
      %v1192 = vadd.f32 0.0, %v1191
      %v1193 = vpop.f32.mrb[0].mxu0
      %v1194 = vpop.f32.mrb[0].mxu0
      %v1195 = vadd.f32 0.0, %v1194
      %v1196 = vpop.f32.mrb[0].mxu0
      %1197 = vmatprep.mubr.bf16.mxu0 0
      %1198 = vmatmul.mubr.bf16.gmra.mrb[0].mxu0 %v975
      %v1199 = vpop.f32.mrb[0].mxu0
      %v1200 = vadd.f32 0.0, %v1199
      %v1201 = vpop.f32.mrb[0].mxu0
      %v1202 = vpop.f32.mrb[0].mxu0
      %v1203 = vadd.f32 0.0, %v1202
      %v1204 = vpop.f32.mrb[0].mxu0
      %1205 = vmatprep.mubr.bf16.mxu0 0
      %1206 = vmatmul.mubr.bf16.gmra.mrb[0].mxu0 %v976
      %v1207 = vpop.f32.mrb[0].mxu0
      %v1208 = vadd.f32 0.0, %v1207
      %v1209 = vpop.f32.mrb[0].mxu0
      %v1210 = vpop.f32.mrb[0].mxu0
      %v1211 = vadd.f32 0.0, %v1210
      %v1212 = vpop.f32.mrb[0].mxu0
      %1213 = vmatprep.mubr.bf16.mxu0 0
      %1214 = vmatmul.mubr.bf16.gmra.mrb[0].mxu0 %v977
      %v1215 = vpop.f32.mrb[0].mxu0
      %v1216 = vadd.f32 0.0, %v1215
      %v1217 = vpop.f32.mrb[0].mxu0
      %v1218 = vpop.f32.mrb[0].mxu0
      %v1219 = vadd.f32 0.0, %v1218
      %v1220 = vpop.f32.mrb[0].mxu0
      %1221 = vmatprep.mubr.bf16.mxu0 0
      %1222 = vmatmul.mubr.bf16.gmra.mrb[0].mxu0 %v978
      %v1223 = vpop.f32.mrb[0].mxu0
      %v1224 = vadd.f32 0.0, %v1223
      %v1225 = vpop.f32.mrb[0].mxu0
      %v1226 = vpop.f32.mrb[0].mxu0
      %v1227 = vadd.f32 0.0, %v1226
      %v1228 = vpop.f32.mrb[0].mxu0
      %1229 = vmatprep.mubr.bf16.mxu0 0
      %1230 = vmatmul.mubr.bf16.gmra.mrb[0].mxu0 %v979
      %v1231 = vpop.f32.mrb[0].mxu0
      %v1232 = vadd.f32 0.0, %v1231
      %v1233 = vpop.f32.mrb[0].mxu0
      %v1234 = vpop.f32.mrb[0].mxu0
      %v1235 = vadd.f32 0.0, %v1234
      %v1236 = vpop.f32.mrb[0].mxu0
      %1237 = vmatprep.mubr.bf16.mxu0 0
      %1238 = vmatmul.mubr.bf16.gmra.mrb[0].mxu0 %v980
      %v1239 = vpop.f32.mrb[0].mxu0
      %v1240 = vadd.f32 0.0, %v1239
      %v1241 = vpop.f32.mrb[0].mxu0
      %v1242 = vpop.f32.mrb[0].mxu0
      %v1243 = vadd.f32 0.0, %v1242
      %v1244 = vpop.f32.mrb[0].mxu0
      %1245 = vmatprep.mubr.bf16.mxu0 0
      %1246 = vmatmul.mubr.bf16.gmra.mrb[0].mxu0 %v981
      %v1247 = vpop.f32.mrb[0].mxu0
      %v1248 = vadd.f32 0.0, %v1247
      %v1249 = vpop.f32.mrb[0].mxu0
      %v1250 = vpop.f32.mrb[0].mxu0
      %v1251 = vadd.f32 0.0, %v1250
      %v1252 = vpop.f32.mrb[0].mxu0
      %1253 = vmatprep.mubr.bf16.mxu0 0
      %1254 = vmatmul.mubr.bf16.gmra.mrb[0].mxu0 %v982
      %v1255 = vpop.f32.mrb[0].mxu0
      %v1256 = vadd.f32 0.0, %v1255
      %v1257 = vpop.f32.mrb[0].mxu0
      %v1258 = vpop.f32.mrb[0].mxu0
      %v1259 = vadd.f32 0.0, %v1258
      %v1260 = vpop.f32.mrb[0].mxu0
      %1261 = vmatprep.mubr.bf16.mxu0 0
      %1262 = vmatmul.mubr.bf16.gmra.mrb[0].mxu0 %v983
      %v1263 = vpop.f32.mrb[0].mxu0
      %v1264 = vadd.f32 0.0, %v1263
      %v1265 = vpop.f32.mrb[0].mxu0
      %v1266 = vpop.f32.mrb[0].mxu0
      %v1267 = vadd.f32 0.0, %v1266
      %v1268 = vpop.f32.mrb[0].mxu0
      %1269 = vmatprep.mubr.bf16.mxu0 0
      %1270 = vmatmul.mubr.bf16.gmra.mrb[0].mxu0 %v984
      %v1271 = vpop.f32.mrb[0].mxu0
      %v1272 = vadd.f32 0.0, %v1271
      %v1273 = vpop.f32.mrb[0].mxu0
      %v1274 = vpop.f32.mrb[0].mxu0
      %v1275 = vadd.f32 0.0, %v1274
      %v1276 = vpop.f32.mrb[0].mxu0
      %1277 = vmatprep.mubr.bf16.mxu0 0
      %1278 = vmatmul.mubr.bf16.gmra.mrb[0].mxu0 %v985
      %v1279 = vpop.f32.mrb[0].mxu0
      %v1280 = vadd.f32 0.0, %v1279
      %v1281 = vpop.f32.mrb[0].mxu0
      %v1282 = vpop.f32.mrb[0].mxu0
      %v1283 = vadd.f32 0.0, %v1282
      %v1284 = vpop.f32.mrb[0].mxu0
      %1285 = vmatprep.mubr.bf16.mxu0 0
      %1286 = vmatmul.mubr.bf16.gmra.mrb[0].mxu0 %v986
      %v1287 = vpop.f32.mrb[0].mxu0
      %v1288 = vadd.f32 0.0, %v1287
      %v1289 = vpop.f32.mrb[0].mxu0
      %v1290 = vpop.f32.mrb[0].mxu0
      %v1291 = vadd.f32 0.0, %v1290
      %v1292 = vpop.f32.mrb[0].mxu0
      %1293 = vmatprep.mubr.bf16.mxu0 0
      %1294 = vmatmul.mubr.bf16.gmra.mrb[0].mxu0 %v987
      %v1295 = vpop.f32.mrb[0].mxu0
      %v1296 = vadd.f32 0.0, %v1295
      %v1297 = vpop.f32.mrb[0].mxu0
      %v1298 = vpop.f32.mrb[0].mxu0
      %v1299 = vadd.f32 0.0, %v1298
      %v1300 = vpop.f32.mrb[0].mxu0
      %1301 = vmatprep.mubr.bf16.mxu0 0
      %1302 = vmatmul.mubr.bf16.gmra.mrb[0].mxu0 %v988
      %v1303 = vpop.f32.mrb[0].mxu0
      %v1304 = vadd.f32 0.0, %v1303
      %v1305 = vpop.f32.mrb[0].mxu0
      %v1306 = vpop.f32.mrb[0].mxu0
      %v1307 = vadd.f32 0.0, %v1306
      %v1308 = vpop.f32.mrb[0].mxu0
      %1309 = vmatprep.mubr.bf16.mxu0 0
      %1310 = vmatmul.mubr.bf16.gmra.mrb[0].mxu0 %v989
      %v1311 = vpop.f32.mrb[0].mxu0
      %v1312 = vadd.f32 0.0, %v1311
      %v1313 = vpop.f32.mrb[0].mxu0
      %v1314 = vpop.f32.mrb[0].mxu0
      %v1315 = vadd.f32 0.0, %v1314
      %v1316 = vpop.f32.mrb[0].mxu0
      %1317 = vmatprep.mubr.bf16.mxu0 0
      %1318 = vmatmul.mubr.bf16.gmra.mrb[0].mxu0 %v990
      %v1319 = vpop.f32.mrb[0].mxu0
      %v1320 = vadd.f32 0.0, %v1319
      %v1321 = vpop.f32.mrb[0].mxu0
      %v1322 = vpop.f32.mrb[0].mxu0
      %v1323 = vadd.f32 0.0, %v1322
      %v1324 = vpop.f32.mrb[0].mxu0
      %1325 = vmatprep.mubr.bf16.mxu0 0
      %1326 = vmatmul.mubr.bf16.gmra.mrb[0].mxu0 %v991
      %v1327 = vpop.f32.mrb[0].mxu0
      %v1328 = vadd.f32 0.0, %v1327
      %v1329 = vpop.f32.mrb[0].mxu0
      %v1330 = vpop.f32.mrb[0].mxu0
      %v1331 = vadd.f32 0.0, %v1330
      %v1332 = vpop.f32.mrb[0].mxu0
      %1333 = vmatprep.mubr.bf16.mxu0 0
      %1334 = vmatmul.mubr.bf16.gmra.mrb[0].mxu0 %v992
      %v1335 = vpop.f32.mrb[0].mxu0
      %v1336 = vadd.f32 0.0, %v1335
      %v1337 = vpop.f32.mrb[0].mxu0
      %v1338 = vpop.f32.mrb[0].mxu0
      %v1339 = vadd.f32 0.0, %v1338
      %v1340 = vpop.f32.mrb[0].mxu0
      %1341 = vmatprep.mubr.bf16.mxu0 0
      %1342 = vmatmul.mubr.bf16.gmra.mrb[0].mxu0 %v993
      %v1343 = vpop.f32.mrb[0].mxu0
      %v1344 = vadd.f32 0.0, %v1343
      %v1345 = vpop.f32.mrb[0].mxu0
      %v1346 = vpop.f32.mrb[0].mxu0
      %v1347 = vadd.f32 0.0, %v1346
      %v1348 = vpop.f32.mrb[0].mxu0
      %1349 = vmatprep.mubr.bf16.mxu0 0
      %1350 = vmatmul.mubr.bf16.gmra.mrb[0].mxu0 %v994
      %v1351 = vpop.f32.mrb[0].mxu0
      %v1352 = vadd.f32 0.0, %v1351
      %v1353 = vpop.f32.mrb[0].mxu0
      %v1354 = vpop.f32.mrb[0].mxu0
      %v1355 = vadd.f32 0.0, %v1354
      %v1356 = vpop.f32.mrb[0].mxu0
      %1357 = vmatprep.mubr.bf16.mxu0 0
      %1358 = vmatmul.mubr.bf16.gmra.mrb[0].mxu0 %v995
      %v1359 = vpop.f32.mrb[0].mxu0
      %v1360 = vadd.f32 0.0, %v1359
      %v1361 = vpop.f32.mrb[0].mxu0
      %v1362 = vpop.f32.mrb[0].mxu0
      %v1363 = vadd.f32 0.0, %v1362
      %v1364 = vpop.f32.mrb[0].mxu0
      %1365 = vmatprep.mubr.bf16.mxu0 0
      %1366 = vmatmul.mubr.bf16.gmra.mrb[0].mxu0 %v996
      %v1367 = vpop.f32.mrb[0].mxu0
      %v1368 = vadd.f32 0.0, %v1367
      %v1369 = vpop.f32.mrb[0].mxu0
      %v1370 = vpop.f32.mrb[0].mxu0
      %v1371 = vadd.f32 0.0, %v1370
      %v1372 = vpop.f32.mrb[0].mxu0
      %1373 = vmatprep.mubr.bf16.mxu0 0
      %1374 = vmatmul.mubr.bf16.gmra.mrb[0].mxu0 %v997
      %v1375 = vpop.f32.mrb[0].mxu0
      %v1376 = vadd.f32 0.0, %v1375
      %v1377 = vpop.f32.mrb[0].mxu0
      %v1378 = vpop.f32.mrb[0].mxu0
      %v1379 = vadd.f32 0.0, %v1378
      %v1380 = vpop.f32.mrb[0].mxu0
      %1381 = vmatprep.mubr.bf16.mxu0 0
      %1382 = vmatmul.mubr.bf16.gmra.mrb[0].mxu0 %v998
      %v1383 = vpop.f32.mrb[0].mxu0
      %v1384 = vadd.f32 0.0, %v1383
      %v1385 = vpop.f32.mrb[0].mxu0
      %v1386 = vpop.f32.mrb[0].mxu0
      %v1387 = vadd.f32 0.0, %v1386
      %v1388 = vpop.f32.mrb[0].mxu0
      %1389 = vmatprep.mubr.bf16.mxu0 0
      %1390 = vmatmul.mubr.bf16.gmra.mrb[0].mxu0 %v999
      %v1391 = vpop.f32.mrb[0].mxu0
      %v1392 = vadd.f32 0.0, %v1391
      %v1393 = vpop.f32.mrb[0].mxu0
      %v1394 = vpop.f32.mrb[0].mxu0
      %v1395 = vadd.f32 0.0, %v1394
      %v1396 = vpop.f32.mrb[0].mxu0
      %1397 = vmatprep.mubr.bf16.mxu0 0
      %1398 = vmatmul.mubr.bf16.gmra.mrb[0].mxu0 %v1000
      %v1399 = vpop.f32.mrb[0].mxu0
      %v1400 = vadd.f32 0.0, %v1399
      %v1401 = vpop.f32.mrb[0].mxu0
      %v1402 = vpop.f32.mrb[0].mxu0
      %v1403 = vadd.f32 0.0, %v1402
      %v1404 = vpop.f32.mrb[0].mxu0
      %1405 = vmatprep.mubr.bf16.mxu0 0
      %1406 = vmatmul.mubr.bf16.gmra.mrb[0].mxu0 %v1001
      %v1407 = vpop.f32.mrb[0].mxu0
      %v1408 = vadd.f32 0.0, %v1407
      %v1409 = vpop.f32.mrb[0].mxu0
      %v1410 = vpop.f32.mrb[0].mxu0
      %v1411 = vadd.f32 0.0, %v1410
      %v1412 = vpop.f32.mrb[0].mxu0
      %1413 = vmatprep.mubr.bf16.mxu0 0
      %1414 = vmatmul.mubr.bf16.gmra.mrb[0].mxu0 %v1002
      %v1415 = vpop.f32.mrb[0].mxu0
      %v1416 = vadd.f32 0.0, %v1415
      %v1417 = vpop.f32.mrb[0].mxu0
      %v1418 = vpop.f32.mrb[0].mxu0
      %v1419 = vadd.f32 0.0, %v1418
      %v1420 = vpop.f32.mrb[0].mxu0
      %1421 = vmatprep.mubr.bf16.mxu0 0
      %1422 = vmatmul.mubr.bf16.gmra.mrb[0].mxu0 %v1003
      %v1423 = vpop.f32.mrb[0].mxu0
      %v1424 = vadd.f32 0.0, %v1423
      %v1425 = vpop.f32.mrb[0].mxu0
      %v1426 = vpop.f32.mrb[0].mxu0
      %v1427 = vadd.f32 0.0, %v1426
      %v1428 = vpop.f32.mrb[0].mxu0
      %1429 = vmatprep.mubr.bf16.mxu0 0
      %1430 = vmatmul.mubr.bf16.gmra.mrb[0].mxu0 %v1004
      %v1431 = vpop.f32.mrb[0].mxu0
      %v1432 = vadd.f32 0.0, %v1431
      %v1433 = vpop.f32.mrb[0].mxu0
      %v1434 = vpop.f32.mrb[0].mxu0
      %v1435 = vadd.f32 0.0, %v1434
      %v1436 = vpop.f32.mrb[0].mxu0
      %1437 = vmatprep.mubr.bf16.mxu0 0
      %1438 = vmatmul.mubr.bf16.gmra.mrb[0].mxu0 %v1005
      %v1439 = vpop.f32.mrb[0].mxu0
      %v1440 = vadd.f32 0.0, %v1439
      %v1441 = vpop.f32.mrb[0].mxu0
      %v1442 = vpop.f32.mrb[0].mxu0
      %v1443 = vadd.f32 0.0, %v1442
      %v1444 = vpop.f32.mrb[0].mxu0
      %1445 = vmatprep.mubr.bf16.mxu0 0
      %1446 = vmatmul.mubr.bf16.gmra.mrb[0].mxu0 %v1006
      %v1447 = vpop.f32.mrb[0].mxu0
      %v1448 = vadd.f32 0.0, %v1447
      %v1449 = vpop.f32.mrb[0].mxu0
      %v1450 = vpop.f32.mrb[0].mxu0
      %v1451 = vadd.f32 0.0, %v1450
      %v1452 = vpop.f32.mrb[0].mxu0
      %1453 = vmatprep.mubr.bf16.mxu0 0
      %1454 = vmatmul.mubr.bf16.gmra.mrb[0].mxu0 %v1007
      %v1455 = vpop.f32.mrb[0].mxu0
      %v1456 = vadd.f32 0.0, %v1455
      %v1457 = vpop.f32.mrb[0].mxu0
      %v1458 = vpop.f32.mrb[0].mxu0
      %v1459 = vadd.f32 0.0, %v1458
      %v1460 = vpop.f32.mrb[0].mxu0
      %1461 = vmatprep.mubr.bf16.mxu0 0
      %1462 = vmatmul.mubr.bf16.gmra.mrb[0].mxu0 %v1008
      %v1463 = vpop.f32.mrb[0].mxu0
      %v1464 = vadd.f32 0.0, %v1463
      %v1465 = vpop.f32.mrb[0].mxu0
      %v1466 = vpop.f32.mrb[0].mxu0
      %v1467 = vadd.f32 0.0, %v1466
      %v1468 = vpop.f32.mrb[0].mxu0
      %1469 = vmatprep.mubr.bf16.mxu0 0
      %1470 = vmatmul.mubr.bf16.gmra.mrb[0].mxu0 %v1009
      %v1471 = vpop.f32.mrb[0].mxu0
      %v1472 = vadd.f32 0.0, %v1471
      %v1473 = vpop.f32.mrb[0].mxu0
      %v1474 = vpop.f32.mrb[0].mxu0
      %v1475 = vadd.f32 0.0, %v1474
      %v1476 = vpop.f32.mrb[0].mxu0
      %1477 = vmatprep.mubr.bf16.mxu0 0
      %1478 = vmatmul.mubr.bf16.gmra.mrb[0].mxu0 %v1010
      %v1479 = vpop.f32.mrb[0].mxu0
      %v1480 = vadd.f32 0.0, %v1479
      %v1481 = vpop.f32.mrb[0].mxu0
      %v1482 = vpop.f32.mrb[0].mxu0
      %v1483 = vadd.f32 0.0, %v1482
      %v1484 = vpop.f32.mrb[0].mxu0
      %1485 = vmatprep.mubr.bf16.mxu0 0
      %1486 = vmatmul.mubr.bf16.gmra.mrb[0].mxu0 %v1011
      %v1487 = vpop.f32.mrb[0].mxu0
      %v1488 = vadd.f32 0.0, %v1487
      %v1489 = vpop.f32.mrb[0].mxu0
      %v1490 = vpop.f32.mrb[0].mxu0
      %v1491 = vadd.f32 0.0, %v1490
      %v1492 = vpop.f32.mrb[0].mxu0
      %1493 = vmatprep.mubr.bf16.mxu0 0
      %1494 = vmatmul.mubr.bf16.gmra.mrb[0].mxu0 %v1012
      %v1495 = vpop.f32.mrb[0].mxu0
      %v1496 = vadd.f32 0.0, %v1495
      %v1497 = vpop.f32.mrb[0].mxu0
      %v1498 = vpop.f32.mrb[0].mxu0
      %v1499 = vadd.f32 0.0, %v1498
      %v1500 = vpop.f32.mrb[0].mxu0
      %1501 = vmatprep.mubr.bf16.mxu0 0
      %1502 = vmatmul.mubr.bf16.gmra.mrb[0].mxu0 %v1013
      %v1503 = vpop.f32.mrb[0].mxu0
      %v1504 = vadd.f32 0.0, %v1503
      %v1505 = vpop.f32.mrb[0].mxu0
      %v1506 = vpop.f32.mrb[0].mxu0
      %v1507 = vadd.f32 0.0, %v1506
      %v1508 = vpop.f32.mrb[0].mxu0
      %1509 = vmatprep.mubr.bf16.mxu0 0
      %1510 = vmatmul.mubr.bf16.gmra.mrb[0].mxu0 %v1014
      %v1511 = vpop.f32.mrb[0].mxu0
      %v1512 = vadd.f32 0.0, %v1511
      %v1513 = vpop.f32.mrb[0].mxu0
      %v1514 = vpop.f32.mrb[0].mxu0
      %v1515 = vadd.f32 0.0, %v1514
      %v1516 = vpop.f32.mrb[0].mxu0
      %1517 = vmatprep.mubr.bf16.mxu0 0
      %1518 = vmatmul.mubr.bf16.gmra.mrb[0].mxu0 %v1015
      %v1519 = vpop.f32.mrb[0].mxu0
      %v1520 = vadd.f32 0.0, %v1519
      %v1521 = vpop.f32.mrb[0].mxu0
      %v1522 = vpop.f32.mrb[0].mxu0
      %v1523 = vadd.f32 0.0, %v1522
      %v1524 = vpop.f32.mrb[0].mxu0
      %1525 = vmatprep.mubr.bf16.mxu0 0
      %1526 = vmatmul.mubr.bf16.gmra.mrb[0].mxu0 %v1016
      %v1527 = vpop.f32.mrb[0].mxu0
      %v1528 = vadd.f32 0.0, %v1527
      %v1529 = vpop.f32.mrb[0].mxu0
      %v1530 = vpop.f32.mrb[0].mxu0
      %v1531 = vadd.f32 0.0, %v1530
      %v1532 = vpop.f32.mrb[0].mxu0
      %1533 = vmatprep.mubr.bf16.mxu0 0
      %1534 = vmatmul.mubr.bf16.gmra.mrb[0].mxu0 %v1017
      %v1535 = vpop.f32.mrb[0].mxu0
      %v1536 = vadd.f32 0.0, %v1535
      %v1537 = vpop.f32.mrb[0].mxu0
      %v1538 = vpop.f32.mrb[0].mxu0
      %v1539 = vadd.f32 0.0, %v1538
      %v1540 = vpop.f32.mrb[0].mxu0
      %1541 = vmatprep.mubr.bf16.mxu0 0
      %1542 = vmatmul.mubr.bf16.gmra.mrb[0].mxu0 %v1018
      %v1543 = vpop.f32.mrb[0].mxu0
      %v1544 = vadd.f32 0.0, %v1543
      %v1545 = vpop.f32.mrb[0].mxu0
      %v1546 = vpop.f32.mrb[0].mxu0
      %v1547 = vadd.f32 0.0, %v1546
      %v1548 = vpop.f32.mrb[0].mxu0
      %1549 = vmatprep.mubr.bf16.mxu0 0
      %1550 = vmatmul.mubr.bf16.gmra.mrb[0].mxu0 %v1019
      %v1551 = vpop.f32.mrb[0].mxu0
      %v1552 = vadd.f32 0.0, %v1551
      %v1553 = vpop.f32.mrb[0].mxu0
      %v1554 = vpop.f32.mrb[0].mxu0
      %v1555 = vadd.f32 0.0, %v1554
      %v1556 = vpop.f32.mrb[0].mxu0
      %1557 = vmatprep.mubr.bf16.mxu0 0
      %1558 = vmatmul.mubr.bf16.gmra.mrb[0].mxu0 %v1020
      %v1559 = vpop.f32.mrb[0].mxu0
      %v1560 = vadd.f32 0.0, %v1559
      %v1561 = vpop.f32.mrb[0].mxu0
      %v1562 = vpop.f32.mrb[0].mxu0
      %v1563 = vadd.f32 0.0, %v1562
      %v1564 = vpop.f32.mrb[0].mxu0
      %1565 = vmatprep.mubr.bf16.mxu0 0
      %1566 = vmatmul.mubr.bf16.gmra.mrb[0].mxu0 %v1021
      %v1567 = vpop.f32.mrb[0].mxu0
      %v1568 = vadd.f32 0.0, %v1567
      %v1569 = vpop.f32.mrb[0].mxu0
      %v1570 = vpop.f32.mrb[0].mxu0
      %v1571 = vadd.f32 0.0, %v1570
      %v1572 = vpop.f32.mrb[0].mxu0
      %1573 = vmatprep.mubr.bf16.mxu0 0
      %1574 = vmatmul.mubr.bf16.gmra.mrb[0].mxu0 %v1022
      %v1575 = vpop.f32.mrb[0].mxu0
      %v1576 = vadd.f32 0.0, %v1575
      %v1577 = vpop.f32.mrb[0].mxu0
      %v1578 = vpop.f32.mrb[0].mxu0
      %v1579 = vadd.f32 0.0, %v1578
      %v1580 = vpop.f32.mrb[0].mxu0
      %1581 = vmatprep.mubr.bf16.mxu0 0
      %1582 = vmatmul.mubr.bf16.gmra.mrb[0].mxu0 %v1023
      %v1583 = vpop.f32.mrb[0].mxu0
      %v1584 = vadd.f32 0.0, %v1583
      %v1585 = vpop.f32.mrb[0].mxu0
      %v1586 = vpop.f32.mrb[0].mxu0
      %v1587 = vadd.f32 0.0, %v1586
      %v1588 = vpop.f32.mrb[0].mxu0
      %1589 = vmatprep.mubr.bf16.mxu0 0
      %1590 = vmatmul.mubr.bf16.gmra.mrb[0].mxu0 %v1024
      %v1591 = vpop.f32.mrb[0].mxu0
      %v1592 = vadd.f32 0.0, %v1591
      %v1593 = vpop.f32.mrb[0].mxu0
      %v1594 = vpop.f32.mrb[0].mxu0
      %v1595 = vadd.f32 0.0, %v1594
      %v1596 = vpop.f32.mrb[0].mxu0
      %1597 = vmatprep.mubr.bf16.mxu0 0
      %1598 = vmatmul.mubr.bf16.gmra.mrb[0].mxu0 %v1025
      %v1599 = vpop.f32.mrb[0].mxu0
      %v1600 = vadd.f32 0.0, %v1599
      %v1601 = vpop.f32.mrb[0].mxu0
      %v1602 = vpop.f32.mrb[0].mxu0
      %v1603 = vadd.f32 0.0, %v1602
      %v1604 = vpop.f32.mrb[0].mxu0
      %1605 = vmatprep.mubr.bf16.mxu0 0
      %1606 = vmatmul.mubr.bf16.gmra.mrb[0].mxu0 %v1026
      %v1607 = vpop.f32.mrb[0].mxu0
      %v1608 = vadd.f32 0.0, %v1607
      %v1609 = vpop.f32.mrb[0].mxu0
      %v1610 = vpop.f32.mrb[0].mxu0
      %v1611 = vadd.f32 0.0, %v1610
      %v1612 = vpop.f32.mrb[0].mxu0
      %1613 = vmatprep.mubr.bf16.mxu0 0
      %1614 = vmatmul.mubr.bf16.gmra.mrb[0].mxu0 %v1027
      %v1615 = vpop.f32.mrb[0].mxu0
      %v1616 = vadd.f32 0.0, %v1615
      %v1617 = vpop.f32.mrb[0].mxu0
      %v1618 = vpop.f32.mrb[0].mxu0
      %v1619 = vadd.f32 0.0, %v1618
      %v1620 = vpop.f32.mrb[0].mxu0
      %1621 = vmatprep.mubr.bf16.mxu0 0
      %1622 = vmatmul.mubr.bf16.gmra.mrb[0].mxu0 %v1028
      %v1623 = vpop.f32.mrb[0].mxu0
      %v1624 = vadd.f32 0.0, %v1623
      %v1625 = vpop.f32.mrb[0].mxu0
      %v1626 = vpop.f32.mrb[0].mxu0
      %v1627 = vadd.f32 0.0, %v1626
      %v1628 = vpop.f32.mrb[0].mxu0
      %1629 = vmatprep.mubr.bf16.mxu0 0
      %1630 = vmatmul.mubr.bf16.gmra.mrb[0].mxu0 %v1029
      %v1631 = vpop.f32.mrb[0].mxu0
      %v1632 = vadd.f32 0.0, %v1631
      %v1633 = vpop.f32.mrb[0].mxu0
      %v1634 = vpop.f32.mrb[0].mxu0
      %v1635 = vadd.f32 0.0, %v1634
      %v1636 = vpop.f32.mrb[0].mxu0
      %1637 = vmatprep.mubr.bf16.mxu0 0
      %1638 = vmatmul.mubr.bf16.gmra.mrb[0].mxu0 %v1030
      %v1639 = vpop.f32.mrb[0].mxu0
      %v1640 = vadd.f32 0.0, %v1639
      %v1641 = vpop.f32.mrb[0].mxu0
      %v1642 = vpop.f32.mrb[0].mxu0
      %v1643 = vadd.f32 0.0, %v1642
      %v1644 = vpop.f32.mrb[0].mxu0
      %1645 = vmatprep.mubr.bf16.mxu0 0
      %1646 = vmatmul.mubr.bf16.gmra.mrb[0].mxu0 %v1031
      %v1647 = vpop.f32.mrb[0].mxu0
      %v1648 = vadd.f32 0.0, %v1647
      %v1649 = vpop.f32.mrb[0].mxu0
      %v1650 = vpop.f32.mrb[0].mxu0
      %v1651 = vadd.f32 0.0, %v1650
      %v1652 = vpop.f32.mrb[0].mxu0
      %1653 = vmatprep.mubr.bf16.mxu0 0
      %1654 = vmatmul.mubr.bf16.gmra.mrb[0].mxu0 %v1032
      %v1655 = vpop.f32.mrb[0].mxu0
      %v1656 = vadd.f32 0.0, %v1655
      %v1657 = vpop.f32.mrb[0].mxu0
      %v1658 = vpop.f32.mrb[0].mxu0
      %v1659 = vadd.f32 0.0, %v1658
      %v1660 = vpop.f32.mrb[0].mxu0
      %1661 = vmatprep.mubr.bf16.mxu0 0
      %1662 = vmatmul.mubr.bf16.gmra.mrb[0].mxu0 %v1033
      %v1663 = vpop.f32.mrb[0].mxu0
      %v1664 = vadd.f32 0.0, %v1663
      %v1665 = vpop.f32.mrb[0].mxu0
      %v1666 = vpop.f32.mrb[0].mxu0
      %v1667 = vadd.f32 0.0, %v1666
      %v1668 = vpop.f32.mrb[0].mxu0
      %1669 = vmatprep.mubr.bf16.mxu0 0
      %1670 = vmatmul.mubr.bf16.gmra.mrb[0].mxu0 %v1034
      %v1671 = vpop.f32.mrb[0].mxu0
      %v1672 = vadd.f32 0.0, %v1671
      %v1673 = vpop.f32.mrb[0].mxu0
      %v1674 = vpop.f32.mrb[0].mxu0
      %v1675 = vadd.f32 0.0, %v1674
      %v1676 = vpop.f32.mrb[0].mxu0
      %1677 = vmatprep.mubr.bf16.mxu0 0
      %1678 = vmatmul.mubr.bf16.gmra.mrb[0].mxu0 %v1035
      %v1679 = vpop.f32.mrb[0].mxu0
      %v1680 = vadd.f32 0.0, %v1679
      %v1681 = vpop.f32.mrb[0].mxu0
      %v1682 = vpop.f32.mrb[0].mxu0
      %v1683 = vadd.f32 0.0, %v1682
      %v1684 = vpop.f32.mrb[0].mxu0
      %1685 = vmatprep.mubr.bf16.mxu0 0
      %1686 = vmatmul.mubr.bf16.gmra.mrb[0].mxu0 %v1036
      %v1687 = vpop.f32.mrb[0].mxu0
      %v1688 = vadd.f32 0.0, %v1687
      %v1689 = vpop.f32.mrb[0].mxu0
      %v1690 = vpop.f32.mrb[0].mxu0
      %v1691 = vadd.f32 0.0, %v1690
      %v1692 = vpop.f32.mrb[0].mxu0
      %1693 = vdwg.mxu0
      %v1695 = vcombine.high %v568, %v568
      %v1697 = vunpack.c.l.s4 1966171168
      %v1698 = vunpack.c.0.s8 %v1697
      %v1699 = vlaneseq
      %v1700 = vshrl.u32 %v1699, 7
      %v1701 = vsub.s32 %v1698, %v1700
      %v1702 = vrot.slane %v568, %v1701
      %v1704 = vunpack.c.l.s4 1966171168
      %v1705 = vunpack.c.0.s8 %v1704
      %v1706 = vlaneseq
      %v1707 = vshrl.u32 %v1706, 7
      %v1708 = vsub.s32 %v1705, %v1707
      %v1709 = vrot.slane %v1695, %v1708
      %v1710 = vcombine.high %v1702, %v1702
      %v1711 = vcombine.high %v1709, %v1709
      %v1713 = vunpack.c.l.s4 1966171168
      %v1714 = vunpack.c.0.s8 %v1713
      %v1715 = vlaneseq
      %v1716 = vshrl.u32 %v1715, 7
      %v1717 = vsub.s32 %v1714, %v1716
      %v1718 = vrot.slane %v1702, %v1717
      %v1720 = vunpack.c.l.s4 1966171168
      %v1721 = vunpack.c.0.s8 %v1720
      %v1722 = vlaneseq
      %v1723 = vshrl.u32 %v1722, 7
      %v1724 = vsub.s32 %v1721, %v1723
      %v1725 = vrot.slane %v1709, %v1724
      %v1727 = vunpack.c.l.s4 1966171168
      %v1728 = vunpack.c.0.s8 %v1727
      %v1729 = vlaneseq
      %v1730 = vshrl.u32 %v1729, 7
      %v1731 = vsub.s32 %v1728, %v1730
      %v1732 = vrot.slane %v1710, %v1731
      %v1734 = vunpack.c.l.s4 1966171168
      %v1735 = vunpack.c.0.s8 %v1734
      %v1736 = vlaneseq
      %v1737 = vshrl.u32 %v1736, 7
      %v1738 = vsub.s32 %v1735, %v1737
      %v1739 = vrot.slane %v1711, %v1738
      %v1740 = vcombine.high %v1718, %v1718
      %v1741 = vcombine.high %v1725, %v1725
      %v1742 = vcombine.high %v1732, %v1732
      %v1743 = vcombine.high %v1739, %v1739
      %v1744 = vlaneseq
      %v1745 = vshrl.u32 %v1744, 7
      %v1746 = vsub.s32 0, %v1745
      %v1747 = vrot.slane %v1718, %v1746
      %v1748 = vlaneseq
      %v1749 = vshrl.u32 %v1748, 7
      %v1750 = vsub.s32 0, %v1749
      %v1751 = vrot.slane %v1732, %v1750
      %v1752 = vlaneseq
      %v1753 = vshrl.u32 %v1752, 7
      %v1754 = vsub.s32 0, %v1753
      %v1755 = vrot.slane %v1740, %v1754
      %v1756 = vlaneseq
      %v1757 = vshrl.u32 %v1756, 7
      %v1758 = vsub.s32 0, %v1757
      %v1759 = vrot.slane %v1742, %v1758
      %v1760 = vlaneseq
      %v1761 = vshrl.u32 %v1760, 7
      %v1762 = vsub.s32 0, %v1761
      %v1763 = vrot.slane %v1725, %v1762
      %v1764 = vlaneseq
      %v1765 = vshrl.u32 %v1764, 7
      %v1766 = vsub.s32 0, %v1765
      %v1767 = vrot.slane %v1739, %v1766
      %v1768 = vlaneseq
      %v1769 = vshrl.u32 %v1768, 7
      %v1770 = vsub.s32 0, %v1769
      %v1771 = vrot.slane %v1741, %v1770
      %v1772 = vlaneseq
      %v1773 = vshrl.u32 %v1772, 7
      %v1774 = vsub.s32 0, %v1773
      %v1775 = vrot.slane %v1743, %v1774
      %v1784 = vadd.f32 %v1184, %v1747
      %v1785 = vadd.f32 %v1187, %v1747
      %v1786 = vadd.f32 %v1192, %v1747
      %v1787 = vadd.f32 %v1195, %v1747
      %v1788 = vadd.f32 %v1200, %v1747
      %v1789 = vadd.f32 %v1203, %v1747
      %v1790 = vadd.f32 %v1208, %v1747
      %v1791 = vadd.f32 %v1211, %v1747
      %v1792 = vadd.f32 %v1216, %v1747
      %v1793 = vadd.f32 %v1219, %v1747
      %v1794 = vadd.f32 %v1224, %v1747
      %v1795 = vadd.f32 %v1227, %v1747
      %v1796 = vadd.f32 %v1232, %v1747
      %v1797 = vadd.f32 %v1235, %v1747
      %v1798 = vadd.f32 %v1240, %v1747
      %v1799 = vadd.f32 %v1243, %v1747
      %v1800 = vadd.f32 %v1248, %v1751
      %v1801 = vadd.f32 %v1251, %v1751
      %v1802 = vadd.f32 %v1256, %v1751
      %v1803 = vadd.f32 %v1259, %v1751
      %v1804 = vadd.f32 %v1264, %v1751
      %v1805 = vadd.f32 %v1267, %v1751
      %v1806 = vadd.f32 %v1272, %v1751
      %v1807 = vadd.f32 %v1275, %v1751
      %v1808 = vadd.f32 %v1280, %v1751
      %v1809 = vadd.f32 %v1283, %v1751
      %v1810 = vadd.f32 %v1288, %v1751
      %v1811 = vadd.f32 %v1291, %v1751
      %v1812 = vadd.f32 %v1296, %v1751
      %v1813 = vadd.f32 %v1299, %v1751
      %v1814 = vadd.f32 %v1304, %v1751
      %v1815 = vadd.f32 %v1307, %v1751
      %v1816 = vadd.f32 %v1312, %v1755
      %v1817 = vadd.f32 %v1315, %v1755
      %v1818 = vadd.f32 %v1320, %v1755
      %v1819 = vadd.f32 %v1323, %v1755
      %v1820 = vadd.f32 %v1328, %v1755
      %v1821 = vadd.f32 %v1331, %v1755
      %v1822 = vadd.f32 %v1336, %v1755
      %v1823 = vadd.f32 %v1339, %v1755
      %v1824 = vadd.f32 %v1344, %v1755
      %v1825 = vadd.f32 %v1347, %v1755
      %v1826 = vadd.f32 %v1352, %v1755
      %v1827 = vadd.f32 %v1355, %v1755
      %v1828 = vadd.f32 %v1360, %v1755
      %v1829 = vadd.f32 %v1363, %v1755
      %v1830 = vadd.f32 %v1368, %v1755
      %v1831 = vadd.f32 %v1371, %v1755
      %v1832 = vadd.f32 %v1376, %v1759
      %v1833 = vadd.f32 %v1379, %v1759
      %v1834 = vadd.f32 %v1384, %v1759
      %v1835 = vadd.f32 %v1387, %v1759
      %v1836 = vadd.f32 %v1392, %v1759
      %v1837 = vadd.f32 %v1395, %v1759
      %v1838 = vadd.f32 %v1400, %v1759
      %v1839 = vadd.f32 %v1403, %v1759
      %v1840 = vadd.f32 %v1408, %v1759
      %v1841 = vadd.f32 %v1411, %v1759
      %v1842 = vadd.f32 %v1416, %v1759
      %v1843 = vadd.f32 %v1419, %v1759
      %v1844 = vadd.f32 %v1424, %v1759
      %v1845 = vadd.f32 %v1427, %v1759
      %v1846 = vadd.f32 %v1432, %v1759
      %v1847 = vadd.f32 %v1435, %v1759
      %v1848 = vadd.f32 %v1440, %v1763
      %v1849 = vadd.f32 %v1443, %v1763
      %v1850 = vadd.f32 %v1448, %v1763
      %v1851 = vadd.f32 %v1451, %v1763
      %v1852 = vadd.f32 %v1456, %v1763
      %v1853 = vadd.f32 %v1459, %v1763
      %v1854 = vadd.f32 %v1464, %v1763
      %v1855 = vadd.f32 %v1467, %v1763
      %v1856 = vadd.f32 %v1472, %v1763
      %v1857 = vadd.f32 %v1475, %v1763
      %v1858 = vadd.f32 %v1480, %v1763
      %v1859 = vadd.f32 %v1483, %v1763
      %v1860 = vadd.f32 %v1488, %v1763
      %v1861 = vadd.f32 %v1491, %v1763
      %v1862 = vadd.f32 %v1496, %v1763
      %v1863 = vadd.f32 %v1499, %v1763
      %v1864 = vadd.f32 %v1504, %v1767
      %v1865 = vadd.f32 %v1507, %v1767
      %v1866 = vadd.f32 %v1512, %v1767
      %v1867 = vadd.f32 %v1515, %v1767
      %v1868 = vadd.f32 %v1520, %v1767
      %v1869 = vadd.f32 %v1523, %v1767
      %v1870 = vadd.f32 %v1528, %v1767
      %v1871 = vadd.f32 %v1531, %v1767
      %v1872 = vadd.f32 %v1536, %v1767
      %v1873 = vadd.f32 %v1539, %v1767
      %v1874 = vadd.f32 %v1544, %v1767
      %v1875 = vadd.f32 %v1547, %v1767
      %v1876 = vadd.f32 %v1552, %v1767
      %v1877 = vadd.f32 %v1555, %v1767
      %v1878 = vadd.f32 %v1560, %v1767
      %v1879 = vadd.f32 %v1563, %v1767
      %v1880 = vadd.f32 %v1568, %v1771
      %v1881 = vadd.f32 %v1571, %v1771
      %v1882 = vadd.f32 %v1576, %v1771
      %v1883 = vadd.f32 %v1579, %v1771
      %v1884 = vadd.f32 %v1584, %v1771
      %v1885 = vadd.f32 %v1587, %v1771
      %v1886 = vadd.f32 %v1592, %v1771
      %v1887 = vadd.f32 %v1595, %v1771
      %v1888 = vadd.f32 %v1600, %v1771
      %v1889 = vadd.f32 %v1603, %v1771
      %v1890 = vadd.f32 %v1608, %v1771
      %v1891 = vadd.f32 %v1611, %v1771
      %v1892 = vadd.f32 %v1616, %v1771
      %v1893 = vadd.f32 %v1619, %v1771
      %v1894 = vadd.f32 %v1624, %v1771
      %v1895 = vadd.f32 %v1627, %v1771
      %v1896 = vadd.f32 %v1632, %v1775
      %v1897 = vadd.f32 %v1635, %v1775
      %v1898 = vadd.f32 %v1640, %v1775
      %v1899 = vadd.f32 %v1643, %v1775
      %v1900 = vadd.f32 %v1648, %v1775
      %v1901 = vadd.f32 %v1651, %v1775
      %v1902 = vadd.f32 %v1656, %v1775
      %v1903 = vadd.f32 %v1659, %v1775
      %v1904 = vadd.f32 %v1664, %v1775
      %v1905 = vadd.f32 %v1667, %v1775
      %v1906 = vadd.f32 %v1672, %v1775
      %v1907 = vadd.f32 %v1675, %v1775
      %v1908 = vadd.f32 %v1680, %v1775
      %v1909 = vadd.f32 %v1683, %v1775
      %v1910 = vadd.f32 %v1688, %v1775
      %v1911 = vadd.f32 %v1691, %v1775
      %v1912 = vld [vmem:[%s5] sm:$0x1]
      %v1914 = vlaneseq
      %v1915 = vshrl.u32 %v1914, 7
      %v1916 = vsub.s32 0, %v1915
      %v1917 = vrot.slane %v1912, %v1916
      %v1919 = vadd.f32 %v1784, %v1917
      %v1920 = vadd.f32 %v1785, %v1917
      %v1921 = vadd.f32 %v1786, %v1917
      %v1922 = vadd.f32 %v1787, %v1917
      %v1923 = vadd.f32 %v1788, %v1917
      %v1924 = vadd.f32 %v1789, %v1917
      %v1925 = vadd.f32 %v1790, %v1917
      %v1926 = vadd.f32 %v1791, %v1917
      %v1927 = vadd.f32 %v1792, %v1917
      %v1928 = vadd.f32 %v1793, %v1917
      %v1929 = vadd.f32 %v1794, %v1917
      %v1930 = vadd.f32 %v1795, %v1917
      %v1931 = vadd.f32 %v1796, %v1917
      %v1932 = vadd.f32 %v1797, %v1917
      %v1933 = vadd.f32 %v1798, %v1917
      %v1934 = vadd.f32 %v1799, %v1917
      %v1935 = vadd.f32 %v1800, %v1917
      %v1936 = vadd.f32 %v1801, %v1917
      %v1937 = vadd.f32 %v1802, %v1917
      %v1938 = vadd.f32 %v1803, %v1917
      %v1939 = vadd.f32 %v1804, %v1917
      %v1940 = vadd.f32 %v1805, %v1917
      %v1941 = vadd.f32 %v1806, %v1917
      %v1942 = vadd.f32 %v1807, %v1917
      %v1943 = vadd.f32 %v1808, %v1917
      %v1944 = vadd.f32 %v1809, %v1917
      %v1945 = vadd.f32 %v1810, %v1917
      %v1946 = vadd.f32 %v1811, %v1917
      %v1947 = vadd.f32 %v1812, %v1917
      %v1948 = vadd.f32 %v1813, %v1917
      %v1949 = vadd.f32 %v1814, %v1917
      %v1950 = vadd.f32 %v1815, %v1917
      %v1951 = vadd.f32 %v1816, %v1917
      %v1952 = vadd.f32 %v1817, %v1917
      %v1953 = vadd.f32 %v1818, %v1917
      %v1954 = vadd.f32 %v1819, %v1917
      %v1955 = vadd.f32 %v1820, %v1917
      %v1956 = vadd.f32 %v1821, %v1917
      %v1957 = vadd.f32 %v1822, %v1917
      %v1958 = vadd.f32 %v1823, %v1917
      %v1959 = vadd.f32 %v1824, %v1917
      %v1960 = vadd.f32 %v1825, %v1917
      %v1961 = vadd.f32 %v1826, %v1917
      %v1962 = vadd.f32 %v1827, %v1917
      %v1963 = vadd.f32 %v1828, %v1917
      %v1964 = vadd.f32 %v1829, %v1917
      %v1965 = vadd.f32 %v1830, %v1917
      %v1966 = vadd.f32 %v1831, %v1917
      %v1967 = vadd.f32 %v1832, %v1917
      %v1968 = vadd.f32 %v1833, %v1917
      %v1969 = vadd.f32 %v1834, %v1917
      %v1970 = vadd.f32 %v1835, %v1917
      %v1971 = vadd.f32 %v1836, %v1917
      %v1972 = vadd.f32 %v1837, %v1917
      %v1973 = vadd.f32 %v1838, %v1917
      %v1974 = vadd.f32 %v1839, %v1917
      %v1975 = vadd.f32 %v1840, %v1917
      %v1976 = vadd.f32 %v1841, %v1917
      %v1977 = vadd.f32 %v1842, %v1917
      %v1978 = vadd.f32 %v1843, %v1917
      %v1979 = vadd.f32 %v1844, %v1917
      %v1980 = vadd.f32 %v1845, %v1917
      %v1981 = vadd.f32 %v1846, %v1917
      %v1982 = vadd.f32 %v1847, %v1917
      %v1983 = vadd.f32 %v1848, %v1917
      %v1984 = vadd.f32 %v1849, %v1917
      %v1985 = vadd.f32 %v1850, %v1917
      %v1986 = vadd.f32 %v1851, %v1917
      %v1987 = vadd.f32 %v1852, %v1917
      %v1988 = vadd.f32 %v1853, %v1917
      %v1989 = vadd.f32 %v1854, %v1917
      %v1990 = vadd.f32 %v1855, %v1917
      %v1991 = vadd.f32 %v1856, %v1917
      %v1992 = vadd.f32 %v1857, %v1917
      %v1993 = vadd.f32 %v1858, %v1917
      %v1994 = vadd.f32 %v1859, %v1917
      %v1995 = vadd.f32 %v1860, %v1917
      %v1996 = vadd.f32 %v1861, %v1917
      %v1997 = vadd.f32 %v1862, %v1917
      %v1998 = vadd.f32 %v1863, %v1917
      %v1999 = vadd.f32 %v1864, %v1917
      %v2000 = vadd.f32 %v1865, %v1917
      %v2001 = vadd.f32 %v1866, %v1917
      %v2002 = vadd.f32 %v1867, %v1917
      %v2003 = vadd.f32 %v1868, %v1917
      %v2004 = vadd.f32 %v1869, %v1917
      %v2005 = vadd.f32 %v1870, %v1917
      %v2006 = vadd.f32 %v1871, %v1917
      %v2007 = vadd.f32 %v1872, %v1917
      %v2008 = vadd.f32 %v1873, %v1917
      %v2009 = vadd.f32 %v1874, %v1917
      %v2010 = vadd.f32 %v1875, %v1917
      %v2011 = vadd.f32 %v1876, %v1917
      %v2012 = vadd.f32 %v1877, %v1917
      %v2013 = vadd.f32 %v1878, %v1917
      %v2014 = vadd.f32 %v1879, %v1917
      %v2015 = vadd.f32 %v1880, %v1917
      %v2016 = vadd.f32 %v1881, %v1917
      %v2017 = vadd.f32 %v1882, %v1917
      %v2018 = vadd.f32 %v1883, %v1917
      %v2019 = vadd.f32 %v1884, %v1917
      %v2020 = vadd.f32 %v1885, %v1917
      %v2021 = vadd.f32 %v1886, %v1917
      %v2022 = vadd.f32 %v1887, %v1917
      %v2023 = vadd.f32 %v1888, %v1917
      %v2024 = vadd.f32 %v1889, %v1917
      %v2025 = vadd.f32 %v1890, %v1917
      %v2026 = vadd.f32 %v1891, %v1917
      %v2027 = vadd.f32 %v1892, %v1917
      %v2028 = vadd.f32 %v1893, %v1917
      %v2029 = vadd.f32 %v1894, %v1917
      %v2030 = vadd.f32 %v1895, %v1917
      %v2031 = vadd.f32 %v1896, %v1917
      %v2032 = vadd.f32 %v1897, %v1917
      %v2033 = vadd.f32 %v1898, %v1917
      %v2034 = vadd.f32 %v1899, %v1917
      %v2035 = vadd.f32 %v1900, %v1917
      %v2036 = vadd.f32 %v1901, %v1917
      %v2037 = vadd.f32 %v1902, %v1917
      %v2038 = vadd.f32 %v1903, %v1917
      %v2039 = vadd.f32 %v1904, %v1917
      %v2040 = vadd.f32 %v1905, %v1917
      %v2041 = vadd.f32 %v1906, %v1917
      %v2042 = vadd.f32 %v1907, %v1917
      %v2043 = vadd.f32 %v1908, %v1917
      %v2044 = vadd.f32 %v1909, %v1917
      %v2045 = vadd.f32 %v1910, %v1917
      %v2046 = vadd.f32 %v1911, %v1917
      %v2047 = vmax.f32 %v1919, 0.0
      %v2048 = vmax.f32 %v1920, 0.0
      %v2049 = vmax.f32 %v1921, 0.0
      %v2050 = vmax.f32 %v1922, 0.0
      %v2051 = vmax.f32 %v1923, 0.0
      %v2052 = vmax.f32 %v1924, 0.0
      %v2053 = vmax.f32 %v1925, 0.0
      %v2054 = vmax.f32 %v1926, 0.0
      %v2055 = vmax.f32 %v1927, 0.0
      %v2056 = vmax.f32 %v1928, 0.0
      %v2057 = vmax.f32 %v1929, 0.0
      %v2058 = vmax.f32 %v1930, 0.0
      %v2059 = vmax.f32 %v1931, 0.0
      %v2060 = vmax.f32 %v1932, 0.0
      %v2061 = vmax.f32 %v1933, 0.0
      %v2062 = vmax.f32 %v1934, 0.0
      %v2063 = vmax.f32 %v1935, 0.0
      %v2064 = vmax.f32 %v1936, 0.0
      %v2065 = vmax.f32 %v1937, 0.0
      %v2066 = vmax.f32 %v1938, 0.0
      %v2067 = vmax.f32 %v1939, 0.0
      %v2068 = vmax.f32 %v1940, 0.0
      %v2069 = vmax.f32 %v1941, 0.0
      %v2070 = vmax.f32 %v1942, 0.0
      %v2071 = vmax.f32 %v1943, 0.0
      %v2072 = vmax.f32 %v1944, 0.0
      %v2073 = vmax.f32 %v1945, 0.0
      %v2074 = vmax.f32 %v1946, 0.0
      %v2075 = vmax.f32 %v1947, 0.0
      %v2076 = vmax.f32 %v1948, 0.0
      %v2077 = vmax.f32 %v1949, 0.0
      %v2078 = vmax.f32 %v1950, 0.0
      %v2079 = vmax.f32 %v1951, 0.0
      %v2080 = vmax.f32 %v1952, 0.0
      %v2081 = vmax.f32 %v1953, 0.0
      %v2082 = vmax.f32 %v1954, 0.0
      %v2083 = vmax.f32 %v1955, 0.0
      %v2084 = vmax.f32 %v1956, 0.0
      %v2085 = vmax.f32 %v1957, 0.0
      %v2086 = vmax.f32 %v1958, 0.0
      %v2087 = vmax.f32 %v1959, 0.0
      %v2088 = vmax.f32 %v1960, 0.0
      %v2089 = vmax.f32 %v1961, 0.0
      %v2090 = vmax.f32 %v1962, 0.0
      %v2091 = vmax.f32 %v1963, 0.0
      %v2092 = vmax.f32 %v1964, 0.0
      %v2093 = vmax.f32 %v1965, 0.0
      %v2094 = vmax.f32 %v1966, 0.0
      %v2095 = vmax.f32 %v1967, 0.0
      %v2096 = vmax.f32 %v1968, 0.0
      %v2097 = vmax.f32 %v1969, 0.0
      %v2098 = vmax.f32 %v1970, 0.0
      %v2099 = vmax.f32 %v1971, 0.0
      %v2100 = vmax.f32 %v1972, 0.0
      %v2101 = vmax.f32 %v1973, 0.0
      %v2102 = vmax.f32 %v1974, 0.0
      %v2103 = vmax.f32 %v1975, 0.0
      %v2104 = vmax.f32 %v1976, 0.0
      %v2105 = vmax.f32 %v1977, 0.0
      %v2106 = vmax.f32 %v1978, 0.0
      %v2107 = vmax.f32 %v1979, 0.0
      %v2108 = vmax.f32 %v1980, 0.0
      %v2109 = vmax.f32 %v1981, 0.0
      %v2110 = vmax.f32 %v1982, 0.0
      %v2111 = vmax.f32 %v1983, 0.0
      %v2112 = vmax.f32 %v1984, 0.0
      %v2113 = vmax.f32 %v1985, 0.0
      %v2114 = vmax.f32 %v1986, 0.0
      %v2115 = vmax.f32 %v1987, 0.0
      %v2116 = vmax.f32 %v1988, 0.0
      %v2117 = vmax.f32 %v1989, 0.0
      %v2118 = vmax.f32 %v1990, 0.0
      %v2119 = vmax.f32 %v1991, 0.0
      %v2120 = vmax.f32 %v1992, 0.0
      %v2121 = vmax.f32 %v1993, 0.0
      %v2122 = vmax.f32 %v1994, 0.0
      %v2123 = vmax.f32 %v1995, 0.0
      %v2124 = vmax.f32 %v1996, 0.0
      %v2125 = vmax.f32 %v1997, 0.0
      %v2126 = vmax.f32 %v1998, 0.0
      %v2127 = vmax.f32 %v1999, 0.0
      %v2128 = vmax.f32 %v2000, 0.0
      %v2129 = vmax.f32 %v2001, 0.0
      %v2130 = vmax.f32 %v2002, 0.0
      %v2131 = vmax.f32 %v2003, 0.0
      %v2132 = vmax.f32 %v2004, 0.0
      %v2133 = vmax.f32 %v2005, 0.0
      %v2134 = vmax.f32 %v2006, 0.0
      %v2135 = vmax.f32 %v2007, 0.0
      %v2136 = vmax.f32 %v2008, 0.0
      %v2137 = vmax.f32 %v2009, 0.0
      %v2138 = vmax.f32 %v2010, 0.0
      %v2139 = vmax.f32 %v2011, 0.0
      %v2140 = vmax.f32 %v2012, 0.0
      %v2141 = vmax.f32 %v2013, 0.0
      %v2142 = vmax.f32 %v2014, 0.0
      %v2143 = vmax.f32 %v2015, 0.0
      %v2144 = vmax.f32 %v2016, 0.0
      %v2145 = vmax.f32 %v2017, 0.0
      %v2146 = vmax.f32 %v2018, 0.0
      %v2147 = vmax.f32 %v2019, 0.0
      %v2148 = vmax.f32 %v2020, 0.0
      %v2149 = vmax.f32 %v2021, 0.0
      %v2150 = vmax.f32 %v2022, 0.0
      %v2151 = vmax.f32 %v2023, 0.0
      %v2152 = vmax.f32 %v2024, 0.0
      %v2153 = vmax.f32 %v2025, 0.0
      %v2154 = vmax.f32 %v2026, 0.0
      %v2155 = vmax.f32 %v2027, 0.0
      %v2156 = vmax.f32 %v2028, 0.0
      %v2157 = vmax.f32 %v2029, 0.0
      %v2158 = vmax.f32 %v2030, 0.0
      %v2159 = vmax.f32 %v2031, 0.0
      %v2160 = vmax.f32 %v2032, 0.0
      %v2161 = vmax.f32 %v2033, 0.0
      %v2162 = vmax.f32 %v2034, 0.0
      %v2163 = vmax.f32 %v2035, 0.0
      %v2164 = vmax.f32 %v2036, 0.0
      %v2165 = vmax.f32 %v2037, 0.0
      %v2166 = vmax.f32 %v2038, 0.0
      %v2167 = vmax.f32 %v2039, 0.0
      %v2168 = vmax.f32 %v2040, 0.0
      %v2169 = vmax.f32 %v2041, 0.0
      %v2170 = vmax.f32 %v2042, 0.0
      %v2171 = vmax.f32 %v2043, 0.0
      %v2172 = vmax.f32 %v2044, 0.0
      %v2173 = vmax.f32 %v2045, 0.0
      %v2174 = vmax.f32 %v2046, 0.0
      %v2175 = vld [vmem:[%s6] sm:$0x1]
      %v2177 = vlaneseq
      %v2178 = vshrl.u32 %v2177, 7
      %v2179 = vsub.s32 0, %v2178
      %v2180 = vrot.slane %v2175, %v2179
      %v2182 = vmul.f32 %v2047, %v2180
      %v2183 = vmul.f32 %v2048, %v2180
      %v2184 = vmul.f32 %v2049, %v2180
      %v2185 = vmul.f32 %v2050, %v2180
      %v2186 = vmul.f32 %v2051, %v2180
      %v2187 = vmul.f32 %v2052, %v2180
      %v2188 = vmul.f32 %v2053, %v2180
      %v2189 = vmul.f32 %v2054, %v2180
      %v2190 = vmul.f32 %v2055, %v2180
      %v2191 = vmul.f32 %v2056, %v2180
      %v2192 = vmul.f32 %v2057, %v2180
      %v2193 = vmul.f32 %v2058, %v2180
      %v2194 = vmul.f32 %v2059, %v2180
      %v2195 = vmul.f32 %v2060, %v2180
      %v2196 = vmul.f32 %v2061, %v2180
      %v2197 = vmul.f32 %v2062, %v2180
      %v2198 = vmul.f32 %v2063, %v2180
      %v2199 = vmul.f32 %v2064, %v2180
      %v2200 = vmul.f32 %v2065, %v2180
      %v2201 = vmul.f32 %v2066, %v2180
      %v2202 = vmul.f32 %v2067, %v2180
      %v2203 = vmul.f32 %v2068, %v2180
      %v2204 = vmul.f32 %v2069, %v2180
      %v2205 = vmul.f32 %v2070, %v2180
      %v2206 = vmul.f32 %v2071, %v2180
      %v2207 = vmul.f32 %v2072, %v2180
      %v2208 = vmul.f32 %v2073, %v2180
      %v2209 = vmul.f32 %v2074, %v2180
      %v2210 = vmul.f32 %v2075, %v2180
      %v2211 = vmul.f32 %v2076, %v2180
      %v2212 = vmul.f32 %v2077, %v2180
      %v2213 = vmul.f32 %v2078, %v2180
      %v2214 = vmul.f32 %v2079, %v2180
      %v2215 = vmul.f32 %v2080, %v2180
      %v2216 = vmul.f32 %v2081, %v2180
      %v2217 = vmul.f32 %v2082, %v2180
      %v2218 = vmul.f32 %v2083, %v2180
      %v2219 = vmul.f32 %v2084, %v2180
      %v2220 = vmul.f32 %v2085, %v2180
      %v2221 = vmul.f32 %v2086, %v2180
      %v2222 = vmul.f32 %v2087, %v2180
      %v2223 = vmul.f32 %v2088, %v2180
      %v2224 = vmul.f32 %v2089, %v2180
      %v2225 = vmul.f32 %v2090, %v2180
      %v2226 = vmul.f32 %v2091, %v2180
      %v2227 = vmul.f32 %v2092, %v2180
      %v2228 = vmul.f32 %v2093, %v2180
      %v2229 = vmul.f32 %v2094, %v2180
      %v2230 = vmul.f32 %v2095, %v2180
      %v2231 = vmul.f32 %v2096, %v2180
      %v2232 = vmul.f32 %v2097, %v2180
      %v2233 = vmul.f32 %v2098, %v2180
      %v2234 = vmul.f32 %v2099, %v2180
      %v2235 = vmul.f32 %v2100, %v2180
      %v2236 = vmul.f32 %v2101, %v2180
      %v2237 = vmul.f32 %v2102, %v2180
      %v2238 = vmul.f32 %v2103, %v2180
      %v2239 = vmul.f32 %v2104, %v2180
      %v2240 = vmul.f32 %v2105, %v2180
      %v2241 = vmul.f32 %v2106, %v2180
      %v2242 = vmul.f32 %v2107, %v2180
      %v2243 = vmul.f32 %v2108, %v2180
      %v2244 = vmul.f32 %v2109, %v2180
      %v2245 = vmul.f32 %v2110, %v2180
      %v2246 = vmul.f32 %v2111, %v2180
      %v2247 = vmul.f32 %v2112, %v2180
      %v2248 = vmul.f32 %v2113, %v2180
      %v2249 = vmul.f32 %v2114, %v2180
      %v2250 = vmul.f32 %v2115, %v2180
      %v2251 = vmul.f32 %v2116, %v2180
      %v2252 = vmul.f32 %v2117, %v2180
      %v2253 = vmul.f32 %v2118, %v2180
      %v2254 = vmul.f32 %v2119, %v2180
      %v2255 = vmul.f32 %v2120, %v2180
      %v2256 = vmul.f32 %v2121, %v2180
      %v2257 = vmul.f32 %v2122, %v2180
      %v2258 = vmul.f32 %v2123, %v2180
      %v2259 = vmul.f32 %v2124, %v2180
      %v2260 = vmul.f32 %v2125, %v2180
      %v2261 = vmul.f32 %v2126, %v2180
      %v2262 = vmul.f32 %v2127, %v2180
      %v2263 = vmul.f32 %v2128, %v2180
      %v2264 = vmul.f32 %v2129, %v2180
      %v2265 = vmul.f32 %v2130, %v2180
      %v2266 = vmul.f32 %v2131, %v2180
      %v2267 = vmul.f32 %v2132, %v2180
      %v2268 = vmul.f32 %v2133, %v2180
      %v2269 = vmul.f32 %v2134, %v2180
      %v2270 = vmul.f32 %v2135, %v2180
      %v2271 = vmul.f32 %v2136, %v2180
      %v2272 = vmul.f32 %v2137, %v2180
      %v2273 = vmul.f32 %v2138, %v2180
      %v2274 = vmul.f32 %v2139, %v2180
      %v2275 = vmul.f32 %v2140, %v2180
      %v2276 = vmul.f32 %v2141, %v2180
      %v2277 = vmul.f32 %v2142, %v2180
      %v2278 = vmul.f32 %v2143, %v2180
      %v2279 = vmul.f32 %v2144, %v2180
      %v2280 = vmul.f32 %v2145, %v2180
      %v2281 = vmul.f32 %v2146, %v2180
      %v2282 = vmul.f32 %v2147, %v2180
      %v2283 = vmul.f32 %v2148, %v2180
      %v2284 = vmul.f32 %v2149, %v2180
      %v2285 = vmul.f32 %v2150, %v2180
      %v2286 = vmul.f32 %v2151, %v2180
      %v2287 = vmul.f32 %v2152, %v2180
      %v2288 = vmul.f32 %v2153, %v2180
      %v2289 = vmul.f32 %v2154, %v2180
      %v2290 = vmul.f32 %v2155, %v2180
      %v2291 = vmul.f32 %v2156, %v2180
      %v2292 = vmul.f32 %v2157, %v2180
      %v2293 = vmul.f32 %v2158, %v2180
      %v2294 = vmul.f32 %v2159, %v2180
      %v2295 = vmul.f32 %v2160, %v2180
      %v2296 = vmul.f32 %v2161, %v2180
      %v2297 = vmul.f32 %v2162, %v2180
      %v2298 = vmul.f32 %v2163, %v2180
      %v2299 = vmul.f32 %v2164, %v2180
      %v2300 = vmul.f32 %v2165, %v2180
      %v2301 = vmul.f32 %v2166, %v2180
      %v2302 = vmul.f32 %v2167, %v2180
      %v2303 = vmul.f32 %v2168, %v2180
      %v2304 = vmul.f32 %v2169, %v2180
      %v2305 = vmul.f32 %v2170, %v2180
      %v2306 = vmul.f32 %v2171, %v2180
      %v2307 = vmul.f32 %v2172, %v2180
      %v2308 = vmul.f32 %v2173, %v2180
      %v2309 = vmul.f32 %v2174, %v2180
      %2310 = vadd.xlane.f32.xlu0 %v2182
      %v2311 = vpop.xlane.xlu0 %2310
      %2312 = vadd.xlane.f32.xlu0 %v2183
      %v2313 = vpop.xlane.xlu0 %2312
      %2314 = vadd.xlane.f32.xlu0 %v2184
      %v2315 = vpop.xlane.xlu0 %2314
      %2316 = vadd.xlane.f32.xlu0 %v2185
      %v2317 = vpop.xlane.xlu0 %2316
      %2318 = vadd.xlane.f32.xlu0 %v2186
      %v2319 = vpop.xlane.xlu0 %2318
      %2320 = vadd.xlane.f32.xlu0 %v2187
      %v2321 = vpop.xlane.xlu0 %2320
      %2322 = vadd.xlane.f32.xlu0 %v2188
      %v2323 = vpop.xlane.xlu0 %2322
      %2324 = vadd.xlane.f32.xlu0 %v2189
      %v2325 = vpop.xlane.xlu0 %2324
      %2326 = vadd.xlane.f32.xlu0 %v2190
      %v2327 = vpop.xlane.xlu0 %2326
      %2328 = vadd.xlane.f32.xlu0 %v2191
      %v2329 = vpop.xlane.xlu0 %2328
      %2330 = vadd.xlane.f32.xlu0 %v2192
      %v2331 = vpop.xlane.xlu0 %2330
      %2332 = vadd.xlane.f32.xlu0 %v2193
      %v2333 = vpop.xlane.xlu0 %2332
      %2334 = vadd.xlane.f32.xlu0 %v2194
      %v2335 = vpop.xlane.xlu0 %2334
      %2336 = vadd.xlane.f32.xlu0 %v2195
      %v2337 = vpop.xlane.xlu0 %2336
      %2338 = vadd.xlane.f32.xlu0 %v2196
      %v2339 = vpop.xlane.xlu0 %2338
      %2340 = vadd.xlane.f32.xlu0 %v2197
      %v2341 = vpop.xlane.xlu0 %2340
      %2342 = vadd.xlane.f32.xlu0 %v2198
      %v2343 = vpop.xlane.xlu0 %2342
      %2344 = vadd.xlane.f32.xlu0 %v2199
      %v2345 = vpop.xlane.xlu0 %2344
      %2346 = vadd.xlane.f32.xlu0 %v2200
      %v2347 = vpop.xlane.xlu0 %2346
      %2348 = vadd.xlane.f32.xlu0 %v2201
      %v2349 = vpop.xlane.xlu0 %2348
      %2350 = vadd.xlane.f32.xlu0 %v2202
      %v2351 = vpop.xlane.xlu0 %2350
      %2352 = vadd.xlane.f32.xlu0 %v2203
      %v2353 = vpop.xlane.xlu0 %2352
      %2354 = vadd.xlane.f32.xlu0 %v2204
      %v2355 = vpop.xlane.xlu0 %2354
      %2356 = vadd.xlane.f32.xlu0 %v2205
      %v2357 = vpop.xlane.xlu0 %2356
      %2358 = vadd.xlane.f32.xlu0 %v2206
      %v2359 = vpop.xlane.xlu0 %2358
      %2360 = vadd.xlane.f32.xlu0 %v2207
      %v2361 = vpop.xlane.xlu0 %2360
      %2362 = vadd.xlane.f32.xlu0 %v2208
      %v2363 = vpop.xlane.xlu0 %2362
      %2364 = vadd.xlane.f32.xlu0 %v2209
      %v2365 = vpop.xlane.xlu0 %2364
      %2366 = vadd.xlane.f32.xlu0 %v2210
      %v2367 = vpop.xlane.xlu0 %2366
      %2368 = vadd.xlane.f32.xlu0 %v2211
      %v2369 = vpop.xlane.xlu0 %2368
      %2370 = vadd.xlane.f32.xlu0 %v2212
      %v2371 = vpop.xlane.xlu0 %2370
      %2372 = vadd.xlane.f32.xlu0 %v2213
      %v2373 = vpop.xlane.xlu0 %2372
      %2374 = vadd.xlane.f32.xlu0 %v2214
      %v2375 = vpop.xlane.xlu0 %2374
      %2376 = vadd.xlane.f32.xlu0 %v2215
      %v2377 = vpop.xlane.xlu0 %2376
      %2378 = vadd.xlane.f32.xlu0 %v2216
      %v2379 = vpop.xlane.xlu0 %2378
      %2380 = vadd.xlane.f32.xlu0 %v2217
      %v2381 = vpop.xlane.xlu0 %2380
      %2382 = vadd.xlane.f32.xlu0 %v2218
      %v2383 = vpop.xlane.xlu0 %2382
      %2384 = vadd.xlane.f32.xlu0 %v2219
      %v2385 = vpop.xlane.xlu0 %2384
      %2386 = vadd.xlane.f32.xlu0 %v2220
      %v2387 = vpop.xlane.xlu0 %2386
      %2388 = vadd.xlane.f32.xlu0 %v2221
      %v2389 = vpop.xlane.xlu0 %2388
      %2390 = vadd.xlane.f32.xlu0 %v2222
      %v2391 = vpop.xlane.xlu0 %2390
      %2392 = vadd.xlane.f32.xlu0 %v2223
      %v2393 = vpop.xlane.xlu0 %2392
      %2394 = vadd.xlane.f32.xlu0 %v2224
      %v2395 = vpop.xlane.xlu0 %2394
      %2396 = vadd.xlane.f32.xlu0 %v2225
      %v2397 = vpop.xlane.xlu0 %2396
      %2398 = vadd.xlane.f32.xlu0 %v2226
      %v2399 = vpop.xlane.xlu0 %2398
      %2400 = vadd.xlane.f32.xlu0 %v2227
      %v2401 = vpop.xlane.xlu0 %2400
      %2402 = vadd.xlane.f32.xlu0 %v2228
      %v2403 = vpop.xlane.xlu0 %2402
      %2404 = vadd.xlane.f32.xlu0 %v2229
      %v2405 = vpop.xlane.xlu0 %2404
      %2406 = vadd.xlane.f32.xlu0 %v2230
      %v2407 = vpop.xlane.xlu0 %2406
      %2408 = vadd.xlane.f32.xlu0 %v2231
      %v2409 = vpop.xlane.xlu0 %2408
      %2410 = vadd.xlane.f32.xlu0 %v2232
      %v2411 = vpop.xlane.xlu0 %2410
      %2412 = vadd.xlane.f32.xlu0 %v2233
      %v2413 = vpop.xlane.xlu0 %2412
      %2414 = vadd.xlane.f32.xlu0 %v2234
      %v2415 = vpop.xlane.xlu0 %2414
      %2416 = vadd.xlane.f32.xlu0 %v2235
      %v2417 = vpop.xlane.xlu0 %2416
      %2418 = vadd.xlane.f32.xlu0 %v2236
      %v2419 = vpop.xlane.xlu0 %2418
      %2420 = vadd.xlane.f32.xlu0 %v2237
      %v2421 = vpop.xlane.xlu0 %2420
      %2422 = vadd.xlane.f32.xlu0 %v2238
      %v2423 = vpop.xlane.xlu0 %2422
      %2424 = vadd.xlane.f32.xlu0 %v2239
      %v2425 = vpop.xlane.xlu0 %2424
      %2426 = vadd.xlane.f32.xlu0 %v2240
      %v2427 = vpop.xlane.xlu0 %2426
      %2428 = vadd.xlane.f32.xlu0 %v2241
      %v2429 = vpop.xlane.xlu0 %2428
      %2430 = vadd.xlane.f32.xlu0 %v2242
      %v2431 = vpop.xlane.xlu0 %2430
      %2432 = vadd.xlane.f32.xlu0 %v2243
      %v2433 = vpop.xlane.xlu0 %2432
      %2434 = vadd.xlane.f32.xlu0 %v2244
      %v2435 = vpop.xlane.xlu0 %2434
      %2436 = vadd.xlane.f32.xlu0 %v2245
      %v2437 = vpop.xlane.xlu0 %2436
      %2438 = vadd.xlane.f32.xlu0 %v2246
      %v2439 = vpop.xlane.xlu0 %2438
      %2440 = vadd.xlane.f32.xlu0 %v2247
      %v2441 = vpop.xlane.xlu0 %2440
      %2442 = vadd.xlane.f32.xlu0 %v2248
      %v2443 = vpop.xlane.xlu0 %2442
      %2444 = vadd.xlane.f32.xlu0 %v2249
      %v2445 = vpop.xlane.xlu0 %2444
      %2446 = vadd.xlane.f32.xlu0 %v2250
      %v2447 = vpop.xlane.xlu0 %2446
      %2448 = vadd.xlane.f32.xlu0 %v2251
      %v2449 = vpop.xlane.xlu0 %2448
      %2450 = vadd.xlane.f32.xlu0 %v2252
      %v2451 = vpop.xlane.xlu0 %2450
      %2452 = vadd.xlane.f32.xlu0 %v2253
      %v2453 = vpop.xlane.xlu0 %2452
      %2454 = vadd.xlane.f32.xlu0 %v2254
      %v2455 = vpop.xlane.xlu0 %2454
      %2456 = vadd.xlane.f32.xlu0 %v2255
      %v2457 = vpop.xlane.xlu0 %2456
      %2458 = vadd.xlane.f32.xlu0 %v2256
      %v2459 = vpop.xlane.xlu0 %2458
      %2460 = vadd.xlane.f32.xlu0 %v2257
      %v2461 = vpop.xlane.xlu0 %2460
      %2462 = vadd.xlane.f32.xlu0 %v2258
      %v2463 = vpop.xlane.xlu0 %2462
      %2464 = vadd.xlane.f32.xlu0 %v2259
      %v2465 = vpop.xlane.xlu0 %2464
      %2466 = vadd.xlane.f32.xlu0 %v2260
      %v2467 = vpop.xlane.xlu0 %2466
      %2468 = vadd.xlane.f32.xlu0 %v2261
      %v2469 = vpop.xlane.xlu0 %2468
      %2470 = vadd.xlane.f32.xlu0 %v2262
      %v2471 = vpop.xlane.xlu0 %2470
      %2472 = vadd.xlane.f32.xlu0 %v2263
      %v2473 = vpop.xlane.xlu0 %2472
      %2474 = vadd.xlane.f32.xlu0 %v2264
      %v2475 = vpop.xlane.xlu0 %2474
      %2476 = vadd.xlane.f32.xlu0 %v2265
      %v2477 = vpop.xlane.xlu0 %2476
      %2478 = vadd.xlane.f32.xlu0 %v2266
      %v2479 = vpop.xlane.xlu0 %2478
      %2480 = vadd.xlane.f32.xlu0 %v2267
      %v2481 = vpop.xlane.xlu0 %2480
      %2482 = vadd.xlane.f32.xlu0 %v2268
      %v2483 = vpop.xlane.xlu0 %2482
      %2484 = vadd.xlane.f32.xlu0 %v2269
      %v2485 = vpop.xlane.xlu0 %2484
      %2486 = vadd.xlane.f32.xlu0 %v2270
      %v2487 = vpop.xlane.xlu0 %2486
      %2488 = vadd.xlane.f32.xlu0 %v2271
      %v2489 = vpop.xlane.xlu0 %2488
      %2490 = vadd.xlane.f32.xlu0 %v2272
      %v2491 = vpop.xlane.xlu0 %2490
      %2492 = vadd.xlane.f32.xlu0 %v2273
      %v2493 = vpop.xlane.xlu0 %2492
      %2494 = vadd.xlane.f32.xlu0 %v2274
      %v2495 = vpop.xlane.xlu0 %2494
      %2496 = vadd.xlane.f32.xlu0 %v2275
      %v2497 = vpop.xlane.xlu0 %2496
      %2498 = vadd.xlane.f32.xlu0 %v2276
      %v2499 = vpop.xlane.xlu0 %2498
      %2500 = vadd.xlane.f32.xlu0 %v2277
      %v2501 = vpop.xlane.xlu0 %2500
      %2502 = vadd.xlane.f32.xlu0 %v2278
      %v2503 = vpop.xlane.xlu0 %2502
      %2504 = vadd.xlane.f32.xlu0 %v2279
      %v2505 = vpop.xlane.xlu0 %2504
      %2506 = vadd.xlane.f32.xlu0 %v2280
      %v2507 = vpop.xlane.xlu0 %2506
      %2508 = vadd.xlane.f32.xlu0 %v2281
      %v2509 = vpop.xlane.xlu0 %2508
      %2510 = vadd.xlane.f32.xlu0 %v2282
      %v2511 = vpop.xlane.xlu0 %2510
      %2512 = vadd.xlane.f32.xlu0 %v2283
      %v2513 = vpop.xlane.xlu0 %2512
      %2514 = vadd.xlane.f32.xlu0 %v2284
      %v2515 = vpop.xlane.xlu0 %2514
      %2516 = vadd.xlane.f32.xlu0 %v2285
      %v2517 = vpop.xlane.xlu0 %2516
      %2518 = vadd.xlane.f32.xlu0 %v2286
      %v2519 = vpop.xlane.xlu0 %2518
      %2520 = vadd.xlane.f32.xlu0 %v2287
      %v2521 = vpop.xlane.xlu0 %2520
      %2522 = vadd.xlane.f32.xlu0 %v2288
      %v2523 = vpop.xlane.xlu0 %2522
      %2524 = vadd.xlane.f32.xlu0 %v2289
      %v2525 = vpop.xlane.xlu0 %2524
      %2526 = vadd.xlane.f32.xlu0 %v2290
      %v2527 = vpop.xlane.xlu0 %2526
      %2528 = vadd.xlane.f32.xlu0 %v2291
      %v2529 = vpop.xlane.xlu0 %2528
      %2530 = vadd.xlane.f32.xlu0 %v2292
      %v2531 = vpop.xlane.xlu0 %2530
      %2532 = vadd.xlane.f32.xlu0 %v2293
      %v2533 = vpop.xlane.xlu0 %2532
      %2534 = vadd.xlane.f32.xlu0 %v2294
      %v2535 = vpop.xlane.xlu0 %2534
      %2536 = vadd.xlane.f32.xlu0 %v2295
      %v2537 = vpop.xlane.xlu0 %2536
      %2538 = vadd.xlane.f32.xlu0 %v2296
      %v2539 = vpop.xlane.xlu0 %2538
      %2540 = vadd.xlane.f32.xlu0 %v2297
      %v2541 = vpop.xlane.xlu0 %2540
      %2542 = vadd.xlane.f32.xlu0 %v2298
      %v2543 = vpop.xlane.xlu0 %2542
      %2544 = vadd.xlane.f32.xlu0 %v2299
      %v2545 = vpop.xlane.xlu0 %2544
      %2546 = vadd.xlane.f32.xlu0 %v2300
      %v2547 = vpop.xlane.xlu0 %2546
      %2548 = vadd.xlane.f32.xlu0 %v2301
      %v2549 = vpop.xlane.xlu0 %2548
      %2550 = vadd.xlane.f32.xlu0 %v2302
      %v2551 = vpop.xlane.xlu0 %2550
      %2552 = vadd.xlane.f32.xlu0 %v2303
      %v2553 = vpop.xlane.xlu0 %2552
      %2554 = vadd.xlane.f32.xlu0 %v2304
      %v2555 = vpop.xlane.xlu0 %2554
      %2556 = vadd.xlane.f32.xlu0 %v2305
      %v2557 = vpop.xlane.xlu0 %2556
      %2558 = vadd.xlane.f32.xlu0 %v2306
      %v2559 = vpop.xlane.xlu0 %2558
      %2560 = vadd.xlane.f32.xlu0 %v2307
      %v2561 = vpop.xlane.xlu0 %2560
      %2562 = vadd.xlane.f32.xlu0 %v2308
      %v2563 = vpop.xlane.xlu0 %2562
      %2564 = vadd.xlane.f32.xlu0 %v2309
      %v2565 = vpop.xlane.xlu0 %2564
      %v2566 = vlaneseq
      %v2567 = vand.u32 %v2566, 127
      %vm2568 = vcmp.lt.s32.totalorder %v2567, 8
      %v2697 = vlaneseq
      %v2698 = vshrl.u32 %v2697, 7
      %v2699 = vsub.s32 %v2567, %v2698
      %v2700 = vrot.slane %v2311, %v2699
      %v2701 = vadd.s32 %v2567, 4294967288
      %v2702 = vlaneseq
      %v2703 = vshrl.u32 %v2702, 7
      %v2704 = vsub.s32 %v2701, %v2703
      %v2705 = vrot.slane %v2313, %v2704
      %vm2706 = vcmask 130112
      %v2707 = vsel %vm2706, %v2705, %v2700
      %v2708 = vadd.s32 %v2567, 4294967280
      %v2709 = vlaneseq
      %v2710 = vshrl.u32 %v2709, 7
      %v2711 = vsub.s32 %v2708, %v2710
      %v2712 = vrot.slane %v2315, %v2711
      %vm2713 = vcmask 195712
      %v2714 = vsel %vm2713, %v2712, %v2707
      %v2715 = vadd.s32 %v2567, 4294967272
      %v2716 = vlaneseq
      %v2717 = vshrl.u32 %v2716, 7
      %v2718 = vsub.s32 %v2715, %v2717
      %v2719 = vrot.slane %v2317, %v2718
      %vm2720 = vcmask 261312
      %v2721 = vsel %vm2720, %v2719, %v2714
      %v2722 = vadd.s32 %v2567, 4294967264
      %v2723 = vlaneseq
      %v2724 = vshrl.u32 %v2723, 7
      %v2725 = vsub.s32 %v2722, %v2724
      %v2726 = vrot.slane %v2319, %v2725
      %vm2727 = vcmask 326912
      %v2728 = vsel %vm2727, %v2726, %v2721
      %v2729 = vadd.s32 %v2567, 4294967256
      %v2730 = vlaneseq
      %v2731 = vshrl.u32 %v2730, 7
      %v2732 = vsub.s32 %v2729, %v2731
      %v2733 = vrot.slane %v2321, %v2732
      %vm2734 = vcmask 392512
      %v2735 = vsel %vm2734, %v2733, %v2728
      %v2736 = vadd.s32 %v2567, 4294967248
      %v2737 = vlaneseq
      %v2738 = vshrl.u32 %v2737, 7
      %v2739 = vsub.s32 %v2736, %v2738
      %v2740 = vrot.slane %v2323, %v2739
      %vm2741 = vcmask 458112
      %v2742 = vsel %vm2741, %v2740, %v2735
      %v2743 = vadd.s32 %v2567, 4294967240
      %v2744 = vlaneseq
      %v2745 = vshrl.u32 %v2744, 7
      %v2746 = vsub.s32 %v2743, %v2745
      %v2747 = vrot.slane %v2325, %v2746
      %vm2748 = vcmask 523712
      %v2749 = vsel %vm2748, %v2747, %v2742
      %v2750 = vadd.s32 %v2567, 4294967232
      %v2751 = vlaneseq
      %v2752 = vshrl.u32 %v2751, 7
      %v2753 = vsub.s32 %v2750, %v2752
      %v2754 = vrot.slane %v2327, %v2753
      %vm2755 = vcmask 589312
      %v2756 = vsel %vm2755, %v2754, %v2749
      %v2757 = vadd.s32 %v2567, 4294967224
      %v2758 = vlaneseq
      %v2759 = vshrl.u32 %v2758, 7
      %v2760 = vsub.s32 %v2757, %v2759
      %v2761 = vrot.slane %v2329, %v2760
      %vm2762 = vcmask 654912
      %v2763 = vsel %vm2762, %v2761, %v2756
      %v2764 = vadd.s32 %v2567, 4294967216
      %v2765 = vlaneseq
      %v2766 = vshrl.u32 %v2765, 7
      %v2767 = vsub.s32 %v2764, %v2766
      %v2768 = vrot.slane %v2331, %v2767
      %vm2769 = vcmask 720512
      %v2770 = vsel %vm2769, %v2768, %v2763
      %v2771 = vadd.s32 %v2567, 4294967208
      %v2772 = vlaneseq
      %v2773 = vshrl.u32 %v2772, 7
      %v2774 = vsub.s32 %v2771, %v2773
      %v2775 = vrot.slane %v2333, %v2774
      %vm2776 = vcmask 786112
      %v2777 = vsel %vm2776, %v2775, %v2770
      %v2778 = vadd.s32 %v2567, 4294967200
      %v2779 = vlaneseq
      %v2780 = vshrl.u32 %v2779, 7
      %v2781 = vsub.s32 %v2778, %v2780
      %v2782 = vrot.slane %v2335, %v2781
      %vm2783 = vcmask 851712
      %v2784 = vsel %vm2783, %v2782, %v2777
      %v2785 = vadd.s32 %v2567, 4294967192
      %v2786 = vlaneseq
      %v2787 = vshrl.u32 %v2786, 7
      %v2788 = vsub.s32 %v2785, %v2787
      %v2789 = vrot.slane %v2337, %v2788
      %vm2790 = vcmask 917312
      %v2791 = vsel %vm2790, %v2789, %v2784
      %v2792 = vadd.s32 %v2567, 4294967184
      %v2793 = vlaneseq
      %v2794 = vshrl.u32 %v2793, 7
      %v2795 = vsub.s32 %v2792, %v2794
      %v2796 = vrot.slane %v2339, %v2795
      %vm2797 = vcmask 982912
      %v2798 = vsel %vm2797, %v2796, %v2791
      %v2799 = vadd.s32 %v2567, 4294967176
      %v2800 = vlaneseq
      %v2801 = vshrl.u32 %v2800, 7
      %v2802 = vsub.s32 %v2799, %v2801
      %v2803 = vrot.slane %v2341, %v2802
      %vm2804 = vcmask 1048512
      %v2805 = vsel %vm2804, %v2803, %v2798
      %v2806 = vlaneseq
      %v2807 = vshrl.u32 %v2806, 7
      %v2808 = vsub.s32 %v2567, %v2807
      %v2809 = vrot.slane %v2343, %v2808
      %v2810 = vlaneseq
      %v2811 = vshrl.u32 %v2810, 7
      %v2812 = vsub.s32 %v2701, %v2811
      %v2813 = vrot.slane %v2345, %v2812
      %v2814 = vsel %vm2706, %v2813, %v2809
      %v2815 = vlaneseq
      %v2816 = vshrl.u32 %v2815, 7
      %v2817 = vsub.s32 %v2708, %v2816
      %v2818 = vrot.slane %v2347, %v2817
      %v2819 = vsel %vm2713, %v2818, %v2814
      %v2820 = vlaneseq
      %v2821 = vshrl.u32 %v2820, 7
      %v2822 = vsub.s32 %v2715, %v2821
      %v2823 = vrot.slane %v2349, %v2822
      %v2824 = vsel %vm2720, %v2823, %v2819
      %v2825 = vlaneseq
      %v2826 = vshrl.u32 %v2825, 7
      %v2827 = vsub.s32 %v2722, %v2826
      %v2828 = vrot.slane %v2351, %v2827
      %v2829 = vsel %vm2727, %v2828, %v2824
      %v2830 = vlaneseq
      %v2831 = vshrl.u32 %v2830, 7
      %v2832 = vsub.s32 %v2729, %v2831
      %v2833 = vrot.slane %v2353, %v2832
      %v2834 = vsel %vm2734, %v2833, %v2829
      %v2835 = vlaneseq
      %v2836 = vshrl.u32 %v2835, 7
      %v2837 = vsub.s32 %v2736, %v2836
      %v2838 = vrot.slane %v2355, %v2837
      %v2839 = vsel %vm2741, %v2838, %v2834
      %v2840 = vlaneseq
      %v2841 = vshrl.u32 %v2840, 7
      %v2842 = vsub.s32 %v2743, %v2841
      %v2843 = vrot.slane %v2357, %v2842
      %v2844 = vsel %vm2748, %v2843, %v2839
      %v2845 = vlaneseq
      %v2846 = vshrl.u32 %v2845, 7
      %v2847 = vsub.s32 %v2750, %v2846
      %v2848 = vrot.slane %v2359, %v2847
      %v2849 = vsel %vm2755, %v2848, %v2844
      %v2850 = vlaneseq
      %v2851 = vshrl.u32 %v2850, 7
      %v2852 = vsub.s32 %v2757, %v2851
      %v2853 = vrot.slane %v2361, %v2852
      %v2854 = vsel %vm2762, %v2853, %v2849
      %v2855 = vlaneseq
      %v2856 = vshrl.u32 %v2855, 7
      %v2857 = vsub.s32 %v2764, %v2856
      %v2858 = vrot.slane %v2363, %v2857
      %v2859 = vsel %vm2769, %v2858, %v2854
      %v2860 = vlaneseq
      %v2861 = vshrl.u32 %v2860, 7
      %v2862 = vsub.s32 %v2771, %v2861
      %v2863 = vrot.slane %v2365, %v2862
      %v2864 = vsel %vm2776, %v2863, %v2859
      %v2865 = vlaneseq
      %v2866 = vshrl.u32 %v2865, 7
      %v2867 = vsub.s32 %v2778, %v2866
      %v2868 = vrot.slane %v2367, %v2867
      %v2869 = vsel %vm2783, %v2868, %v2864
      %v2870 = vlaneseq
      %v2871 = vshrl.u32 %v2870, 7
      %v2872 = vsub.s32 %v2785, %v2871
      %v2873 = vrot.slane %v2369, %v2872
      %v2874 = vsel %vm2790, %v2873, %v2869
      %v2875 = vlaneseq
      %v2876 = vshrl.u32 %v2875, 7
      %v2877 = vsub.s32 %v2792, %v2876
      %v2878 = vrot.slane %v2371, %v2877
      %v2879 = vsel %vm2797, %v2878, %v2874
      %v2880 = vlaneseq
      %v2881 = vshrl.u32 %v2880, 7
      %v2882 = vsub.s32 %v2799, %v2881
      %v2883 = vrot.slane %v2373, %v2882
      %v2884 = vsel %vm2804, %v2883, %v2879
      %v2885 = vlaneseq
      %v2886 = vshrl.u32 %v2885, 7
      %v2887 = vsub.s32 %v2567, %v2886
      %v2888 = vrot.slane %v2375, %v2887
      %v2889 = vlaneseq
      %v2890 = vshrl.u32 %v2889, 7
      %v2891 = vsub.s32 %v2701, %v2890
      %v2892 = vrot.slane %v2377, %v2891
      %v2893 = vsel %vm2706, %v2892, %v2888
      %v2894 = vlaneseq
      %v2895 = vshrl.u32 %v2894, 7
      %v2896 = vsub.s32 %v2708, %v2895
      %v2897 = vrot.slane %v2379, %v2896
      %v2898 = vsel %vm2713, %v2897, %v2893
      %v2899 = vlaneseq
      %v2900 = vshrl.u32 %v2899, 7
      %v2901 = vsub.s32 %v2715, %v2900
      %v2902 = vrot.slane %v2381, %v2901
      %v2903 = vsel %vm2720, %v2902, %v2898
      %v2904 = vlaneseq
      %v2905 = vshrl.u32 %v2904, 7
      %v2906 = vsub.s32 %v2722, %v2905
      %v2907 = vrot.slane %v2383, %v2906
      %v2908 = vsel %vm2727, %v2907, %v2903
      %v2909 = vlaneseq
      %v2910 = vshrl.u32 %v2909, 7
      %v2911 = vsub.s32 %v2729, %v2910
      %v2912 = vrot.slane %v2385, %v2911
      %v2913 = vsel %vm2734, %v2912, %v2908
      %v2914 = vlaneseq
      %v2915 = vshrl.u32 %v2914, 7
      %v2916 = vsub.s32 %v2736, %v2915
      %v2917 = vrot.slane %v2387, %v2916
      %v2918 = vsel %vm2741, %v2917, %v2913
      %v2919 = vlaneseq
      %v2920 = vshrl.u32 %v2919, 7
      %v2921 = vsub.s32 %v2743, %v2920
      %v2922 = vrot.slane %v2389, %v2921
      %v2923 = vsel %vm2748, %v2922, %v2918
      %v2924 = vlaneseq
      %v2925 = vshrl.u32 %v2924, 7
      %v2926 = vsub.s32 %v2750, %v2925
      %v2927 = vrot.slane %v2391, %v2926
      %v2928 = vsel %vm2755, %v2927, %v2923
      %v2929 = vlaneseq
      %v2930 = vshrl.u32 %v2929, 7
      %v2931 = vsub.s32 %v2757, %v2930
      %v2932 = vrot.slane %v2393, %v2931
      %v2933 = vsel %vm2762, %v2932, %v2928
      %v2934 = vlaneseq
      %v2935 = vshrl.u32 %v2934, 7
      %v2936 = vsub.s32 %v2764, %v2935
      %v2937 = vrot.slane %v2395, %v2936
      %v2938 = vsel %vm2769, %v2937, %v2933
      %v2939 = vlaneseq
      %v2940 = vshrl.u32 %v2939, 7
      %v2941 = vsub.s32 %v2771, %v2940
      %v2942 = vrot.slane %v2397, %v2941
      %v2943 = vsel %vm2776, %v2942, %v2938
      %v2944 = vlaneseq
      %v2945 = vshrl.u32 %v2944, 7
      %v2946 = vsub.s32 %v2778, %v2945
      %v2947 = vrot.slane %v2399, %v2946
      %v2948 = vsel %vm2783, %v2947, %v2943
      %v2949 = vlaneseq
      %v2950 = vshrl.u32 %v2949, 7
      %v2951 = vsub.s32 %v2785, %v2950
      %v2952 = vrot.slane %v2401, %v2951
      %v2953 = vsel %vm2790, %v2952, %v2948
      %v2954 = vlaneseq
      %v2955 = vshrl.u32 %v2954, 7
      %v2956 = vsub.s32 %v2792, %v2955
      %v2957 = vrot.slane %v2403, %v2956
      %v2958 = vsel %vm2797, %v2957, %v2953
      %v2959 = vlaneseq
      %v2960 = vshrl.u32 %v2959, 7
      %v2961 = vsub.s32 %v2799, %v2960
      %v2962 = vrot.slane %v2405, %v2961
      %v2963 = vsel %vm2804, %v2962, %v2958
      %v2964 = vlaneseq
      %v2965 = vshrl.u32 %v2964, 7
      %v2966 = vsub.s32 %v2567, %v2965
      %v2967 = vrot.slane %v2407, %v2966
      %v2968 = vlaneseq
      %v2969 = vshrl.u32 %v2968, 7
      %v2970 = vsub.s32 %v2701, %v2969
      %v2971 = vrot.slane %v2409, %v2970
      %v2972 = vsel %vm2706, %v2971, %v2967
      %v2973 = vlaneseq
      %v2974 = vshrl.u32 %v2973, 7
      %v2975 = vsub.s32 %v2708, %v2974
      %v2976 = vrot.slane %v2411, %v2975
      %v2977 = vsel %vm2713, %v2976, %v2972
      %v2978 = vlaneseq
      %v2979 = vshrl.u32 %v2978, 7
      %v2980 = vsub.s32 %v2715, %v2979
      %v2981 = vrot.slane %v2413, %v2980
      %v2982 = vsel %vm2720, %v2981, %v2977
      %v2983 = vlaneseq
      %v2984 = vshrl.u32 %v2983, 7
      %v2985 = vsub.s32 %v2722, %v2984
      %v2986 = vrot.slane %v2415, %v2985
      %v2987 = vsel %vm2727, %v2986, %v2982
      %v2988 = vlaneseq
      %v2989 = vshrl.u32 %v2988, 7
      %v2990 = vsub.s32 %v2729, %v2989
      %v2991 = vrot.slane %v2417, %v2990
      %v2992 = vsel %vm2734, %v2991, %v2987
      %v2993 = vlaneseq
      %v2994 = vshrl.u32 %v2993, 7
      %v2995 = vsub.s32 %v2736, %v2994
      %v2996 = vrot.slane %v2419, %v2995
      %v2997 = vsel %vm2741, %v2996, %v2992
      %v2998 = vlaneseq
      %v2999 = vshrl.u32 %v2998, 7
      %v3000 = vsub.s32 %v2743, %v2999
      %v3001 = vrot.slane %v2421, %v3000
      %v3002 = vsel %vm2748, %v3001, %v2997
      %v3003 = vlaneseq
      %v3004 = vshrl.u32 %v3003, 7
      %v3005 = vsub.s32 %v2750, %v3004
      %v3006 = vrot.slane %v2423, %v3005
      %v3007 = vsel %vm2755, %v3006, %v3002
      %v3008 = vlaneseq
      %v3009 = vshrl.u32 %v3008, 7
      %v3010 = vsub.s32 %v2757, %v3009
      %v3011 = vrot.slane %v2425, %v3010
      %v3012 = vsel %vm2762, %v3011, %v3007
      %v3013 = vlaneseq
      %v3014 = vshrl.u32 %v3013, 7
      %v3015 = vsub.s32 %v2764, %v3014
      %v3016 = vrot.slane %v2427, %v3015
      %v3017 = vsel %vm2769, %v3016, %v3012
      %v3018 = vlaneseq
      %v3019 = vshrl.u32 %v3018, 7
      %v3020 = vsub.s32 %v2771, %v3019
      %v3021 = vrot.slane %v2429, %v3020
      %v3022 = vsel %vm2776, %v3021, %v3017
      %v3023 = vlaneseq
      %v3024 = vshrl.u32 %v3023, 7
      %v3025 = vsub.s32 %v2778, %v3024
      %v3026 = vrot.slane %v2431, %v3025
      %v3027 = vsel %vm2783, %v3026, %v3022
      %v3028 = vlaneseq
      %v3029 = vshrl.u32 %v3028, 7
      %v3030 = vsub.s32 %v2785, %v3029
      %v3031 = vrot.slane %v2433, %v3030
      %v3032 = vsel %vm2790, %v3031, %v3027
      %v3033 = vlaneseq
      %v3034 = vshrl.u32 %v3033, 7
      %v3035 = vsub.s32 %v2792, %v3034
      %v3036 = vrot.slane %v2435, %v3035
      %v3037 = vsel %vm2797, %v3036, %v3032
      %v3038 = vlaneseq
      %v3039 = vshrl.u32 %v3038, 7
      %v3040 = vsub.s32 %v2799, %v3039
      %v3041 = vrot.slane %v2437, %v3040
      %v3042 = vsel %vm2804, %v3041, %v3037
      %v3043 = vlaneseq
      %v3044 = vshrl.u32 %v3043, 7
      %v3045 = vsub.s32 %v2567, %v3044
      %v3046 = vrot.slane %v2439, %v3045
      %v3047 = vlaneseq
      %v3048 = vshrl.u32 %v3047, 7
      %v3049 = vsub.s32 %v2701, %v3048
      %v3050 = vrot.slane %v2441, %v3049
      %v3051 = vsel %vm2706, %v3050, %v3046
      %v3052 = vlaneseq
      %v3053 = vshrl.u32 %v3052, 7
      %v3054 = vsub.s32 %v2708, %v3053
      %v3055 = vrot.slane %v2443, %v3054
      %v3056 = vsel %vm2713, %v3055, %v3051
      %v3057 = vlaneseq
      %v3058 = vshrl.u32 %v3057, 7
      %v3059 = vsub.s32 %v2715, %v3058
      %v3060 = vrot.slane %v2445, %v3059
      %v3061 = vsel %vm2720, %v3060, %v3056
      %v3062 = vlaneseq
      %v3063 = vshrl.u32 %v3062, 7
      %v3064 = vsub.s32 %v2722, %v3063
      %v3065 = vrot.slane %v2447, %v3064
      %v3066 = vsel %vm2727, %v3065, %v3061
      %v3067 = vlaneseq
      %v3068 = vshrl.u32 %v3067, 7
      %v3069 = vsub.s32 %v2729, %v3068
      %v3070 = vrot.slane %v2449, %v3069
      %v3071 = vsel %vm2734, %v3070, %v3066
      %v3072 = vlaneseq
      %v3073 = vshrl.u32 %v3072, 7
      %v3074 = vsub.s32 %v2736, %v3073
      %v3075 = vrot.slane %v2451, %v3074
      %v3076 = vsel %vm2741, %v3075, %v3071
      %v3077 = vlaneseq
      %v3078 = vshrl.u32 %v3077, 7
      %v3079 = vsub.s32 %v2743, %v3078
      %v3080 = vrot.slane %v2453, %v3079
      %v3081 = vsel %vm2748, %v3080, %v3076
      %v3082 = vlaneseq
      %v3083 = vshrl.u32 %v3082, 7
      %v3084 = vsub.s32 %v2750, %v3083
      %v3085 = vrot.slane %v2455, %v3084
      %v3086 = vsel %vm2755, %v3085, %v3081
      %v3087 = vlaneseq
      %v3088 = vshrl.u32 %v3087, 7
      %v3089 = vsub.s32 %v2757, %v3088
      %v3090 = vrot.slane %v2457, %v3089
      %v3091 = vsel %vm2762, %v3090, %v3086
      %v3092 = vlaneseq
      %v3093 = vshrl.u32 %v3092, 7
      %v3094 = vsub.s32 %v2764, %v3093
      %v3095 = vrot.slane %v2459, %v3094
      %v3096 = vsel %vm2769, %v3095, %v3091
      %v3097 = vlaneseq
      %v3098 = vshrl.u32 %v3097, 7
      %v3099 = vsub.s32 %v2771, %v3098
      %v3100 = vrot.slane %v2461, %v3099
      %v3101 = vsel %vm2776, %v3100, %v3096
      %v3102 = vlaneseq
      %v3103 = vshrl.u32 %v3102, 7
      %v3104 = vsub.s32 %v2778, %v3103
      %v3105 = vrot.slane %v2463, %v3104
      %v3106 = vsel %vm2783, %v3105, %v3101
      %v3107 = vlaneseq
      %v3108 = vshrl.u32 %v3107, 7
      %v3109 = vsub.s32 %v2785, %v3108
      %v3110 = vrot.slane %v2465, %v3109
      %v3111 = vsel %vm2790, %v3110, %v3106
      %v3112 = vlaneseq
      %v3113 = vshrl.u32 %v3112, 7
      %v3114 = vsub.s32 %v2792, %v3113
      %v3115 = vrot.slane %v2467, %v3114
      %v3116 = vsel %vm2797, %v3115, %v3111
      %v3117 = vlaneseq
      %v3118 = vshrl.u32 %v3117, 7
      %v3119 = vsub.s32 %v2799, %v3118
      %v3120 = vrot.slane %v2469, %v3119
      %v3121 = vsel %vm2804, %v3120, %v3116
      %v3122 = vlaneseq
      %v3123 = vshrl.u32 %v3122, 7
      %v3124 = vsub.s32 %v2567, %v3123
      %v3125 = vrot.slane %v2471, %v3124
      %v3126 = vlaneseq
      %v3127 = vshrl.u32 %v3126, 7
      %v3128 = vsub.s32 %v2701, %v3127
      %v3129 = vrot.slane %v2473, %v3128
      %v3130 = vsel %vm2706, %v3129, %v3125
      %v3131 = vlaneseq
      %v3132 = vshrl.u32 %v3131, 7
      %v3133 = vsub.s32 %v2708, %v3132
      %v3134 = vrot.slane %v2475, %v3133
      %v3135 = vsel %vm2713, %v3134, %v3130
      %v3136 = vlaneseq
      %v3137 = vshrl.u32 %v3136, 7
      %v3138 = vsub.s32 %v2715, %v3137
      %v3139 = vrot.slane %v2477, %v3138
      %v3140 = vsel %vm2720, %v3139, %v3135
      %v3141 = vlaneseq
      %v3142 = vshrl.u32 %v3141, 7
      %v3143 = vsub.s32 %v2722, %v3142
      %v3144 = vrot.slane %v2479, %v3143
      %v3145 = vsel %vm2727, %v3144, %v3140
      %v3146 = vlaneseq
      %v3147 = vshrl.u32 %v3146, 7
      %v3148 = vsub.s32 %v2729, %v3147
      %v3149 = vrot.slane %v2481, %v3148
      %v3150 = vsel %vm2734, %v3149, %v3145
      %v3151 = vlaneseq
      %v3152 = vshrl.u32 %v3151, 7
      %v3153 = vsub.s32 %v2736, %v3152
      %v3154 = vrot.slane %v2483, %v3153
      %v3155 = vsel %vm2741, %v3154, %v3150
      %v3156 = vlaneseq
      %v3157 = vshrl.u32 %v3156, 7
      %v3158 = vsub.s32 %v2743, %v3157
      %v3159 = vrot.slane %v2485, %v3158
      %v3160 = vsel %vm2748, %v3159, %v3155
      %v3161 = vlaneseq
      %v3162 = vshrl.u32 %v3161, 7
      %v3163 = vsub.s32 %v2750, %v3162
      %v3164 = vrot.slane %v2487, %v3163
      %v3165 = vsel %vm2755, %v3164, %v3160
      %v3166 = vlaneseq
      %v3167 = vshrl.u32 %v3166, 7
      %v3168 = vsub.s32 %v2757, %v3167
      %v3169 = vrot.slane %v2489, %v3168
      %v3170 = vsel %vm2762, %v3169, %v3165
      %v3171 = vlaneseq
      %v3172 = vshrl.u32 %v3171, 7
      %v3173 = vsub.s32 %v2764, %v3172
      %v3174 = vrot.slane %v2491, %v3173
      %v3175 = vsel %vm2769, %v3174, %v3170
      %v3176 = vlaneseq
      %v3177 = vshrl.u32 %v3176, 7
      %v3178 = vsub.s32 %v2771, %v3177
      %v3179 = vrot.slane %v2493, %v3178
      %v3180 = vsel %vm2776, %v3179, %v3175
      %v3181 = vlaneseq
      %v3182 = vshrl.u32 %v3181, 7
      %v3183 = vsub.s32 %v2778, %v3182
      %v3184 = vrot.slane %v2495, %v3183
      %v3185 = vsel %vm2783, %v3184, %v3180
      %v3186 = vlaneseq
      %v3187 = vshrl.u32 %v3186, 7
      %v3188 = vsub.s32 %v2785, %v3187
      %v3189 = vrot.slane %v2497, %v3188
      %v3190 = vsel %vm2790, %v3189, %v3185
      %v3191 = vlaneseq
      %v3192 = vshrl.u32 %v3191, 7
      %v3193 = vsub.s32 %v2792, %v3192
      %v3194 = vrot.slane %v2499, %v3193
      %v3195 = vsel %vm2797, %v3194, %v3190
      %v3196 = vlaneseq
      %v3197 = vshrl.u32 %v3196, 7
      %v3198 = vsub.s32 %v2799, %v3197
      %v3199 = vrot.slane %v2501, %v3198
      %v3200 = vsel %vm2804, %v3199, %v3195
      %v3201 = vlaneseq
      %v3202 = vshrl.u32 %v3201, 7
      %v3203 = vsub.s32 %v2567, %v3202
      %v3204 = vrot.slane %v2503, %v3203
      %v3205 = vlaneseq
      %v3206 = vshrl.u32 %v3205, 7
      %v3207 = vsub.s32 %v2701, %v3206
      %v3208 = vrot.slane %v2505, %v3207
      %v3209 = vsel %vm2706, %v3208, %v3204
      %v3210 = vlaneseq
      %v3211 = vshrl.u32 %v3210, 7
      %v3212 = vsub.s32 %v2708, %v3211
      %v3213 = vrot.slane %v2507, %v3212
      %v3214 = vsel %vm2713, %v3213, %v3209
      %v3215 = vlaneseq
      %v3216 = vshrl.u32 %v3215, 7
      %v3217 = vsub.s32 %v2715, %v3216
      %v3218 = vrot.slane %v2509, %v3217
      %v3219 = vsel %vm2720, %v3218, %v3214
      %v3220 = vlaneseq
      %v3221 = vshrl.u32 %v3220, 7
      %v3222 = vsub.s32 %v2722, %v3221
      %v3223 = vrot.slane %v2511, %v3222
      %v3224 = vsel %vm2727, %v3223, %v3219
      %v3225 = vlaneseq
      %v3226 = vshrl.u32 %v3225, 7
      %v3227 = vsub.s32 %v2729, %v3226
      %v3228 = vrot.slane %v2513, %v3227
      %v3229 = vsel %vm2734, %v3228, %v3224
      %v3230 = vlaneseq
      %v3231 = vshrl.u32 %v3230, 7
      %v3232 = vsub.s32 %v2736, %v3231
      %v3233 = vrot.slane %v2515, %v3232
      %v3234 = vsel %vm2741, %v3233, %v3229
      %v3235 = vlaneseq
      %v3236 = vshrl.u32 %v3235, 7
      %v3237 = vsub.s32 %v2743, %v3236
      %v3238 = vrot.slane %v2517, %v3237
      %v3239 = vsel %vm2748, %v3238, %v3234
      %v3240 = vlaneseq
      %v3241 = vshrl.u32 %v3240, 7
      %v3242 = vsub.s32 %v2750, %v3241
      %v3243 = vrot.slane %v2519, %v3242
      %v3244 = vsel %vm2755, %v3243, %v3239
      %v3245 = vlaneseq
      %v3246 = vshrl.u32 %v3245, 7
      %v3247 = vsub.s32 %v2757, %v3246
      %v3248 = vrot.slane %v2521, %v3247
      %v3249 = vsel %vm2762, %v3248, %v3244
      %v3250 = vlaneseq
      %v3251 = vshrl.u32 %v3250, 7
      %v3252 = vsub.s32 %v2764, %v3251
      %v3253 = vrot.slane %v2523, %v3252
      %v3254 = vsel %vm2769, %v3253, %v3249
      %v3255 = vlaneseq
      %v3256 = vshrl.u32 %v3255, 7
      %v3257 = vsub.s32 %v2771, %v3256
      %v3258 = vrot.slane %v2525, %v3257
      %v3259 = vsel %vm2776, %v3258, %v3254
      %v3260 = vlaneseq
      %v3261 = vshrl.u32 %v3260, 7
      %v3262 = vsub.s32 %v2778, %v3261
      %v3263 = vrot.slane %v2527, %v3262
      %v3264 = vsel %vm2783, %v3263, %v3259
      %v3265 = vlaneseq
      %v3266 = vshrl.u32 %v3265, 7
      %v3267 = vsub.s32 %v2785, %v3266
      %v3268 = vrot.slane %v2529, %v3267
      %v3269 = vsel %vm2790, %v3268, %v3264
      %v3270 = vlaneseq
      %v3271 = vshrl.u32 %v3270, 7
      %v3272 = vsub.s32 %v2792, %v3271
      %v3273 = vrot.slane %v2531, %v3272
      %v3274 = vsel %vm2797, %v3273, %v3269
      %v3275 = vlaneseq
      %v3276 = vshrl.u32 %v3275, 7
      %v3277 = vsub.s32 %v2799, %v3276
      %v3278 = vrot.slane %v2533, %v3277
      %v3279 = vsel %vm2804, %v3278, %v3274
      %v3280 = vlaneseq
      %v3281 = vshrl.u32 %v3280, 7
      %v3282 = vsub.s32 %v2567, %v3281
      %v3283 = vrot.slane %v2535, %v3282
      %v3284 = vlaneseq
      %v3285 = vshrl.u32 %v3284, 7
      %v3286 = vsub.s32 %v2701, %v3285
      %v3287 = vrot.slane %v2537, %v3286
      %v3288 = vsel %vm2706, %v3287, %v3283
      %v3289 = vlaneseq
      %v3290 = vshrl.u32 %v3289, 7
      %v3291 = vsub.s32 %v2708, %v3290
      %v3292 = vrot.slane %v2539, %v3291
      %v3293 = vsel %vm2713, %v3292, %v3288
      %v3294 = vlaneseq
      %v3295 = vshrl.u32 %v3294, 7
      %v3296 = vsub.s32 %v2715, %v3295
      %v3297 = vrot.slane %v2541, %v3296
      %v3298 = vsel %vm2720, %v3297, %v3293
      %v3299 = vlaneseq
      %v3300 = vshrl.u32 %v3299, 7
      %v3301 = vsub.s32 %v2722, %v3300
      %v3302 = vrot.slane %v2543, %v3301
      %v3303 = vsel %vm2727, %v3302, %v3298
      %v3304 = vlaneseq
      %v3305 = vshrl.u32 %v3304, 7
      %v3306 = vsub.s32 %v2729, %v3305
      %v3307 = vrot.slane %v2545, %v3306
      %v3308 = vsel %vm2734, %v3307, %v3303
      %v3309 = vlaneseq
      %v3310 = vshrl.u32 %v3309, 7
      %v3311 = vsub.s32 %v2736, %v3310
      %v3312 = vrot.slane %v2547, %v3311
      %v3313 = vsel %vm2741, %v3312, %v3308
      %v3314 = vlaneseq
      %v3315 = vshrl.u32 %v3314, 7
      %v3316 = vsub.s32 %v2743, %v3315
      %v3317 = vrot.slane %v2549, %v3316
      %v3318 = vsel %vm2748, %v3317, %v3313
      %v3319 = vlaneseq
      %v3320 = vshrl.u32 %v3319, 7
      %v3321 = vsub.s32 %v2750, %v3320
      %v3322 = vrot.slane %v2551, %v3321
      %v3323 = vsel %vm2755, %v3322, %v3318
      %v3324 = vlaneseq
      %v3325 = vshrl.u32 %v3324, 7
      %v3326 = vsub.s32 %v2757, %v3325
      %v3327 = vrot.slane %v2553, %v3326
      %v3328 = vsel %vm2762, %v3327, %v3323
      %v3329 = vlaneseq
      %v3330 = vshrl.u32 %v3329, 7
      %v3331 = vsub.s32 %v2764, %v3330
      %v3332 = vrot.slane %v2555, %v3331
      %v3333 = vsel %vm2769, %v3332, %v3328
      %v3334 = vlaneseq
      %v3335 = vshrl.u32 %v3334, 7
      %v3336 = vsub.s32 %v2771, %v3335
      %v3337 = vrot.slane %v2557, %v3336
      %v3338 = vsel %vm2776, %v3337, %v3333
      %v3339 = vlaneseq
      %v3340 = vshrl.u32 %v3339, 7
      %v3341 = vsub.s32 %v2778, %v3340
      %v3342 = vrot.slane %v2559, %v3341
      %v3343 = vsel %vm2783, %v3342, %v3338
      %v3344 = vlaneseq
      %v3345 = vshrl.u32 %v3344, 7
      %v3346 = vsub.s32 %v2785, %v3345
      %v3347 = vrot.slane %v2561, %v3346
      %v3348 = vsel %vm2790, %v3347, %v3343
      %v3349 = vlaneseq
      %v3350 = vshrl.u32 %v3349, 7
      %v3351 = vsub.s32 %v2792, %v3350
      %v3352 = vrot.slane %v2563, %v3351
      %v3353 = vsel %vm2797, %v3352, %v3348
      %v3354 = vlaneseq
      %v3355 = vshrl.u32 %v3354, 7
      %v3356 = vsub.s32 %v2799, %v3355
      %v3357 = vrot.slane %v2565, %v3356
      %v3358 = vsel %vm2804, %v3357, %v3353
      %vm3359 = vcmask 1041409
      %v3360 = vsel %vm3359, %v2884, %v2805
      %vm3361 = vcmask 1042434
      %v3362 = vsel %vm3361, %v2963, %v3360
      %vm3363 = vcmask 1043459
      %v3364 = vsel %vm3363, %v3042, %v3362
      %vm3365 = vcmask 1044484
      %v3366 = vsel %vm3365, %v3121, %v3364
      %vm3367 = vcmask 1045509
      %v3368 = vsel %vm3367, %v3200, %v3366
      %vm3369 = vcmask 1046534
      %v3370 = vsel %vm3369, %v3279, %v3368
      %vm3371 = vcmask 1047559
      %v3372 = vsel %vm3371, %v3358, %v3370
      %v3374 = vsel %vm2568, %v3372, -1e+30
      %3375 = vmax.xlane.f32.xlu0 %v3374
      %v3376 = vpop.xlane.xlu0 %3375
      %v3377 = vsub.f32 %v3374, %v3376
      %v3378 = vmul.f32 %v3377, 1.442695
      %v3379 = vpow.pop %v3378
      %3380 = vadd.xlane.f32.xlu0 %v3379
      %v3381 = vpop.xlane.xlu0 %3380
      %v3382 = vrcp.pop %v3381
      %v3383 = vmul.f32 %v3379, %v3382
      %3384 = vst [vmem:[#allocation23] sm:$0xff] %v3383
      %v3386 = vcombine.high %v3383, %v3383
      %v3388 = vunpack.c.l.s4 1966171168
      %v3389 = vunpack.c.0.s8 %v3388
      %v3390 = vlaneseq
      %v3391 = vshrl.u32 %v3390, 7
      %v3392 = vsub.s32 %v3389, %v3391
      %v3393 = vrot.slane %v3383, %v3392
      %v3395 = vunpack.c.l.s4 1966171168
      %v3396 = vunpack.c.0.s8 %v3395
      %v3397 = vlaneseq
      %v3398 = vshrl.u32 %v3397, 7
      %v3399 = vsub.s32 %v3396, %v3398
      %v3400 = vrot.slane %v3386, %v3399
      %v3401 = vcombine.high %v3393, %v3393
      %v3402 = vcombine.high %v3400, %v3400
      %v3404 = vunpack.c.l.s4 1966171168
      %v3405 = vunpack.c.0.s8 %v3404
      %v3406 = vlaneseq
      %v3407 = vshrl.u32 %v3406, 7
      %v3408 = vsub.s32 %v3405, %v3407
      %v3409 = vrot.slane %v3393, %v3408
      %v3411 = vunpack.c.l.s4 1966171168
      %v3412 = vunpack.c.0.s8 %v3411
      %v3413 = vlaneseq
      %v3414 = vshrl.u32 %v3413, 7
      %v3415 = vsub.s32 %v3412, %v3414
      %v3416 = vrot.slane %v3400, %v3415
      %v3418 = vunpack.c.l.s4 1966171168
      %v3419 = vunpack.c.0.s8 %v3418
      %v3420 = vlaneseq
      %v3421 = vshrl.u32 %v3420, 7
      %v3422 = vsub.s32 %v3419, %v3421
      %v3423 = vrot.slane %v3401, %v3422
      %v3425 = vunpack.c.l.s4 1966171168
      %v3426 = vunpack.c.0.s8 %v3425
      %v3427 = vlaneseq
      %v3428 = vshrl.u32 %v3427, 7
      %v3429 = vsub.s32 %v3426, %v3428
      %v3430 = vrot.slane %v3402, %v3429
      %v3431 = vcombine.high %v3409, %v3409
      %v3432 = vcombine.high %v3416, %v3416
      %v3433 = vcombine.high %v3423, %v3423
      %v3434 = vcombine.high %v3430, %v3430
      %v3443 = vpack.c.bf16 %v3409, %v3409
      %v3444 = vpack.c.bf16 %v3423, %v3423
      %v3445 = vpack.c.bf16 %v3431, %v3431
      %v3446 = vpack.c.bf16 %v3433, %v3433
      %v3447 = vpack.c.bf16 %v3416, %v3416
      %v3448 = vpack.c.bf16 %v3430, %v3430
      %v3449 = vpack.c.bf16 %v3432, %v3432
      %v3450 = vpack.c.bf16 %v3434, %v3434
      %3451 = vmatprep.subr.bf16.mxu0 0
      %3452 = vmatpush1.bf16.msra.mxu0 %v973
      %3453 = vmatprep.subr.bf16.mxu0 0
      %3454 = vmatpush1.bf16.msra.mxu0 %v974
      %3455 = vmatprep.subr.bf16.mxu0 0
      %3456 = vmatpush1.bf16.msra.mxu0 %v975
      %3457 = vmatprep.subr.bf16.mxu0 0
      %3458 = vmatpush1.bf16.msra.mxu0 %v976
      %3459 = vmatprep.subr.bf16.mxu0 0
      %3460 = vmatpush1.bf16.msra.mxu0 %v977
      %3461 = vmatprep.subr.bf16.mxu0 0
      %3462 = vmatpush1.bf16.msra.mxu0 %v978
      %3463 = vmatprep.subr.bf16.mxu0 0
      %3464 = vmatpush1.bf16.msra.mxu0 %v979
      %3465 = vmatprep.subr.bf16.mxu0 0
      %3466 = vmatpush1.bf16.msra.mxu0 %v980
      %3467 = vmatprep.subr.bf16.mxu0 0
      %3468 = vmatpush1.bf16.msra.mxu0 0
      %3469 = vmatprep.subr.bf16.mxu0 0
      %3470 = vmatpush1.bf16.msra.mxu0 0
      %3471 = vmatprep.subr.bf16.mxu0 0
      %3472 = vmatpush1.bf16.msra.mxu0 0
      %3473 = vmatprep.subr.bf16.mxu0 0
      %3474 = vmatpush1.bf16.msra.mxu0 0
      %3475 = vmatprep.subr.bf16.mxu0 0
      %3476 = vmatpush1.bf16.msra.mxu0 0
      %3477 = vmatprep.subr.bf16.mxu0 0
      %3478 = vmatpush1.bf16.msra.mxu0 0
      %3479 = vmatprep.subr.bf16.mxu0 0
      %3480 = vmatpush1.bf16.msra.mxu0 0
      %3481 = vmatprep.subr.bf16.mxu0 0
      %3482 = vmatpush1.bf16.msra.mxu0 0
      %3483 = vmatprep.mubr.bf16.mxu0 0
      %3484 = vmatmul.mubr.bf16.gmra.mrb[0].mxu0 %v3443
      %v3485 = vpop.f32.mrb[0].mxu0
      %v3486 = vadd.f32 0.0, %v3485
      %v3487 = vpop.f32.mrb[0].mxu0
      %v3488 = vpop.f32.mrb[0].mxu0
      %v3489 = vpop.f32.mrb[0].mxu0
      %3490 = vdwg.mxu0
      %3491 = vmatprep.subr.bf16.mxu0 0
      %3492 = vmatpush1.bf16.msra.mxu0 %v981
      %3493 = vmatprep.subr.bf16.mxu0 0
      %3494 = vmatpush1.bf16.msra.mxu0 %v982
      %3495 = vmatprep.subr.bf16.mxu0 0
      %3496 = vmatpush1.bf16.msra.mxu0 %v983
      %3497 = vmatprep.subr.bf16.mxu0 0
      %3498 = vmatpush1.bf16.msra.mxu0 %v984
      %3499 = vmatprep.subr.bf16.mxu0 0
      %3500 = vmatpush1.bf16.msra.mxu0 %v985
      %3501 = vmatprep.subr.bf16.mxu0 0
      %3502 = vmatpush1.bf16.msra.mxu0 %v986
      %3503 = vmatprep.subr.bf16.mxu0 0
      %3504 = vmatpush1.bf16.msra.mxu0 %v987
      %3505 = vmatprep.subr.bf16.mxu0 0
      %3506 = vmatpush1.bf16.msra.mxu0 %v988
      %3507 = vmatprep.subr.bf16.mxu0 0
      %3508 = vmatpush1.bf16.msra.mxu0 0
      %3509 = vmatprep.subr.bf16.mxu0 0
      %3510 = vmatpush1.bf16.msra.mxu0 0
      %3511 = vmatprep.subr.bf16.mxu0 0
      %3512 = vmatpush1.bf16.msra.mxu0 0
      %3513 = vmatprep.subr.bf16.mxu0 0
      %3514 = vmatpush1.bf16.msra.mxu0 0
      %3515 = vmatprep.subr.bf16.mxu0 0
      %3516 = vmatpush1.bf16.msra.mxu0 0
      %3517 = vmatprep.subr.bf16.mxu0 0
      %3518 = vmatpush1.bf16.msra.mxu0 0
      %3519 = vmatprep.subr.bf16.mxu0 0
      %3520 = vmatpush1.bf16.msra.mxu0 0
      %3521 = vmatprep.subr.bf16.mxu0 0
      %3522 = vmatpush1.bf16.msra.mxu0 0
      %3523 = vmatprep.mubr.bf16.mxu0 0
      %3524 = vmatmul.mubr.bf16.gmra.mrb[0].mxu0 %v3444
      %v3525 = vpop.f32.mrb[0].mxu0
      %v3526 = vadd.f32 0.0, %v3525
      %v3527 = vpop.f32.mrb[0].mxu0
      %v3528 = vpop.f32.mrb[0].mxu0
      %v3529 = vpop.f32.mrb[0].mxu0
      %3530 = vdwg.mxu0
      %3531 = vmatprep.subr.bf16.mxu0 0
      %3532 = vmatpush1.bf16.msra.mxu0 %v989
      %3533 = vmatprep.subr.bf16.mxu0 0
      %3534 = vmatpush1.bf16.msra.mxu0 %v990
      %3535 = vmatprep.subr.bf16.mxu0 0
      %3536 = vmatpush1.bf16.msra.mxu0 %v991
      %3537 = vmatprep.subr.bf16.mxu0 0
      %3538 = vmatpush1.bf16.msra.mxu0 %v992
      %3539 = vmatprep.subr.bf16.mxu0 0
      %3540 = vmatpush1.bf16.msra.mxu0 %v993
      %3541 = vmatprep.subr.bf16.mxu0 0
      %3542 = vmatpush1.bf16.msra.mxu0 %v994
      %3543 = vmatprep.subr.bf16.mxu0 0
      %3544 = vmatpush1.bf16.msra.mxu0 %v995
      %3545 = vmatprep.subr.bf16.mxu0 0
      %3546 = vmatpush1.bf16.msra.mxu0 %v996
      %3547 = vmatprep.subr.bf16.mxu0 0
      %3548 = vmatpush1.bf16.msra.mxu0 0
      %3549 = vmatprep.subr.bf16.mxu0 0
      %3550 = vmatpush1.bf16.msra.mxu0 0
      %3551 = vmatprep.subr.bf16.mxu0 0
      %3552 = vmatpush1.bf16.msra.mxu0 0
      %3553 = vmatprep.subr.bf16.mxu0 0
      %3554 = vmatpush1.bf16.msra.mxu0 0
      %3555 = vmatprep.subr.bf16.mxu0 0
      %3556 = vmatpush1.bf16.msra.mxu0 0
      %3557 = vmatprep.subr.bf16.mxu0 0
      %3558 = vmatpush1.bf16.msra.mxu0 0
      %3559 = vmatprep.subr.bf16.mxu0 0
      %3560 = vmatpush1.bf16.msra.mxu0 0
      %3561 = vmatprep.subr.bf16.mxu0 0
      %3562 = vmatpush1.bf16.msra.mxu0 0
      %3563 = vmatprep.mubr.bf16.mxu0 0
      %3564 = vmatmul.mubr.bf16.gmra.mrb[0].mxu0 %v3445
      %v3565 = vpop.f32.mrb[0].mxu0
      %v3566 = vadd.f32 0.0, %v3565
      %v3567 = vpop.f32.mrb[0].mxu0
      %v3568 = vpop.f32.mrb[0].mxu0
      %v3569 = vpop.f32.mrb[0].mxu0
      %3570 = vdwg.mxu0
      %3571 = vmatprep.subr.bf16.mxu0 0
      %3572 = vmatpush1.bf16.msra.mxu0 %v997
      %3573 = vmatprep.subr.bf16.mxu0 0
      %3574 = vmatpush1.bf16.msra.mxu0 %v998
      %3575 = vmatprep.subr.bf16.mxu0 0
      %3576 = vmatpush1.bf16.msra.mxu0 %v999
      %3577 = vmatprep.subr.bf16.mxu0 0
      %3578 = vmatpush1.bf16.msra.mxu0 %v1000
      %3579 = vmatprep.subr.bf16.mxu0 0
      %3580 = vmatpush1.bf16.msra.mxu0 %v1001
      %3581 = vmatprep.subr.bf16.mxu0 0
      %3582 = vmatpush1.bf16.msra.mxu0 %v1002
      %3583 = vmatprep.subr.bf16.mxu0 0
      %3584 = vmatpush1.bf16.msra.mxu0 %v1003
      %3585 = vmatprep.subr.bf16.mxu0 0
      %3586 = vmatpush1.bf16.msra.mxu0 %v1004
      %3587 = vmatprep.subr.bf16.mxu0 0
      %3588 = vmatpush1.bf16.msra.mxu0 0
      %3589 = vmatprep.subr.bf16.mxu0 0
      %3590 = vmatpush1.bf16.msra.mxu0 0
      %3591 = vmatprep.subr.bf16.mxu0 0
      %3592 = vmatpush1.bf16.msra.mxu0 0
      %3593 = vmatprep.subr.bf16.mxu0 0
      %3594 = vmatpush1.bf16.msra.mxu0 0
      %3595 = vmatprep.subr.bf16.mxu0 0
      %3596 = vmatpush1.bf16.msra.mxu0 0
      %3597 = vmatprep.subr.bf16.mxu0 0
      %3598 = vmatpush1.bf16.msra.mxu0 0
      %3599 = vmatprep.subr.bf16.mxu0 0
      %3600 = vmatpush1.bf16.msra.mxu0 0
      %3601 = vmatprep.subr.bf16.mxu0 0
      %3602 = vmatpush1.bf16.msra.mxu0 0
      %3603 = vmatprep.mubr.bf16.mxu0 0
      %3604 = vmatmul.mubr.bf16.gmra.mrb[0].mxu0 %v3446
      %v3605 = vpop.f32.mrb[0].mxu0
      %v3606 = vadd.f32 0.0, %v3605
      %v3607 = vpop.f32.mrb[0].mxu0
      %v3608 = vpop.f32.mrb[0].mxu0
      %v3609 = vpop.f32.mrb[0].mxu0
      %3610 = vdwg.mxu0
      %3611 = vmatprep.subr.bf16.mxu0 0
      %3612 = vmatpush1.bf16.msra.mxu0 %v1005
      %3613 = vmatprep.subr.bf16.mxu0 0
      %3614 = vmatpush1.bf16.msra.mxu0 %v1006
      %3615 = vmatprep.subr.bf16.mxu0 0
      %3616 = vmatpush1.bf16.msra.mxu0 %v1007
      %3617 = vmatprep.subr.bf16.mxu0 0
      %3618 = vmatpush1.bf16.msra.mxu0 %v1008
      %3619 = vmatprep.subr.bf16.mxu0 0
      %3620 = vmatpush1.bf16.msra.mxu0 %v1009
      %3621 = vmatprep.subr.bf16.mxu0 0
      %3622 = vmatpush1.bf16.msra.mxu0 %v1010
      %3623 = vmatprep.subr.bf16.mxu0 0
      %3624 = vmatpush1.bf16.msra.mxu0 %v1011
      %3625 = vmatprep.subr.bf16.mxu0 0
      %3626 = vmatpush1.bf16.msra.mxu0 %v1012
      %3627 = vmatprep.subr.bf16.mxu0 0
      %3628 = vmatpush1.bf16.msra.mxu0 0
      %3629 = vmatprep.subr.bf16.mxu0 0
      %3630 = vmatpush1.bf16.msra.mxu0 0
      %3631 = vmatprep.subr.bf16.mxu0 0
      %3632 = vmatpush1.bf16.msra.mxu0 0
      %3633 = vmatprep.subr.bf16.mxu0 0
      %3634 = vmatpush1.bf16.msra.mxu0 0
      %3635 = vmatprep.subr.bf16.mxu0 0
      %3636 = vmatpush1.bf16.msra.mxu0 0
      %3637 = vmatprep.subr.bf16.mxu0 0
      %3638 = vmatpush1.bf16.msra.mxu0 0
      %3639 = vmatprep.subr.bf16.mxu0 0
      %3640 = vmatpush1.bf16.msra.mxu0 0
      %3641 = vmatprep.subr.bf16.mxu0 0
      %3642 = vmatpush1.bf16.msra.mxu0 0
      %3643 = vmatprep.mubr.bf16.mxu0 0
      %3644 = vmatmul.mubr.bf16.gmra.mrb[0].mxu0 %v3447
      %v3645 = vpop.f32.mrb[0].mxu0
      %v3646 = vadd.f32 0.0, %v3645
      %v3647 = vpop.f32.mrb[0].mxu0
      %v3648 = vpop.f32.mrb[0].mxu0
      %v3649 = vpop.f32.mrb[0].mxu0
      %3650 = vdwg.mxu0
      %3651 = vmatprep.subr.bf16.mxu0 0
      %3652 = vmatpush1.bf16.msra.mxu0 %v1013
      %3653 = vmatprep.subr.bf16.mxu0 0
      %3654 = vmatpush1.bf16.msra.mxu0 %v1014
      %3655 = vmatprep.subr.bf16.mxu0 0
      %3656 = vmatpush1.bf16.msra.mxu0 %v1015
      %3657 = vmatprep.subr.bf16.mxu0 0
      %3658 = vmatpush1.bf16.msra.mxu0 %v1016
      %3659 = vmatprep.subr.bf16.mxu0 0
      %3660 = vmatpush1.bf16.msra.mxu0 %v1017
      %3661 = vmatprep.subr.bf16.mxu0 0
      %3662 = vmatpush1.bf16.msra.mxu0 %v1018
      %3663 = vmatprep.subr.bf16.mxu0 0
      %3664 = vmatpush1.bf16.msra.mxu0 %v1019
      %3665 = vmatprep.subr.bf16.mxu0 0
      %3666 = vmatpush1.bf16.msra.mxu0 %v1020
      %3667 = vmatprep.subr.bf16.mxu0 0
      %3668 = vmatpush1.bf16.msra.mxu0 0
      %3669 = vmatprep.subr.bf16.mxu0 0
      %3670 = vmatpush1.bf16.msra.mxu0 0
      %3671 = vmatprep.subr.bf16.mxu0 0
      %3672 = vmatpush1.bf16.msra.mxu0 0
      %3673 = vmatprep.subr.bf16.mxu0 0
      %3674 = vmatpush1.bf16.msra.mxu0 0
      %3675 = vmatprep.subr.bf16.mxu0 0
      %3676 = vmatpush1.bf16.msra.mxu0 0
      %3677 = vmatprep.subr.bf16.mxu0 0
      %3678 = vmatpush1.bf16.msra.mxu0 0
      %3679 = vmatprep.subr.bf16.mxu0 0
      %3680 = vmatpush1.bf16.msra.mxu0 0
      %3681 = vmatprep.subr.bf16.mxu0 0
      %3682 = vmatpush1.bf16.msra.mxu0 0
      %3683 = vmatprep.mubr.bf16.mxu0 0
      %3684 = vmatmul.mubr.bf16.gmra.mrb[0].mxu0 %v3448
      %v3685 = vpop.f32.mrb[0].mxu0
      %v3686 = vadd.f32 0.0, %v3685
      %v3687 = vpop.f32.mrb[0].mxu0
      %v3688 = vpop.f32.mrb[0].mxu0
      %v3689 = vpop.f32.mrb[0].mxu0
      %3690 = vdwg.mxu0
      %3691 = vmatprep.subr.bf16.mxu0 0
      %3692 = vmatpush1.bf16.msra.mxu0 %v1021
      %3693 = vmatprep.subr.bf16.mxu0 0
      %3694 = vmatpush1.bf16.msra.mxu0 %v1022
      %3695 = vmatprep.subr.bf16.mxu0 0
      %3696 = vmatpush1.bf16.msra.mxu0 %v1023
      %3697 = vmatprep.subr.bf16.mxu0 0
      %3698 = vmatpush1.bf16.msra.mxu0 %v1024
      %3699 = vmatprep.subr.bf16.mxu0 0
      %3700 = vmatpush1.bf16.msra.mxu0 %v1025
      %3701 = vmatprep.subr.bf16.mxu0 0
      %3702 = vmatpush1.bf16.msra.mxu0 %v1026
      %3703 = vmatprep.subr.bf16.mxu0 0
      %3704 = vmatpush1.bf16.msra.mxu0 %v1027
      %3705 = vmatprep.subr.bf16.mxu0 0
      %3706 = vmatpush1.bf16.msra.mxu0 %v1028
      %3707 = vmatprep.subr.bf16.mxu0 0
      %3708 = vmatpush1.bf16.msra.mxu0 0
      %3709 = vmatprep.subr.bf16.mxu0 0
      %3710 = vmatpush1.bf16.msra.mxu0 0
      %3711 = vmatprep.subr.bf16.mxu0 0
      %3712 = vmatpush1.bf16.msra.mxu0 0
      %3713 = vmatprep.subr.bf16.mxu0 0
      %3714 = vmatpush1.bf16.msra.mxu0 0
      %3715 = vmatprep.subr.bf16.mxu0 0
      %3716 = vmatpush1.bf16.msra.mxu0 0
      %3717 = vmatprep.subr.bf16.mxu0 0
      %3718 = vmatpush1.bf16.msra.mxu0 0
      %3719 = vmatprep.subr.bf16.mxu0 0
      %3720 = vmatpush1.bf16.msra.mxu0 0
      %3721 = vmatprep.subr.bf16.mxu0 0
      %3722 = vmatpush1.bf16.msra.mxu0 0
      %3723 = vmatprep.mubr.bf16.mxu0 0
      %3724 = vmatmul.mubr.bf16.gmra.mrb[0].mxu0 %v3449
      %v3725 = vpop.f32.mrb[0].mxu0
      %v3726 = vadd.f32 0.0, %v3725
      %v3727 = vpop.f32.mrb[0].mxu0
      %v3728 = vpop.f32.mrb[0].mxu0
      %v3729 = vpop.f32.mrb[0].mxu0
      %3730 = vdwg.mxu0
      %3731 = vmatprep.subr.bf16.mxu0 0
      %3732 = vmatpush1.bf16.msra.mxu0 %v1029
      %3733 = vmatprep.subr.bf16.mxu0 0
      %3734 = vmatpush1.bf16.msra.mxu0 %v1030
      %3735 = vmatprep.subr.bf16.mxu0 0
      %3736 = vmatpush1.bf16.msra.mxu0 %v1031
      %3737 = vmatprep.subr.bf16.mxu0 0
      %3738 = vmatpush1.bf16.msra.mxu0 %v1032
      %3739 = vmatprep.subr.bf16.mxu0 0
      %3740 = vmatpush1.bf16.msra.mxu0 %v1033
      %3741 = vmatprep.subr.bf16.mxu0 0
      %3742 = vmatpush1.bf16.msra.mxu0 %v1034
      %3743 = vmatprep.subr.bf16.mxu0 0
      %3744 = vmatpush1.bf16.msra.mxu0 %v1035
      %3745 = vmatprep.subr.bf16.mxu0 0
      %3746 = vmatpush1.bf16.msra.mxu0 %v1036
      %3747 = vmatprep.subr.bf16.mxu0 0
      %3748 = vmatpush1.bf16.msra.mxu0 0
      %3749 = vmatprep.subr.bf16.mxu0 0
      %3750 = vmatpush1.bf16.msra.mxu0 0
      %3751 = vmatprep.subr.bf16.mxu0 0
      %3752 = vmatpush1.bf16.msra.mxu0 0
      %3753 = vmatprep.subr.bf16.mxu0 0
      %3754 = vmatpush1.bf16.msra.mxu0 0
      %3755 = vmatprep.subr.bf16.mxu0 0
      %3756 = vmatpush1.bf16.msra.mxu0 0
      %3757 = vmatprep.subr.bf16.mxu0 0
      %3758 = vmatpush1.bf16.msra.mxu0 0
      %3759 = vmatprep.subr.bf16.mxu0 0
      %3760 = vmatpush1.bf16.msra.mxu0 0
      %3761 = vmatprep.subr.bf16.mxu0 0
      %3762 = vmatpush1.bf16.msra.mxu0 0
      %3763 = vmatprep.mubr.bf16.mxu0 0
      %3764 = vmatmul.mubr.bf16.gmra.mrb[0].mxu0 %v3450
      %v3765 = vpop.f32.mrb[0].mxu0
      %v3766 = vadd.f32 0.0, %v3765
      %v3767 = vpop.f32.mrb[0].mxu0
      %v3768 = vpop.f32.mrb[0].mxu0
      %v3769 = vpop.f32.mrb[0].mxu0
      %3770 = vdwg.mxu0
      %v3771 = vpack.c.bf16 %v3486, %v3486
      %v3772 = vpack.c.bf16 %v3526, %v3526
      %v3773 = vpack.c.bf16 %v3566, %v3566
      %v3774 = vpack.c.bf16 %v3606, %v3606
      %v3775 = vpack.c.bf16 %v3646, %v3646
      %v3776 = vpack.c.bf16 %v3686, %v3686
      %v3777 = vpack.c.bf16 %v3726, %v3726
      %v3778 = vpack.c.bf16 %v3766, %v3766
      %v3779 = vld [vmem:[#allocation16] sm:$0xff]
      %v3780 = vld [vmem:[#allocation16 + $0x8] sm:$0xf]
      %v3781 = vld [vmem:[#allocation16 + $0xc] sm:$0xff]
      %v3782 = vld [vmem:[#allocation16 + $0x14] sm:$0xf]
      %v3783 = vld [vmem:[#allocation16 + $0x18] sm:$0xff]
      %v3784 = vld [vmem:[#allocation16 + $0x20] sm:$0xf]
      %v3785 = vld [vmem:[#allocation16 + $0x24] sm:$0xff]
      %v3786 = vld [vmem:[#allocation16 + $0x2c] sm:$0xf]
      %v3787 = vld [vmem:[#allocation16 + $0x30] sm:$0xff]
      %v3788 = vld [vmem:[#allocation16 + $0x38] sm:$0xf]
      %v3789 = vld [vmem:[#allocation16 + $0x3c] sm:$0xff]
      %v3790 = vld [vmem:[#allocation16 + $0x44] sm:$0xf]
      %v3791 = vld [vmem:[#allocation16 + $0x48] sm:$0xff]
      %v3792 = vld [vmem:[#allocation16 + $0x50] sm:$0xf]
      %v3793 = vld [vmem:[#allocation16 + $0x54] sm:$0xff]
      %v3794 = vld [vmem:[#allocation16 + $0x5c] sm:$0xf]
      %v3795 = vld [vmem:[#allocation16 + $0x60] sm:$0xff]
      %v3796 = vld [vmem:[#allocation16 + $0x68] sm:$0xf]
      %v3797 = vld [vmem:[#allocation16 + $0x6c] sm:$0xff]
      %v3798 = vld [vmem:[#allocation16 + $0x74] sm:$0xf]
      %v3799 = vld [vmem:[#allocation16 + $0x78] sm:$0xff]
      %v3800 = vld [vmem:[#allocation16 + $0x80] sm:$0xf]
      %v3801 = vld [vmem:[#allocation16 + $0x84] sm:$0xff]
      %v3802 = vld [vmem:[#allocation16 + $0x8c] sm:$0xf]
      %v3803 = vld [vmem:[#allocation16 + $0x90] sm:$0xff]
      %v3804 = vld [vmem:[#allocation16 + $0x98] sm:$0xf]
      %v3805 = vld [vmem:[#allocation16 + $0x9c] sm:$0xff]
      %v3806 = vld [vmem:[#allocation16 + $0xa4] sm:$0xf]
      %v3807 = vld [vmem:[#allocation16 + $0xa8] sm:$0xff]
      %v3808 = vld [vmem:[#allocation16 + $0xb0] sm:$0xf]
      %v3809 = vld [vmem:[#allocation16 + $0xb4] sm:$0xff]
      %v3810 = vld [vmem:[#allocation16 + $0xbc] sm:$0xf]
      %v3819 = vunpack.c.l.b16 %v3771
      %v3820 = vunpack.c.l.b16 %v3772
      %v3821 = vunpack.c.l.b16 %v3773
      %v3822 = vunpack.c.l.b16 %v3774
      %v3823 = vunpack.c.l.b16 %v3775
      %v3824 = vunpack.c.l.b16 %v3776
      %v3825 = vunpack.c.l.b16 %v3777
      %v3826 = vunpack.c.l.b16 %v3778
      %v3827 = vrot.slane %v3820, 7
      %v3828 = vsel %vm3359, %v3827, %v3819
      %v3829 = vrot.slane %v3821, 6
      %v3830 = vsel %vm3361, %v3829, %v3828
      %v3831 = vrot.slane %v3822, 5
      %v3832 = vsel %vm3363, %v3831, %v3830
      %v3833 = vrot.slane %v3823, 4
      %v3834 = vsel %vm3365, %v3833, %v3832
      %v3835 = vrot.slane %v3824, 3
      %v3836 = vsel %vm3367, %v3835, %v3834
      %v3837 = vrot.slane %v3825, 2
      %v3838 = vsel %vm3369, %v3837, %v3836
      %v3839 = vrot.slane %v3826, 1
      %v3840 = vsel %vm3371, %v3839, %v3838
      %v3841 = vpack.c.b16 %v3840, %v3840
      %v3875 = vunpack.c.l.b16 %v3779
      %v3876 = vunpack.c.h.b16 %v3779
      %v3877 = vunpack.c.l.b16 %v3780
      %v3878 = vunpack.c.l.b16 %v3781
      %v3879 = vunpack.c.h.b16 %v3781
      %v3880 = vunpack.c.l.b16 %v3782
      %v3881 = vunpack.c.l.b16 %v3783
      %v3882 = vunpack.c.h.b16 %v3783
      %v3883 = vunpack.c.l.b16 %v3784
      %v3884 = vunpack.c.l.b16 %v3785
      %v3885 = vunpack.c.h.b16 %v3785
      %v3886 = vunpack.c.l.b16 %v3786
      %v3887 = vunpack.c.l.b16 %v3787
      %v3888 = vunpack.c.h.b16 %v3787
      %v3889 = vunpack.c.l.b16 %v3788
      %v3890 = vunpack.c.l.b16 %v3789
      %v3891 = vunpack.c.h.b16 %v3789
      %v3892 = vunpack.c.l.b16 %v3790
      %v3893 = vunpack.c.l.b16 %v3791
      %v3894 = vunpack.c.h.b16 %v3791
      %v3895 = vunpack.c.l.b16 %v3792
      %v3896 = vunpack.c.l.b16 %v3793
      %v3897 = vunpack.c.h.b16 %v3793
      %v3898 = vunpack.c.l.b16 %v3794
      %v3899 = vunpack.c.l.b16 %v3795
      %v3900 = vunpack.c.h.b16 %v3795
      %v3901 = vunpack.c.l.b16 %v3796
      %v3902 = vunpack.c.l.b16 %v3797
      %v3903 = vunpack.c.h.b16 %v3797
      %v3904 = vunpack.c.l.b16 %v3798
      %v3905 = vunpack.c.l.b16 %v3799
      %v3906 = vunpack.c.h.b16 %v3799
      %v3907 = vunpack.c.l.b16 %v3800
      %v3908 = vunpack.c.l.b16 %v3801
      %v3909 = vunpack.c.h.b16 %v3801
      %v3910 = vunpack.c.l.b16 %v3802
      %v3911 = vunpack.c.l.b16 %v3803
      %v3912 = vunpack.c.h.b16 %v3803
      %v3913 = vunpack.c.l.b16 %v3804
      %v3914 = vunpack.c.l.b16 %v3805
      %v3915 = vunpack.c.h.b16 %v3805
      %v3916 = vunpack.c.l.b16 %v3806
      %v3917 = vunpack.c.l.b16 %v3807
      %v3918 = vunpack.c.h.b16 %v3807
      %v3919 = vunpack.c.l.b16 %v3808
      %v3920 = vunpack.c.l.b16 %v3809
      %v3921 = vunpack.c.h.b16 %v3809
      %v3922 = vunpack.c.l.b16 %v3810
      %v3923 = vpack.c.b16 %v3878, %v3875
      %v3924 = vpack.c.b16 %v3879, %v3876
      %v3925 = vpack.c.b16 %v3880, %v3877
      %v3926 = vpack.c.b16 %v3884, %v3881
      %v3927 = vpack.c.b16 %v3885, %v3882
      %v3928 = vpack.c.b16 %v3886, %v3883
      %v3929 = vpack.c.b16 %v3890, %v3887
      %v3930 = vpack.c.b16 %v3891, %v3888
      %v3931 = vpack.c.b16 %v3892, %v3889
      %v3932 = vpack.c.b16 %v3896, %v3893
      %v3933 = vpack.c.b16 %v3897, %v3894
      %v3934 = vpack.c.b16 %v3898, %v3895
      %v3935 = vpack.c.b16 %v3902, %v3899
      %v3936 = vpack.c.b16 %v3903, %v3900
      %v3937 = vpack.c.b16 %v3904, %v3901
      %v3938 = vpack.c.b16 %v3908, %v3905
      %v3939 = vpack.c.b16 %v3909, %v3906
      %v3940 = vpack.c.b16 %v3910, %v3907
      %v3941 = vpack.c.b16 %v3914, %v3911
      %v3942 = vpack.c.b16 %v3915, %v3912
      %v3943 = vpack.c.b16 %v3916, %v3913
      %v3944 = vpack.c.b16 %v3920, %v3917
      %v3945 = vpack.c.b16 %v3921, %v3918
      %v3946 = vpack.c.b16 %v3922, %v3919
      %3971 = vmatprep.subr.bf16.mxu0 %v3924
      %3972 = vmatpush1.bf16.msra.mxu0 %v3923
      %3973 = vmatprep.subr.bf16.mxu0 %v3927
      %3974 = vmatpush1.bf16.msra.mxu0 %v3926
      %3975 = vmatprep.subr.bf16.mxu0 %v3930
      %3976 = vmatpush1.bf16.msra.mxu0 %v3929
      %3977 = vmatprep.subr.bf16.mxu0 %v3933
      %3978 = vmatpush1.bf16.msra.mxu0 %v3932
      %3979 = vmatprep.subr.bf16.mxu0 %v3936
      %3980 = vmatpush1.bf16.msra.mxu0 %v3935
      %3981 = vmatprep.subr.bf16.mxu0 %v3939
      %3982 = vmatpush1.bf16.msra.mxu0 %v3938
      %3983 = vmatprep.subr.bf16.mxu0 %v3942
      %3984 = vmatpush1.bf16.msra.mxu0 %v3941
      %3985 = vmatprep.subr.bf16.mxu0 %v3945
      %3986 = vmatpush1.bf16.msra.mxu0 %v3944
      %3987 = vmatprep.subr.bf16.mxu0 0
      %3988 = vmatpush1.bf16.msra.mxu0 0
      %3989 = vmatprep.subr.bf16.mxu0 0
      %3990 = vmatpush1.bf16.msra.mxu0 0
      %3991 = vmatprep.subr.bf16.mxu0 0
      %3992 = vmatpush1.bf16.msra.mxu0 0
      %3993 = vmatprep.subr.bf16.mxu0 0
      %3994 = vmatpush1.bf16.msra.mxu0 0
      %3995 = vmatprep.subr.bf16.mxu0 0
      %3996 = vmatpush1.bf16.msra.mxu0 0
      %3997 = vmatprep.subr.bf16.mxu0 0
      %3998 = vmatpush1.bf16.msra.mxu0 0
      %3999 = vmatprep.subr.bf16.mxu0 0
      %4000 = vmatpush1.bf16.msra.mxu0 0
      %4001 = vmatprep.subr.bf16.mxu0 0
      %4002 = vmatpush1.bf16.msra.mxu0 0
      %4003 = vmatprep.mubr.bf16.mxu0 0
      %4004 = vmatmul.mubr.bf16.gmra.mrb[0].mxu0 %v3841
      %v4005 = vpop.f32.mrb[0].mxu0
      %v4006 = vadd.f32 0.0, %v4005
      %v4007 = vpop.f32.mrb[0].mxu0
      %v4008 = vadd.f32 0.0, %v4007
      %v4009 = vpop.f32.mrb[0].mxu0
      %v4010 = vpop.f32.mrb[0].mxu0
      %4011 = vdwg.mxu0
      %4012 = vmatprep.subr.bf16.mxu0 0
      %4013 = vmatpush1.bf16.msra.mxu0 %v3925
      %4014 = vmatprep.subr.bf16.mxu0 0
      %4015 = vmatpush1.bf16.msra.mxu0 %v3928
      %4016 = vmatprep.subr.bf16.mxu0 0
      %4017 = vmatpush1.bf16.msra.mxu0 %v3931
      %4018 = vmatprep.subr.bf16.mxu0 0
      %4019 = vmatpush1.bf16.msra.mxu0 %v3934
      %4020 = vmatprep.subr.bf16.mxu0 0
      %4021 = vmatpush1.bf16.msra.mxu0 %v3937
      %4022 = vmatprep.subr.bf16.mxu0 0
      %4023 = vmatpush1.bf16.msra.mxu0 %v3940
      %4024 = vmatprep.subr.bf16.mxu0 0
      %4025 = vmatpush1.bf16.msra.mxu0 %v3943
      %4026 = vmatprep.subr.bf16.mxu0 0
      %4027 = vmatpush1.bf16.msra.mxu0 %v3946
      %4028 = vmatprep.subr.bf16.mxu0 0
      %4029 = vmatpush1.bf16.msra.mxu0 0
      %4030 = vmatprep.subr.bf16.mxu0 0
      %4031 = vmatpush1.bf16.msra.mxu0 0
      %4032 = vmatprep.subr.bf16.mxu0 0
      %4033 = vmatpush1.bf16.msra.mxu0 0
      %4034 = vmatprep.subr.bf16.mxu0 0
      %4035 = vmatpush1.bf16.msra.mxu0 0
      %4036 = vmatprep.subr.bf16.mxu0 0
      %4037 = vmatpush1.bf16.msra.mxu0 0
      %4038 = vmatprep.subr.bf16.mxu0 0
      %4039 = vmatpush1.bf16.msra.mxu0 0
      %4040 = vmatprep.subr.bf16.mxu0 0
      %4041 = vmatpush1.bf16.msra.mxu0 0
      %4042 = vmatprep.subr.bf16.mxu0 0
      %4043 = vmatpush1.bf16.msra.mxu0 0
      %4044 = vmatprep.mubr.bf16.mxu0 0
      %4045 = vmatmul.mubr.bf16.gmra.mrb[0].mxu0 %v3841
      %v4046 = vpop.f32.mrb[0].mxu0
      %v4047 = vadd.f32 0.0, %v4046
      %v4048 = vpop.f32.mrb[0].mxu0
      %v4049 = vpop.f32.mrb[0].mxu0
      %v4050 = vpop.f32.mrb[0].mxu0
      %4051 = vdwg.mxu0
      %v4084 = vunpack.c.l.b16 %v179
      %v4085 = vunpack.c.h.b16 %v179
      %v4086 = vunpack.c.l.b16 %v180
      %v4087 = vunpack.c.l.b16 %v181
      %v4088 = vunpack.c.h.b16 %v181
      %v4089 = vunpack.c.l.b16 %v182
      %v4090 = vunpack.c.l.b16 %v183
      %v4091 = vunpack.c.h.b16 %v183
      %v4092 = vunpack.c.l.b16 %v184
      %v4093 = vunpack.c.l.b16 %v185
      %v4094 = vunpack.c.h.b16 %v185
      %v4095 = vunpack.c.l.b16 %v186
      %v4096 = vunpack.c.l.b16 %v187
      %v4097 = vunpack.c.h.b16 %v187
      %v4098 = vunpack.c.l.b16 %v188
      %v4099 = vunpack.c.l.b16 %v189
      %v4100 = vunpack.c.h.b16 %v189
      %v4101 = vunpack.c.l.b16 %v190
      %v4102 = vunpack.c.l.b16 %v191
      %v4103 = vunpack.c.h.b16 %v191
      %v4104 = vunpack.c.l.b16 %v192
      %v4105 = vunpack.c.l.b16 %v193
      %v4106 = vunpack.c.h.b16 %v193
      %v4107 = vunpack.c.l.b16 %v194
      %v4108 = vunpack.c.l.b16 %v195
      %v4109 = vunpack.c.h.b16 %v195
      %v4110 = vunpack.c.l.b16 %v196
      %v4111 = vunpack.c.l.b16 %v197
      %v4112 = vunpack.c.h.b16 %v197
      %v4113 = vunpack.c.l.b16 %v198
      %v4114 = vunpack.c.l.b16 %v199
      %v4115 = vunpack.c.h.b16 %v199
      %v4116 = vunpack.c.l.b16 %v200
      %v4117 = vunpack.c.l.b16 %v201
      %v4118 = vunpack.c.h.b16 %v201
      %v4119 = vunpack.c.l.b16 %v202
      %v4120 = vunpack.c.l.b16 %v203
      %v4121 = vunpack.c.h.b16 %v203
      %v4122 = vunpack.c.l.b16 %v204
      %v4123 = vunpack.c.l.b16 %v205
      %v4124 = vunpack.c.h.b16 %v205
      %v4125 = vunpack.c.l.b16 %v206
      %v4126 = vunpack.c.l.b16 %v207
      %v4127 = vunpack.c.h.b16 %v207
      %v4128 = vunpack.c.l.b16 %v208
      %v4129 = vunpack.c.l.b16 %v209
      %v4130 = vunpack.c.h.b16 %v209
      %v4131 = vunpack.c.l.b16 %v210
      %v4132 = vpack.c.b16 %v4087, %v4084
      %v4133 = vpack.c.b16 %v4088, %v4085
      %v4134 = vpack.c.b16 %v4089, %v4086
      %v4135 = vpack.c.b16 %v4093, %v4090
      %v4136 = vpack.c.b16 %v4094, %v4091
      %v4137 = vpack.c.b16 %v4095, %v4092
      %v4138 = vpack.c.b16 %v4099, %v4096
      %v4139 = vpack.c.b16 %v4100, %v4097
      %v4140 = vpack.c.b16 %v4101, %v4098
      %v4141 = vpack.c.b16 %v4105, %v4102
      %v4142 = vpack.c.b16 %v4106, %v4103
      %v4143 = vpack.c.b16 %v4107, %v4104
      %v4144 = vpack.c.b16 %v4111, %v4108
      %v4145 = vpack.c.b16 %v4112, %v4109
      %v4146 = vpack.c.b16 %v4113, %v4110
      %v4147 = vpack.c.b16 %v4117, %v4114
      %v4148 = vpack.c.b16 %v4118, %v4115
      %v4149 = vpack.c.b16 %v4119, %v4116
      %v4150 = vpack.c.b16 %v4123, %v4120
      %v4151 = vpack.c.b16 %v4124, %v4121
      %v4152 = vpack.c.b16 %v4125, %v4122
      %v4153 = vpack.c.b16 %v4129, %v4126
      %v4154 = vpack.c.b16 %v4130, %v4127
      %v4155 = vpack.c.b16 %v4131, %v4128
      %4180 = vmatprep.subr.bf16.mxu0 %v4133
      %4181 = vmatpush1.bf16.msra.mxu0 %v4132
      %4182 = vmatprep.subr.bf16.mxu0 %v4136
      %4183 = vmatpush1.bf16.msra.mxu0 %v4135
      %4184 = vmatprep.subr.bf16.mxu0 %v4139
      %4185 = vmatpush1.bf16.msra.mxu0 %v4138
      %4186 = vmatprep.subr.bf16.mxu0 %v4142
      %4187 = vmatpush1.bf16.msra.mxu0 %v4141
      %4188 = vmatprep.subr.bf16.mxu0 %v4145
      %4189 = vmatpush1.bf16.msra.mxu0 %v4144
      %4190 = vmatprep.subr.bf16.mxu0 %v4148
      %4191 = vmatpush1.bf16.msra.mxu0 %v4147
      %4192 = vmatprep.subr.bf16.mxu0 %v4151
      %4193 = vmatpush1.bf16.msra.mxu0 %v4150
      %4194 = vmatprep.subr.bf16.mxu0 %v4154
      %4195 = vmatpush1.bf16.msra.mxu0 %v4153
      %4196 = vmatprep.subr.bf16.mxu0 0
      %4197 = vmatpush1.bf16.msra.mxu0 0
      %4198 = vmatprep.subr.bf16.mxu0 0
      %4199 = vmatpush1.bf16.msra.mxu0 0
      %4200 = vmatprep.subr.bf16.mxu0 0
      %4201 = vmatpush1.bf16.msra.mxu0 0
      %4202 = vmatprep.subr.bf16.mxu0 0
      %4203 = vmatpush1.bf16.msra.mxu0 0
      %4204 = vmatprep.subr.bf16.mxu0 0
      %4205 = vmatpush1.bf16.msra.mxu0 0
      %4206 = vmatprep.subr.bf16.mxu0 0
      %4207 = vmatpush1.bf16.msra.mxu0 0
      %4208 = vmatprep.subr.bf16.mxu0 0
      %4209 = vmatpush1.bf16.msra.mxu0 0
      %4210 = vmatprep.subr.bf16.mxu0 0
      %4211 = vmatpush1.bf16.msra.mxu0 0
      %4212 = vmatprep.mubr.bf16.mxu0 0
      %4213 = vmatmul.mubr.bf16.gmra.mrb[0].mxu0 %v178
      %v4214 = vpop.f32.mrb[0].mxu0
      %v4215 = vadd.f32 %v4006, %v4214
      %v4216 = vpop.f32.mrb[0].mxu0
      %v4217 = vadd.f32 %v4008, %v4216
      %v4218 = vpop.f32.mrb[0].mxu0
      %v4219 = vpop.f32.mrb[0].mxu0
      %4220 = vdwg.mxu0
      %4221 = vmatprep.subr.bf16.mxu0 0
      %4222 = vmatpush1.bf16.msra.mxu0 %v4134
      %4223 = vmatprep.subr.bf16.mxu0 0
      %4224 = vmatpush1.bf16.msra.mxu0 %v4137
      %4225 = vmatprep.subr.bf16.mxu0 0
      %4226 = vmatpush1.bf16.msra.mxu0 %v4140
      %4227 = vmatprep.subr.bf16.mxu0 0
      %4228 = vmatpush1.bf16.msra.mxu0 %v4143
      %4229 = vmatprep.subr.bf16.mxu0 0
      %4230 = vmatpush1.bf16.msra.mxu0 %v4146
      %4231 = vmatprep.subr.bf16.mxu0 0
      %4232 = vmatpush1.bf16.msra.mxu0 %v4149
      %4233 = vmatprep.subr.bf16.mxu0 0
      %4234 = vmatpush1.bf16.msra.mxu0 %v4152
      %4235 = vmatprep.subr.bf16.mxu0 0
      %4236 = vmatpush1.bf16.msra.mxu0 %v4155
      %4237 = vmatprep.subr.bf16.mxu0 0
      %4238 = vmatpush1.bf16.msra.mxu0 0
      %4239 = vmatprep.subr.bf16.mxu0 0
      %4240 = vmatpush1.bf16.msra.mxu0 0
      %4241 = vmatprep.subr.bf16.mxu0 0
      %4242 = vmatpush1.bf16.msra.mxu0 0
      %4243 = vmatprep.subr.bf16.mxu0 0
      %4244 = vmatpush1.bf16.msra.mxu0 0
      %4245 = vmatprep.subr.bf16.mxu0 0
      %4246 = vmatpush1.bf16.msra.mxu0 0
      %4247 = vmatprep.subr.bf16.mxu0 0
      %4248 = vmatpush1.bf16.msra.mxu0 0
      %4249 = vmatprep.subr.bf16.mxu0 0
      %4250 = vmatpush1.bf16.msra.mxu0 0
      %4251 = vmatprep.subr.bf16.mxu0 0
      %4252 = vmatpush1.bf16.msra.mxu0 0
      %4253 = vmatprep.mubr.bf16.mxu0 0
      %4254 = vmatmul.mubr.bf16.gmra.mrb[0].mxu0 %v178
      %v4255 = vpop.f32.mrb[0].mxu0
      %v4256 = vadd.f32 %v4047, %v4255
      %v4257 = vpop.f32.mrb[0].mxu0
      %v4258 = vpop.f32.mrb[0].mxu0
      %v4259 = vpop.f32.mrb[0].mxu0
      %4260 = vdwg.mxu0
      %v4261 = vld [vmem:[%s10] sm:$0x7]
      %v4263 = vlaneseq
      %v4264 = vshrl.u32 %v4263, 7
      %v4265 = vsub.s32 0, %v4264
      %v4266 = vrot.slane %v4261, %v4265
      %v4267 = vlaneseq
      %v4268 = vshrl.u32 %v4267, 7
      %v4269 = vsub.s32 1, %v4268
      %v4270 = vrot.slane %v4261, %v4269
      %v4271 = vlaneseq
      %v4272 = vshrl.u32 %v4271, 7
      %v4273 = vsub.s32 2, %v4272
      %v4274 = vrot.slane %v4261, %v4273
      %v4278 = vadd.f32 %v4215, %v4266
      %v4279 = vadd.f32 %v4217, %v4270
      %v4280 = vadd.f32 %v4256, %v4274
      %v4281 = vadd.f32 %v4278, %v423
      %v4282 = vxor.u32 %v4281, 2147483648
      %v4283 = vmul.f32 %v4282, 1.442695
      %v4284 = vpow.pop %v4283
      %v4285 = vadd.f32 %v4284, 1.0
      %v4286 = vrcp.pop %v4285
      %v4287 = vmul.f32 1.0, %v4286
      %v4288 = vadd.f32 %v4279, %v425
      %v4289 = vxor.u32 %v4288, 2147483648
      %v4290 = vmul.f32 %v4289, 1.442695
      %v4291 = vpow.pop %v4290
      %v4292 = vadd.f32 %v4291, 1.0
      %v4293 = vrcp.pop %v4292
      %v4294 = vmul.f32 1.0, %v4293
      %v4295 = vmul.f32 %v4287, %v464
      %v4296 = vadd.f32 %v4280, %v4295
      %v4297 = vtanh.pop %v4296
      %v4298 = vsub.f32 1.0, %v4294
      %v4299 = vmul.f32 %v4298, %v4297
      %v4300 = vmul.f32 %v4294, %v176
      %v4301 = vadd.f32 %v4299, %v4300
      %4302 = vst [vmem:[#allocation21] sm:$0xff] %v4301
      %v4303 = vpack.c.bf16 %v4301, %v4301
      %4304 = vst [vmem:[#allocation2] sm:$0xf] %v4303
      %v4305 = vpack.c.b16 %v3819, %v3819
      %v4306 = vpack.c.b16 %v3820, %v3820
      %v4307 = vpack.c.b16 %v3821, %v3821
      %v4308 = vpack.c.b16 %v3822, %v3822
      %v4309 = vpack.c.b16 %v3823, %v3823
      %v4310 = vpack.c.b16 %v3824, %v3824
      %v4311 = vpack.c.b16 %v3825, %v3825
      %v4312 = vpack.c.b16 %v3826, %v3826
      %v4313 = vunpack.c.l.b16 %v4305
      %v4314 = vunpack.c.l.b16 %v4306
      %v4315 = vunpack.c.l.b16 %v4307
      %v4316 = vunpack.c.l.b16 %v4308
      %v4317 = vunpack.c.l.b16 %v4309
      %v4318 = vunpack.c.l.b16 %v4310
      %v4319 = vunpack.c.l.b16 %v4311
      %v4320 = vunpack.c.l.b16 %v4312
      %v4321 = vrot.slane %v4314, 7
      %v4322 = vsel %vm3359, %v4321, %v4313
      %v4323 = vrot.slane %v4315, 6
      %v4324 = vsel %vm3361, %v4323, %v4322
      %v4325 = vrot.slane %v4316, 5
      %v4326 = vsel %vm3363, %v4325, %v4324
      %v4327 = vrot.slane %v4317, 4
      %v4328 = vsel %vm3365, %v4327, %v4326
      %v4329 = vrot.slane %v4318, 3
      %v4330 = vsel %vm3367, %v4329, %v4328
      %v4331 = vrot.slane %v4319, 2
      %v4332 = vsel %vm3369, %v4331, %v4330
      %v4333 = vrot.slane %v4320, 1
      %v4334 = vsel %vm3371, %v4333, %v4332
      %v4335 = vpack.c.b16 %v4334, %v4334
      %4337 = vst [vmem:[#allocation2 + $0x4] sm:$0xf] %v4335
      %vm4338 = vcmask 7168
      %4339 = vst.msk [vmem:[#allocation3] sm:$0xff] %vm4338, -1e+30
      %4340 = vst.msk [vmem:[#allocation4] sm:$0xff] %vm4338, 0.0
    $region97: #{tpu_custom_call.1} parent=1 // pred_fallthru
      _
    %v4341 = vld [vmem:[#allocation2] sm:$0xff]
    %v4342 = vld [vmem:[#allocation19] sm:$0xf]
    %v4343 = vld [vmem:[#allocation19 + $0x4] sm:$0xf]
    %v4344 = vld [vmem:[#allocation19 + $0x8] sm:$0xf]
    %v4345 = vld [vmem:[#allocation19 + $0xc] sm:$0xf]
    %v4346 = vld [vmem:[#allocation19 + $0x10] sm:$0xf]
    %v4347 = vld [vmem:[#allocation19 + $0x14] sm:$0xf]
    %v4348 = vld [vmem:[#allocation19 + $0x18] sm:$0xf]
    %v4349 = vld [vmem:[#allocation19 + $0x1c] sm:$0xf]
    %v4350 = vld [vmem:[#allocation19 + $0x20] sm:$0xf]
    %v4351 = vld [vmem:[#allocation19 + $0x24] sm:$0xf]
    %v4352 = vld [vmem:[#allocation19 + $0x28] sm:$0xf]
    %v4353 = vld [vmem:[#allocation19 + $0x2c] sm:$0xf]
    %v4354 = vld [vmem:[#allocation19 + $0x30] sm:$0xf]
    %v4355 = vld [vmem:[#allocation19 + $0x34] sm:$0xf]
    %v4356 = vld [vmem:[#allocation19 + $0x38] sm:$0xf]
    %v4357 = vld [vmem:[#allocation19 + $0x3c] sm:$0xf]
    %v4358 = vld [vmem:[#allocation19 + $0x40] sm:$0xf]
    %v4359 = vld [vmem:[#allocation19 + $0x44] sm:$0xf]
    %v4360 = vld [vmem:[#allocation19 + $0x48] sm:$0xf]
    %v4361 = vld [vmem:[#allocation19 + $0x4c] sm:$0xf]
    %v4362 = vld [vmem:[#allocation19 + $0x50] sm:$0xf]
    %v4363 = vld [vmem:[#allocation19 + $0x54] sm:$0xf]
    %v4364 = vld [vmem:[#allocation19 + $0x58] sm:$0xf]
    %v4365 = vld [vmem:[#allocation19 + $0x5c] sm:$0xf]
    %v4366 = vld [vmem:[#allocation19 + $0x60] sm:$0xf]
    %v4367 = vld [vmem:[#allocation19 + $0x64] sm:$0xf]
    %v4368 = vld [vmem:[#allocation19 + $0x68] sm:$0xf]
    %v4369 = vld [vmem:[#allocation19 + $0x6c] sm:$0xf]
    %v4370 = vld [vmem:[#allocation19 + $0x70] sm:$0xf]
    %v4371 = vld [vmem:[#allocation19 + $0x74] sm:$0xf]
    %v4372 = vld [vmem:[#allocation19 + $0x78] sm:$0xf]
    %v4373 = vld [vmem:[#allocation19 + $0x7c] sm:$0xf]
    %v4374 = vld [vmem:[%s13] sm:$0x1]
    %v4376 = vlaneseq
    %v4377 = vshrl.u32 %v4376, 7
    %v4378 = vsub.s32 0, %v4377
    %v4379 = vrot.slane %v4374, %v4378
    %v4382 = vunpack.c.l.b16 %v4341
    %v4383 = vunpack.c.h.b16 %v4341
    %v4384 = vpack.c.b16 %v4382, %v4382
    %v4385 = vpack.c.b16 %v4383, %v4383
    %v4420 = vunpack.c.l.b16 %v4342
    %v4421 = vunpack.c.l.b16 %v4343
    %v4422 = vunpack.c.l.b16 %v4344
    %v4423 = vunpack.c.l.b16 %v4345
    %v4424 = vunpack.c.l.b16 %v4346
    %v4425 = vunpack.c.l.b16 %v4347
    %v4426 = vunpack.c.l.b16 %v4348
    %v4427 = vunpack.c.l.b16 %v4349
    %v4428 = vunpack.c.l.b16 %v4350
    %v4429 = vunpack.c.l.b16 %v4351
    %v4430 = vunpack.c.l.b16 %v4352
    %v4431 = vunpack.c.l.b16 %v4353
    %v4432 = vunpack.c.l.b16 %v4354
    %v4433 = vunpack.c.l.b16 %v4355
    %v4434 = vunpack.c.l.b16 %v4356
    %v4435 = vunpack.c.l.b16 %v4357
    %v4436 = vunpack.c.l.b16 %v4358
    %v4437 = vunpack.c.l.b16 %v4359
    %v4438 = vunpack.c.l.b16 %v4360
    %v4439 = vunpack.c.l.b16 %v4361
    %v4440 = vunpack.c.l.b16 %v4362
    %v4441 = vunpack.c.l.b16 %v4363
    %v4442 = vunpack.c.l.b16 %v4364
    %v4443 = vunpack.c.l.b16 %v4365
    %v4444 = vunpack.c.l.b16 %v4366
    %v4445 = vunpack.c.l.b16 %v4367
    %v4446 = vunpack.c.l.b16 %v4368
    %v4447 = vunpack.c.l.b16 %v4369
    %v4448 = vunpack.c.l.b16 %v4370
    %v4449 = vunpack.c.l.b16 %v4371
    %v4450 = vunpack.c.l.b16 %v4372
    %v4451 = vunpack.c.l.b16 %v4373
    %v4452 = vpack.c.b16 %v4421, %v4420
    %v4453 = vpack.c.b16 %v4423, %v4422
    %v4454 = vpack.c.b16 %v4425, %v4424
    %v4455 = vpack.c.b16 %v4427, %v4426
    %v4456 = vpack.c.b16 %v4429, %v4428
    %v4457 = vpack.c.b16 %v4431, %v4430
    %v4458 = vpack.c.b16 %v4433, %v4432
    %v4459 = vpack.c.b16 %v4435, %v4434
    %v4460 = vpack.c.b16 %v4437, %v4436
    %v4461 = vpack.c.b16 %v4439, %v4438
    %v4462 = vpack.c.b16 %v4441, %v4440
    %v4463 = vpack.c.b16 %v4443, %v4442
    %v4464 = vpack.c.b16 %v4445, %v4444
    %v4465 = vpack.c.b16 %v4447, %v4446
    %v4466 = vpack.c.b16 %v4449, %v4448
    %v4467 = vpack.c.b16 %v4451, %v4450
    %4484 = vmatprep.subr.bf16.mxu0 0
    %4485 = vmatpush1.bf16.msra.mxu0 %v4452
    %4486 = vmatprep.subr.bf16.mxu0 0
    %4487 = vmatpush1.bf16.msra.mxu0 %v4453
    %4488 = vmatprep.subr.bf16.mxu0 0
    %4489 = vmatpush1.bf16.msra.mxu0 %v4454
    %4490 = vmatprep.subr.bf16.mxu0 0
    %4491 = vmatpush1.bf16.msra.mxu0 %v4455
    %4492 = vmatprep.subr.bf16.mxu0 0
    %4493 = vmatpush1.bf16.msra.mxu0 %v4456
    %4494 = vmatprep.subr.bf16.mxu0 0
    %4495 = vmatpush1.bf16.msra.mxu0 %v4457
    %4496 = vmatprep.subr.bf16.mxu0 0
    %4497 = vmatpush1.bf16.msra.mxu0 %v4458
    %4498 = vmatprep.subr.bf16.mxu0 0
    %4499 = vmatpush1.bf16.msra.mxu0 %v4459
    %4500 = vmatprep.subr.bf16.mxu0 0
    %4501 = vmatpush1.bf16.msra.mxu0 %v4460
    %4502 = vmatprep.subr.bf16.mxu0 0
    %4503 = vmatpush1.bf16.msra.mxu0 %v4461
    %4504 = vmatprep.subr.bf16.mxu0 0
    %4505 = vmatpush1.bf16.msra.mxu0 %v4462
    %4506 = vmatprep.subr.bf16.mxu0 0
    %4507 = vmatpush1.bf16.msra.mxu0 %v4463
    %4508 = vmatprep.subr.bf16.mxu0 0
    %4509 = vmatpush1.bf16.msra.mxu0 %v4464
    %4510 = vmatprep.subr.bf16.mxu0 0
    %4511 = vmatpush1.bf16.msra.mxu0 %v4465
    %4512 = vmatprep.subr.bf16.mxu0 0
    %4513 = vmatpush1.bf16.msra.mxu0 %v4466
    %4514 = vmatprep.subr.bf16.mxu0 0
    %4515 = vmatpush1.bf16.msra.mxu0 %v4467
    %4516 = vmatprep.mubr.bf16.mxu0 %v4385
    %4517 = vmatmul.mubr.bf16.gmra.mrb[0].mxu0 %v4384
    %v4518 = vpop.f32.mrb[0].mxu0
    %v4519 = vadd.f32 %v4379, %v4518
    %v4520 = vpop.f32.mrb[0].mxu0
    %v4521 = vpop.f32.mrb[0].mxu0
    %v4522 = vpop.f32.mrb[0].mxu0
    %4523 = vdwg.mxu0
    %4524 = vst [vmem:[#allocation20] sm:$0xff] %v4519
    %v4525 = vld [vmem:[#allocation3] sm:$0xff]
    %4526 = vmax.xlane.f32.xlu0 %v4519
    %v4527 = vpop.xlane.xlu0 %4526
    %v4528 = vmax.f32 %v4525, %v4527
    %v4529 = vld [vmem:[#allocation4] sm:$0xff]
    %v4530 = vsub.f32 %v4525, %v4528
    %v4531 = vmul.f32 %v4530, 1.442695
    %v4532 = vpow.pop %v4531
    %v4533 = vmul.f32 %v4529, %v4532
    %4535 = vset.pattern.permute.xlu0 0
    %4536 = vperm.xlu0 %4535, %v4528
    %v4537 = vpop.permute.xlu0 %4536
    %v4539 = vsub.f32 %v4519, %v4537
    %v4540 = vmul.f32 %v4539, 1.442695
    %v4541 = vpow.pop %v4540
    %4542 = vadd.xlane.f32.xlu0 %v4541
    %v4543 = vpop.xlane.xlu0 %4542
    %v4544 = vadd.f32 %v4533, %v4543
    %vm4545 = vcmask 7168
    %4546 = vst.msk [vmem:[#allocation4] sm:$0xff] %vm4545, %v4544
    %4547 = vst.msk [vmem:[#allocation3] sm:$0xff] %vm4545, %v4528
    // Predicated region
    $region98: #{tpu_custom_call.1} parent=1 // pred_check
      %p4548 = pneg %p172
    $region99: #{tpu_custom_call.1} parent=1 // pred_check_branch
      %4550 = sbr.rel (%p4548) target = $region101
    $region100: #{tpu_custom_call.1} parent=1 // pred_region
      %v4551 = vld [vmem:[#allocation3] sm:$0xff]
      %v4552 = vld [vmem:[#allocation4] sm:$0xff]
      %v4553 = vlog2.pop %v4552
      %v4554 = vmul.f32 %v4553, 0.6931472
      %v4555 = vadd.f32 %v4551, %v4554
      %4556 = vst.msk [vmem:[%s15] sm:$0xff] %vm4545, %v4555
    $region101: #{tpu_custom_call.1} parent=1 // pred_fallthru
      _
    // Predicated region
    $region102: #{tpu_custom_call.1} parent=1 // pred_check
      _
    $region103: #{tpu_custom_call.1} parent=1 // pred_check_branch
      %4558 = sbr.rel (0) target = $region105
    $region104: #{tpu_custom_call.1} parent=1 // pred_region
      %s4560 = ssub.s32 128, 128
      %4561 = vsyncadd [#allocation7], %s4560
      %s4563 = sshll.u32 [#allocation20], 4
      %s4564 = int_to_ptr.vmem [resolvable:$true] %s4563
      %4566 = dma.vmem_to_hbm [thread:$0]  %s4564, 128, %s14, [#allocation7]
    $region105: #{tpu_custom_call.1} parent=1 // pred_fallthru
      _
    // Predicated region
    $region106: #{tpu_custom_call.1} parent=1 // pred_check
      _
    $region107: #{tpu_custom_call.1} parent=1 // pred_check_branch
      %4568 = sbr.rel (0) target = $region109
    $region108: #{tpu_custom_call.1} parent=1 // pred_region
      _
    $region109: #{tpu_custom_call.1} parent=1 // pred_fallthru
      _
    // Predicated region
    $region110: #{tpu_custom_call.1} parent=1 // pred_check
      _
    $region111: #{tpu_custom_call.1} parent=1 // pred_check_branch
      %4570 = sbr.rel (0) target = $region113
    $region112: #{tpu_custom_call.1} parent=1 // pred_region
      %s4572 = ssub.s32 128, 128
      %4573 = vsyncadd [#allocation22], %s4572
      %s4575 = sshll.u32 [#allocation21], 4
      %s4576 = int_to_ptr.vmem [resolvable:$true] %s4575
      %4578 = dma.vmem_to_hbm [thread:$0]  %s4576, 128, %s16, [#allocation22]
    $region113: #{tpu_custom_call.1} parent=1 // pred_fallthru
      _
    // Predicated region
    $region114: #{tpu_custom_call.1} parent=1 // pred_check
      _
    $region115: #{tpu_custom_call.1} parent=1 // pred_check_branch
      %4580 = sbr.rel (0) target = $region117
    $region116: #{tpu_custom_call.1} parent=1 // pred_region
      %s4582 = ssub.s32 128, 128
      %4583 = vsyncadd [#allocation22], %s4582
      %s4585 = sshll.u32 [#allocation23], 4
      %s4586 = int_to_ptr.vmem [resolvable:$true] %s4585
      %4588 = dma.vmem_to_hbm [thread:$0]  %s4586, 128, %s17, [#allocation22]
    $region117: #{tpu_custom_call.1} parent=1 // pred_fallthru
      _
    // Predicated region
    $region118: #{tpu_custom_call.1} parent=1 // pred_check
      _
    $region119: #{tpu_custom_call.1} parent=1 // pred_check_branch
      %4590 = sbr.rel (0) target = $region121
    $region120: #{tpu_custom_call.1} parent=1 // pred_region
      %4591 = dma.done [#allocation7], 128
    $region121: #{tpu_custom_call.1} parent=1 // pred_fallthru
      _
    // Predicated region
    $region122: #{tpu_custom_call.1} parent=1 // pred_check
      _
    $region123: #{tpu_custom_call.1} parent=1 // pred_check_branch
      %4593 = sbr.rel (0) target = $region125
    $region124: #{tpu_custom_call.1} parent=1 // pred_region
      _
    $region125: #{tpu_custom_call.1} parent=1 // pred_fallthru
      _
    // Predicated region
    $region126: #{tpu_custom_call.1} parent=1 // pred_check
      _
    $region127: #{tpu_custom_call.1} parent=1 // pred_check_branch
      %4595 = sbr.rel (0) target = $region129
    $region128: #{tpu_custom_call.1} parent=1 // pred_region
      %4596 = dma.done [#allocation22], 128
    $region129: #{tpu_custom_call.1} parent=1 // pred_fallthru
      _
    // Predicated region
    $region130: #{tpu_custom_call.1} parent=1 // pred_check
      _
    $region131: #{tpu_custom_call.1} parent=1 // pred_check_branch
      %4598 = sbr.rel (0) target = $region133
    $region132: #{tpu_custom_call.1} parent=1 // pred_region
      %4599 = dma.done [#allocation22], 128
    $region133: #{tpu_custom_call.1} parent=1 // pred_fallthru
      _
    %4600 = vsyncpa [#allocation6], 1
    %4601 = vsyncpa [#allocation9], 1
    %4602 = vsyncpa [#allocation12], 1
    %4603 = vsyncpa [#allocation15], 1
    %4604 = vsyncpa [#allocation18], 1
    %4605 = vsyncpa [#allocation7], 1
    %4606 = vsyncpa [#allocation22], 1

</llo_original>
